<compile_context>
chip_gen: v7x
topology: tpu7x:2x2x1
jax: 0.10.0
libtpu: 0.0.40
codegen_flags: <defaults>
</compile_context>

<pallas_src>
import numpy as np
import jax
import jax.numpy as jnp
from jax.experimental import pallas as pl
from jax.experimental.pallas import tpu as pltpu

# Fuzzy membership parameters (a, b, c, d) from the reference module.
_FA, _FB, _FC, _FD = 0.0, 0.3, 0.7, 1.0
_INV_BA = 1.0 / (_FB - _FA)
_INV_DC = 1.0 / (_FD - _FC)
_BN_EPS = 1e-5
_LANES = 128


def _round_up(x, m):
    return (x + m - 1) // m * m


def _vmem_limit_bytes():
    # Stay within physical VMEM on every generation (v7x: 64 MiB / core).
    try:
        cap = int(pltpu.get_tpu_info().vmem_capacity_bytes)
    except Exception:
        cap = 64 << 20
    return int(min(cap // 2, 64 << 20))


_VMEM_LIMIT = _vmem_limit_bytes()


def _cparams():
    return pltpu.CompilerParams(
        dimension_semantics=("parallel", "parallel"),
        vmem_limit_bytes=_VMEM_LIMIT)


def _fuzzy(y):
    # Trapezoidal membership; reference semantics (no clamp at 1).
    return jnp.maximum(jnp.minimum((y - _FA) * _INV_BA, (_FD - y) * _INV_DC), 0.0)


def _pick_h_tile(h, rs, c):
    """Divisor T of H with M=T*rs >= 256 when possible, VMEM-bounded (v7x-safe)."""
    budget = 6 << 20
    best = 1
    for t in range(1, h + 1):
        if h % t:
            continue
        if (t * rs) % 8 and t != h:      # keep blocks sublane-aligned
            continue
        if (t + 2) * rs * c * 4 > budget:
            continue
        best = t
        if t * rs >= 256:
            break
    return best


# --------------------------- Pallas kernels --------------------------------

def _make_conv1_kernel(t, rs):
    """conv1 (pre-packed K) + bias + fuzzy; emits y1, per-tile halo rows, stats."""
    m1 = t * rs

    def kernel(p_ref, w_ref, b_ref, msk_ref, y_ref, hf_ref, hl_ref, st_ref):
        y = jnp.dot(p_ref[...], w_ref[...], preferred_element_type=jnp.float32)
        y = _fuzzy(y + b_ref[...])
        y_ref[...] = y
        hf_ref[...] = y[0:rs, :]             # first image-row of this tile
        hl_ref[...] = y[m1 - rs:m1, :]       # last image-row of this tile
        ym = y * msk_ref[...]                # exclude the 2 pad slots per row
        st_ref[...] = jnp.concatenate(
            [jnp.sum(ym, axis=0, keepdims=True),
             jnp.sum(ym * y, axis=0, keepdims=True)], axis=0)

    return kernel


def _conv1(patches, w1, b1, mask, t, rs, cout_p):
    n, mtot, kp = patches.shape
    nt = (mtot // rs) // t
    m1 = t * rs
    return pl.pallas_call(
        _make_conv1_kernel(t, rs),
        grid=(n, nt),
        in_specs=[
            pl.BlockSpec((None, m1, kp), lambda i, j: (i, j, 0)),
            pl.BlockSpec((kp, cout_p), lambda i, j: (0, 0)),
            pl.BlockSpec((1, cout_p), lambda i, j: (0, 0)),
            pl.BlockSpec((m1, 1), lambda i, j: (0, 0)),
        ],
        out_specs=(
            pl.BlockSpec((None, m1, cout_p), lambda i, j: (i, j, 0)),
            pl.BlockSpec((None, None, rs, cout_p), lambda i, j: (i, j, 0, 0)),
            pl.BlockSpec((None, None, rs, cout_p), lambda i, j: (i, j, 0, 0)),
            pl.BlockSpec((None, None, 2, cout_p), lambda i, j: (i, j, 0, 0)),
        ),
        out_shape=(
            jax.ShapeDtypeStruct((n, mtot, cout_p), jnp.float32),
            jax.ShapeDtypeStruct((n, nt, rs, cout_p), jnp.float32),
            jax.ShapeDtypeStruct((n, nt, rs, cout_p), jnp.float32),
            jax.ShapeDtypeStruct((n, nt, 2, cout_p), jnp.float32),
        ),
        compiler_params=_cparams(),
    )(patches, w1, b1, mask)


def _make_conv2_kernel(t, rs, c_p, cout_p):
    """Fused BN1+ReLU (+conv zero-padding) -> 3x3 conv (9 accumulated MXU dots)
    -> bias -> fuzzy; emits y2 + per-tile BN2 partial stats."""
    mo = t * rs

    def kernel(top_ref, body_ref, bot_ref, sc_ref, sh_ref, w_ref, b_ref,
               mwin_ref, mout_ref, y_ref, st_ref):
        j = pl.program_id(1)
        nt = pl.num_programs(1)
        sc = sc_ref[...]
        sh = sh_ref[...]
        # BN1 + ReLU fused on the input path; image-boundary halo rows -> 0.
        top = jnp.maximum(top_ref[...] * sc + sh, 0.0) * (j > 0).astype(jnp.float32)
        bot = jnp.maximum(bot_ref[...] * sc + sh, 0.0) * (j < nt - 1).astype(jnp.float32)
        body = jnp.maximum(body_ref[...] * sc + sh, 0.0)
        # Flat (W+2)-strided window; mask the per-row pad slots to exact zero.
        win = jnp.concatenate([top, body, bot], axis=0) * mwin_ref[...]
        aw = jnp.concatenate(
            [win.astype(jnp.bfloat16), jnp.zeros((2, c_p), jnp.bfloat16)], axis=0)
        # 3x3 conv = 9 shifted dots accumulated in f32 (no im2col materialization).
        acc = jnp.zeros((mo, cout_p), jnp.float32)
        for kh in range(3):
            for kw in range(3):
                s = kh * rs + kw
                acc = acc + jnp.dot(aw[s:s + mo, :], w_ref[kh * 3 + kw],
                                    preferred_element_type=jnp.float32)
        y = _fuzzy(acc + b_ref[...])
        y_ref[...] = y
        ym = y * mout_ref[...]               # exclude junk output slots
        st_ref[...] = jnp.concatenate(
            [jnp.sum(ym, axis=0, keepdims=True),
             jnp.sum(ym * y, axis=0, keepdims=True)], axis=0)

    return kernel


def _conv2(y1, hf, hl, sc1, sh1, w2, b2, mwin, mout, t, rs, c_p, cout_p):
    n, mtot, _ = y1.shape
    nt = (mtot // rs) // t
    mo = t * rs
    return pl.pallas_call(
        _make_conv2_kernel(t, rs, c_p, cout_p),
        grid=(n, nt),
        in_specs=[
            # top halo = last row of tile j-1 (masked when j == 0)
            pl.BlockSpec((None, None, rs, c_p),
                         lambda i, j: (i, jnp.maximum(j - 1, 0), 0, 0)),
            # body: this tile's rows, fetched exactly once
            pl.BlockSpec((None, mo, c_p), lambda i, j: (i, j, 0)),
            # bottom halo = first row of tile j+1 (masked when j == last)
            pl.BlockSpec((None, None, rs, c_p),
                         lambda i, j: (i, jnp.minimum(j + 1, nt - 1), 0, 0)),
            pl.BlockSpec((1, c_p), lambda i, j: (0, 0)),
            pl.BlockSpec((1, c_p), lambda i, j: (0, 0)),
            pl.BlockSpec((9, c_p, cout_p), lambda i, j: (0, 0, 0)),
            pl.BlockSpec((1, cout_p), lambda i, j: (0, 0)),
            pl.BlockSpec(((t + 2) * rs, 1), lambda i, j: (0, 0)),
            pl.BlockSpec((mo, 1), lambda i, j: (0, 0)),
        ],
        out_specs=(
            pl.BlockSpec((None, mo, cout_p), lambda i, j: (i, j, 0)),
            pl.BlockSpec((None, None, 2, cout_p), lambda i, j: (i, j, 0, 0)),
        ),
        out_shape=(
            jax.ShapeDtypeStruct((n, mtot, cout_p), jnp.float32),
            jax.ShapeDtypeStruct((n, nt, 2, cout_p), jnp.float32),
        ),
        compiler_params=_cparams(),
    )(hl, y1, hf, sc1, sh1, w2, b2, mwin, mout)


def _make_bn2_kernel(out_c):
    def kernel(y_ref, sc_ref, sh_ref, o_ref):
        y = y_ref[:, :out_c]                 # only real channels leave the chip
        o_ref[...] = jnp.maximum(y * sc_ref[...] + sh_ref[...], 0.0)
    return kernel


def _bn_relu_out(y2, sc2, sh2, t, rs, out_c):
    n, mtot, cp = y2.shape
    nt = (mtot // rs) // t
    mo = t * rs
    return pl.pallas_call(
        _make_bn2_kernel(out_c),
        grid=(n, nt),
        in_specs=[
            pl.BlockSpec((None, mo, cp), lambda i, j: (i, j, 0)),
            pl.BlockSpec((1, out_c), lambda i, j: (0, 0)),
            pl.BlockSpec((1, out_c), lambda i, j: (0, 0)),
        ],
        out_specs=pl.BlockSpec((None, mo, out_c), lambda i, j: (i, j, 0)),
        out_shape=jax.ShapeDtypeStruct((n, mtot, out_c), jnp.float32),
        compiler_params=_cparams(),
    )(y2, sc2, sh2)


# ------------------------------- JAX glue ----------------------------------

def _bn_scale_shift(stats, gamma_p, beta_p, count):
    # Tiny reduction of per-tile partials -> train-mode (biased) batch stats.
    s = jnp.sum(stats, axis=(0, 1))                    # (2, C)
    mean = s[0] / count
    var = jnp.maximum(s[1] / count - mean * mean, 0.0)
    scale = gamma_p * jax.lax.rsqrt(var + _BN_EPS)
    shift = beta_p - mean * scale
    return scale.reshape(1, -1), shift.reshape(1, -1)


def double_conv_forward(x_nchw, p, *, out_channels):
    n, cin, h, w = x_nchw.shape
    rs = w + 2                                  # flat row stride (W + 2 pad slots)
    kp = p["w1"].shape[0]
    c_p = p["w2"].shape[1]                      # padded channel count (128-mult)
    cout_p = p["w2"].shape[2]
    t = _pick_h_tile(h, rs, c_p)
    count = float(n * h * w)

    # conv1 input: im2col with K = 9*Cin packed into a single lane group,
    # laid out in the (W+2)-strided flat layout the downstream kernels use.
    x = jnp.transpose(x_nchw, (0, 2, 3, 1)).astype(jnp.bfloat16)
    xp = jnp.pad(x, ((0, 0), (1, 1), (1, 1), (0, 0)))
    slabs = [xp[:, dh:dh + h, dw:dw + w, :] for dh in range(3) for dw in range(3)]
    pat = jnp.concatenate(slabs, axis=-1)                       # (N,H,W,9*Cin)
    pat = jnp.pad(pat, ((0, 0), (0, 0), (1, 1), (0, 0)))        # add the 2 pad slots
    pat = pat.reshape(n, h * rs, 9 * cin)
    pat = jnp.pad(pat, ((0, 0), (0, 0), (0, kp - 9 * cin)))     # lane-pad K

    # Static validity masks for the flat layout (built once at trace time).
    row_in = np.array([0.0] + [1.0] * w + [0.0], np.float32)    # data at c in [1,W]
    row_out = np.array([1.0] * w + [0.0, 0.0], np.float32)      # outputs at c in [0,W)
    m_in_t = jnp.asarray(np.tile(row_in, t)[:, None])
    m_win = jnp.asarray(np.tile(row_in, t + 2)[:, None])
    m_out_t = jnp.asarray(np.tile(row_out, t)[:, None])

    # Layer 1: conv + fuzzy (+ BN1 partial sums), f32 output kept for precision.
    y1, hf, hl, st1 = _conv1(pat, p["w1"], p["b1"], m_in_t, t, rs, c_p)
    sc1, sh1 = _bn_scale_shift(st1, p["g1"], p["bt1"], count)

    # Layer 2: BN1+ReLU fused into the conv2 input path (no a1 intermediate).
    y2, st2 = _conv2(y1, hf, hl, sc1, sh1, p["w2"], p["b2"], m_win, m_out_t,
                     t, rs, c_p, cout_p)
    sc2, sh2 = _bn_scale_shift(st2, p["g2"], p["bt2"], count)

    # Final BN2 + ReLU, real channels only; cheap layout cleanup in XLA.
    out = _bn_relu_out(y2, sc2[:, :out_channels], sh2[:, :out_channels],
                       t, rs, out_channels)
    out = out.reshape(n, h, rs, out_channels)[:, :, :w, :]
    return jnp.transpose(out, (0, 3, 1, 2))     # NHWC -> NCHW


# --------------------------- parameter handling -----------------------------

def init_double_conv_params(key, in_channels, out_channels):
    """PyTorch-layout (OIHW) parameters, PyTorch-default-style init."""
    def conv_init(k, cin, cout):
        k1, k2 = jax.random.split(k)
        bound = 1.0 / float(np.sqrt(cin * 9))
        wgt = jax.random.uniform(k1, (cout, cin, 3, 3), jnp.float32, -bound, bound)
        b = jax.random.uniform(k2, (cout,), jnp.float32, -bound, bound)
        return wgt, b

    k1, k2 = jax.random.split(key)
    w1, b1 = conv_init(k1, in_channels, out_channels)
    w2, b2 = conv_init(k2, out_channels, out_channels)
    ones = jnp.ones((out_channels,), jnp.float32)
    zeros = jnp.zeros((out_channels,), jnp.float32)
    return dict(w1=w1, b1=b1, g1=ones, bt1=zeros,
                w2=w2, b2=b2, g2=ones, bt2=zeros)


def pack_double_conv_params(raw, in_channels, out_channels):
    """One-time relayout: conv1 -> [9*Cin (one lane group), Cout_p]; conv2 ->
    [tap, Cin_p, Cout_p]; all MXU operands bf16, epilogue params f32."""
    kp = _round_up(9 * in_channels, _LANES)
    c_p = _round_up(out_channels, _LANES)
    cout_p = c_p

    w1 = jnp.transpose(raw["w1"], (2, 3, 1, 0)).reshape(9 * in_channels, out_channels)
    w1 = jnp.pad(w1, ((0, kp - 9 * in_channels), (0, cout_p - out_channels)))
    w1 = w1.astype(jnp.bfloat16)

    w2 = jnp.transpose(raw["w2"], (2, 3, 1, 0)).reshape(9, out_channels, out_channels)
    w2 = jnp.pad(w2, ((0, 0), (0, c_p - out_channels), (0, cout_p - out_channels)))
    w2 = w2.astype(jnp.bfloat16)

    def pad_c(v, fill=0.0):
        return jnp.pad(v, (0, cout_p - out_channels),
                       constant_values=fill).astype(jnp.float32)

    return dict(
        w1=w1, b1=pad_c(raw["b1"]).reshape(1, -1),
        g1=pad_c(raw["g1"], 1.0), bt1=pad_c(raw["bt1"]),
        w2=w2, b2=pad_c(raw["b2"]).reshape(1, -1),
        g2=pad_c(raw["g2"], 1.0), bt2=pad_c(raw["bt2"]),
    )


# ----------------------------- pure-JAX reference ---------------------------

def _reference_double_conv(x_nchw, raw):
    """f32 reference; conv/MXU inputs get the same bf16 rounding the kernels
    apply, isolating kernel mechanics from the intended mixed-precision recipe."""
    def conv3x3(x, wgt, b):
        return jax.lax.conv_general_dilated(
            x, jnp.transpose(wgt, (2, 3, 1, 0)), (1, 1), "SAME",
            dimension_numbers=("NHWC", "HWIO", "NHWC")) + b

    def bn_relu(y, g, bt):
        mean = jnp.mean(y, axis=(0, 1, 2))
        var = jnp.mean(jnp.square(y - mean), axis=(0, 1, 2))
        return jnp.maximum((y - mean) * jax.lax.rsqrt(var + _BN_EPS) * g + bt, 0.0)

    def q(v):
        return v.astype(jnp.bfloat16).astype(jnp.float32)

    x = jnp.transpose(x_nchw, (0, 2, 3, 1))
    y = _fuzzy(conv3x3(q(x), q(raw["w1"]), raw["b1"]))
    a = bn_relu(y, raw["g1"], raw["bt1"])
    y = _fuzzy(conv3x3(q(a), q(raw["w2"]), raw["b2"]))
    a = bn_relu(y, raw["g2"], raw["bt2"])
    return jnp.transpose(a, (0, 3, 1, 2))


# --------------------------------- main --------------------------------------

if __name__ == "__main__":
    IN_C, OUT_C = 4, 64
    key = jax.random.PRNGKey(0)
    pkey, xkey, xkey2 = jax.random.split(key, 3)
    raw = init_double_conv_params(pkey, IN_C, OUT_C)
    packed = pack_double_conv_params(raw, IN_C, OUT_C)      # one-time relayout

    fwd = jax.jit(double_conv_forward, static_argnames=("out_channels",))

    # Shape implied by the module: batch=2, channels=4, 16x16 spatial.
    x = jax.random.normal(xkey, (2, IN_C, 16, 16), jnp.float32)
    out = jax.block_until_ready(fwd(x, packed, out_channels=OUT_C))
    assert out.shape == (2, OUT_C, 16, 16), out.shape
    assert bool(jnp.all(jnp.isfinite(out)))
    ref = _reference_double_conv(x, raw)
    err = float(jnp.max(jnp.abs(out - ref)))
    assert err < 5e-2, f"max abs err vs reference: {err}"

    # Second shape exercises the multi-tile + halo path (H > H_tile).
    x2 = jax.random.normal(xkey2, (1, IN_C, 32, 16), jnp.float32)
    out2 = jax.block_until_ready(fwd(x2, packed, out_channels=OUT_C))
    assert out2.shape == (1, OUT_C, 32, 16), out2.shape
    ref2 = _reference_double_conv(x2, raw)
    err2 = float(jnp.max(jnp.abs(out2 - ref2)))
    assert err2 < 5e-2, f"max abs err vs reference (tiled): {err2}"

    print("KERNEL_OK")
</pallas_src>

<mosaic_0001>
module attributes {stable_mosaic.version = 11 : i64} {
  func.func @kernel(%arg0: i32, %arg1: i32, %arg2: memref<1x288x128xbf16, #tpu.memory_space<vmem>>, %arg3: memref<128x128xbf16, #tpu.memory_space<vmem>>, %arg4: memref<1x128xf32, #tpu.memory_space<vmem>>, %arg5: memref<288x1xf32, #tpu.memory_space<vmem>>, %arg6: memref<1x288x128xf32, #tpu.memory_space<vmem>>, %arg7: memref<1x1x18x128xf32, #tpu.memory_space<vmem>>, %arg8: memref<1x1x18x128xf32, #tpu.memory_space<vmem>>, %arg9: memref<1x1x2x128xf32, #tpu.memory_space<vmem>>) attributes {dimension_semantics = [#tpu.dimension_semantics<parallel>, #tpu.dimension_semantics<parallel>], iteration_bounds = array<i64: 2, 1>, scalar_prefetch = 0 : i64, scratch_operands = 0 : i64, tpu.core_type = #tpu.core_type<tc>, window_params = [{transform_indices = @transform_0, window_bounds = array<i64: 1, 288, 128>}, {pipeline_mode = #tpu.pipeline_mode<synchronous>, transform_indices = @transform_1, window_bounds = array<i64: 128, 128>}, {pipeline_mode = #tpu.pipeline_mode<synchronous>, transform_indices = @transform_2, window_bounds = array<i64: 1, 128>}, {pipeline_mode = #tpu.pipeline_mode<synchronous>, transform_indices = @transform_3, window_bounds = array<i64: 288, 1>}, {transform_indices = @transform_4, window_bounds = array<i64: 1, 288, 128>}, {transform_indices = @transform_5, window_bounds = array<i64: 1, 1, 18, 128>}, {transform_indices = @transform_6, window_bounds = array<i64: 1, 1, 18, 128>}, {transform_indices = @transform_7, window_bounds = array<i64: 1, 1, 2, 128>}]} {
    %c0 = arith.constant 0 : index
    %c0_0 = arith.constant 0 : index
    %c0_1 = arith.constant 0 : index
    %0 = vector.load %arg2[%c0, %c0_0, %c0_1] : memref<1x288x128xbf16, #tpu.memory_space<vmem>>, vector<1x288x128xbf16>
    %1 = vector.shape_cast %0 : vector<1x288x128xbf16> to vector<288x128xbf16>
    %c0_2 = arith.constant 0 : index
    %c0_3 = arith.constant 0 : index
    %2 = vector.load %arg3[%c0_2, %c0_3] : memref<128x128xbf16, #tpu.memory_space<vmem>>, vector<128x128xbf16>
    %cst = arith.constant dense<0.000000e+00> : vector<288x128xf32>
    %3 = tpu.matmul %1, %2, %cst {dimension_numbers = #tpu.dot_dimension_numbers<[1], [0], [0], [1], [0, 0, 1, 1], [], []>} : vector<288x128xbf16>, vector<128x128xbf16>, vector<288x128xf32> -> vector<288x128xf32>
    %c0_4 = arith.constant 0 : index
    %c0_5 = arith.constant 0 : index
    %4 = vector.load %arg4[%c0_4, %c0_5] : memref<1x128xf32, #tpu.memory_space<vmem>>, vector<1x128xf32>
    %5 = vector.broadcast %4 : vector<1x128xf32> to vector<288x128xf32>
    %6 = arith.addf %3, %5 : vector<288x128xf32>
    %cst_6 = arith.constant 0.000000e+00 : f32
    %7 = vector.broadcast %cst_6 : f32 to vector<288x128xf32>
    %8 = arith.subf %6, %7 : vector<288x128xf32>
    %cst_7 = arith.constant 3.33333325 : f32
    %9 = vector.broadcast %cst_7 : f32 to vector<288x128xf32>
    %10 = arith.mulf %8, %9 : vector<288x128xf32>
    %cst_8 = arith.constant 1.000000e+00 : f32
    %11 = vector.broadcast %cst_8 : f32 to vector<288x128xf32>
    %12 = arith.subf %11, %6 : vector<288x128xf32>
    %cst_9 = arith.constant 3.33333325 : f32
    %13 = vector.broadcast %cst_9 : f32 to vector<288x128xf32>
    %14 = arith.mulf %12, %13 : vector<288x128xf32>
    %15 = arith.minimumf %10, %14 : vector<288x128xf32>
    %cst_10 = arith.constant 0.000000e+00 : f32
    %16 = vector.broadcast %cst_10 : f32 to vector<288x128xf32>
    %17 = arith.maximumf %15, %16 : vector<288x128xf32>
    %c0_11 = arith.constant 0 : index
    %c0_12 = arith.constant 0 : index
    %c0_13 = arith.constant 0 : index
    %18 = vector.load %arg6[%c0_11, %c0_12, %c0_13] : memref<1x288x128xf32, #tpu.memory_space<vmem>>, vector<1x288x128xf32>
    %19 = vector.shape_cast %18 : vector<1x288x128xf32> to vector<288x128xf32>
    %20 = vector.shape_cast %17 : vector<288x128xf32> to vector<1x288x128xf32>
    tpu.vector_store %arg6[%c0_11, %c0_12, %c0_13], %20 {strides = array<i32>} : memref<1x288x128xf32, #tpu.memory_space<vmem>>, vector<1x288x128xf32>,
    %21 = vector.extract_strided_slice %17 {offsets = [0, 0], sizes = [18, 128], strides = [1, 1]} : vector<288x128xf32> to vector<18x128xf32>
    %c0_14 = arith.constant 0 : index
    %c0_15 = arith.constant 0 : index
    %c0_16 = arith.constant 0 : index
    %c0_17 = arith.constant 0 : index
    %22 = vector.load %arg7[%c0_14, %c0_15, %c0_16, %c0_17] : memref<1x1x18x128xf32, #tpu.memory_space<vmem>>, vector<1x1x18x128xf32>
    %23 = vector.shape_cast %22 : vector<1x1x18x128xf32> to vector<18x128xf32>
    %24 = vector.shape_cast %21 : vector<18x128xf32> to vector<1x1x18x128xf32>
    tpu.vector_store %arg7[%c0_14, %c0_15, %c0_16, %c0_17], %24 {strides = array<i32>} : memref<1x1x18x128xf32, #tpu.memory_space<vmem>>, vector<1x1x18x128xf32>,
    %25 = vector.extract_strided_slice %17 {offsets = [270, 0], sizes = [18, 128], strides = [1, 1]} : vector<288x128xf32> to vector<18x128xf32>
    %c0_18 = arith.constant 0 : index
    %c0_19 = arith.constant 0 : index
    %c0_20 = arith.constant 0 : index
    %c0_21 = arith.constant 0 : index
    %26 = vector.load %arg8[%c0_18, %c0_19, %c0_20, %c0_21] : memref<1x1x18x128xf32, #tpu.memory_space<vmem>>, vector<1x1x18x128xf32>
    %27 = vector.shape_cast %26 : vector<1x1x18x128xf32> to vector<18x128xf32>
    %28 = vector.shape_cast %25 : vector<18x128xf32> to vector<1x1x18x128xf32>
    tpu.vector_store %arg8[%c0_18, %c0_19, %c0_20, %c0_21], %28 {strides = array<i32>} : memref<1x1x18x128xf32, #tpu.memory_space<vmem>>, vector<1x1x18x128xf32>,
    %c0_22 = arith.constant 0 : index
    %c0_23 = arith.constant 0 : index
    %29 = vector.load %arg5[%c0_22, %c0_23] : memref<288x1xf32, #tpu.memory_space<vmem>>, vector<288x1xf32>
    %30 = vector.broadcast %29 : vector<288x1xf32> to vector<288x128xf32>
    %31 = arith.mulf %17, %30 : vector<288x128xf32>
    %cst_24 = arith.constant dense<0.000000e+00> : vector<128xf32>
    %32 = vector.multi_reduction <add>, %31, %cst_24 [0] : vector<288x128xf32> to vector<128xf32>
    %33 = vector.shape_cast %32 : vector<128xf32> to vector<1x128xf32>
    %34 = arith.mulf %31, %17 : vector<288x128xf32>
    %cst_25 = arith.constant dense<0.000000e+00> : vector<128xf32>
    %35 = vector.multi_reduction <add>, %34, %cst_25 [0] : vector<288x128xf32> to vector<128xf32>
    %36 = vector.shape_cast %35 : vector<128xf32> to vector<1x128xf32>
    %37 = tpu.concatenate %33, %36 in 0 : vector<1x128xf32>, vector<1x128xf32> -> vector<2x128xf32>
    %c0_26 = arith.constant 0 : index
    %c0_27 = arith.constant 0 : index
    %c0_28 = arith.constant 0 : index
    %c0_29 = arith.constant 0 : index
    %38 = vector.load %arg9[%c0_26, %c0_27, %c0_28, %c0_29] : memref<1x1x2x128xf32, #tpu.memory_space<vmem>>, vector<1x1x2x128xf32>
    %39 = vector.shape_cast %38 : vector<1x1x2x128xf32> to vector<2x128xf32>
    %40 = vector.shape_cast %37 : vector<2x128xf32> to vector<1x1x2x128xf32>
    tpu.vector_store %arg9[%c0_26, %c0_27, %c0_28, %c0_29], %40 {strides = array<i32>} : memref<1x1x2x128xf32, #tpu.memory_space<vmem>>, vector<1x1x2x128xf32>,
    return
  }
  func.func @transform_0(%arg0: i32, %arg1: i32) -> (i32, i32, i32) {
    %c0_i32 = arith.constant 0 : i32
    %c0_i32_0 = arith.constant 0 : i32
    return %arg0, %arg1, %c0_i32 : i32, i32, i32
  }
  func.func @transform_1(%arg0: i32, %arg1: i32) -> (i32, i32) {
    %c0_i32 = arith.constant 0 : i32
    %c0_i32_0 = arith.constant 0 : i32
    %c0_i32_1 = arith.constant 0 : i32
    return %c0_i32, %c0_i32_0 : i32, i32
  }
  func.func @transform_2(%arg0: i32, %arg1: i32) -> (i32, i32) {
    %c0_i32 = arith.constant 0 : i32
    %c0_i32_0 = arith.constant 0 : i32
    %c0_i32_1 = arith.constant 0 : i32
    return %c0_i32, %c0_i32_0 : i32, i32
  }
  func.func @transform_3(%arg0: i32, %arg1: i32) -> (i32, i32) {
    %c0_i32 = arith.constant 0 : i32
    %c0_i32_0 = arith.constant 0 : i32
    %c0_i32_1 = arith.constant 0 : i32
    return %c0_i32, %c0_i32_0 : i32, i32
  }
  func.func @transform_4(%arg0: i32, %arg1: i32) -> (i32, i32, i32) {
    %c0_i32 = arith.constant 0 : i32
    %c0_i32_0 = arith.constant 0 : i32
    return %arg0, %arg1, %c0_i32 : i32, i32, i32
  }
  func.func @transform_5(%arg0: i32, %arg1: i32) -> (i32, i32, i32, i32) {
    %c0_i32 = arith.constant 0 : i32
    %c0_i32_0 = arith.constant 0 : i32
    %c0_i32_1 = arith.constant 0 : i32
    return %arg0, %arg1, %c0_i32, %c0_i32_0 : i32, i32, i32, i32
  }
  func.func @transform_6(%arg0: i32, %arg1: i32) -> (i32, i32, i32, i32) {
    %c0_i32 = arith.constant 0 : i32
    %c0_i32_0 = arith.constant 0 : i32
    %c0_i32_1 = arith.constant 0 : i32
    return %arg0, %arg1, %c0_i32, %c0_i32_0 : i32, i32, i32, i32
  }
  func.func @transform_7(%arg0: i32, %arg1: i32) -> (i32, i32, i32, i32) {
    %c0_i32 = arith.constant 0 : i32
    %c0_i32_0 = arith.constant 0 : i32
    %c0_i32_1 = arith.constant 0 : i32
    return %arg0, %arg1, %c0_i32, %c0_i32_0 : i32, i32, i32, i32
  }
}

module attributes {stable_mosaic.version = 11 : i64} {
  func.func @kernel(%arg0: i32, %arg1: i32, %arg2: memref<1x1x18x128xf32, #tpu.memory_space<vmem>>, %arg3: memref<1x288x128xf32, #tpu.memory_space<vmem>>, %arg4: memref<1x1x18x128xf32, #tpu.memory_space<vmem>>, %arg5: memref<1x128xf32, #tpu.memory_space<vmem>>, %arg6: memref<1x128xf32, #tpu.memory_space<vmem>>, %arg7: memref<9x128x128xbf16, #tpu.memory_space<vmem>>, %arg8: memref<1x128xf32, #tpu.memory_space<vmem>>, %arg9: memref<324x1xf32, #tpu.memory_space<vmem>>, %arg10: memref<288x1xf32, #tpu.memory_space<vmem>>, %arg11: memref<1x288x128xf32, #tpu.memory_space<vmem>>, %arg12: memref<1x1x2x128xf32, #tpu.memory_space<vmem>>) attributes {dimension_semantics = [#tpu.dimension_semantics<parallel>, #tpu.dimension_semantics<parallel>], iteration_bounds = array<i64: 2, 1>, scalar_prefetch = 0 : i64, scratch_operands = 0 : i64, tpu.core_type = #tpu.core_type<tc>, window_params = [{transform_indices = @transform_0, window_bounds = array<i64: 1, 1, 18, 128>}, {transform_indices = @transform_1, window_bounds = array<i64: 1, 288, 128>}, {transform_indices = @transform_2, window_bounds = array<i64: 1, 1, 18, 128>}, {pipeline_mode = #tpu.pipeline_mode<synchronous>, transform_indices = @transform_3, window_bounds = array<i64: 1, 128>}, {pipeline_mode = #tpu.pipeline_mode<synchronous>, transform_indices = @transform_4, window_bounds = array<i64: 1, 128>}, {pipeline_mode = #tpu.pipeline_mode<synchronous>, transform_indices = @transform_5, window_bounds = array<i64: 9, 128, 128>}, {pipeline_mode = #tpu.pipeline_mode<synchronous>, transform_indices = @transform_6, window_bounds = array<i64: 1, 128>}, {pipeline_mode = #tpu.pipeline_mode<synchronous>, transform_indices = @transform_7, window_bounds = array<i64: 324, 1>}, {pipeline_mode = #tpu.pipeline_mode<synchronous>, transform_indices = @transform_8, window_bounds = array<i64: 288, 1>}, {transform_indices = @transform_9, window_bounds = array<i64: 1, 288, 128>}, {transform_indices = @transform_10, window_bounds = array<i64: 1, 1, 2, 128>}]} {
    %c0 = arith.constant 0 : index
    %c0_0 = arith.constant 0 : index
    %0 = vector.load %arg5[%c0, %c0_0] : memref<1x128xf32, #tpu.memory_space<vmem>>, vector<1x128xf32>
    %c0_1 = arith.constant 0 : index
    %c0_2 = arith.constant 0 : index
    %1 = vector.load %arg6[%c0_1, %c0_2] : memref<1x128xf32, #tpu.memory_space<vmem>>, vector<1x128xf32>
    %c0_3 = arith.constant 0 : index
    %c0_4 = arith.constant 0 : index
    %c0_5 = arith.constant 0 : index
    %c0_6 = arith.constant 0 : index
    %2 = vector.load %arg2[%c0_3, %c0_4, %c0_5, %c0_6] : memref<1x1x18x128xf32, #tpu.memory_space<vmem>>, vector<1x1x18x128xf32>
    %3 = vector.shape_cast %2 : vector<1x1x18x128xf32> to vector<18x128xf32>
    %4 = vector.broadcast %0 : vector<1x128xf32> to vector<18x128xf32>
    %5 = arith.mulf %3, %4 : vector<18x128xf32>
    %6 = vector.broadcast %1 : vector<1x128xf32> to vector<18x128xf32>
    %7 = arith.addf %5, %6 : vector<18x128xf32>
    %cst = arith.constant 0.000000e+00 : f32
    %8 = vector.broadcast %cst : f32 to vector<18x128xf32>
    %9 = arith.maximumf %7, %8 : vector<18x128xf32>
    %c0_i32 = arith.constant 0 : i32
    %10 = arith.cmpi sgt, %arg1, %c0_i32 : i32
    %11 = arith.extui %10 : i1 to i32
    %12 = arith.sitofp %11 : i32 to f32
    %13 = vector.broadcast %12 : f32 to vector<18x128xf32>
    %14 = arith.mulf %9, %13 : vector<18x128xf32>
    %c0_7 = arith.constant 0 : index
    %c0_8 = arith.constant 0 : index
    %c0_9 = arith.constant 0 : index
    %c0_10 = arith.constant 0 : index
    %15 = vector.load %arg4[%c0_7, %c0_8, %c0_9, %c0_10] : memref<1x1x18x128xf32, #tpu.memory_space<vmem>>, vector<1x1x18x128xf32>
    %16 = vector.shape_cast %15 : vector<1x1x18x128xf32> to vector<18x128xf32>
    %17 = vector.broadcast %0 : vector<1x128xf32> to vector<18x128xf32>
    %18 = arith.mulf %16, %17 : vector<18x128xf32>
    %19 = vector.broadcast %1 : vector<1x128xf32> to vector<18x128xf32>
    %20 = arith.addf %18, %19 : vector<18x128xf32>
    %cst_11 = arith.constant 0.000000e+00 : f32
    %21 = vector.broadcast %cst_11 : f32 to vector<18x128xf32>
    %22 = arith.maximumf %20, %21 : vector<18x128xf32>
    %c0_i32_12 = arith.constant 0 : i32
    %23 = arith.cmpi slt, %arg1, %c0_i32_12 : i32
    %24 = arith.extui %23 : i1 to i32
    %25 = arith.sitofp %24 : i32 to f32
    %26 = vector.broadcast %25 : f32 to vector<18x128xf32>
    %27 = arith.mulf %22, %26 : vector<18x128xf32>
    %c0_13 = arith.constant 0 : index
    %c0_14 = arith.constant 0 : index
    %c0_15 = arith.constant 0 : index
    %28 = vector.load %arg3[%c0_13, %c0_14, %c0_15] : memref<1x288x128xf32, #tpu.memory_space<vmem>>, vector<1x288x128xf32>
    %29 = vector.shape_cast %28 : vector<1x288x128xf32> to vector<288x128xf32>
    %30 = vector.broadcast %0 : vector<1x128xf32> to vector<288x128xf32>
    %31 = arith.mulf %29, %30 : vector<288x128xf32>
    %32 = vector.broadcast %1 : vector<1x128xf32> to vector<288x128xf32>
    %33 = arith.addf %31, %32 : vector<288x128xf32>
    %cst_16 = arith.constant 0.000000e+00 : f32
    %34 = vector.broadcast %cst_16 : f32 to vector<288x128xf32>
    %35 = arith.maximumf %33, %34 : vector<288x128xf32>
    %36 = tpu.concatenate %14, %35, %27 in 0 : vector<18x128xf32>, vector<288x128xf32>, vector<18x128xf32> -> vector<324x128xf32>
    %c0_17 = arith.constant 0 : index
    %c0_18 = arith.constant 0 : index
    %37 = vector.load %arg9[%c0_17, %c0_18] : memref<324x1xf32, #tpu.memory_space<vmem>>, vector<324x1xf32>
    %38 = vector.broadcast %37 : vector<324x1xf32> to vector<324x128xf32>
    %39 = arith.mulf %36, %38 : vector<324x128xf32>
    %40 = arith.truncf %39 : vector<324x128xf32> to vector<324x128xbf16>
    %cst_19 = arith.constant 0.000000e+00 : bf16
    %41 = vector.broadcast %cst_19 : bf16 to vector<2x128xbf16>
    %42 = tpu.concatenate %40, %41 in 0 : vector<324x128xbf16>, vector<2x128xbf16> -> vector<326x128xbf16>
    %cst_20 = arith.constant 0.000000e+00 : f32
    %43 = vector.broadcast %cst_20 : f32 to vector<288x128xf32>
    %44 = vector.extract_strided_slice %42 {offsets = [0, 0], sizes = [288, 128], strides = [1, 1]} : vector<326x128xbf16> to vector<288x128xbf16>
    %c0_21 = arith.constant 0 : index
    %c0_22 = arith.constant 0 : index
    %c0_23 = arith.constant 0 : index
    %45 = vector.load %arg7[%c0_21, %c0_22, %c0_23] : memref<9x128x128xbf16, #tpu.memory_space<vmem>>, vector<1x128x128xbf16>
    %46 = vector.shape_cast %45 : vector<1x128x128xbf16> to vector<128x128xbf16>
    %cst_24 = arith.constant dense<0.000000e+00> : vector<288x128xf32>
    %47 = tpu.matmul %44, %46, %cst_24 {dimension_numbers = #tpu.dot_dimension_numbers<[1], [0], [0], [1], [0, 0, 1, 1], [], []>} : vector<288x128xbf16>, vector<128x128xbf16>, vector<288x128xf32> -> vector<288x128xf32>
    %48 = arith.addf %43, %47 : vector<288x128xf32>
    %49 = vector.extract_strided_slice %42 {offsets = [1, 0], sizes = [288, 128], strides = [1, 1]} : vector<326x128xbf16> to vector<288x128xbf16>
    %c1 = arith.constant 1 : index
    %c0_25 = arith.constant 0 : index
    %c0_26 = arith.constant 0 : index
    %50 = vector.load %arg7[%c1, %c0_25, %c0_26] : memref<9x128x128xbf16, #tpu.memory_space<vmem>>, vector<1x128x128xbf16>
    %51 = vector.shape_cast %50 : vector<1x128x128xbf16> to vector<128x128xbf16>
    %cst_27 = arith.constant dense<0.000000e+00> : vector<288x128xf32>
    %52 = tpu.matmul %49, %51, %cst_27 {dimension_numbers = #tpu.dot_dimension_numbers<[1], [0], [0], [1], [0, 0, 1, 1], [], []>} : vector<288x128xbf16>, vector<128x128xbf16>, vector<288x128xf32> -> vector<288x128xf32>
    %53 = arith.addf %48, %52 : vector<288x128xf32>
    %54 = vector.extract_strided_slice %42 {offsets = [2, 0], sizes = [288, 128], strides = [1, 1]} : vector<326x128xbf16> to vector<288x128xbf16>
    %c2 = arith.constant 2 : index
    %c0_28 = arith.constant 0 : index
    %c0_29 = arith.constant 0 : index
    %55 = vector.load %arg7[%c2, %c0_28, %c0_29] : memref<9x128x128xbf16, #tpu.memory_space<vmem>>, vector<1x128x128xbf16>
    %56 = vector.shape_cast %55 : vector<1x128x128xbf16> to vector<128x128xbf16>
    %cst_30 = arith.constant dense<0.000000e+00> : vector<288x128xf32>
    %57 = tpu.matmul %54, %56, %cst_30 {dimension_numbers = #tpu.dot_dimension_numbers<[1], [0], [0], [1], [0, 0, 1, 1], [], []>} : vector<288x128xbf16>, vector<128x128xbf16>, vector<288x128xf32> -> vector<288x128xf32>
    %58 = arith.addf %53, %57 : vector<288x128xf32>
    %59 = vector.extract_strided_slice %42 {offsets = [18, 0], sizes = [288, 128], strides = [1, 1]} : vector<326x128xbf16> to vector<288x128xbf16>
    %c3 = arith.constant 3 : index
    %c0_31 = arith.constant 0 : index
    %c0_32 = arith.constant 0 : index
    %60 = vector.load %arg7[%c3, %c0_31, %c0_32] : memref<9x128x128xbf16, #tpu.memory_space<vmem>>, vector<1x128x128xbf16>
    %61 = vector.shape_cast %60 : vector<1x128x128xbf16> to vector<128x128xbf16>
    %cst_33 = arith.constant dense<0.000000e+00> : vector<288x128xf32>
    %62 = tpu.matmul %59, %61, %cst_33 {dimension_numbers = #tpu.dot_dimension_numbers<[1], [0], [0], [1], [0, 0, 1, 1], [], []>} : vector<288x128xbf16>, vector<128x128xbf16>, vector<288x128xf32> -> vector<288x128xf32>
    %63 = arith.addf %58, %62 : vector<288x128xf32>
    %64 = vector.extract_strided_slice %42 {offsets = [19, 0], sizes = [288, 128], strides = [1, 1]} : vector<326x128xbf16> to vector<288x128xbf16>
    %c4 = arith.constant 4 : index
    %c0_34 = arith.constant 0 : index
    %c0_35 = arith.constant 0 : index
    %65 = vector.load %arg7[%c4, %c0_34, %c0_35] : memref<9x128x128xbf16, #tpu.memory_space<vmem>>, vector<1x128x128xbf16>
    %66 = vector.shape_cast %65 : vector<1x128x128xbf16> to vector<128x128xbf16>
    %cst_36 = arith.constant dense<0.000000e+00> : vector<288x128xf32>
    %67 = tpu.matmul %64, %66, %cst_36 {dimension_numbers = #tpu.dot_dimension_numbers<[1], [0], [0], [1], [0, 0, 1, 1], [], []>} : vector<288x128xbf16>, vector<128x128xbf16>, vector<288x128xf32> -> vector<288x128xf32>
    %68 = arith.addf %63, %67 : vector<288x128xf32>
    %69 = vector.extract_strided_slice %42 {offsets = [20, 0], sizes = [288, 128], strides = [1, 1]} : vector<326x128xbf16> to vector<288x128xbf16>
    %c5 = arith.constant 5 : index
    %c0_37 = arith.constant 0 : index
    %c0_38 = arith.constant 0 : index
    %70 = vector.load %arg7[%c5, %c0_37, %c0_38] : memref<9x128x128xbf16, #tpu.memory_space<vmem>>, vector<1x128x128xbf16>
    %71 = vector.shape_cast %70 : vector<1x128x128xbf16> to vector<128x128xbf16>
    %cst_39 = arith.constant dense<0.000000e+00> : vector<288x128xf32>
    %72 = tpu.matmul %69, %71, %cst_39 {dimension_numbers = #tpu.dot_dimension_numbers<[1], [0], [0], [1], [0, 0, 1, 1], [], []>} : vector<288x128xbf16>, vector<128x128xbf16>, vector<288x128xf32> -> vector<288x128xf32>
    %73 = arith.addf %68, %72 : vector<288x128xf32>
    %74 = vector.extract_strided_slice %42 {offsets = [36, 0], sizes = [288, 128], strides = [1, 1]} : vector<326x128xbf16> to vector<288x128xbf16>
    %c6 = arith.constant 6 : index
    %c0_40 = arith.constant 0 : index
    %c0_41 = arith.constant 0 : index
    %75 = vector.load %arg7[%c6, %c0_40, %c0_41] : memref<9x128x128xbf16, #tpu.memory_space<vmem>>, vector<1x128x128xbf16>
    %76 = vector.shape_cast %75 : vector<1x128x128xbf16> to vector<128x128xbf16>
    %cst_42 = arith.constant dense<0.000000e+00> : vector<288x128xf32>
    %77 = tpu.matmul %74, %76, %cst_42 {dimension_numbers = #tpu.dot_dimension_numbers<[1], [0], [0], [1], [0, 0, 1, 1], [], []>} : vector<288x128xbf16>, vector<128x128xbf16>, vector<288x128xf32> -> vector<288x128xf32>
    %78 = arith.addf %73, %77 : vector<288x128xf32>
    %79 = vector.extract_strided_slice %42 {offsets = [37, 0], sizes = [288, 128], strides = [1, 1]} : vector<326x128xbf16> to vector<288x128xbf16>
    %c7 = arith.constant 7 : index
    %c0_43 = arith.constant 0 : index
    %c0_44 = arith.constant 0 : index
    %80 = vector.load %arg7[%c7, %c0_43, %c0_44] : memref<9x128x128xbf16, #tpu.memory_space<vmem>>, vector<1x128x128xbf16>
    %81 = vector.shape_cast %80 : vector<1x128x128xbf16> to vector<128x128xbf16>
    %cst_45 = arith.constant dense<0.000000e+00> : vector<288x128xf32>
    %82 = tpu.matmul %79, %81, %cst_45 {dimension_numbers = #tpu.dot_dimension_numbers<[1], [0], [0], [1], [0, 0, 1, 1], [], []>} : vector<288x128xbf16>, vector<128x128xbf16>, vector<288x128xf32> -> vector<288x128xf32>
    %83 = arith.addf %78, %82 : vector<288x128xf32>
    %84 = vector.extract_strided_slice %42 {offsets = [38, 0], sizes = [288, 128], strides = [1, 1]} : vector<326x128xbf16> to vector<288x128xbf16>
    %c8 = arith.constant 8 : index
    %c0_46 = arith.constant 0 : index
    %c0_47 = arith.constant 0 : index
    %85 = vector.load %arg7[%c8, %c0_46, %c0_47] : memref<9x128x128xbf16, #tpu.memory_space<vmem>>, vector<1x128x128xbf16>
    %86 = vector.shape_cast %85 : vector<1x128x128xbf16> to vector<128x128xbf16>
    %cst_48 = arith.constant dense<0.000000e+00> : vector<288x128xf32>
    %87 = tpu.matmul %84, %86, %cst_48 {dimension_numbers = #tpu.dot_dimension_numbers<[1], [0], [0], [1], [0, 0, 1, 1], [], []>} : vector<288x128xbf16>, vector<128x128xbf16>, vector<288x128xf32> -> vector<288x128xf32>
    %88 = arith.addf %83, %87 : vector<288x128xf32>
    %c0_49 = arith.constant 0 : index
    %c0_50 = arith.constant 0 : index
    %89 = vector.load %arg8[%c0_49, %c0_50] : memref<1x128xf32, #tpu.memory_space<vmem>>, vector<1x128xf32>
    %90 = vector.broadcast %89 : vector<1x128xf32> to vector<288x128xf32>
    %91 = arith.addf %88, %90 : vector<288x128xf32>
    %cst_51 = arith.constant 0.000000e+00 : f32
    %92 = vector.broadcast %cst_51 : f32 to vector<288x128xf32>
    %93 = arith.subf %91, %92 : vector<288x128xf32>
    %cst_52 = arith.constant 3.33333325 : f32
    %94 = vector.broadcast %cst_52 : f32 to vector<288x128xf32>
    %95 = arith.mulf %93, %94 : vector<288x128xf32>
    %cst_53 = arith.constant 1.000000e+00 : f32
    %96 = vector.broadcast %cst_53 : f32 to vector<288x128xf32>
    %97 = arith.subf %96, %91 : vector<288x128xf32>
    %cst_54 = arith.constant 3.33333325 : f32
    %98 = vector.broadcast %cst_54 : f32 to vector<288x128xf32>
    %99 = arith.mulf %97, %98 : vector<288x128xf32>
    %100 = arith.minimumf %95, %99 : vector<288x128xf32>
    %cst_55 = arith.constant 0.000000e+00 : f32
    %101 = vector.broadcast %cst_55 : f32 to vector<288x128xf32>
    %102 = arith.maximumf %100, %101 : vector<288x128xf32>
    %c0_56 = arith.constant 0 : index
    %c0_57 = arith.constant 0 : index
    %c0_58 = arith.constant 0 : index
    %103 = vector.load %arg11[%c0_56, %c0_57, %c0_58] : memref<1x288x128xf32, #tpu.memory_space<vmem>>, vector<1x288x128xf32>
    %104 = vector.shape_cast %103 : vector<1x288x128xf32> to vector<288x128xf32>
    %105 = vector.shape_cast %102 : vector<288x128xf32> to vector<1x288x128xf32>
    tpu.vector_store %arg11[%c0_56, %c0_57, %c0_58], %105 {strides = array<i32>} : memref<1x288x128xf32, #tpu.memory_space<vmem>>, vector<1x288x128xf32>,
    %c0_59 = arith.constant 0 : index
    %c0_60 = arith.constant 0 : index
    %106 = vector.load %arg10[%c0_59, %c0_60] : memref<288x1xf32, #tpu.memory_space<vmem>>, vector<288x1xf32>
    %107 = vector.broadcast %106 : vector<288x1xf32> to vector<288x128xf32>
    %108 = arith.mulf %102, %107 : vector<288x128xf32>
    %cst_61 = arith.constant dense<0.000000e+00> : vector<128xf32>
    %109 = vector.multi_reduction <add>, %108, %cst_61 [0] : vector<288x128xf32> to vector<128xf32>
    %110 = vector.shape_cast %109 : vector<128xf32> to vector<1x128xf32>
    %111 = arith.mulf %108, %102 : vector<288x128xf32>
    %cst_62 = arith.constant dense<0.000000e+00> : vector<128xf32>
    %112 = vector.multi_reduction <add>, %111, %cst_62 [0] : vector<288x128xf32> to vector<128xf32>
    %113 = vector.shape_cast %112 : vector<128xf32> to vector<1x128xf32>
    %114 = tpu.concatenate %110, %113 in 0 : vector<1x128xf32>, vector<1x128xf32> -> vector<2x128xf32>
    %c0_63 = arith.constant 0 : index
    %c0_64 = arith.constant 0 : index
    %c0_65 = arith.constant 0 : index
    %c0_66 = arith.constant 0 : index
    %115 = vector.load %arg12[%c0_63, %c0_64, %c0_65, %c0_66] : memref<1x1x2x128xf32, #tpu.memory_space<vmem>>, vector<1x1x2x128xf32>
    %116 = vector.shape_cast %115 : vector<1x1x2x128xf32> to vector<2x128xf32>
    %117 = vector.shape_cast %114 : vector<2x128xf32> to vector<1x1x2x128xf32>
    tpu.vector_store %arg12[%c0_63, %c0_64, %c0_65, %c0_66], %117 {strides = array<i32>} : memref<1x1x2x128xf32, #tpu.memory_space<vmem>>, vector<1x1x2x128xf32>,
    return
  }
  func.func @transform_0(%arg0: i32, %arg1: i32) -> (i32, i32, i32, i32) {
    %c1_i32 = arith.constant 1 : i32
    %0 = arith.subi %arg1, %c1_i32 : i32
    %c0_i32 = arith.constant 0 : i32
    %1 = arith.maxsi %0, %c0_i32 : i32
    %c0_i32_0 = arith.constant 0 : i32
    %c0_i32_1 = arith.constant 0 : i32
    %c0_i32_2 = arith.constant 0 : i32
    return %arg0, %1, %c0_i32_0, %c0_i32_1 : i32, i32, i32, i32
  }
  func.func @transform_1(%arg0: i32, %arg1: i32) -> (i32, i32, i32) {
    %c0_i32 = arith.constant 0 : i32
    %c0_i32_0 = arith.constant 0 : i32
    return %arg0, %arg1, %c0_i32 : i32, i32, i32
  }
  func.func @transform_2(%arg0: i32, %arg1: i32) -> (i32, i32, i32, i32) {
    %c1_i32 = arith.constant 1 : i32
    %0 = arith.addi %arg1, %c1_i32 : i32
    %c0_i32 = arith.constant 0 : i32
    %1 = arith.minsi %0, %c0_i32 : i32
    %c0_i32_0 = arith.constant 0 : i32
    %c0_i32_1 = arith.constant 0 : i32
    %c0_i32_2 = arith.constant 0 : i32
    return %arg0, %1, %c0_i32_0, %c0_i32_1 : i32, i32, i32, i32
  }
  func.func @transform_3(%arg0: i32, %arg1: i32) -> (i32, i32) {
    %c0_i32 = arith.constant 0 : i32
    %c0_i32_0 = arith.constant 0 : i32
    %c0_i32_1 = arith.constant 0 : i32
    return %c0_i32, %c0_i32_0 : i32, i32
  }
  func.func @transform_4(%arg0: i32, %arg1: i32) -> (i32, i32) {
    %c0_i32 = arith.constant 0 : i32
    %c0_i32_0 = arith.constant 0 : i32
    %c0_i32_1 = arith.constant 0 : i32
    return %c0_i32, %c0_i32_0 : i32, i32
  }
  func.func @transform_5(%arg0: i32, %arg1: i32) -> (i32, i32, i32) {
    %c0_i32 = arith.constant 0 : i32
    %c0_i32_0 = arith.constant 0 : i32
    %c0_i32_1 = arith.constant 0 : i32
    %c0_i32_2 = arith.constant 0 : i32
    return %c0_i32, %c0_i32_0, %c0_i32_1 : i32, i32, i32
  }
  func.func @transform_6(%arg0: i32, %arg1: i32) -> (i32, i32) {
    %c0_i32 = arith.constant 0 : i32
    %c0_i32_0 = arith.constant 0 : i32
    %c0_i32_1 = arith.constant 0 : i32
    return %c0_i32, %c0_i32_0 : i32, i32
  }
  func.func @transform_7(%arg0: i32, %arg1: i32) -> (i32, i32) {
    %c0_i32 = arith.constant 0 : i32
    %c0_i32_0 = arith.constant 0 : i32
    %c0_i32_1 = arith.constant 0 : i32
    return %c0_i32, %c0_i32_0 : i32, i32
  }
  func.func @transform_8(%arg0: i32, %arg1: i32) -> (i32, i32) {
    %c0_i32 = arith.constant 0 : i32
    %c0_i32_0 = arith.constant 0 : i32
    %c0_i32_1 = arith.constant 0 : i32
    return %c0_i32, %c0_i32_0 : i32, i32
  }
  func.func @transform_9(%arg0: i32, %arg1: i32) -> (i32, i32, i32) {
    %c0_i32 = arith.constant 0 : i32
    %c0_i32_0 = arith.constant 0 : i32
    return %arg0, %arg1, %c0_i32 : i32, i32, i32
  }
  func.func @transform_10(%arg0: i32, %arg1: i32) -> (i32, i32, i32, i32) {
    %c0_i32 = arith.constant 0 : i32
    %c0_i32_0 = arith.constant 0 : i32
    %c0_i32_1 = arith.constant 0 : i32
    return %arg0, %arg1, %c0_i32, %c0_i32_0 : i32, i32, i32, i32
  }
}

module attributes {stable_mosaic.version = 11 : i64} {
  func.func @kernel(%arg0: i32, %arg1: i32, %arg2: memref<1x288x128xf32, #tpu.memory_space<vmem>>, %arg3: memref<1x64xf32, #tpu.memory_space<vmem>>, %arg4: memref<1x64xf32, #tpu.memory_space<vmem>>, %arg5: memref<1x288x64xf32, #tpu.memory_space<vmem>>) attributes {dimension_semantics = [#tpu.dimension_semantics<parallel>, #tpu.dimension_semantics<parallel>], iteration_bounds = array<i64: 2, 1>, scalar_prefetch = 0 : i64, scratch_operands = 0 : i64, tpu.core_type = #tpu.core_type<tc>, window_params = [{transform_indices = @transform_0, window_bounds = array<i64: 1, 288, 128>}, {pipeline_mode = #tpu.pipeline_mode<synchronous>, transform_indices = @transform_1, window_bounds = array<i64: 1, 64>}, {pipeline_mode = #tpu.pipeline_mode<synchronous>, transform_indices = @transform_2, window_bounds = array<i64: 1, 64>}, {transform_indices = @transform_3, window_bounds = array<i64: 1, 288, 64>}]} {
    %c0 = arith.constant 0 : index
    %c0_0 = arith.constant 0 : index
    %c0_1 = arith.constant 0 : index
    %0 = vector.load %arg2[%c0, %c0_0, %c0_1] : memref<1x288x128xf32, #tpu.memory_space<vmem>>, vector<1x288x64xf32>
    %1 = vector.shape_cast %0 : vector<1x288x64xf32> to vector<288x64xf32>
    %c0_2 = arith.constant 0 : index
    %c0_3 = arith.constant 0 : index
    %2 = vector.load %arg3[%c0_2, %c0_3] : memref<1x64xf32, #tpu.memory_space<vmem>>, vector<1x64xf32>
    %3 = vector.broadcast %2 : vector<1x64xf32> to vector<288x64xf32>
    %4 = arith.mulf %1, %3 : vector<288x64xf32>
    %c0_4 = arith.constant 0 : index
    %c0_5 = arith.constant 0 : index
    %5 = vector.load %arg4[%c0_4, %c0_5] : memref<1x64xf32, #tpu.memory_space<vmem>>, vector<1x64xf32>
    %6 = vector.broadcast %5 : vector<1x64xf32> to vector<288x64xf32>
    %7 = arith.addf %4, %6 : vector<288x64xf32>
    %cst = arith.constant 0.000000e+00 : f32
    %8 = vector.broadcast %cst : f32 to vector<288x64xf32>
    %9 = arith.maximumf %7, %8 : vector<288x64xf32>
    %c0_6 = arith.constant 0 : index
    %c0_7 = arith.constant 0 : index
    %c0_8 = arith.constant 0 : index
    %10 = vector.load %arg5[%c0_6, %c0_7, %c0_8] : memref<1x288x64xf32, #tpu.memory_space<vmem>>, vector<1x288x64xf32>
    %11 = vector.shape_cast %10 : vector<1x288x64xf32> to vector<288x64xf32>
    %12 = vector.shape_cast %9 : vector<288x64xf32> to vector<1x288x64xf32>
    tpu.vector_store %arg5[%c0_6, %c0_7, %c0_8], %12 {strides = array<i32>} : memref<1x288x64xf32, #tpu.memory_space<vmem>>, vector<1x288x64xf32>,
    return
  }
  func.func @transform_0(%arg0: i32, %arg1: i32) -> (i32, i32, i32) {
    %c0_i32 = arith.constant 0 : i32
    %c0_i32_0 = arith.constant 0 : i32
    return %arg0, %arg1, %c0_i32 : i32, i32, i32
  }
  func.func @transform_1(%arg0: i32, %arg1: i32) -> (i32, i32) {
    %c0_i32 = arith.constant 0 : i32
    %c0_i32_0 = arith.constant 0 : i32
    %c0_i32_1 = arith.constant 0 : i32
    return %c0_i32, %c0_i32_0 : i32, i32
  }
  func.func @transform_2(%arg0: i32, %arg1: i32) -> (i32, i32) {
    %c0_i32 = arith.constant 0 : i32
    %c0_i32_0 = arith.constant 0 : i32
    %c0_i32_1 = arith.constant 0 : i32
    return %c0_i32, %c0_i32_0 : i32, i32
  }
  func.func @transform_3(%arg0: i32, %arg1: i32) -> (i32, i32, i32) {
    %c0_i32 = arith.constant 0 : i32
    %c0_i32_0 = arith.constant 0 : i32
    return %arg0, %arg1, %c0_i32 : i32, i32, i32
  }
}

</mosaic_0001>

<llo_original>
// kernel: double_conv_forward.3
$region0: #{double_conv_forward.3}
  #allocation0 [shape = 'u32[]', space=smem, size = 0x4, offset = 0x4, fixed_abs, tag = 'smem constant byte address 0x4 - core index']
  #allocation1 [shape = 'u32[144,128]{1,0:T(1,128)}', space=vmem, size = 0x12000, scoped, tag = 'internal scratch']
  %s0 = inlined_call_operand.vmem [shape: bf16[2,288,128], index: 0, kind: input, shape index: {}]
  %s1 = inlined_call_operand.vmem [shape: bf16[128,128], index: 1, kind: input, shape index: {}]
  %s2 = inlined_call_operand.vmem [shape: f32[1,128], index: 2, kind: input, shape index: {}]
  %s3 = inlined_call_operand.vmem [shape: f32[288,1], index: 3, kind: input, shape index: {}]
  %s4 = inlined_call_operand.vmem [shape: f32[2,288,128], index: 4, kind: output, shape index: {0}]
  %s5 = inlined_call_operand.vmem [shape: f32[2,1,18,128], index: 5, kind: output, shape index: {1}]
  %s6 = inlined_call_operand.vmem [shape: f32[2,1,18,128], index: 6, kind: output, shape index: {2}]
  %s7 = inlined_call_operand.vmem [shape: f32[2,1,2,128], index: 7, kind: output, shape index: {3}]
  %8 = xla_tuple %s4, %s5, %s6, %s7
  %s9 = sld [smem:[#allocation0]]
  $region73: #{double_conv_forward.3} parent=0
    _
  %s11 = ssub.s32 1, %s9
  %s12 = scalar_select 0, %s11, %s9
  loop: start=0, step=1, limit=4
  $region2: #{double_conv_forward.3} parent=0 // loop_pre_header
    _
  $region3: #{double_conv_forward.3} parent=0 // loop_header
    %s14 = sphi 0, %s18
    %p15 = scmp.ge.s32.totalorder %s14, 4
    %s21 = sphi 0, %s33
    %s22 = sphi 0, %s29
    %s23 = sphi 0, %s21
    %s24 = sphi 0, %s22
    %s25 = sphi 0, %s23
    %s26 = sphi 0, %s24
    %s38 = sphi 0, %s40
    %s41 = sphi 0, %s38
    %s42 = sphi 0, %s41
    %s58 = sphi 0, %s42
    %s62 = sphi 0, %s62
    %s64 = sphi 0, %s62
    %s65 = sphi 0, %s64
    %s79 = sphi 0, %s65
    %s83 = sphi 0, %s83
    %s85 = sphi 0, %s83
    %s86 = sphi 0, %s85
    %s100 = sphi 0, %s86
    %s104 = sphi 0, %s104
    %s106 = sphi 0, %s104
    %s107 = sphi 0, %s106
    %s121 = sphi 0, %s107
    %s129 = sphi 0, %s131
    %s132 = sphi 0, %s129
    %s133 = sphi 0, %s132
    %s149 = sphi 0, %s133
    %s157 = sphi 0, %s159
    %s160 = sphi 0, %s157
    %s161 = sphi 0, %s160
    %s177 = sphi 0, %s161
    %s185 = sphi 0, %s187
    %s188 = sphi 0, %s185
    %s189 = sphi 0, %s188
    %s205 = sphi 0, %s189
    %s213 = sphi 0, %s215
    %s216 = sphi 0, %s213
    %s217 = sphi 0, %s216
    %s233 = sphi 0, %s217
  $region4: #{double_conv_forward.3} parent=0 // loop_header_branch
    %17 = sbr.rel (%p15) target = $region8
  $region5: #{double_conv_forward.3} parent=0 // loop_body
    %s19 = ssub.s32 %s14, 1
    %s20 = ssub.s32 %s14, 2
    %s27 = sadd.s32 1, %s22
    %p28 = scmp.ge.s32.totalorder %s27, 1
    %s29 = scalar_select %p28, 0, %s27
    %s30 = sadd.s32 1, %s21
    %s31 = scalar_select %p28, %s30, %s21
    %p32 = scmp.ge.s32.totalorder %s31, 2
    %s33 = scalar_select %p32, 0, %s31
    %s34 = ssub.s32 %s21, %s33
    %s35 = ssub.s32 %s22, %s29
    %s36 = sor.u32 %s34, %s35
    %p37 = scmp.eq.s32.totalorder %s36, 0
    %s39 = sadd.s32 %s38, 1
    %s40 = scalar_select %p37, %s38, %s39
    %p43 = pneg %p37
    %p44 = scmp.eq.s32.totalorder %s14, 1
    %p45 = por %p43, %p44
    %p46 = scmp.ne.s32.totalorder %s38, %s41
    %p47 = scmp.eq.s32.totalorder %s14, 0
    %p48 = por %p46, %p47
    %p49 = scmp.ne.s32.totalorder %s38, %s41
    %p50 = scmp.eq.s32.totalorder %s19, 1
    %p51 = por %p49, %p50
    %p52 = scmp.ne.s32.totalorder %s41, %s42
    %p53 = scmp.eq.s32.totalorder %s19, 0
    %p54 = por %p52, %p53
    %p55 = scmp.ne.s32.totalorder %s41, %s42
    %p56 = scmp.eq.s32.totalorder %s20, 1
    %p57 = por %p55, %p56
    %p59 = scmp.ne.s32.totalorder %s42, %s58
    %p60 = scmp.eq.s32.totalorder %s20, 0
    %p61 = por %p59, %p60
    %s63 = sadd.s32 %s62, 1
    %p66 = scmp.eq.s32.totalorder %s14, 1
    %p67 = scmp.ne.s32.totalorder %s62, %s64
    %p68 = scmp.eq.s32.totalorder %s14, 0
    %p69 = por %p67, %p68
    %p70 = scmp.ne.s32.totalorder %s62, %s64
    %p71 = scmp.eq.s32.totalorder %s19, 1
    %p72 = por %p70, %p71
    %p73 = scmp.ne.s32.totalorder %s64, %s65
    %p74 = scmp.eq.s32.totalorder %s19, 0
    %p75 = por %p73, %p74
    %p76 = scmp.ne.s32.totalorder %s64, %s65
    %p77 = scmp.eq.s32.totalorder %s20, 1
    %p78 = por %p76, %p77
    %p80 = scmp.ne.s32.totalorder %s65, %s79
    %p81 = scmp.eq.s32.totalorder %s20, 0
    %p82 = por %p80, %p81
    %s84 = sadd.s32 %s83, 1
    %p87 = scmp.eq.s32.totalorder %s14, 1
    %p88 = scmp.ne.s32.totalorder %s83, %s85
    %p89 = scmp.eq.s32.totalorder %s14, 0
    %p90 = por %p88, %p89
    %p91 = scmp.ne.s32.totalorder %s83, %s85
    %p92 = scmp.eq.s32.totalorder %s19, 1
    %p93 = por %p91, %p92
    %p94 = scmp.ne.s32.totalorder %s85, %s86
    %p95 = scmp.eq.s32.totalorder %s19, 0
    %p96 = por %p94, %p95
    %p97 = scmp.ne.s32.totalorder %s85, %s86
    %p98 = scmp.eq.s32.totalorder %s20, 1
    %p99 = por %p97, %p98
    %p101 = scmp.ne.s32.totalorder %s86, %s100
    %p102 = scmp.eq.s32.totalorder %s20, 0
    %p103 = por %p101, %p102
    %s105 = sadd.s32 %s104, 1
    %p108 = scmp.eq.s32.totalorder %s14, 1
    %p109 = scmp.ne.s32.totalorder %s104, %s106
    %p110 = scmp.eq.s32.totalorder %s14, 0
    %p111 = por %p109, %p110
    %p112 = scmp.ne.s32.totalorder %s104, %s106
    %p113 = scmp.eq.s32.totalorder %s19, 1
    %p114 = por %p112, %p113
    %p115 = scmp.ne.s32.totalorder %s106, %s107
    %p116 = scmp.eq.s32.totalorder %s19, 0
    %p117 = por %p115, %p116
    %p118 = scmp.ne.s32.totalorder %s106, %s107
    %p119 = scmp.eq.s32.totalorder %s20, 1
    %p120 = por %p118, %p119
    %p122 = scmp.ne.s32.totalorder %s107, %s121
    %p123 = scmp.eq.s32.totalorder %s20, 0
    %p124 = por %p122, %p123
    %s125 = ssub.s32 %s21, %s33
    %s126 = ssub.s32 %s22, %s29
    %s127 = sor.u32 %s125, %s126
    %p128 = scmp.eq.s32.totalorder %s127, 0
    %s130 = sadd.s32 %s129, 1
    %s131 = scalar_select %p128, %s129, %s130
    %p134 = pneg %p128
    %p135 = scmp.eq.s32.totalorder %s14, 1
    %p136 = por %p134, %p135
    %p137 = scmp.ne.s32.totalorder %s129, %s132
    %p138 = scmp.eq.s32.totalorder %s14, 0
    %p139 = por %p137, %p138
    %p140 = scmp.ne.s32.totalorder %s129, %s132
    %p141 = scmp.eq.s32.totalorder %s19, 1
    %p142 = por %p140, %p141
    %p143 = scmp.ne.s32.totalorder %s132, %s133
    %p144 = scmp.eq.s32.totalorder %s19, 0
    %p145 = por %p143, %p144
    %p146 = scmp.ne.s32.totalorder %s132, %s133
    %p147 = scmp.eq.s32.totalorder %s20, 1
    %p148 = por %p146, %p147
    %p150 = scmp.ne.s32.totalorder %s133, %s149
    %p151 = scmp.eq.s32.totalorder %s20, 0
    %p152 = por %p150, %p151
    %s153 = ssub.s32 %s21, %s33
    %s154 = ssub.s32 %s22, %s29
    %s155 = sor.u32 %s153, %s154
    %p156 = scmp.eq.s32.totalorder %s155, 0
    %s158 = sadd.s32 %s157, 1
    %s159 = scalar_select %p156, %s157, %s158
    %p162 = pneg %p156
    %p163 = scmp.eq.s32.totalorder %s14, 1
    %p164 = por %p162, %p163
    %p165 = scmp.ne.s32.totalorder %s157, %s160
    %p166 = scmp.eq.s32.totalorder %s14, 0
    %p167 = por %p165, %p166
    %p168 = scmp.ne.s32.totalorder %s157, %s160
    %p169 = scmp.eq.s32.totalorder %s19, 1
    %p170 = por %p168, %p169
    %p171 = scmp.ne.s32.totalorder %s160, %s161
    %p172 = scmp.eq.s32.totalorder %s19, 0
    %p173 = por %p171, %p172
    %p174 = scmp.ne.s32.totalorder %s160, %s161
    %p175 = scmp.eq.s32.totalorder %s20, 1
    %p176 = por %p174, %p175
    %p178 = scmp.ne.s32.totalorder %s161, %s177
    %p179 = scmp.eq.s32.totalorder %s20, 0
    %p180 = por %p178, %p179
    %s181 = ssub.s32 %s21, %s33
    %s182 = ssub.s32 %s22, %s29
    %s183 = sor.u32 %s181, %s182
    %p184 = scmp.eq.s32.totalorder %s183, 0
    %s186 = sadd.s32 %s185, 1
    %s187 = scalar_select %p184, %s185, %s186
    %p190 = pneg %p184
    %p191 = scmp.eq.s32.totalorder %s14, 1
    %p192 = por %p190, %p191
    %p193 = scmp.ne.s32.totalorder %s185, %s188
    %p194 = scmp.eq.s32.totalorder %s14, 0
    %p195 = por %p193, %p194
    %p196 = scmp.ne.s32.totalorder %s185, %s188
    %p197 = scmp.eq.s32.totalorder %s19, 1
    %p198 = por %p196, %p197
    %p199 = scmp.ne.s32.totalorder %s188, %s189
    %p200 = scmp.eq.s32.totalorder %s19, 0
    %p201 = por %p199, %p200
    %p202 = scmp.ne.s32.totalorder %s188, %s189
    %p203 = scmp.eq.s32.totalorder %s20, 1
    %p204 = por %p202, %p203
    %p206 = scmp.ne.s32.totalorder %s189, %s205
    %p207 = scmp.eq.s32.totalorder %s20, 0
    %p208 = por %p206, %p207
    %s209 = ssub.s32 %s21, %s33
    %s210 = ssub.s32 %s22, %s29
    %s211 = sor.u32 %s209, %s210
    %p212 = scmp.eq.s32.totalorder %s211, 0
    %s214 = sadd.s32 %s213, 1
    %s215 = scalar_select %p212, %s213, %s214
    %p218 = pneg %p212
    %p219 = scmp.eq.s32.totalorder %s14, 1
    %p220 = por %p218, %p219
    %p221 = scmp.ne.s32.totalorder %s213, %s216
    %p222 = scmp.eq.s32.totalorder %s14, 0
    %p223 = por %p221, %p222
    %p224 = scmp.ne.s32.totalorder %s213, %s216
    %p225 = scmp.eq.s32.totalorder %s19, 1
    %p226 = por %p224, %p225
    %p227 = scmp.ne.s32.totalorder %s216, %s217
    %p228 = scmp.eq.s32.totalorder %s19, 0
    %p229 = por %p227, %p228
    %p230 = scmp.ne.s32.totalorder %s216, %s217
    %p231 = scmp.eq.s32.totalorder %s20, 1
    %p232 = por %p230, %p231
    %p234 = scmp.ne.s32.totalorder %s217, %s233
    %p235 = scmp.eq.s32.totalorder %s20, 0
    %p236 = por %p234, %p235
    %p237 = scmp.le.s32.totalorder 1, %s14
    %p238 = scmp.lt.s32.totalorder %s14, 3
    %p239 = pnand %p237, %p238
    %p240 = pneg %p239
    // Predicated region
    $region9: #{double_conv_forward.3} parent=5 // pred_check
      _
    $region10: #{double_conv_forward.3} parent=5 // pred_check_branch
      %242 = sbr.rel (%p239) target = $region12
    $region11: #{double_conv_forward.3} parent=5 // pred_region
      %s243 = ssub.s32 %s14, 1
      // Predicated region
      $region13: #{double_conv_forward.3} parent=11 // pred_check
        %p244 = pneg %p75
      $region14: #{double_conv_forward.3} parent=11 // pred_check_branch
        %246 = sbr.rel (%p244) target = $region16
      $region15: #{double_conv_forward.3} parent=11 // pred_region
        _
      $region16: #{double_conv_forward.3} parent=11 // pred_fallthru
        _
      // Predicated region
      $region17: #{double_conv_forward.3} parent=11 // pred_check
        %p247 = pneg %p96
      $region18: #{double_conv_forward.3} parent=11 // pred_check_branch
        %249 = sbr.rel (%p247) target = $region20
      $region19: #{double_conv_forward.3} parent=11 // pred_region
        _
      $region20: #{double_conv_forward.3} parent=11 // pred_fallthru
        _
      // Predicated region
      $region21: #{double_conv_forward.3} parent=11 // pred_check
        %p250 = pneg %p117
      $region22: #{double_conv_forward.3} parent=11 // pred_check_branch
        %252 = sbr.rel (%p250) target = $region24
      $region23: #{double_conv_forward.3} parent=11 // pred_region
        _
      $region24: #{double_conv_forward.3} parent=11 // pred_fallthru
        _
    $region12: #{double_conv_forward.3} parent=5 // pred_fallthru
      _
    %p253 = scmp.lt.s32.totalorder %s14, 2
    // Predicated region
    $region25: #{double_conv_forward.3} parent=5 // pred_check
      %p254 = pneg %p253
    $region26: #{double_conv_forward.3} parent=5 // pred_check_branch
      %256 = sbr.rel (%p254) target = $region28
    $region27: #{double_conv_forward.3} parent=5 // pred_region
      // Predicated region
      $region29: #{double_conv_forward.3} parent=27 // pred_check
        %p257 = pneg %p48
      $region30: #{double_conv_forward.3} parent=27 // pred_check_branch
        %259 = sbr.rel (%p257) target = $region32
      $region31: #{double_conv_forward.3} parent=27 // pred_region
        %s260 = smul.u32 36, %s22
        %p261 = scmp.lt.s32.totalorder %s21, 1
        %s262 = scalar_select %p261, %s21, 1
        %p263 = scmp.lt.s32.totalorder %s260, 35
        %s264 = scalar_select %p263, %s260, 35
        %s265 = smul.addr %s262, 36
        %s266 = sadd.s32 %s264, %s265
        %s267 = smul.addr %s266, 4
        %s268 = scalar_lea.vmem %s0, %s267
        %s269 = smul.u32 36, %s22
      $region32: #{double_conv_forward.3} parent=27 // pred_fallthru
        _
    $region28: #{double_conv_forward.3} parent=5 // pred_fallthru
      _
    %p270 = scmp.le.s32.totalorder 1, %s14
    %p271 = scmp.lt.s32.totalorder %s14, 3
    %p272 = pnand %p270, %p271
    %p273 = pneg %p272
    // Predicated region
    $region33: #{double_conv_forward.3} parent=5 // pred_check
      _
    $region34: #{double_conv_forward.3} parent=5 // pred_check_branch
      %275 = sbr.rel (%p272) target = $region36
    $region35: #{double_conv_forward.3} parent=5 // pred_region
      %s276 = ssub.s32 %s14, 1
      %s277 = smul.u32 36, %s24
      %p278 = scmp.lt.s32.totalorder %s23, 1
      %s279 = scalar_select %p278, %s23, 1
      %p280 = scmp.lt.s32.totalorder %s277, 35
      %s281 = scalar_select %p280, %s277, 35
      %s282 = smul.addr %s279, 36
      %s283 = sadd.s32 %s281, %s282
      %s284 = smul.addr %s283, 4
      %s285 = scalar_lea.vmem %s0, %s284
      %p286 = pneg %p54
      %p287 = pneg %p51
      %p288 = pneg %p75
      %p289 = pneg %p72
      %p290 = pneg %p96
      %p291 = pneg %p93
      %p292 = pneg %p117
      %p293 = pneg %p114
      %p294 = pneg %p145
      %p295 = pneg %p142
      %s296 = smul.u32 36, %s24
      %p297 = scmp.lt.s32.totalorder %s23, 1
      %s298 = scalar_select %p297, %s23, 1
      %p299 = scmp.lt.s32.totalorder %s296, 35
      %s300 = scalar_select %p299, %s296, 35
      %s301 = smul.addr %s298, 36
      %s302 = sadd.s32 %s300, %s301
      %s303 = smul.addr %s302, 8
      %s304 = scalar_lea.vmem %s4, %s303
      %p305 = pneg %p173
      %p306 = pneg %p170
      %p307 = scmp.lt.s32.totalorder %s23, 1
      %s308 = scalar_select %p307, %s23, 1
      %p309 = scmp.lt.s32.totalorder %s24, 0
      %s310 = scalar_select %p309, %s24, 0
      %s311 = smul.addr %s310, 3
      %s312 = smul.addr %s308, 3
      %s313 = sadd.s32 %s311, %s312
      %s314 = smul.addr %s313, 8
      %s315 = scalar_lea.vmem %s5, %s314
      %p316 = pneg %p201
      %p317 = pneg %p198
      %p318 = scmp.lt.s32.totalorder %s23, 1
      %s319 = scalar_select %p318, %s23, 1
      %p320 = scmp.lt.s32.totalorder %s24, 0
      %s321 = scalar_select %p320, %s24, 0
      %s322 = smul.addr %s321, 3
      %s323 = smul.addr %s319, 3
      %s324 = sadd.s32 %s322, %s323
      %s325 = smul.addr %s324, 8
      %s326 = scalar_lea.vmem %s6, %s325
      %p327 = pneg %p229
      %p328 = pneg %p226
      %p329 = scmp.lt.s32.totalorder %s23, 1
      %s330 = scalar_select %p329, %s23, 1
      %p331 = scmp.lt.s32.totalorder %s24, 0
      %s332 = scalar_select %p331, %s24, 0
      %s333 = sadd.s32 %s332, %s330
      %s334 = smul.addr %s333, 2
      %s335 = scalar_lea.vmem %s7, %s334
      %s336 = smul.u32 36, %s24
      %p337 = scmp.lt.s32.totalorder %s23, 1
      %s338 = scalar_select %p337, %s23, 1
      %p339 = scmp.lt.s32.totalorder %s336, 35
      %s340 = scalar_select %p339, %s336, 35
      %s341 = smul.addr %s338, 36
      %s342 = sadd.s32 %s340, %s341
      %s343 = smul.addr %s342, 4
      %s344 = scalar_lea.vmem %s0, %s343
      %s345 = smul.u32 36, %s24
      %s346 = smul.u32 36, %s24
      %p347 = scmp.lt.s32.totalorder %s23, 1
      %s348 = scalar_select %p347, %s23, 1
      %p349 = scmp.lt.s32.totalorder %s346, 35
      %s350 = scalar_select %p349, %s346, 35
      %s351 = smul.addr %s348, 36
      %s352 = sadd.s32 %s350, %s351
      %s353 = smul.addr %s352, 8
      %s354 = scalar_lea.vmem %s4, %s353
      %s355 = smul.u32 36, %s24
      %p356 = scmp.lt.s32.totalorder %s23, 1
      %s357 = scalar_select %p356, %s23, 1
      %p358 = scmp.lt.s32.totalorder %s24, 0
      %s359 = scalar_select %p358, %s24, 0
      %s360 = smul.addr %s359, 3
      %s361 = smul.addr %s357, 3
      %s362 = sadd.s32 %s360, %s361
      %s363 = smul.addr %s362, 8
      %s364 = scalar_lea.vmem %s5, %s363
      %p365 = scmp.lt.s32.totalorder %s23, 1
      %s366 = scalar_select %p365, %s23, 1
      %p367 = scmp.lt.s32.totalorder %s24, 0
      %s368 = scalar_select %p367, %s24, 0
      %s369 = smul.addr %s368, 3
      %s370 = smul.addr %s366, 3
      %s371 = sadd.s32 %s369, %s370
      %s372 = smul.addr %s371, 8
      %s373 = scalar_lea.vmem %s6, %s372
      %p374 = scmp.lt.s32.totalorder %s23, 1
      %s375 = scalar_select %p374, %s23, 1
      %p376 = scmp.lt.s32.totalorder %s24, 0
      %s377 = scalar_select %p376, %s24, 0
      %s378 = sadd.s32 %s377, %s375
      %s379 = smul.addr %s378, 2
      %s380 = scalar_lea.vmem %s7, %s379
      %v382 = vld [vmem:[%s344] sm:$0xf]
      %v383 = vld [vmem:[%s344 + $0x4] sm:$0xf]
      %v384 = vld [vmem:[%s344 + $0x8] sm:$0xf]
      %v385 = vld [vmem:[%s344 + $0xc] sm:$0xf]
      %v386 = vld [vmem:[%s344 + $0x10] sm:$0xf]
      %v387 = vld [vmem:[%s344 + $0x14] sm:$0xf]
      %v388 = vld [vmem:[%s344 + $0x18] sm:$0xf]
      %v389 = vld [vmem:[%s344 + $0x1c] sm:$0xf]
      %v390 = vld [vmem:[%s344 + $0x20] sm:$0xf]
      %v391 = vld [vmem:[%s344 + $0x24] sm:$0xf]
      %v392 = vld [vmem:[%s344 + $0x28] sm:$0xf]
      %v393 = vld [vmem:[%s344 + $0x2c] sm:$0xf]
      %v394 = vld [vmem:[%s344 + $0x30] sm:$0xf]
      %v395 = vld [vmem:[%s344 + $0x34] sm:$0xf]
      %v396 = vld [vmem:[%s344 + $0x38] sm:$0xf]
      %v397 = vld [vmem:[%s344 + $0x3c] sm:$0xf]
      %v398 = vld [vmem:[%s344 + $0x40] sm:$0xf]
      %v399 = vld [vmem:[%s344 + $0x44] sm:$0xf]
      %v400 = vld [vmem:[%s344 + $0x48] sm:$0xf]
      %v401 = vld [vmem:[%s344 + $0x4c] sm:$0xf]
      %v402 = vld [vmem:[%s344 + $0x50] sm:$0xf]
      %v403 = vld [vmem:[%s344 + $0x54] sm:$0xf]
      %v404 = vld [vmem:[%s344 + $0x58] sm:$0xf]
      %v405 = vld [vmem:[%s344 + $0x5c] sm:$0xf]
      %v406 = vld [vmem:[%s344 + $0x60] sm:$0xf]
      %v407 = vld [vmem:[%s344 + $0x64] sm:$0xf]
      %v408 = vld [vmem:[%s344 + $0x68] sm:$0xf]
      %v409 = vld [vmem:[%s344 + $0x6c] sm:$0xf]
      %v410 = vld [vmem:[%s344 + $0x70] sm:$0xf]
      %v411 = vld [vmem:[%s344 + $0x74] sm:$0xf]
      %v412 = vld [vmem:[%s344 + $0x78] sm:$0xf]
      %v413 = vld [vmem:[%s344 + $0x7c] sm:$0xf]
      %v414 = vld [vmem:[%s344 + $0x80] sm:$0xf]
      %v415 = vld [vmem:[%s344 + $0x84] sm:$0xf]
      %v416 = vld [vmem:[%s344 + $0x88] sm:$0xf]
      %v417 = vld [vmem:[%s344 + $0x8c] sm:$0xf]
      %v418 = vld [vmem:[%s1] sm:$0xf]
      %v419 = vld [vmem:[%s1 + $0x4] sm:$0xf]
      %v420 = vld [vmem:[%s1 + $0x8] sm:$0xf]
      %v421 = vld [vmem:[%s1 + $0xc] sm:$0xf]
      %v422 = vld [vmem:[%s1 + $0x10] sm:$0xf]
      %v423 = vld [vmem:[%s1 + $0x14] sm:$0xf]
      %v424 = vld [vmem:[%s1 + $0x18] sm:$0xf]
      %v425 = vld [vmem:[%s1 + $0x1c] sm:$0xf]
      %v426 = vld [vmem:[%s1 + $0x20] sm:$0xf]
      %v427 = vld [vmem:[%s1 + $0x24] sm:$0xf]
      %v428 = vld [vmem:[%s1 + $0x28] sm:$0xf]
      %v429 = vld [vmem:[%s1 + $0x2c] sm:$0xf]
      %v430 = vld [vmem:[%s1 + $0x30] sm:$0xf]
      %v431 = vld [vmem:[%s1 + $0x34] sm:$0xf]
      %v432 = vld [vmem:[%s1 + $0x38] sm:$0xf]
      %v433 = vld [vmem:[%s1 + $0x3c] sm:$0xf]
      %v434 = vld [vmem:[%s2] sm:$0x1]
      %v436 = vlaneseq
      %v437 = vshrl.u32 %v436, 7
      %v438 = vsub.s32 0, %v437
      %v439 = vrot.slane %v434, %v438
      %v477 = vunpack.c.l.b16 %v382
      %v478 = vunpack.c.l.b16 %v383
      %v479 = vunpack.c.l.b16 %v384
      %v480 = vunpack.c.l.b16 %v385
      %v481 = vunpack.c.l.b16 %v386
      %v482 = vunpack.c.l.b16 %v387
      %v483 = vunpack.c.l.b16 %v388
      %v484 = vunpack.c.l.b16 %v389
      %v485 = vunpack.c.l.b16 %v390
      %v486 = vunpack.c.l.b16 %v391
      %v487 = vunpack.c.l.b16 %v392
      %v488 = vunpack.c.l.b16 %v393
      %v489 = vunpack.c.l.b16 %v394
      %v490 = vunpack.c.l.b16 %v395
      %v491 = vunpack.c.l.b16 %v396
      %v492 = vunpack.c.l.b16 %v397
      %v493 = vunpack.c.l.b16 %v398
      %v494 = vunpack.c.l.b16 %v399
      %v495 = vunpack.c.l.b16 %v400
      %v496 = vunpack.c.l.b16 %v401
      %v497 = vunpack.c.l.b16 %v402
      %v498 = vunpack.c.l.b16 %v403
      %v499 = vunpack.c.l.b16 %v404
      %v500 = vunpack.c.l.b16 %v405
      %v501 = vunpack.c.l.b16 %v406
      %v502 = vunpack.c.l.b16 %v407
      %v503 = vunpack.c.l.b16 %v408
      %v504 = vunpack.c.l.b16 %v409
      %v505 = vunpack.c.l.b16 %v410
      %v506 = vunpack.c.l.b16 %v411
      %v507 = vunpack.c.l.b16 %v412
      %v508 = vunpack.c.l.b16 %v413
      %v509 = vunpack.c.l.b16 %v414
      %v510 = vunpack.c.l.b16 %v415
      %v511 = vunpack.c.l.b16 %v416
      %v512 = vunpack.c.l.b16 %v417
      %v513 = vpack.c.b16 %v478, %v477
      %v514 = vpack.c.b16 %v480, %v479
      %v515 = vpack.c.b16 %v482, %v481
      %v516 = vpack.c.b16 %v484, %v483
      %v517 = vpack.c.b16 %v486, %v485
      %v518 = vpack.c.b16 %v488, %v487
      %v519 = vpack.c.b16 %v490, %v489
      %v520 = vpack.c.b16 %v492, %v491
      %v521 = vpack.c.b16 %v494, %v493
      %v522 = vpack.c.b16 %v496, %v495
      %v523 = vpack.c.b16 %v498, %v497
      %v524 = vpack.c.b16 %v500, %v499
      %v525 = vpack.c.b16 %v502, %v501
      %v526 = vpack.c.b16 %v504, %v503
      %v527 = vpack.c.b16 %v506, %v505
      %v528 = vpack.c.b16 %v508, %v507
      %v529 = vpack.c.b16 %v510, %v509
      %v530 = vpack.c.b16 %v512, %v511
      %v565 = vunpack.c.l.b16 %v418
      %v566 = vunpack.c.l.b16 %v419
      %v567 = vunpack.c.l.b16 %v420
      %v568 = vunpack.c.l.b16 %v421
      %v569 = vunpack.c.l.b16 %v422
      %v570 = vunpack.c.l.b16 %v423
      %v571 = vunpack.c.l.b16 %v424
      %v572 = vunpack.c.l.b16 %v425
      %v573 = vunpack.c.l.b16 %v426
      %v574 = vunpack.c.l.b16 %v427
      %v575 = vunpack.c.l.b16 %v428
      %v576 = vunpack.c.l.b16 %v429
      %v577 = vunpack.c.l.b16 %v430
      %v578 = vunpack.c.l.b16 %v431
      %v579 = vunpack.c.l.b16 %v432
      %v580 = vunpack.c.l.b16 %v433
      %v581 = vpack.c.b16 %v566, %v565
      %v582 = vpack.c.b16 %v568, %v567
      %v583 = vpack.c.b16 %v570, %v569
      %v584 = vpack.c.b16 %v572, %v571
      %v585 = vpack.c.b16 %v574, %v573
      %v586 = vpack.c.b16 %v576, %v575
      %v587 = vpack.c.b16 %v578, %v577
      %v588 = vpack.c.b16 %v580, %v579
      %597 = vmatprep.subr.bf16.mxu0 0
      %598 = vmatpush1.bf16.msra.mxu0 %v581
      %599 = vmatprep.subr.bf16.mxu0 0
      %600 = vmatpush1.bf16.msra.mxu0 %v582
      %601 = vmatprep.subr.bf16.mxu0 0
      %602 = vmatpush1.bf16.msra.mxu0 %v583
      %603 = vmatprep.subr.bf16.mxu0 0
      %604 = vmatpush1.bf16.msra.mxu0 %v584
      %605 = vmatprep.subr.bf16.mxu0 0
      %606 = vmatpush1.bf16.msra.mxu0 %v585
      %607 = vmatprep.subr.bf16.mxu0 0
      %608 = vmatpush1.bf16.msra.mxu0 %v586
      %609 = vmatprep.subr.bf16.mxu0 0
      %610 = vmatpush1.bf16.msra.mxu0 %v587
      %611 = vmatprep.subr.bf16.mxu0 0
      %612 = vmatpush1.bf16.msra.mxu0 %v588
      %613 = vmatprep.subr.bf16.mxu0 0
      %614 = vmatpush1.bf16.msra.mxu0 0
      %615 = vmatprep.subr.bf16.mxu0 0
      %616 = vmatpush1.bf16.msra.mxu0 0
      %617 = vmatprep.subr.bf16.mxu0 0
      %618 = vmatpush1.bf16.msra.mxu0 0
      %619 = vmatprep.subr.bf16.mxu0 0
      %620 = vmatpush1.bf16.msra.mxu0 0
      %621 = vmatprep.subr.bf16.mxu0 0
      %622 = vmatpush1.bf16.msra.mxu0 0
      %623 = vmatprep.subr.bf16.mxu0 0
      %624 = vmatpush1.bf16.msra.mxu0 0
      %625 = vmatprep.subr.bf16.mxu0 0
      %626 = vmatpush1.bf16.msra.mxu0 0
      %627 = vmatprep.subr.bf16.mxu0 0
      %628 = vmatpush1.bf16.msra.mxu0 0
      %629 = vmatprep.mubr.bf16.mxu0 0
      %630 = vmatmul.mubr.bf16.gmra.mrb[0].mxu0 %v513
      %v631 = vpop.f32.mrb[0].mxu0
      %v632 = vadd.f32 %v439, %v631
      %v633 = vpop.f32.mrb[0].mxu0
      %v634 = vpop.f32.mrb[0].mxu0
      %v635 = vadd.f32 %v439, %v634
      %v636 = vpop.f32.mrb[0].mxu0
      %637 = vmatprep.mubr.bf16.mxu0 0
      %638 = vmatmul.mubr.bf16.gmra.mrb[0].mxu0 %v514
      %v639 = vpop.f32.mrb[0].mxu0
      %v640 = vadd.f32 %v439, %v639
      %v641 = vpop.f32.mrb[0].mxu0
      %v642 = vpop.f32.mrb[0].mxu0
      %v643 = vadd.f32 %v439, %v642
      %v644 = vpop.f32.mrb[0].mxu0
      %645 = vmatprep.mubr.bf16.mxu0 0
      %646 = vmatmul.mubr.bf16.gmra.mrb[0].mxu0 %v515
      %v647 = vpop.f32.mrb[0].mxu0
      %v648 = vadd.f32 %v439, %v647
      %v649 = vpop.f32.mrb[0].mxu0
      %v650 = vpop.f32.mrb[0].mxu0
      %v651 = vadd.f32 %v439, %v650
      %v652 = vpop.f32.mrb[0].mxu0
      %653 = vmatprep.mubr.bf16.mxu0 0
      %654 = vmatmul.mubr.bf16.gmra.mrb[0].mxu0 %v516
      %v655 = vpop.f32.mrb[0].mxu0
      %v656 = vadd.f32 %v439, %v655
      %v657 = vpop.f32.mrb[0].mxu0
      %v658 = vpop.f32.mrb[0].mxu0
      %v659 = vadd.f32 %v439, %v658
      %v660 = vpop.f32.mrb[0].mxu0
      %661 = vmatprep.mubr.bf16.mxu0 0
      %662 = vmatmul.mubr.bf16.gmra.mrb[0].mxu0 %v517
      %v663 = vpop.f32.mrb[0].mxu0
      %v664 = vadd.f32 %v439, %v663
      %v665 = vpop.f32.mrb[0].mxu0
      %v666 = vpop.f32.mrb[0].mxu0
      %v667 = vadd.f32 %v439, %v666
      %v668 = vpop.f32.mrb[0].mxu0
      %669 = vmatprep.mubr.bf16.mxu0 0
      %670 = vmatmul.mubr.bf16.gmra.mrb[0].mxu0 %v518
      %v671 = vpop.f32.mrb[0].mxu0
      %v672 = vadd.f32 %v439, %v671
      %v673 = vpop.f32.mrb[0].mxu0
      %v674 = vpop.f32.mrb[0].mxu0
      %v675 = vadd.f32 %v439, %v674
      %v676 = vpop.f32.mrb[0].mxu0
      %677 = vmatprep.mubr.bf16.mxu0 0
      %678 = vmatmul.mubr.bf16.gmra.mrb[0].mxu0 %v519
      %v679 = vpop.f32.mrb[0].mxu0
      %v680 = vadd.f32 %v439, %v679
      %v681 = vpop.f32.mrb[0].mxu0
      %v682 = vpop.f32.mrb[0].mxu0
      %v683 = vadd.f32 %v439, %v682
      %v684 = vpop.f32.mrb[0].mxu0
      %685 = vmatprep.mubr.bf16.mxu0 0
      %686 = vmatmul.mubr.bf16.gmra.mrb[0].mxu0 %v520
      %v687 = vpop.f32.mrb[0].mxu0
      %v688 = vadd.f32 %v439, %v687
      %v689 = vpop.f32.mrb[0].mxu0
      %v690 = vpop.f32.mrb[0].mxu0
      %v691 = vadd.f32 %v439, %v690
      %v692 = vpop.f32.mrb[0].mxu0
      %693 = vmatprep.mubr.bf16.mxu0 0
      %694 = vmatmul.mubr.bf16.gmra.mrb[0].mxu0 %v521
      %v695 = vpop.f32.mrb[0].mxu0
      %v696 = vadd.f32 %v439, %v695
      %v697 = vpop.f32.mrb[0].mxu0
      %v698 = vpop.f32.mrb[0].mxu0
      %v699 = vadd.f32 %v439, %v698
      %v700 = vpop.f32.mrb[0].mxu0
      %701 = vmatprep.mubr.bf16.mxu0 0
      %702 = vmatmul.mubr.bf16.gmra.mrb[0].mxu0 %v522
      %v703 = vpop.f32.mrb[0].mxu0
      %v704 = vadd.f32 %v439, %v703
      %v705 = vpop.f32.mrb[0].mxu0
      %v706 = vpop.f32.mrb[0].mxu0
      %v707 = vadd.f32 %v439, %v706
      %v708 = vpop.f32.mrb[0].mxu0
      %709 = vmatprep.mubr.bf16.mxu0 0
      %710 = vmatmul.mubr.bf16.gmra.mrb[0].mxu0 %v523
      %v711 = vpop.f32.mrb[0].mxu0
      %v712 = vadd.f32 %v439, %v711
      %v713 = vpop.f32.mrb[0].mxu0
      %v714 = vpop.f32.mrb[0].mxu0
      %v715 = vadd.f32 %v439, %v714
      %v716 = vpop.f32.mrb[0].mxu0
      %717 = vmatprep.mubr.bf16.mxu0 0
      %718 = vmatmul.mubr.bf16.gmra.mrb[0].mxu0 %v524
      %v719 = vpop.f32.mrb[0].mxu0
      %v720 = vadd.f32 %v439, %v719
      %v721 = vpop.f32.mrb[0].mxu0
      %v722 = vpop.f32.mrb[0].mxu0
      %v723 = vadd.f32 %v439, %v722
      %v724 = vpop.f32.mrb[0].mxu0
      %725 = vmatprep.mubr.bf16.mxu0 0
      %726 = vmatmul.mubr.bf16.gmra.mrb[0].mxu0 %v525
      %v727 = vpop.f32.mrb[0].mxu0
      %v728 = vadd.f32 %v439, %v727
      %v729 = vpop.f32.mrb[0].mxu0
      %v730 = vpop.f32.mrb[0].mxu0
      %v731 = vadd.f32 %v439, %v730
      %v732 = vpop.f32.mrb[0].mxu0
      %733 = vmatprep.mubr.bf16.mxu0 0
      %734 = vmatmul.mubr.bf16.gmra.mrb[0].mxu0 %v526
      %v735 = vpop.f32.mrb[0].mxu0
      %v736 = vadd.f32 %v439, %v735
      %v737 = vpop.f32.mrb[0].mxu0
      %v738 = vpop.f32.mrb[0].mxu0
      %v739 = vadd.f32 %v439, %v738
      %v740 = vpop.f32.mrb[0].mxu0
      %741 = vmatprep.mubr.bf16.mxu0 0
      %742 = vmatmul.mubr.bf16.gmra.mrb[0].mxu0 %v527
      %v743 = vpop.f32.mrb[0].mxu0
      %v744 = vadd.f32 %v439, %v743
      %v745 = vpop.f32.mrb[0].mxu0
      %v746 = vpop.f32.mrb[0].mxu0
      %v747 = vadd.f32 %v439, %v746
      %v748 = vpop.f32.mrb[0].mxu0
      %749 = vmatprep.mubr.bf16.mxu0 0
      %750 = vmatmul.mubr.bf16.gmra.mrb[0].mxu0 %v528
      %v751 = vpop.f32.mrb[0].mxu0
      %v752 = vadd.f32 %v439, %v751
      %v753 = vpop.f32.mrb[0].mxu0
      %v754 = vpop.f32.mrb[0].mxu0
      %v755 = vadd.f32 %v439, %v754
      %v756 = vpop.f32.mrb[0].mxu0
      %757 = vmatprep.mubr.bf16.mxu0 0
      %758 = vmatmul.mubr.bf16.gmra.mrb[0].mxu0 %v529
      %v759 = vpop.f32.mrb[0].mxu0
      %v760 = vadd.f32 %v439, %v759
      %v761 = vpop.f32.mrb[0].mxu0
      %v762 = vpop.f32.mrb[0].mxu0
      %v763 = vadd.f32 %v439, %v762
      %v764 = vpop.f32.mrb[0].mxu0
      %765 = vmatprep.mubr.bf16.mxu0 0
      %766 = vmatmul.mubr.bf16.gmra.mrb[0].mxu0 %v530
      %v767 = vpop.f32.mrb[0].mxu0
      %v768 = vadd.f32 %v439, %v767
      %v769 = vpop.f32.mrb[0].mxu0
      %v770 = vpop.f32.mrb[0].mxu0
      %v771 = vadd.f32 %v439, %v770
      %v772 = vpop.f32.mrb[0].mxu0
      %773 = vdwg.mxu0
      %v774 = vmul.f32 %v632, 3.3333333
      %v775 = vmul.f32 %v635, 3.3333333
      %v776 = vmul.f32 %v640, 3.3333333
      %v777 = vmul.f32 %v643, 3.3333333
      %v778 = vmul.f32 %v648, 3.3333333
      %v779 = vmul.f32 %v651, 3.3333333
      %v780 = vmul.f32 %v656, 3.3333333
      %v781 = vmul.f32 %v659, 3.3333333
      %v782 = vmul.f32 %v664, 3.3333333
      %v783 = vmul.f32 %v667, 3.3333333
      %v784 = vmul.f32 %v672, 3.3333333
      %v785 = vmul.f32 %v675, 3.3333333
      %v786 = vmul.f32 %v680, 3.3333333
      %v787 = vmul.f32 %v683, 3.3333333
      %v788 = vmul.f32 %v688, 3.3333333
      %v789 = vmul.f32 %v691, 3.3333333
      %v790 = vmul.f32 %v696, 3.3333333
      %v791 = vmul.f32 %v699, 3.3333333
      %v792 = vmul.f32 %v704, 3.3333333
      %v793 = vmul.f32 %v707, 3.3333333
      %v794 = vmul.f32 %v712, 3.3333333
      %v795 = vmul.f32 %v715, 3.3333333
      %v796 = vmul.f32 %v720, 3.3333333
      %v797 = vmul.f32 %v723, 3.3333333
      %v798 = vmul.f32 %v728, 3.3333333
      %v799 = vmul.f32 %v731, 3.3333333
      %v800 = vmul.f32 %v736, 3.3333333
      %v801 = vmul.f32 %v739, 3.3333333
      %v802 = vmul.f32 %v744, 3.3333333
      %v803 = vmul.f32 %v747, 3.3333333
      %v804 = vmul.f32 %v752, 3.3333333
      %v805 = vmul.f32 %v755, 3.3333333
      %v806 = vmul.f32 %v760, 3.3333333
      %v807 = vmul.f32 %v763, 3.3333333
      %v808 = vmul.f32 %v768, 3.3333333
      %v809 = vmul.f32 %v771, 3.3333333
      %v810 = vsub.f32 1.0, %v632
      %v811 = vsub.f32 1.0, %v635
      %v812 = vsub.f32 1.0, %v640
      %v813 = vsub.f32 1.0, %v643
      %v814 = vsub.f32 1.0, %v648
      %v815 = vsub.f32 1.0, %v651
      %v816 = vsub.f32 1.0, %v656
      %v817 = vsub.f32 1.0, %v659
      %v818 = vsub.f32 1.0, %v664
      %v819 = vsub.f32 1.0, %v667
      %v820 = vsub.f32 1.0, %v672
      %v821 = vsub.f32 1.0, %v675
      %v822 = vsub.f32 1.0, %v680
      %v823 = vsub.f32 1.0, %v683
      %v824 = vsub.f32 1.0, %v688
      %v825 = vsub.f32 1.0, %v691
      %v826 = vsub.f32 1.0, %v696
      %v827 = vsub.f32 1.0, %v699
      %v828 = vsub.f32 1.0, %v704
      %v829 = vsub.f32 1.0, %v707
      %v830 = vsub.f32 1.0, %v712
      %v831 = vsub.f32 1.0, %v715
      %v832 = vsub.f32 1.0, %v720
      %v833 = vsub.f32 1.0, %v723
      %v834 = vsub.f32 1.0, %v728
      %v835 = vsub.f32 1.0, %v731
      %v836 = vsub.f32 1.0, %v736
      %v837 = vsub.f32 1.0, %v739
      %v838 = vsub.f32 1.0, %v744
      %v839 = vsub.f32 1.0, %v747
      %v840 = vsub.f32 1.0, %v752
      %v841 = vsub.f32 1.0, %v755
      %v842 = vsub.f32 1.0, %v760
      %v843 = vsub.f32 1.0, %v763
      %v844 = vsub.f32 1.0, %v768
      %v845 = vsub.f32 1.0, %v771
      %v846 = vmul.f32 %v810, 3.3333333
      %v847 = vmul.f32 %v811, 3.3333333
      %v848 = vmul.f32 %v812, 3.3333333
      %v849 = vmul.f32 %v813, 3.3333333
      %v850 = vmul.f32 %v814, 3.3333333
      %v851 = vmul.f32 %v815, 3.3333333
      %v852 = vmul.f32 %v816, 3.3333333
      %v853 = vmul.f32 %v817, 3.3333333
      %v854 = vmul.f32 %v818, 3.3333333
      %v855 = vmul.f32 %v819, 3.3333333
      %v856 = vmul.f32 %v820, 3.3333333
      %v857 = vmul.f32 %v821, 3.3333333
      %v858 = vmul.f32 %v822, 3.3333333
      %v859 = vmul.f32 %v823, 3.3333333
      %v860 = vmul.f32 %v824, 3.3333333
      %v861 = vmul.f32 %v825, 3.3333333
      %v862 = vmul.f32 %v826, 3.3333333
      %v863 = vmul.f32 %v827, 3.3333333
      %v864 = vmul.f32 %v828, 3.3333333
      %v865 = vmul.f32 %v829, 3.3333333
      %v866 = vmul.f32 %v830, 3.3333333
      %v867 = vmul.f32 %v831, 3.3333333
      %v868 = vmul.f32 %v832, 3.3333333
      %v869 = vmul.f32 %v833, 3.3333333
      %v870 = vmul.f32 %v834, 3.3333333
      %v871 = vmul.f32 %v835, 3.3333333
      %v872 = vmul.f32 %v836, 3.3333333
      %v873 = vmul.f32 %v837, 3.3333333
      %v874 = vmul.f32 %v838, 3.3333333
      %v875 = vmul.f32 %v839, 3.3333333
      %v876 = vmul.f32 %v840, 3.3333333
      %v877 = vmul.f32 %v841, 3.3333333
      %v878 = vmul.f32 %v842, 3.3333333
      %v879 = vmul.f32 %v843, 3.3333333
      %v880 = vmul.f32 %v844, 3.3333333
      %v881 = vmul.f32 %v845, 3.3333333
      %v882 = vmin.f32 %v774, %v846
      %v883 = vmin.f32 %v775, %v847
      %v884 = vmin.f32 %v776, %v848
      %v885 = vmin.f32 %v777, %v849
      %v886 = vmin.f32 %v778, %v850
      %v887 = vmin.f32 %v779, %v851
      %v888 = vmin.f32 %v780, %v852
      %v889 = vmin.f32 %v781, %v853
      %v890 = vmin.f32 %v782, %v854
      %v891 = vmin.f32 %v783, %v855
      %v892 = vmin.f32 %v784, %v856
      %v893 = vmin.f32 %v785, %v857
      %v894 = vmin.f32 %v786, %v858
      %v895 = vmin.f32 %v787, %v859
      %v896 = vmin.f32 %v788, %v860
      %v897 = vmin.f32 %v789, %v861
      %v898 = vmin.f32 %v790, %v862
      %v899 = vmin.f32 %v791, %v863
      %v900 = vmin.f32 %v792, %v864
      %v901 = vmin.f32 %v793, %v865
      %v902 = vmin.f32 %v794, %v866
      %v903 = vmin.f32 %v795, %v867
      %v904 = vmin.f32 %v796, %v868
      %v905 = vmin.f32 %v797, %v869
      %v906 = vmin.f32 %v798, %v870
      %v907 = vmin.f32 %v799, %v871
      %v908 = vmin.f32 %v800, %v872
      %v909 = vmin.f32 %v801, %v873
      %v910 = vmin.f32 %v802, %v874
      %v911 = vmin.f32 %v803, %v875
      %v912 = vmin.f32 %v804, %v876
      %v913 = vmin.f32 %v805, %v877
      %v914 = vmin.f32 %v806, %v878
      %v915 = vmin.f32 %v807, %v879
      %v916 = vmin.f32 %v808, %v880
      %v917 = vmin.f32 %v809, %v881
      %v918 = vmax.f32 %v882, 0.0
      %v919 = vmax.f32 %v883, 0.0
      %v920 = vmax.f32 %v884, 0.0
      %v921 = vmax.f32 %v885, 0.0
      %v922 = vmax.f32 %v886, 0.0
      %v923 = vmax.f32 %v887, 0.0
      %v924 = vmax.f32 %v888, 0.0
      %v925 = vmax.f32 %v889, 0.0
      %v926 = vmax.f32 %v890, 0.0
      %v927 = vmax.f32 %v891, 0.0
      %v928 = vmax.f32 %v892, 0.0
      %v929 = vmax.f32 %v893, 0.0
      %v930 = vmax.f32 %v894, 0.0
      %v931 = vmax.f32 %v895, 0.0
      %v932 = vmax.f32 %v896, 0.0
      %v933 = vmax.f32 %v897, 0.0
      %v934 = vmax.f32 %v898, 0.0
      %v935 = vmax.f32 %v899, 0.0
      %v936 = vmax.f32 %v900, 0.0
      %v937 = vmax.f32 %v901, 0.0
      %v938 = vmax.f32 %v902, 0.0
      %v939 = vmax.f32 %v903, 0.0
      %v940 = vmax.f32 %v904, 0.0
      %v941 = vmax.f32 %v905, 0.0
      %v942 = vmax.f32 %v906, 0.0
      %v943 = vmax.f32 %v907, 0.0
      %v944 = vmax.f32 %v908, 0.0
      %v945 = vmax.f32 %v909, 0.0
      %v946 = vmax.f32 %v910, 0.0
      %v947 = vmax.f32 %v911, 0.0
      %v948 = vmax.f32 %v912, 0.0
      %v949 = vmax.f32 %v913, 0.0
      %v950 = vmax.f32 %v914, 0.0
      %v951 = vmax.f32 %v915, 0.0
      %v952 = vmax.f32 %v916, 0.0
      %v953 = vmax.f32 %v917, 0.0
      %954 = vst [vmem:[%s354] sm:$0xff] %v918
      %955 = vst [vmem:[%s354 + $0x8] sm:$0xff] %v919
      %956 = vst [vmem:[%s354 + $0x10] sm:$0xff] %v920
      %957 = vst [vmem:[%s354 + $0x18] sm:$0xff] %v921
      %958 = vst [vmem:[%s354 + $0x20] sm:$0xff] %v922
      %959 = vst [vmem:[%s354 + $0x28] sm:$0xff] %v923
      %960 = vst [vmem:[%s354 + $0x30] sm:$0xff] %v924
      %961 = vst [vmem:[%s354 + $0x38] sm:$0xff] %v925
      %962 = vst [vmem:[%s354 + $0x40] sm:$0xff] %v926
      %963 = vst [vmem:[%s354 + $0x48] sm:$0xff] %v927
      %964 = vst [vmem:[%s354 + $0x50] sm:$0xff] %v928
      %965 = vst [vmem:[%s354 + $0x58] sm:$0xff] %v929
      %966 = vst [vmem:[%s354 + $0x60] sm:$0xff] %v930
      %967 = vst [vmem:[%s354 + $0x68] sm:$0xff] %v931
      %968 = vst [vmem:[%s354 + $0x70] sm:$0xff] %v932
      %969 = vst [vmem:[%s354 + $0x78] sm:$0xff] %v933
      %970 = vst [vmem:[%s354 + $0x80] sm:$0xff] %v934
      %971 = vst [vmem:[%s354 + $0x88] sm:$0xff] %v935
      %972 = vst [vmem:[%s354 + $0x90] sm:$0xff] %v936
      %973 = vst [vmem:[%s354 + $0x98] sm:$0xff] %v937
      %974 = vst [vmem:[%s354 + $0xa0] sm:$0xff] %v938
      %975 = vst [vmem:[%s354 + $0xa8] sm:$0xff] %v939
      %976 = vst [vmem:[%s354 + $0xb0] sm:$0xff] %v940
      %977 = vst [vmem:[%s354 + $0xb8] sm:$0xff] %v941
      %978 = vst [vmem:[%s354 + $0xc0] sm:$0xff] %v942
      %979 = vst [vmem:[%s354 + $0xc8] sm:$0xff] %v943
      %980 = vst [vmem:[%s354 + $0xd0] sm:$0xff] %v944
      %981 = vst [vmem:[%s354 + $0xd8] sm:$0xff] %v945
      %982 = vst [vmem:[%s354 + $0xe0] sm:$0xff] %v946
      %983 = vst [vmem:[%s354 + $0xe8] sm:$0xff] %v947
      %984 = vst [vmem:[%s354 + $0xf0] sm:$0xff] %v948
      %985 = vst [vmem:[%s354 + $0xf8] sm:$0xff] %v949
      %986 = vst [vmem:[%s354 + $0x100] sm:$0xff] %v950
      %987 = vst [vmem:[%s354 + $0x108] sm:$0xff] %v951
      %988 = vst [vmem:[%s354 + $0x110] sm:$0xff] %v952
      %989 = vst [vmem:[%s354 + $0x118] sm:$0xff] %v953
      %990 = vst [vmem:[%s364] sm:$0xff] %v918
      %991 = vst [vmem:[%s364 + $0x8] sm:$0xff] %v919
      %992 = vst [vmem:[%s364 + $0x10] sm:$0x3] %v920
      %993 = vst [vmem:[%s373 - $0x6] sm:$0xc0] %v951
      %994 = vst [vmem:[%s373 + $0x2] sm:$0xff] %v952
      %995 = vst [vmem:[%s373 + $0xa] sm:$0xff] %v953
      %v996 = vld [vmem:[%s3] sm:$0xff]
      %v997 = vld [vmem:[%s3 + $0x8] sm:$0xff]
      %v998 = vld [vmem:[%s3 + $0x10] sm:$0xff]
      %v999 = vld [vmem:[%s3 + $0x18] sm:$0xff]
      %v1000 = vld [vmem:[%s3 + $0x20] sm:$0xff]
      %v1001 = vld [vmem:[%s3 + $0x28] sm:$0xff]
      %v1002 = vld [vmem:[%s3 + $0x30] sm:$0xff]
      %v1003 = vld [vmem:[%s3 + $0x38] sm:$0xff]
      %v1004 = vld [vmem:[%s3 + $0x40] sm:$0xff]
      %v1005 = vld [vmem:[%s3 + $0x48] sm:$0xff]
      %v1006 = vld [vmem:[%s3 + $0x50] sm:$0xff]
      %v1007 = vld [vmem:[%s3 + $0x58] sm:$0xff]
      %v1008 = vld [vmem:[%s3 + $0x60] sm:$0xff]
      %v1009 = vld [vmem:[%s3 + $0x68] sm:$0xff]
      %v1010 = vld [vmem:[%s3 + $0x70] sm:$0xff]
      %v1011 = vld [vmem:[%s3 + $0x78] sm:$0xff]
      %v1012 = vld [vmem:[%s3 + $0x80] sm:$0xff]
      %v1013 = vld [vmem:[%s3 + $0x88] sm:$0xff]
      %v1014 = vld [vmem:[%s3 + $0x90] sm:$0xff]
      %v1015 = vld [vmem:[%s3 + $0x98] sm:$0xff]
      %v1016 = vld [vmem:[%s3 + $0xa0] sm:$0xff]
      %v1017 = vld [vmem:[%s3 + $0xa8] sm:$0xff]
      %v1018 = vld [vmem:[%s3 + $0xb0] sm:$0xff]
      %v1019 = vld [vmem:[%s3 + $0xb8] sm:$0xff]
      %v1020 = vld [vmem:[%s3 + $0xc0] sm:$0xff]
      %v1021 = vld [vmem:[%s3 + $0xc8] sm:$0xff]
      %v1022 = vld [vmem:[%s3 + $0xd0] sm:$0xff]
      %v1023 = vld [vmem:[%s3 + $0xd8] sm:$0xff]
      %v1024 = vld [vmem:[%s3 + $0xe0] sm:$0xff]
      %v1025 = vld [vmem:[%s3 + $0xe8] sm:$0xff]
      %v1026 = vld [vmem:[%s3 + $0xf0] sm:$0xff]
      %v1027 = vld [vmem:[%s3 + $0xf8] sm:$0xff]
      %v1028 = vld [vmem:[%s3 + $0x100] sm:$0xff]
      %v1029 = vld [vmem:[%s3 + $0x108] sm:$0xff]
      %v1030 = vld [vmem:[%s3 + $0x110] sm:$0xff]
      %v1031 = vld [vmem:[%s3 + $0x118] sm:$0xff]
      %1033 = vset.pattern.permute.xlu0 0
      %1034 = vperm.xlu0 %1033, %v996
      %v1035 = vpop.permute.xlu0 %1034
      %1038 = vset.pattern.permute.xlu0 0
      %1039 = vperm.xlu0 %1038, %v997
      %v1040 = vpop.permute.xlu0 %1039
      %1043 = vset.pattern.permute.xlu0 0
      %1044 = vperm.xlu0 %1043, %v998
      %v1045 = vpop.permute.xlu0 %1044
      %1048 = vset.pattern.permute.xlu0 0
      %1049 = vperm.xlu0 %1048, %v999
      %v1050 = vpop.permute.xlu0 %1049
      %1053 = vset.pattern.permute.xlu0 0
      %1054 = vperm.xlu0 %1053, %v1000
      %v1055 = vpop.permute.xlu0 %1054
      %1058 = vset.pattern.permute.xlu0 0
      %1059 = vperm.xlu0 %1058, %v1001
      %v1060 = vpop.permute.xlu0 %1059
      %1063 = vset.pattern.permute.xlu0 0
      %1064 = vperm.xlu0 %1063, %v1002
      %v1065 = vpop.permute.xlu0 %1064
      %1068 = vset.pattern.permute.xlu0 0
      %1069 = vperm.xlu0 %1068, %v1003
      %v1070 = vpop.permute.xlu0 %1069
      %1073 = vset.pattern.permute.xlu0 0
      %1074 = vperm.xlu0 %1073, %v1004
      %v1075 = vpop.permute.xlu0 %1074
      %1078 = vset.pattern.permute.xlu0 0
      %1079 = vperm.xlu0 %1078, %v1005
      %v1080 = vpop.permute.xlu0 %1079
      %1083 = vset.pattern.permute.xlu0 0
      %1084 = vperm.xlu0 %1083, %v1006
      %v1085 = vpop.permute.xlu0 %1084
      %1088 = vset.pattern.permute.xlu0 0
      %1089 = vperm.xlu0 %1088, %v1007
      %v1090 = vpop.permute.xlu0 %1089
      %1093 = vset.pattern.permute.xlu0 0
      %1094 = vperm.xlu0 %1093, %v1008
      %v1095 = vpop.permute.xlu0 %1094
      %1098 = vset.pattern.permute.xlu0 0
      %1099 = vperm.xlu0 %1098, %v1009
      %v1100 = vpop.permute.xlu0 %1099
      %1103 = vset.pattern.permute.xlu0 0
      %1104 = vperm.xlu0 %1103, %v1010
      %v1105 = vpop.permute.xlu0 %1104
      %1108 = vset.pattern.permute.xlu0 0
      %1109 = vperm.xlu0 %1108, %v1011
      %v1110 = vpop.permute.xlu0 %1109
      %1113 = vset.pattern.permute.xlu0 0
      %1114 = vperm.xlu0 %1113, %v1012
      %v1115 = vpop.permute.xlu0 %1114
      %1118 = vset.pattern.permute.xlu0 0
      %1119 = vperm.xlu0 %1118, %v1013
      %v1120 = vpop.permute.xlu0 %1119
      %1123 = vset.pattern.permute.xlu0 0
      %1124 = vperm.xlu0 %1123, %v1014
      %v1125 = vpop.permute.xlu0 %1124
      %1128 = vset.pattern.permute.xlu0 0
      %1129 = vperm.xlu0 %1128, %v1015
      %v1130 = vpop.permute.xlu0 %1129
      %1133 = vset.pattern.permute.xlu0 0
      %1134 = vperm.xlu0 %1133, %v1016
      %v1135 = vpop.permute.xlu0 %1134
      %1138 = vset.pattern.permute.xlu0 0
      %1139 = vperm.xlu0 %1138, %v1017
      %v1140 = vpop.permute.xlu0 %1139
      %1143 = vset.pattern.permute.xlu0 0
      %1144 = vperm.xlu0 %1143, %v1018
      %v1145 = vpop.permute.xlu0 %1144
      %1148 = vset.pattern.permute.xlu0 0
      %1149 = vperm.xlu0 %1148, %v1019
      %v1150 = vpop.permute.xlu0 %1149
      %1153 = vset.pattern.permute.xlu0 0
      %1154 = vperm.xlu0 %1153, %v1020
      %v1155 = vpop.permute.xlu0 %1154
      %1158 = vset.pattern.permute.xlu0 0
      %1159 = vperm.xlu0 %1158, %v1021
      %v1160 = vpop.permute.xlu0 %1159
      %1163 = vset.pattern.permute.xlu0 0
      %1164 = vperm.xlu0 %1163, %v1022
      %v1165 = vpop.permute.xlu0 %1164
      %1168 = vset.pattern.permute.xlu0 0
      %1169 = vperm.xlu0 %1168, %v1023
      %v1170 = vpop.permute.xlu0 %1169
      %1173 = vset.pattern.permute.xlu0 0
      %1174 = vperm.xlu0 %1173, %v1024
      %v1175 = vpop.permute.xlu0 %1174
      %1178 = vset.pattern.permute.xlu0 0
      %1179 = vperm.xlu0 %1178, %v1025
      %v1180 = vpop.permute.xlu0 %1179
      %1183 = vset.pattern.permute.xlu0 0
      %1184 = vperm.xlu0 %1183, %v1026
      %v1185 = vpop.permute.xlu0 %1184
      %1188 = vset.pattern.permute.xlu0 0
      %1189 = vperm.xlu0 %1188, %v1027
      %v1190 = vpop.permute.xlu0 %1189
      %1193 = vset.pattern.permute.xlu0 0
      %1194 = vperm.xlu0 %1193, %v1028
      %v1195 = vpop.permute.xlu0 %1194
      %1198 = vset.pattern.permute.xlu0 0
      %1199 = vperm.xlu0 %1198, %v1029
      %v1200 = vpop.permute.xlu0 %1199
      %1203 = vset.pattern.permute.xlu0 0
      %1204 = vperm.xlu0 %1203, %v1030
      %v1205 = vpop.permute.xlu0 %1204
      %1208 = vset.pattern.permute.xlu0 0
      %1209 = vperm.xlu0 %1208, %v1031
      %v1210 = vpop.permute.xlu0 %1209
      %v1212 = vmul.f32 %v918, %v1035
      %v1213 = vmul.f32 %v919, %v1040
      %v1214 = vmul.f32 %v920, %v1045
      %v1215 = vmul.f32 %v921, %v1050
      %v1216 = vmul.f32 %v922, %v1055
      %v1217 = vmul.f32 %v923, %v1060
      %v1218 = vmul.f32 %v924, %v1065
      %v1219 = vmul.f32 %v925, %v1070
      %v1220 = vmul.f32 %v926, %v1075
      %v1221 = vmul.f32 %v927, %v1080
      %v1222 = vmul.f32 %v928, %v1085
      %v1223 = vmul.f32 %v929, %v1090
      %v1224 = vmul.f32 %v930, %v1095
      %v1225 = vmul.f32 %v931, %v1100
      %v1226 = vmul.f32 %v932, %v1105
      %v1227 = vmul.f32 %v933, %v1110
      %v1228 = vmul.f32 %v934, %v1115
      %v1229 = vmul.f32 %v935, %v1120
      %v1230 = vmul.f32 %v936, %v1125
      %v1231 = vmul.f32 %v937, %v1130
      %v1232 = vmul.f32 %v938, %v1135
      %v1233 = vmul.f32 %v939, %v1140
      %v1234 = vmul.f32 %v940, %v1145
      %v1235 = vmul.f32 %v941, %v1150
      %v1236 = vmul.f32 %v942, %v1155
      %v1237 = vmul.f32 %v943, %v1160
      %v1238 = vmul.f32 %v944, %v1165
      %v1239 = vmul.f32 %v945, %v1170
      %v1240 = vmul.f32 %v946, %v1175
      %v1241 = vmul.f32 %v947, %v1180
      %v1242 = vmul.f32 %v948, %v1185
      %v1243 = vmul.f32 %v949, %v1190
      %v1244 = vmul.f32 %v950, %v1195
      %v1245 = vmul.f32 %v951, %v1200
      %v1246 = vmul.f32 %v952, %v1205
      %v1247 = vmul.f32 %v953, %v1210
      %v1248 = vadd.f32 %v1212, %v1213
      %v1249 = vadd.f32 %v1248, %v1214
      %v1250 = vadd.f32 %v1249, %v1215
      %v1251 = vadd.f32 %v1250, %v1216
      %v1252 = vadd.f32 %v1251, %v1217
      %v1253 = vadd.f32 %v1252, %v1218
      %v1254 = vadd.f32 %v1253, %v1219
      %v1255 = vadd.f32 %v1254, %v1220
      %v1256 = vadd.f32 %v1255, %v1221
      %v1257 = vadd.f32 %v1256, %v1222
      %v1258 = vadd.f32 %v1257, %v1223
      %v1259 = vadd.f32 %v1258, %v1224
      %v1260 = vadd.f32 %v1259, %v1225
      %v1261 = vadd.f32 %v1260, %v1226
      %v1262 = vadd.f32 %v1261, %v1227
      %v1263 = vadd.f32 %v1262, %v1228
      %v1264 = vadd.f32 %v1263, %v1229
      %v1265 = vadd.f32 %v1264, %v1230
      %v1266 = vadd.f32 %v1265, %v1231
      %v1267 = vadd.f32 %v1266, %v1232
      %v1268 = vadd.f32 %v1267, %v1233
      %v1269 = vadd.f32 %v1268, %v1234
      %v1270 = vadd.f32 %v1269, %v1235
      %v1271 = vadd.f32 %v1270, %v1236
      %v1272 = vadd.f32 %v1271, %v1237
      %v1273 = vadd.f32 %v1272, %v1238
      %v1274 = vadd.f32 %v1273, %v1239
      %v1275 = vadd.f32 %v1274, %v1240
      %v1276 = vadd.f32 %v1275, %v1241
      %v1277 = vadd.f32 %v1276, %v1242
      %v1278 = vadd.f32 %v1277, %v1243
      %v1279 = vadd.f32 %v1278, %v1244
      %v1280 = vadd.f32 %v1279, %v1245
      %v1281 = vadd.f32 %v1280, %v1246
      %v1282 = vadd.f32 %v1281, %v1247
      %v1283 = vrot.slane %v1282, 4
      %v1284 = vadd.f32 %v1282, %v1283
      %v1285 = vrot.slane %v1284, 2
      %v1286 = vadd.f32 %v1284, %v1285
      %v1287 = vrot.slane %v1286, 1
      %v1288 = vadd.f32 %v1286, %v1287
      %v1289 = vmul.f32 %v1212, %v918
      %v1290 = vmul.f32 %v1213, %v919
      %v1291 = vmul.f32 %v1214, %v920
      %v1292 = vmul.f32 %v1215, %v921
      %v1293 = vmul.f32 %v1216, %v922
      %v1294 = vmul.f32 %v1217, %v923
      %v1295 = vmul.f32 %v1218, %v924
      %v1296 = vmul.f32 %v1219, %v925
      %v1297 = vmul.f32 %v1220, %v926
      %v1298 = vmul.f32 %v1221, %v927
      %v1299 = vmul.f32 %v1222, %v928
      %v1300 = vmul.f32 %v1223, %v929
      %v1301 = vmul.f32 %v1224, %v930
      %v1302 = vmul.f32 %v1225, %v931
      %v1303 = vmul.f32 %v1226, %v932
      %v1304 = vmul.f32 %v1227, %v933
      %v1305 = vmul.f32 %v1228, %v934
      %v1306 = vmul.f32 %v1229, %v935
      %v1307 = vmul.f32 %v1230, %v936
      %v1308 = vmul.f32 %v1231, %v937
      %v1309 = vmul.f32 %v1232, %v938
      %v1310 = vmul.f32 %v1233, %v939
      %v1311 = vmul.f32 %v1234, %v940
      %v1312 = vmul.f32 %v1235, %v941
      %v1313 = vmul.f32 %v1236, %v942
      %v1314 = vmul.f32 %v1237, %v943
      %v1315 = vmul.f32 %v1238, %v944
      %v1316 = vmul.f32 %v1239, %v945
      %v1317 = vmul.f32 %v1240, %v946
      %v1318 = vmul.f32 %v1241, %v947
      %v1319 = vmul.f32 %v1242, %v948
      %v1320 = vmul.f32 %v1243, %v949
      %v1321 = vmul.f32 %v1244, %v950
      %v1322 = vmul.f32 %v1245, %v951
      %v1323 = vmul.f32 %v1246, %v952
      %v1324 = vmul.f32 %v1247, %v953
      %v1325 = vadd.f32 %v1289, %v1290
      %v1326 = vadd.f32 %v1325, %v1291
      %v1327 = vadd.f32 %v1326, %v1292
      %v1328 = vadd.f32 %v1327, %v1293
      %v1329 = vadd.f32 %v1328, %v1294
      %v1330 = vadd.f32 %v1329, %v1295
      %v1331 = vadd.f32 %v1330, %v1296
      %v1332 = vadd.f32 %v1331, %v1297
      %v1333 = vadd.f32 %v1332, %v1298
      %v1334 = vadd.f32 %v1333, %v1299
      %v1335 = vadd.f32 %v1334, %v1300
      %v1336 = vadd.f32 %v1335, %v1301
      %v1337 = vadd.f32 %v1336, %v1302
      %v1338 = vadd.f32 %v1337, %v1303
      %v1339 = vadd.f32 %v1338, %v1304
      %v1340 = vadd.f32 %v1339, %v1305
      %v1341 = vadd.f32 %v1340, %v1306
      %v1342 = vadd.f32 %v1341, %v1307
      %v1343 = vadd.f32 %v1342, %v1308
      %v1344 = vadd.f32 %v1343, %v1309
      %v1345 = vadd.f32 %v1344, %v1310
      %v1346 = vadd.f32 %v1345, %v1311
      %v1347 = vadd.f32 %v1346, %v1312
      %v1348 = vadd.f32 %v1347, %v1313
      %v1349 = vadd.f32 %v1348, %v1314
      %v1350 = vadd.f32 %v1349, %v1315
      %v1351 = vadd.f32 %v1350, %v1316
      %v1352 = vadd.f32 %v1351, %v1317
      %v1353 = vadd.f32 %v1352, %v1318
      %v1354 = vadd.f32 %v1353, %v1319
      %v1355 = vadd.f32 %v1354, %v1320
      %v1356 = vadd.f32 %v1355, %v1321
      %v1357 = vadd.f32 %v1356, %v1322
      %v1358 = vadd.f32 %v1357, %v1323
      %v1359 = vadd.f32 %v1358, %v1324
      %v1360 = vrot.slane %v1359, 4
      %v1361 = vadd.f32 %v1359, %v1360
      %v1362 = vrot.slane %v1361, 2
      %v1363 = vadd.f32 %v1361, %v1362
      %v1364 = vrot.slane %v1363, 1
      %v1365 = vadd.f32 %v1363, %v1364
      %vm1366 = vcmask 1040384
      %v1367 = vsel %vm1366, %v1288, %v1365
      %1368 = vst [vmem:[%s380] sm:$0x3] %v1367
      %s1369 = smul.u32 36, %s24
      %p1370 = scmp.lt.s32.totalorder %s23, 1
      %s1371 = scalar_select %p1370, %s23, 1
      %p1372 = scmp.lt.s32.totalorder %s1369, 35
      %s1373 = scalar_select %p1372, %s1369, 35
      %s1374 = smul.addr %s1371, 36
      %s1375 = sadd.s32 %s1373, %s1374
      %s1376 = smul.addr %s1375, 8
      %s1377 = scalar_lea.vmem %s4, %s1376
      %p1378 = scmp.lt.s32.totalorder %s23, 1
      %s1379 = scalar_select %p1378, %s23, 1
      %p1380 = scmp.lt.s32.totalorder %s24, 0
      %s1381 = scalar_select %p1380, %s24, 0
      %s1382 = smul.addr %s1381, 3
      %s1383 = smul.addr %s1379, 3
      %s1384 = sadd.s32 %s1382, %s1383
      %s1385 = smul.addr %s1384, 8
      %s1386 = scalar_lea.vmem %s5, %s1385
      %p1387 = scmp.lt.s32.totalorder %s23, 1
      %s1388 = scalar_select %p1387, %s23, 1
      %p1389 = scmp.lt.s32.totalorder %s24, 0
      %s1390 = scalar_select %p1389, %s24, 0
      %s1391 = smul.addr %s1390, 3
      %s1392 = smul.addr %s1388, 3
      %s1393 = sadd.s32 %s1391, %s1392
      %s1394 = smul.addr %s1393, 8
      %s1395 = scalar_lea.vmem %s6, %s1394
      %p1396 = scmp.lt.s32.totalorder %s23, 1
      %s1397 = scalar_select %p1396, %s23, 1
      %p1398 = scmp.lt.s32.totalorder %s24, 0
      %s1399 = scalar_select %p1398, %s24, 0
      %s1400 = sadd.s32 %s1399, %s1397
      %s1401 = smul.addr %s1400, 2
      %s1402 = scalar_lea.vmem %s7, %s1401
      // Predicated region
      $region37: #{double_conv_forward.3} parent=35 // pred_check
        %p1403 = pneg %p142
      $region38: #{double_conv_forward.3} parent=35 // pred_check_branch
        %1405 = sbr.rel (%p1403) target = $region40
      $region39: #{double_conv_forward.3} parent=35 // pred_region
        %s1406 = smul.u32 36, %s24
      $region40: #{double_conv_forward.3} parent=35 // pred_fallthru
        _
      // Predicated region
      $region41: #{double_conv_forward.3} parent=35 // pred_check
        %p1407 = pneg %p170
      $region42: #{double_conv_forward.3} parent=35 // pred_check_branch
        %1409 = sbr.rel (%p1407) target = $region44
      $region43: #{double_conv_forward.3} parent=35 // pred_region
        _
      $region44: #{double_conv_forward.3} parent=35 // pred_fallthru
        _
      // Predicated region
      $region45: #{double_conv_forward.3} parent=35 // pred_check
        %p1410 = pneg %p198
      $region46: #{double_conv_forward.3} parent=35 // pred_check_branch
        %1412 = sbr.rel (%p1410) target = $region48
      $region47: #{double_conv_forward.3} parent=35 // pred_region
        _
      $region48: #{double_conv_forward.3} parent=35 // pred_fallthru
        _
      // Predicated region
      $region49: #{double_conv_forward.3} parent=35 // pred_check
        %p1413 = pneg %p226
      $region50: #{double_conv_forward.3} parent=35 // pred_check_branch
        %1415 = sbr.rel (%p1413) target = $region52
      $region51: #{double_conv_forward.3} parent=35 // pred_region
        _
      $region52: #{double_conv_forward.3} parent=35 // pred_fallthru
        _
    $region36: #{double_conv_forward.3} parent=5 // pred_fallthru
      _
    %p1416 = scmp.le.s32.totalorder 2, %s14
    // Predicated region
    $region53: #{double_conv_forward.3} parent=5 // pred_check
      %p1417 = pneg %p1416
    $region54: #{double_conv_forward.3} parent=5 // pred_check_branch
      %1419 = sbr.rel (%p1417) target = $region56
    $region55: #{double_conv_forward.3} parent=5 // pred_region
      %s1420 = ssub.s32 %s14, 2
      // Predicated region
      $region57: #{double_conv_forward.3} parent=55 // pred_check
        %p1421 = pneg %p148
      $region58: #{double_conv_forward.3} parent=55 // pred_check_branch
        %1423 = sbr.rel (%p1421) target = $region60
      $region59: #{double_conv_forward.3} parent=55 // pred_region
        %s1424 = smul.u32 36, %s26
        %p1425 = scmp.lt.s32.totalorder %s25, 1
        %s1426 = scalar_select %p1425, %s25, 1
        %p1427 = scmp.lt.s32.totalorder %s1424, 35
        %s1428 = scalar_select %p1427, %s1424, 35
        %s1429 = smul.addr %s1426, 36
        %s1430 = sadd.s32 %s1428, %s1429
        %s1431 = smul.addr %s1430, 8
        %s1432 = scalar_lea.vmem %s4, %s1431
      $region60: #{double_conv_forward.3} parent=55 // pred_fallthru
        _
      // Predicated region
      $region61: #{double_conv_forward.3} parent=55 // pred_check
        %p1433 = pneg %p176
      $region62: #{double_conv_forward.3} parent=55 // pred_check_branch
        %1435 = sbr.rel (%p1433) target = $region64
      $region63: #{double_conv_forward.3} parent=55 // pred_region
        %p1436 = scmp.lt.s32.totalorder %s25, 1
        %s1437 = scalar_select %p1436, %s25, 1
        %p1438 = scmp.lt.s32.totalorder %s26, 0
        %s1439 = scalar_select %p1438, %s26, 0
        %s1440 = smul.addr %s1439, 3
        %s1441 = smul.addr %s1437, 3
        %s1442 = sadd.s32 %s1440, %s1441
        %s1443 = smul.addr %s1442, 8
        %s1444 = scalar_lea.vmem %s5, %s1443
      $region64: #{double_conv_forward.3} parent=55 // pred_fallthru
        _
      // Predicated region
      $region65: #{double_conv_forward.3} parent=55 // pred_check
        %p1445 = pneg %p204
      $region66: #{double_conv_forward.3} parent=55 // pred_check_branch
        %1447 = sbr.rel (%p1445) target = $region68
      $region67: #{double_conv_forward.3} parent=55 // pred_region
        %p1448 = scmp.lt.s32.totalorder %s25, 1
        %s1449 = scalar_select %p1448, %s25, 1
        %p1450 = scmp.lt.s32.totalorder %s26, 0
        %s1451 = scalar_select %p1450, %s26, 0
        %s1452 = smul.addr %s1451, 3
        %s1453 = smul.addr %s1449, 3
        %s1454 = sadd.s32 %s1452, %s1453
        %s1455 = smul.addr %s1454, 8
        %s1456 = scalar_lea.vmem %s6, %s1455
      $region68: #{double_conv_forward.3} parent=55 // pred_fallthru
        _
      // Predicated region
      $region69: #{double_conv_forward.3} parent=55 // pred_check
        %p1457 = pneg %p232
      $region70: #{double_conv_forward.3} parent=55 // pred_check_branch
        %1459 = sbr.rel (%p1457) target = $region72
      $region71: #{double_conv_forward.3} parent=55 // pred_region
        %p1460 = scmp.lt.s32.totalorder %s25, 1
        %s1461 = scalar_select %p1460, %s25, 1
        %p1462 = scmp.lt.s32.totalorder %s26, 0
        %s1463 = scalar_select %p1462, %s26, 0
        %s1464 = sadd.s32 %s1463, %s1461
        %s1465 = smul.addr %s1464, 2
        %s1466 = scalar_lea.vmem %s7, %s1465
      $region72: #{double_conv_forward.3} parent=55 // pred_fallthru
        _
    $region56: #{double_conv_forward.3} parent=5 // pred_fallthru
      _
  $region6: #{double_conv_forward.3} parent=0 // loop_footer
    %s18 = sadd.s32 1, %s14
  $region7: #{double_conv_forward.3} parent=0 // loop_footer_branch
    %13 = sbr.rel target = $region3
  $region8: #{double_conv_forward.3} parent=0 // loop_exit
    _

// kernel: double_conv_forward.5
$region0: #{double_conv_forward.5}
  #allocation0 [shape = 'u32[]', space=smem, size = 0x4, offset = 0x4, fixed_abs, tag = 'smem constant byte address 0x4 - core index']
  #allocation1 [shape = 'u32[144,128]{1,0:T(1,128)}', space=vmem, size = 0x12000, scoped, tag = 'internal scratch']
  %s0 = inlined_call_operand.vmem [shape: f32[2,288,128], index: 0, kind: input, shape index: {}]
  %s1 = inlined_call_operand.vmem [shape: f32[1,64], index: 1, kind: input, shape index: {}]
  %s2 = inlined_call_operand.vmem [shape: f32[1,64], index: 2, kind: input, shape index: {}]
  %s3 = inlined_call_operand.vmem [shape: f32[2,288,64], index: 3, kind: output, shape index: {}]
  %s4 = sld [smem:[#allocation0]]
  $region45: #{double_conv_forward.5} parent=0
    _
  %s6 = ssub.s32 1, %s4
  %s7 = scalar_select 0, %s6, %s4
  loop: start=0, step=1, limit=4
  $region2: #{double_conv_forward.5} parent=0 // loop_pre_header
    _
  $region3: #{double_conv_forward.5} parent=0 // loop_header
    %s9 = sphi 0, %s13
    %p10 = scmp.ge.s32.totalorder %s9, 4
    %s16 = sphi 0, %s28
    %s17 = sphi 0, %s24
    %s18 = sphi 0, %s16
    %s19 = sphi 0, %s17
    %s20 = sphi 0, %s18
    %s21 = sphi 0, %s19
    %s33 = sphi 0, %s35
    %s36 = sphi 0, %s33
    %s37 = sphi 0, %s36
    %s53 = sphi 0, %s37
    %s57 = sphi 0, %s57
    %s59 = sphi 0, %s57
    %s60 = sphi 0, %s59
    %s74 = sphi 0, %s60
    %s78 = sphi 0, %s78
    %s80 = sphi 0, %s78
    %s81 = sphi 0, %s80
    %s95 = sphi 0, %s81
    %s103 = sphi 0, %s105
    %s106 = sphi 0, %s103
    %s107 = sphi 0, %s106
    %s123 = sphi 0, %s107
  $region4: #{double_conv_forward.5} parent=0 // loop_header_branch
    %12 = sbr.rel (%p10) target = $region8
  $region5: #{double_conv_forward.5} parent=0 // loop_body
    %s14 = ssub.s32 %s9, 1
    %s15 = ssub.s32 %s9, 2
    %s22 = sadd.s32 1, %s17
    %p23 = scmp.ge.s32.totalorder %s22, 1
    %s24 = scalar_select %p23, 0, %s22
    %s25 = sadd.s32 1, %s16
    %s26 = scalar_select %p23, %s25, %s16
    %p27 = scmp.ge.s32.totalorder %s26, 2
    %s28 = scalar_select %p27, 0, %s26
    %s29 = ssub.s32 %s16, %s28
    %s30 = ssub.s32 %s17, %s24
    %s31 = sor.u32 %s29, %s30
    %p32 = scmp.eq.s32.totalorder %s31, 0
    %s34 = sadd.s32 %s33, 1
    %s35 = scalar_select %p32, %s33, %s34
    %p38 = pneg %p32
    %p39 = scmp.eq.s32.totalorder %s9, 1
    %p40 = por %p38, %p39
    %p41 = scmp.ne.s32.totalorder %s33, %s36
    %p42 = scmp.eq.s32.totalorder %s9, 0
    %p43 = por %p41, %p42
    %p44 = scmp.ne.s32.totalorder %s33, %s36
    %p45 = scmp.eq.s32.totalorder %s14, 1
    %p46 = por %p44, %p45
    %p47 = scmp.ne.s32.totalorder %s36, %s37
    %p48 = scmp.eq.s32.totalorder %s14, 0
    %p49 = por %p47, %p48
    %p50 = scmp.ne.s32.totalorder %s36, %s37
    %p51 = scmp.eq.s32.totalorder %s15, 1
    %p52 = por %p50, %p51
    %p54 = scmp.ne.s32.totalorder %s37, %s53
    %p55 = scmp.eq.s32.totalorder %s15, 0
    %p56 = por %p54, %p55
    %s58 = sadd.s32 %s57, 1
    %p61 = scmp.eq.s32.totalorder %s9, 1
    %p62 = scmp.ne.s32.totalorder %s57, %s59
    %p63 = scmp.eq.s32.totalorder %s9, 0
    %p64 = por %p62, %p63
    %p65 = scmp.ne.s32.totalorder %s57, %s59
    %p66 = scmp.eq.s32.totalorder %s14, 1
    %p67 = por %p65, %p66
    %p68 = scmp.ne.s32.totalorder %s59, %s60
    %p69 = scmp.eq.s32.totalorder %s14, 0
    %p70 = por %p68, %p69
    %p71 = scmp.ne.s32.totalorder %s59, %s60
    %p72 = scmp.eq.s32.totalorder %s15, 1
    %p73 = por %p71, %p72
    %p75 = scmp.ne.s32.totalorder %s60, %s74
    %p76 = scmp.eq.s32.totalorder %s15, 0
    %p77 = por %p75, %p76
    %s79 = sadd.s32 %s78, 1
    %p82 = scmp.eq.s32.totalorder %s9, 1
    %p83 = scmp.ne.s32.totalorder %s78, %s80
    %p84 = scmp.eq.s32.totalorder %s9, 0
    %p85 = por %p83, %p84
    %p86 = scmp.ne.s32.totalorder %s78, %s80
    %p87 = scmp.eq.s32.totalorder %s14, 1
    %p88 = por %p86, %p87
    %p89 = scmp.ne.s32.totalorder %s80, %s81
    %p90 = scmp.eq.s32.totalorder %s14, 0
    %p91 = por %p89, %p90
    %p92 = scmp.ne.s32.totalorder %s80, %s81
    %p93 = scmp.eq.s32.totalorder %s15, 1
    %p94 = por %p92, %p93
    %p96 = scmp.ne.s32.totalorder %s81, %s95
    %p97 = scmp.eq.s32.totalorder %s15, 0
    %p98 = por %p96, %p97
    %s99 = ssub.s32 %s16, %s28
    %s100 = ssub.s32 %s17, %s24
    %s101 = sor.u32 %s99, %s100
    %p102 = scmp.eq.s32.totalorder %s101, 0
    %s104 = sadd.s32 %s103, 1
    %s105 = scalar_select %p102, %s103, %s104
    %p108 = pneg %p102
    %p109 = scmp.eq.s32.totalorder %s9, 1
    %p110 = por %p108, %p109
    %p111 = scmp.ne.s32.totalorder %s103, %s106
    %p112 = scmp.eq.s32.totalorder %s9, 0
    %p113 = por %p111, %p112
    %p114 = scmp.ne.s32.totalorder %s103, %s106
    %p115 = scmp.eq.s32.totalorder %s14, 1
    %p116 = por %p114, %p115
    %p117 = scmp.ne.s32.totalorder %s106, %s107
    %p118 = scmp.eq.s32.totalorder %s14, 0
    %p119 = por %p117, %p118
    %p120 = scmp.ne.s32.totalorder %s106, %s107
    %p121 = scmp.eq.s32.totalorder %s15, 1
    %p122 = por %p120, %p121
    %p124 = scmp.ne.s32.totalorder %s107, %s123
    %p125 = scmp.eq.s32.totalorder %s15, 0
    %p126 = por %p124, %p125
    %p127 = scmp.le.s32.totalorder 1, %s9
    %p128 = scmp.lt.s32.totalorder %s9, 3
    %p129 = pnand %p127, %p128
    %p130 = pneg %p129
    // Predicated region
    $region9: #{double_conv_forward.5} parent=5 // pred_check
      _
    $region10: #{double_conv_forward.5} parent=5 // pred_check_branch
      %132 = sbr.rel (%p129) target = $region12
    $region11: #{double_conv_forward.5} parent=5 // pred_region
      %s133 = ssub.s32 %s9, 1
      // Predicated region
      $region13: #{double_conv_forward.5} parent=11 // pred_check
        %p134 = pneg %p70
      $region14: #{double_conv_forward.5} parent=11 // pred_check_branch
        %136 = sbr.rel (%p134) target = $region16
      $region15: #{double_conv_forward.5} parent=11 // pred_region
        _
      $region16: #{double_conv_forward.5} parent=11 // pred_fallthru
        _
      // Predicated region
      $region17: #{double_conv_forward.5} parent=11 // pred_check
        %p137 = pneg %p91
      $region18: #{double_conv_forward.5} parent=11 // pred_check_branch
        %139 = sbr.rel (%p137) target = $region20
      $region19: #{double_conv_forward.5} parent=11 // pred_region
        _
      $region20: #{double_conv_forward.5} parent=11 // pred_fallthru
        _
    $region12: #{double_conv_forward.5} parent=5 // pred_fallthru
      _
    %p140 = scmp.lt.s32.totalorder %s9, 2
    // Predicated region
    $region21: #{double_conv_forward.5} parent=5 // pred_check
      %p141 = pneg %p140
    $region22: #{double_conv_forward.5} parent=5 // pred_check_branch
      %143 = sbr.rel (%p141) target = $region24
    $region23: #{double_conv_forward.5} parent=5 // pred_region
      // Predicated region
      $region25: #{double_conv_forward.5} parent=23 // pred_check
        %p144 = pneg %p43
      $region26: #{double_conv_forward.5} parent=23 // pred_check_branch
        %146 = sbr.rel (%p144) target = $region28
      $region27: #{double_conv_forward.5} parent=23 // pred_region
        %s147 = smul.u32 36, %s17
        %p148 = scmp.lt.s32.totalorder %s16, 1
        %s149 = scalar_select %p148, %s16, 1
        %p150 = scmp.lt.s32.totalorder %s147, 35
        %s151 = scalar_select %p150, %s147, 35
        %s152 = smul.addr %s149, 36
        %s153 = sadd.s32 %s151, %s152
        %s154 = smul.addr %s153, 8
        %s155 = scalar_lea.vmem %s0, %s154
        %s156 = smul.u32 36, %s17
      $region28: #{double_conv_forward.5} parent=23 // pred_fallthru
        _
    $region24: #{double_conv_forward.5} parent=5 // pred_fallthru
      _
    %p157 = scmp.le.s32.totalorder 1, %s9
    %p158 = scmp.lt.s32.totalorder %s9, 3
    %p159 = pnand %p157, %p158
    %p160 = pneg %p159
    // Predicated region
    $region29: #{double_conv_forward.5} parent=5 // pred_check
      _
    $region30: #{double_conv_forward.5} parent=5 // pred_check_branch
      %162 = sbr.rel (%p159) target = $region32
    $region31: #{double_conv_forward.5} parent=5 // pred_region
      %s163 = ssub.s32 %s9, 1
      %s164 = smul.u32 36, %s19
      %p165 = scmp.lt.s32.totalorder %s18, 1
      %s166 = scalar_select %p165, %s18, 1
      %p167 = scmp.lt.s32.totalorder %s164, 35
      %s168 = scalar_select %p167, %s164, 35
      %s169 = smul.addr %s166, 36
      %s170 = sadd.s32 %s168, %s169
      %s171 = smul.addr %s170, 8
      %s172 = scalar_lea.vmem %s0, %s171
      %p173 = pneg %p49
      %p174 = pneg %p46
      %p175 = pneg %p70
      %p176 = pneg %p67
      %p177 = pneg %p91
      %p178 = pneg %p88
      %p179 = pneg %p119
      %p180 = pneg %p116
      %s181 = smul.u32 36, %s19
      %p182 = scmp.lt.s32.totalorder %s18, 1
      %s183 = scalar_select %p182, %s18, 1
      %p184 = scmp.lt.s32.totalorder %s181, 35
      %s185 = scalar_select %p184, %s181, 35
      %s186 = smul.addr %s183, 36
      %s187 = sadd.s32 %s185, %s186
      %s188 = smul.addr %s187, 8
      %s189 = scalar_lea.vmem %s3, %s188
      %s190 = smul.u32 36, %s19
      %p191 = scmp.lt.s32.totalorder %s18, 1
      %s192 = scalar_select %p191, %s18, 1
      %p193 = scmp.lt.s32.totalorder %s190, 35
      %s194 = scalar_select %p193, %s190, 35
      %s195 = smul.addr %s192, 36
      %s196 = sadd.s32 %s194, %s195
      %s197 = smul.addr %s196, 8
      %s198 = scalar_lea.vmem %s0, %s197
      %s199 = smul.u32 36, %s19
      %s200 = smul.u32 36, %s19
      %p201 = scmp.lt.s32.totalorder %s18, 1
      %s202 = scalar_select %p201, %s18, 1
      %p203 = scmp.lt.s32.totalorder %s200, 35
      %s204 = scalar_select %p203, %s200, 35
      %s205 = smul.addr %s202, 36
      %s206 = sadd.s32 %s204, %s205
      %s207 = smul.addr %s206, 8
      %s208 = scalar_lea.vmem %s3, %s207
      %s209 = smul.u32 36, %s19
      %v210 = vld [vmem:[%s198] sm:$0xff]
      %v211 = vld [vmem:[%s198 + $0x8] sm:$0xff]
      %v212 = vld [vmem:[%s198 + $0x10] sm:$0xff]
      %v213 = vld [vmem:[%s198 + $0x18] sm:$0xff]
      %v214 = vld [vmem:[%s198 + $0x20] sm:$0xff]
      %v215 = vld [vmem:[%s198 + $0x28] sm:$0xff]
      %v216 = vld [vmem:[%s198 + $0x30] sm:$0xff]
      %v217 = vld [vmem:[%s198 + $0x38] sm:$0xff]
      %v218 = vld [vmem:[%s198 + $0x40] sm:$0xff]
      %v219 = vld [vmem:[%s198 + $0x48] sm:$0xff]
      %v220 = vld [vmem:[%s198 + $0x50] sm:$0xff]
      %v221 = vld [vmem:[%s198 + $0x58] sm:$0xff]
      %v222 = vld [vmem:[%s198 + $0x60] sm:$0xff]
      %v223 = vld [vmem:[%s198 + $0x68] sm:$0xff]
      %v224 = vld [vmem:[%s198 + $0x70] sm:$0xff]
      %v225 = vld [vmem:[%s198 + $0x78] sm:$0xff]
      %v226 = vld [vmem:[%s198 + $0x80] sm:$0xff]
      %v227 = vld [vmem:[%s198 + $0x88] sm:$0xff]
      %v228 = vld [vmem:[%s198 + $0x90] sm:$0xff]
      %v229 = vld [vmem:[%s198 + $0x98] sm:$0xff]
      %v230 = vld [vmem:[%s198 + $0xa0] sm:$0xff]
      %v231 = vld [vmem:[%s198 + $0xa8] sm:$0xff]
      %v232 = vld [vmem:[%s198 + $0xb0] sm:$0xff]
      %v233 = vld [vmem:[%s198 + $0xb8] sm:$0xff]
      %v234 = vld [vmem:[%s198 + $0xc0] sm:$0xff]
      %v235 = vld [vmem:[%s198 + $0xc8] sm:$0xff]
      %v236 = vld [vmem:[%s198 + $0xd0] sm:$0xff]
      %v237 = vld [vmem:[%s198 + $0xd8] sm:$0xff]
      %v238 = vld [vmem:[%s198 + $0xe0] sm:$0xff]
      %v239 = vld [vmem:[%s198 + $0xe8] sm:$0xff]
      %v240 = vld [vmem:[%s198 + $0xf0] sm:$0xff]
      %v241 = vld [vmem:[%s198 + $0xf8] sm:$0xff]
      %v242 = vld [vmem:[%s198 + $0x100] sm:$0xff]
      %v243 = vld [vmem:[%s198 + $0x108] sm:$0xff]
      %v244 = vld [vmem:[%s198 + $0x110] sm:$0xff]
      %v245 = vld [vmem:[%s198 + $0x118] sm:$0xff]
      %v246 = vld [vmem:[%s1] sm:$0x1]
      %v248 = vlaneseq
      %v249 = vshrl.u32 %v248, 7
      %v250 = vsub.s32 0, %v249
      %v251 = vrot.slane %v246, %v250
      %v253 = vmul.f32 %v210, %v251
      %v254 = vmul.f32 %v211, %v251
      %v255 = vmul.f32 %v212, %v251
      %v256 = vmul.f32 %v213, %v251
      %v257 = vmul.f32 %v214, %v251
      %v258 = vmul.f32 %v215, %v251
      %v259 = vmul.f32 %v216, %v251
      %v260 = vmul.f32 %v217, %v251
      %v261 = vmul.f32 %v218, %v251
      %v262 = vmul.f32 %v219, %v251
      %v263 = vmul.f32 %v220, %v251
      %v264 = vmul.f32 %v221, %v251
      %v265 = vmul.f32 %v222, %v251
      %v266 = vmul.f32 %v223, %v251
      %v267 = vmul.f32 %v224, %v251
      %v268 = vmul.f32 %v225, %v251
      %v269 = vmul.f32 %v226, %v251
      %v270 = vmul.f32 %v227, %v251
      %v271 = vmul.f32 %v228, %v251
      %v272 = vmul.f32 %v229, %v251
      %v273 = vmul.f32 %v230, %v251
      %v274 = vmul.f32 %v231, %v251
      %v275 = vmul.f32 %v232, %v251
      %v276 = vmul.f32 %v233, %v251
      %v277 = vmul.f32 %v234, %v251
      %v278 = vmul.f32 %v235, %v251
      %v279 = vmul.f32 %v236, %v251
      %v280 = vmul.f32 %v237, %v251
      %v281 = vmul.f32 %v238, %v251
      %v282 = vmul.f32 %v239, %v251
      %v283 = vmul.f32 %v240, %v251
      %v284 = vmul.f32 %v241, %v251
      %v285 = vmul.f32 %v242, %v251
      %v286 = vmul.f32 %v243, %v251
      %v287 = vmul.f32 %v244, %v251
      %v288 = vmul.f32 %v245, %v251
      %v289 = vld [vmem:[%s2] sm:$0x1]
      %v291 = vlaneseq
      %v292 = vshrl.u32 %v291, 7
      %v293 = vsub.s32 0, %v292
      %v294 = vrot.slane %v289, %v293
      %v296 = vadd.f32 %v253, %v294
      %v297 = vadd.f32 %v254, %v294
      %v298 = vadd.f32 %v255, %v294
      %v299 = vadd.f32 %v256, %v294
      %v300 = vadd.f32 %v257, %v294
      %v301 = vadd.f32 %v258, %v294
      %v302 = vadd.f32 %v259, %v294
      %v303 = vadd.f32 %v260, %v294
      %v304 = vadd.f32 %v261, %v294
      %v305 = vadd.f32 %v262, %v294
      %v306 = vadd.f32 %v263, %v294
      %v307 = vadd.f32 %v264, %v294
      %v308 = vadd.f32 %v265, %v294
      %v309 = vadd.f32 %v266, %v294
      %v310 = vadd.f32 %v267, %v294
      %v311 = vadd.f32 %v268, %v294
      %v312 = vadd.f32 %v269, %v294
      %v313 = vadd.f32 %v270, %v294
      %v314 = vadd.f32 %v271, %v294
      %v315 = vadd.f32 %v272, %v294
      %v316 = vadd.f32 %v273, %v294
      %v317 = vadd.f32 %v274, %v294
      %v318 = vadd.f32 %v275, %v294
      %v319 = vadd.f32 %v276, %v294
      %v320 = vadd.f32 %v277, %v294
      %v321 = vadd.f32 %v278, %v294
      %v322 = vadd.f32 %v279, %v294
      %v323 = vadd.f32 %v280, %v294
      %v324 = vadd.f32 %v281, %v294
      %v325 = vadd.f32 %v282, %v294
      %v326 = vadd.f32 %v283, %v294
      %v327 = vadd.f32 %v284, %v294
      %v328 = vadd.f32 %v285, %v294
      %v329 = vadd.f32 %v286, %v294
      %v330 = vadd.f32 %v287, %v294
      %v331 = vadd.f32 %v288, %v294
      %v332 = vmax.f32 %v296, 0.0
      %v333 = vmax.f32 %v297, 0.0
      %v334 = vmax.f32 %v298, 0.0
      %v335 = vmax.f32 %v299, 0.0
      %v336 = vmax.f32 %v300, 0.0
      %v337 = vmax.f32 %v301, 0.0
      %v338 = vmax.f32 %v302, 0.0
      %v339 = vmax.f32 %v303, 0.0
      %v340 = vmax.f32 %v304, 0.0
      %v341 = vmax.f32 %v305, 0.0
      %v342 = vmax.f32 %v306, 0.0
      %v343 = vmax.f32 %v307, 0.0
      %v344 = vmax.f32 %v308, 0.0
      %v345 = vmax.f32 %v309, 0.0
      %v346 = vmax.f32 %v310, 0.0
      %v347 = vmax.f32 %v311, 0.0
      %v348 = vmax.f32 %v312, 0.0
      %v349 = vmax.f32 %v313, 0.0
      %v350 = vmax.f32 %v314, 0.0
      %v351 = vmax.f32 %v315, 0.0
      %v352 = vmax.f32 %v316, 0.0
      %v353 = vmax.f32 %v317, 0.0
      %v354 = vmax.f32 %v318, 0.0
      %v355 = vmax.f32 %v319, 0.0
      %v356 = vmax.f32 %v320, 0.0
      %v357 = vmax.f32 %v321, 0.0
      %v358 = vmax.f32 %v322, 0.0
      %v359 = vmax.f32 %v323, 0.0
      %v360 = vmax.f32 %v324, 0.0
      %v361 = vmax.f32 %v325, 0.0
      %v362 = vmax.f32 %v326, 0.0
      %v363 = vmax.f32 %v327, 0.0
      %v364 = vmax.f32 %v328, 0.0
      %v365 = vmax.f32 %v329, 0.0
      %v366 = vmax.f32 %v330, 0.0
      %v367 = vmax.f32 %v331, 0.0
      %vm368 = vcmask 523264
      %369 = vst.msk [vmem:[%s208] sm:$0xff] %vm368, %v332
      %370 = vst.msk [vmem:[%s208 + $0x8] sm:$0xff] %vm368, %v333
      %371 = vst.msk [vmem:[%s208 + $0x10] sm:$0xff] %vm368, %v334
      %372 = vst.msk [vmem:[%s208 + $0x18] sm:$0xff] %vm368, %v335
      %373 = vst.msk [vmem:[%s208 + $0x20] sm:$0xff] %vm368, %v336
      %374 = vst.msk [vmem:[%s208 + $0x28] sm:$0xff] %vm368, %v337
      %375 = vst.msk [vmem:[%s208 + $0x30] sm:$0xff] %vm368, %v338
      %376 = vst.msk [vmem:[%s208 + $0x38] sm:$0xff] %vm368, %v339
      %377 = vst.msk [vmem:[%s208 + $0x40] sm:$0xff] %vm368, %v340
      %378 = vst.msk [vmem:[%s208 + $0x48] sm:$0xff] %vm368, %v341
      %379 = vst.msk [vmem:[%s208 + $0x50] sm:$0xff] %vm368, %v342
      %380 = vst.msk [vmem:[%s208 + $0x58] sm:$0xff] %vm368, %v343
      %381 = vst.msk [vmem:[%s208 + $0x60] sm:$0xff] %vm368, %v344
      %382 = vst.msk [vmem:[%s208 + $0x68] sm:$0xff] %vm368, %v345
      %383 = vst.msk [vmem:[%s208 + $0x70] sm:$0xff] %vm368, %v346
      %384 = vst.msk [vmem:[%s208 + $0x78] sm:$0xff] %vm368, %v347
      %385 = vst.msk [vmem:[%s208 + $0x80] sm:$0xff] %vm368, %v348
      %386 = vst.msk [vmem:[%s208 + $0x88] sm:$0xff] %vm368, %v349
      %387 = vst.msk [vmem:[%s208 + $0x90] sm:$0xff] %vm368, %v350
      %388 = vst.msk [vmem:[%s208 + $0x98] sm:$0xff] %vm368, %v351
      %389 = vst.msk [vmem:[%s208 + $0xa0] sm:$0xff] %vm368, %v352
      %390 = vst.msk [vmem:[%s208 + $0xa8] sm:$0xff] %vm368, %v353
      %391 = vst.msk [vmem:[%s208 + $0xb0] sm:$0xff] %vm368, %v354
      %392 = vst.msk [vmem:[%s208 + $0xb8] sm:$0xff] %vm368, %v355
      %393 = vst.msk [vmem:[%s208 + $0xc0] sm:$0xff] %vm368, %v356
      %394 = vst.msk [vmem:[%s208 + $0xc8] sm:$0xff] %vm368, %v357
      %395 = vst.msk [vmem:[%s208 + $0xd0] sm:$0xff] %vm368, %v358
      %396 = vst.msk [vmem:[%s208 + $0xd8] sm:$0xff] %vm368, %v359
      %397 = vst.msk [vmem:[%s208 + $0xe0] sm:$0xff] %vm368, %v360
      %398 = vst.msk [vmem:[%s208 + $0xe8] sm:$0xff] %vm368, %v361
      %399 = vst.msk [vmem:[%s208 + $0xf0] sm:$0xff] %vm368, %v362
      %400 = vst.msk [vmem:[%s208 + $0xf8] sm:$0xff] %vm368, %v363
      %401 = vst.msk [vmem:[%s208 + $0x100] sm:$0xff] %vm368, %v364
      %402 = vst.msk [vmem:[%s208 + $0x108] sm:$0xff] %vm368, %v365
      %403 = vst.msk [vmem:[%s208 + $0x110] sm:$0xff] %vm368, %v366
      %404 = vst.msk [vmem:[%s208 + $0x118] sm:$0xff] %vm368, %v367
      %s405 = smul.u32 36, %s19
      %p406 = scmp.lt.s32.totalorder %s18, 1
      %s407 = scalar_select %p406, %s18, 1
      %p408 = scmp.lt.s32.totalorder %s405, 35
      %s409 = scalar_select %p408, %s405, 35
      %s410 = smul.addr %s407, 36
      %s411 = sadd.s32 %s409, %s410
      %s412 = smul.addr %s411, 8
      %s413 = scalar_lea.vmem %s3, %s412
      // Predicated region
      $region33: #{double_conv_forward.5} parent=31 // pred_check
        %p414 = pneg %p116
      $region34: #{double_conv_forward.5} parent=31 // pred_check_branch
        %416 = sbr.rel (%p414) target = $region36
      $region35: #{double_conv_forward.5} parent=31 // pred_region
        %s417 = smul.u32 36, %s19
      $region36: #{double_conv_forward.5} parent=31 // pred_fallthru
        _
    $region32: #{double_conv_forward.5} parent=5 // pred_fallthru
      _
    %p418 = scmp.le.s32.totalorder 2, %s9
    // Predicated region
    $region37: #{double_conv_forward.5} parent=5 // pred_check
      %p419 = pneg %p418
    $region38: #{double_conv_forward.5} parent=5 // pred_check_branch
      %421 = sbr.rel (%p419) target = $region40
    $region39: #{double_conv_forward.5} parent=5 // pred_region
      %s422 = ssub.s32 %s9, 2
      // Predicated region
      $region41: #{double_conv_forward.5} parent=39 // pred_check
        %p423 = pneg %p122
      $region42: #{double_conv_forward.5} parent=39 // pred_check_branch
        %425 = sbr.rel (%p423) target = $region44
      $region43: #{double_conv_forward.5} parent=39 // pred_region
        %s426 = smul.u32 36, %s21
        %p427 = scmp.lt.s32.totalorder %s20, 1
        %s428 = scalar_select %p427, %s20, 1
        %p429 = scmp.lt.s32.totalorder %s426, 35
        %s430 = scalar_select %p429, %s426, 35
        %s431 = smul.addr %s428, 36
        %s432 = sadd.s32 %s430, %s431
        %s433 = smul.addr %s432, 8
        %s434 = scalar_lea.vmem %s3, %s433
      $region44: #{double_conv_forward.5} parent=39 // pred_fallthru
        _
    $region40: #{double_conv_forward.5} parent=5 // pred_fallthru
      _
  $region6: #{double_conv_forward.5} parent=0 // loop_footer
    %s13 = sadd.s32 1, %s9
  $region7: #{double_conv_forward.5} parent=0 // loop_footer_branch
    %8 = sbr.rel target = $region3
  $region8: #{double_conv_forward.5} parent=0 // loop_exit
    _

// kernel: double_conv_forward.4
$region0: #{double_conv_forward.4}
  #allocation0 [shape = 'u32[]', space=smem, size = 0x4, offset = 0x4, fixed_abs, tag = 'smem constant byte address 0x4 - core index']
  #allocation1 [shape = 'u32[144,128]{1,0:T(1,128)}', space=vmem, size = 0x12000, scoped, tag = 'internal scratch']
  %s0 = inlined_call_operand.vmem [shape: f32[2,1,18,128], index: 0, kind: input, shape index: {}]
  %s1 = inlined_call_operand.vmem [shape: f32[2,288,128], index: 1, kind: input, shape index: {}]
  %s2 = inlined_call_operand.vmem [shape: f32[2,1,18,128], index: 2, kind: input, shape index: {}]
  %s3 = inlined_call_operand.vmem [shape: f32[1,128], index: 3, kind: input, shape index: {}]
  %s4 = inlined_call_operand.vmem [shape: f32[1,128], index: 4, kind: input, shape index: {}]
  %s5 = inlined_call_operand.vmem [shape: bf16[9,128,128], index: 5, kind: input, shape index: {}]
  %s6 = inlined_call_operand.vmem [shape: f32[1,128], index: 6, kind: input, shape index: {}]
  %s7 = inlined_call_operand.vmem [shape: f32[324,1], index: 7, kind: input, shape index: {}]
  %s8 = inlined_call_operand.vmem [shape: f32[288,1], index: 8, kind: input, shape index: {}]
  %s9 = inlined_call_operand.vmem [shape: f32[2,288,128], index: 9, kind: output, shape index: {0}]
  %s10 = inlined_call_operand.vmem [shape: f32[2,1,2,128], index: 10, kind: output, shape index: {1}]
  %11 = xla_tuple %s9, %s10
  %s12 = sld [smem:[#allocation0]]
  $region77: #{double_conv_forward.4} parent=0
    _
  %s14 = ssub.s32 1, %s12
  %s15 = scalar_select 0, %s14, %s12
  loop: start=0, step=1, limit=4
  $region2: #{double_conv_forward.4} parent=0 // loop_pre_header
    _
  $region3: #{double_conv_forward.4} parent=0 // loop_header
    %s17 = sphi 0, %s21
    %p18 = scmp.ge.s32.totalorder %s17, 4
    %s24 = sphi 0, %s36
    %s25 = sphi 0, %s32
    %s26 = sphi 0, %s24
    %s27 = sphi 0, %s25
    %s28 = sphi 0, %s26
    %s29 = sphi 0, %s27
    %s47 = sphi 0, %s49
    %s50 = sphi 0, %s47
    %s51 = sphi 0, %s50
    %s67 = sphi 0, %s51
    %s75 = sphi 0, %s77
    %s78 = sphi 0, %s75
    %s79 = sphi 0, %s78
    %s95 = sphi 0, %s79
    %s109 = sphi 0, %s111
    %s112 = sphi 0, %s109
    %s113 = sphi 0, %s112
    %s129 = sphi 0, %s113
    %s133 = sphi 0, %s133
    %s135 = sphi 0, %s133
    %s136 = sphi 0, %s135
    %s150 = sphi 0, %s136
    %s154 = sphi 0, %s154
    %s156 = sphi 0, %s154
    %s157 = sphi 0, %s156
    %s171 = sphi 0, %s157
    %s175 = sphi 0, %s175
    %s177 = sphi 0, %s175
    %s178 = sphi 0, %s177
    %s192 = sphi 0, %s178
    %s196 = sphi 0, %s196
    %s198 = sphi 0, %s196
    %s199 = sphi 0, %s198
    %s213 = sphi 0, %s199
    %s217 = sphi 0, %s217
    %s219 = sphi 0, %s217
    %s220 = sphi 0, %s219
    %s234 = sphi 0, %s220
    %s238 = sphi 0, %s238
    %s240 = sphi 0, %s238
    %s241 = sphi 0, %s240
    %s255 = sphi 0, %s241
    %s263 = sphi 0, %s265
    %s266 = sphi 0, %s263
    %s267 = sphi 0, %s266
    %s283 = sphi 0, %s267
    %s291 = sphi 0, %s293
    %s294 = sphi 0, %s291
    %s295 = sphi 0, %s294
    %s311 = sphi 0, %s295
  $region4: #{double_conv_forward.4} parent=0 // loop_header_branch
    %20 = sbr.rel (%p18) target = $region8
  $region5: #{double_conv_forward.4} parent=0 // loop_body
    %s22 = ssub.s32 %s17, 1
    %s23 = ssub.s32 %s17, 2
    %s30 = sadd.s32 1, %s25
    %p31 = scmp.ge.s32.totalorder %s30, 1
    %s32 = scalar_select %p31, 0, %s30
    %s33 = sadd.s32 1, %s24
    %s34 = scalar_select %p31, %s33, %s24
    %p35 = scmp.ge.s32.totalorder %s34, 2
    %s36 = scalar_select %p35, 0, %s34
    %s37 = ssub.s32 %s25, 1
    %p38 = scmp.gt.s32.totalorder %s37, 0
    %s39 = scalar_select %p38, %s37, 0
    %s40 = ssub.s32 %s32, 1
    %p41 = scmp.gt.s32.totalorder %s40, 0
    %s42 = scalar_select %p41, %s40, 0
    %s43 = ssub.s32 %s24, %s36
    %s44 = ssub.s32 %s39, %s42
    %s45 = sor.u32 %s43, %s44
    %p46 = scmp.eq.s32.totalorder %s45, 0
    %s48 = sadd.s32 %s47, 1
    %s49 = scalar_select %p46, %s47, %s48
    %p52 = pneg %p46
    %p53 = scmp.eq.s32.totalorder %s17, 1
    %p54 = por %p52, %p53
    %p55 = scmp.ne.s32.totalorder %s47, %s50
    %p56 = scmp.eq.s32.totalorder %s17, 0
    %p57 = por %p55, %p56
    %p58 = scmp.ne.s32.totalorder %s47, %s50
    %p59 = scmp.eq.s32.totalorder %s22, 1
    %p60 = por %p58, %p59
    %p61 = scmp.ne.s32.totalorder %s50, %s51
    %p62 = scmp.eq.s32.totalorder %s22, 0
    %p63 = por %p61, %p62
    %p64 = scmp.ne.s32.totalorder %s50, %s51
    %p65 = scmp.eq.s32.totalorder %s23, 1
    %p66 = por %p64, %p65
    %p68 = scmp.ne.s32.totalorder %s51, %s67
    %p69 = scmp.eq.s32.totalorder %s23, 0
    %p70 = por %p68, %p69
    %s71 = ssub.s32 %s24, %s36
    %s72 = ssub.s32 %s25, %s32
    %s73 = sor.u32 %s71, %s72
    %p74 = scmp.eq.s32.totalorder %s73, 0
    %s76 = sadd.s32 %s75, 1
    %s77 = scalar_select %p74, %s75, %s76
    %p80 = pneg %p74
    %p81 = scmp.eq.s32.totalorder %s17, 1
    %p82 = por %p80, %p81
    %p83 = scmp.ne.s32.totalorder %s75, %s78
    %p84 = scmp.eq.s32.totalorder %s17, 0
    %p85 = por %p83, %p84
    %p86 = scmp.ne.s32.totalorder %s75, %s78
    %p87 = scmp.eq.s32.totalorder %s22, 1
    %p88 = por %p86, %p87
    %p89 = scmp.ne.s32.totalorder %s78, %s79
    %p90 = scmp.eq.s32.totalorder %s22, 0
    %p91 = por %p89, %p90
    %p92 = scmp.ne.s32.totalorder %s78, %s79
    %p93 = scmp.eq.s32.totalorder %s23, 1
    %p94 = por %p92, %p93
    %p96 = scmp.ne.s32.totalorder %s79, %s95
    %p97 = scmp.eq.s32.totalorder %s23, 0
    %p98 = por %p96, %p97
    %s99 = sadd.s32 %s25, 1
    %p100 = scmp.lt.s32.totalorder %s99, 0
    %s101 = scalar_select %p100, %s99, 0
    %s102 = sadd.s32 %s32, 1
    %p103 = scmp.lt.s32.totalorder %s102, 0
    %s104 = scalar_select %p103, %s102, 0
    %s105 = ssub.s32 %s24, %s36
    %s106 = ssub.s32 %s101, %s104
    %s107 = sor.u32 %s105, %s106
    %p108 = scmp.eq.s32.totalorder %s107, 0
    %s110 = sadd.s32 %s109, 1
    %s111 = scalar_select %p108, %s109, %s110
    %p114 = pneg %p108
    %p115 = scmp.eq.s32.totalorder %s17, 1
    %p116 = por %p114, %p115
    %p117 = scmp.ne.s32.totalorder %s109, %s112
    %p118 = scmp.eq.s32.totalorder %s17, 0
    %p119 = por %p117, %p118
    %p120 = scmp.ne.s32.totalorder %s109, %s112
    %p121 = scmp.eq.s32.totalorder %s22, 1
    %p122 = por %p120, %p121
    %p123 = scmp.ne.s32.totalorder %s112, %s113
    %p124 = scmp.eq.s32.totalorder %s22, 0
    %p125 = por %p123, %p124
    %p126 = scmp.ne.s32.totalorder %s112, %s113
    %p127 = scmp.eq.s32.totalorder %s23, 1
    %p128 = por %p126, %p127
    %p130 = scmp.ne.s32.totalorder %s113, %s129
    %p131 = scmp.eq.s32.totalorder %s23, 0
    %p132 = por %p130, %p131
    %s134 = sadd.s32 %s133, 1
    %p137 = scmp.eq.s32.totalorder %s17, 1
    %p138 = scmp.ne.s32.totalorder %s133, %s135
    %p139 = scmp.eq.s32.totalorder %s17, 0
    %p140 = por %p138, %p139
    %p141 = scmp.ne.s32.totalorder %s133, %s135
    %p142 = scmp.eq.s32.totalorder %s22, 1
    %p143 = por %p141, %p142
    %p144 = scmp.ne.s32.totalorder %s135, %s136
    %p145 = scmp.eq.s32.totalorder %s22, 0
    %p146 = por %p144, %p145
    %p147 = scmp.ne.s32.totalorder %s135, %s136
    %p148 = scmp.eq.s32.totalorder %s23, 1
    %p149 = por %p147, %p148
    %p151 = scmp.ne.s32.totalorder %s136, %s150
    %p152 = scmp.eq.s32.totalorder %s23, 0
    %p153 = por %p151, %p152
    %s155 = sadd.s32 %s154, 1
    %p158 = scmp.eq.s32.totalorder %s17, 1
    %p159 = scmp.ne.s32.totalorder %s154, %s156
    %p160 = scmp.eq.s32.totalorder %s17, 0
    %p161 = por %p159, %p160
    %p162 = scmp.ne.s32.totalorder %s154, %s156
    %p163 = scmp.eq.s32.totalorder %s22, 1
    %p164 = por %p162, %p163
    %p165 = scmp.ne.s32.totalorder %s156, %s157
    %p166 = scmp.eq.s32.totalorder %s22, 0
    %p167 = por %p165, %p166
    %p168 = scmp.ne.s32.totalorder %s156, %s157
    %p169 = scmp.eq.s32.totalorder %s23, 1
    %p170 = por %p168, %p169
    %p172 = scmp.ne.s32.totalorder %s157, %s171
    %p173 = scmp.eq.s32.totalorder %s23, 0
    %p174 = por %p172, %p173
    %s176 = sadd.s32 %s175, 1
    %p179 = scmp.eq.s32.totalorder %s17, 1
    %p180 = scmp.ne.s32.totalorder %s175, %s177
    %p181 = scmp.eq.s32.totalorder %s17, 0
    %p182 = por %p180, %p181
    %p183 = scmp.ne.s32.totalorder %s175, %s177
    %p184 = scmp.eq.s32.totalorder %s22, 1
    %p185 = por %p183, %p184
    %p186 = scmp.ne.s32.totalorder %s177, %s178
    %p187 = scmp.eq.s32.totalorder %s22, 0
    %p188 = por %p186, %p187
    %p189 = scmp.ne.s32.totalorder %s177, %s178
    %p190 = scmp.eq.s32.totalorder %s23, 1
    %p191 = por %p189, %p190
    %p193 = scmp.ne.s32.totalorder %s178, %s192
    %p194 = scmp.eq.s32.totalorder %s23, 0
    %p195 = por %p193, %p194
    %s197 = sadd.s32 %s196, 1
    %p200 = scmp.eq.s32.totalorder %s17, 1
    %p201 = scmp.ne.s32.totalorder %s196, %s198
    %p202 = scmp.eq.s32.totalorder %s17, 0
    %p203 = por %p201, %p202
    %p204 = scmp.ne.s32.totalorder %s196, %s198
    %p205 = scmp.eq.s32.totalorder %s22, 1
    %p206 = por %p204, %p205
    %p207 = scmp.ne.s32.totalorder %s198, %s199
    %p208 = scmp.eq.s32.totalorder %s22, 0
    %p209 = por %p207, %p208
    %p210 = scmp.ne.s32.totalorder %s198, %s199
    %p211 = scmp.eq.s32.totalorder %s23, 1
    %p212 = por %p210, %p211
    %p214 = scmp.ne.s32.totalorder %s199, %s213
    %p215 = scmp.eq.s32.totalorder %s23, 0
    %p216 = por %p214, %p215
    %s218 = sadd.s32 %s217, 1
    %p221 = scmp.eq.s32.totalorder %s17, 1
    %p222 = scmp.ne.s32.totalorder %s217, %s219
    %p223 = scmp.eq.s32.totalorder %s17, 0
    %p224 = por %p222, %p223
    %p225 = scmp.ne.s32.totalorder %s217, %s219
    %p226 = scmp.eq.s32.totalorder %s22, 1
    %p227 = por %p225, %p226
    %p228 = scmp.ne.s32.totalorder %s219, %s220
    %p229 = scmp.eq.s32.totalorder %s22, 0
    %p230 = por %p228, %p229
    %p231 = scmp.ne.s32.totalorder %s219, %s220
    %p232 = scmp.eq.s32.totalorder %s23, 1
    %p233 = por %p231, %p232
    %p235 = scmp.ne.s32.totalorder %s220, %s234
    %p236 = scmp.eq.s32.totalorder %s23, 0
    %p237 = por %p235, %p236
    %s239 = sadd.s32 %s238, 1
    %p242 = scmp.eq.s32.totalorder %s17, 1
    %p243 = scmp.ne.s32.totalorder %s238, %s240
    %p244 = scmp.eq.s32.totalorder %s17, 0
    %p245 = por %p243, %p244
    %p246 = scmp.ne.s32.totalorder %s238, %s240
    %p247 = scmp.eq.s32.totalorder %s22, 1
    %p248 = por %p246, %p247
    %p249 = scmp.ne.s32.totalorder %s240, %s241
    %p250 = scmp.eq.s32.totalorder %s22, 0
    %p251 = por %p249, %p250
    %p252 = scmp.ne.s32.totalorder %s240, %s241
    %p253 = scmp.eq.s32.totalorder %s23, 1
    %p254 = por %p252, %p253
    %p256 = scmp.ne.s32.totalorder %s241, %s255
    %p257 = scmp.eq.s32.totalorder %s23, 0
    %p258 = por %p256, %p257
    %s259 = ssub.s32 %s24, %s36
    %s260 = ssub.s32 %s25, %s32
    %s261 = sor.u32 %s259, %s260
    %p262 = scmp.eq.s32.totalorder %s261, 0
    %s264 = sadd.s32 %s263, 1
    %s265 = scalar_select %p262, %s263, %s264
    %p268 = pneg %p262
    %p269 = scmp.eq.s32.totalorder %s17, 1
    %p270 = por %p268, %p269
    %p271 = scmp.ne.s32.totalorder %s263, %s266
    %p272 = scmp.eq.s32.totalorder %s17, 0
    %p273 = por %p271, %p272
    %p274 = scmp.ne.s32.totalorder %s263, %s266
    %p275 = scmp.eq.s32.totalorder %s22, 1
    %p276 = por %p274, %p275
    %p277 = scmp.ne.s32.totalorder %s266, %s267
    %p278 = scmp.eq.s32.totalorder %s22, 0
    %p279 = por %p277, %p278
    %p280 = scmp.ne.s32.totalorder %s266, %s267
    %p281 = scmp.eq.s32.totalorder %s23, 1
    %p282 = por %p280, %p281
    %p284 = scmp.ne.s32.totalorder %s267, %s283
    %p285 = scmp.eq.s32.totalorder %s23, 0
    %p286 = por %p284, %p285
    %s287 = ssub.s32 %s24, %s36
    %s288 = ssub.s32 %s25, %s32
    %s289 = sor.u32 %s287, %s288
    %p290 = scmp.eq.s32.totalorder %s289, 0
    %s292 = sadd.s32 %s291, 1
    %s293 = scalar_select %p290, %s291, %s292
    %p296 = pneg %p290
    %p297 = scmp.eq.s32.totalorder %s17, 1
    %p298 = por %p296, %p297
    %p299 = scmp.ne.s32.totalorder %s291, %s294
    %p300 = scmp.eq.s32.totalorder %s17, 0
    %p301 = por %p299, %p300
    %p302 = scmp.ne.s32.totalorder %s291, %s294
    %p303 = scmp.eq.s32.totalorder %s22, 1
    %p304 = por %p302, %p303
    %p305 = scmp.ne.s32.totalorder %s294, %s295
    %p306 = scmp.eq.s32.totalorder %s22, 0
    %p307 = por %p305, %p306
    %p308 = scmp.ne.s32.totalorder %s294, %s295
    %p309 = scmp.eq.s32.totalorder %s23, 1
    %p310 = por %p308, %p309
    %p312 = scmp.ne.s32.totalorder %s295, %s311
    %p313 = scmp.eq.s32.totalorder %s23, 0
    %p314 = por %p312, %p313
    %p315 = scmp.le.s32.totalorder 1, %s17
    %p316 = scmp.lt.s32.totalorder %s17, 3
    %p317 = pnand %p315, %p316
    %p318 = pneg %p317
    // Predicated region
    $region9: #{double_conv_forward.4} parent=5 // pred_check
      _
    $region10: #{double_conv_forward.4} parent=5 // pred_check_branch
      %320 = sbr.rel (%p317) target = $region12
    $region11: #{double_conv_forward.4} parent=5 // pred_region
      %s321 = ssub.s32 %s17, 1
      // Predicated region
      $region13: #{double_conv_forward.4} parent=11 // pred_check
        %p322 = pneg %p146
      $region14: #{double_conv_forward.4} parent=11 // pred_check_branch
        %324 = sbr.rel (%p322) target = $region16
      $region15: #{double_conv_forward.4} parent=11 // pred_region
        _
      $region16: #{double_conv_forward.4} parent=11 // pred_fallthru
        _
      // Predicated region
      $region17: #{double_conv_forward.4} parent=11 // pred_check
        %p325 = pneg %p167
      $region18: #{double_conv_forward.4} parent=11 // pred_check_branch
        %327 = sbr.rel (%p325) target = $region20
      $region19: #{double_conv_forward.4} parent=11 // pred_region
        _
      $region20: #{double_conv_forward.4} parent=11 // pred_fallthru
        _
      // Predicated region
      $region21: #{double_conv_forward.4} parent=11 // pred_check
        %p328 = pneg %p188
      $region22: #{double_conv_forward.4} parent=11 // pred_check_branch
        %330 = sbr.rel (%p328) target = $region24
      $region23: #{double_conv_forward.4} parent=11 // pred_region
        _
      $region24: #{double_conv_forward.4} parent=11 // pred_fallthru
        _
      // Predicated region
      $region25: #{double_conv_forward.4} parent=11 // pred_check
        %p331 = pneg %p209
      $region26: #{double_conv_forward.4} parent=11 // pred_check_branch
        %333 = sbr.rel (%p331) target = $region28
      $region27: #{double_conv_forward.4} parent=11 // pred_region
        _
      $region28: #{double_conv_forward.4} parent=11 // pred_fallthru
        _
      // Predicated region
      $region29: #{double_conv_forward.4} parent=11 // pred_check
        %p334 = pneg %p230
      $region30: #{double_conv_forward.4} parent=11 // pred_check_branch
        %336 = sbr.rel (%p334) target = $region32
      $region31: #{double_conv_forward.4} parent=11 // pred_region
        _
      $region32: #{double_conv_forward.4} parent=11 // pred_fallthru
        _
      // Predicated region
      $region33: #{double_conv_forward.4} parent=11 // pred_check
        %p337 = pneg %p251
      $region34: #{double_conv_forward.4} parent=11 // pred_check_branch
        %339 = sbr.rel (%p337) target = $region36
      $region35: #{double_conv_forward.4} parent=11 // pred_region
        _
      $region36: #{double_conv_forward.4} parent=11 // pred_fallthru
        _
    $region12: #{double_conv_forward.4} parent=5 // pred_fallthru
      _
    %p340 = scmp.lt.s32.totalorder %s17, 2
    // Predicated region
    $region37: #{double_conv_forward.4} parent=5 // pred_check
      %p341 = pneg %p340
    $region38: #{double_conv_forward.4} parent=5 // pred_check_branch
      %343 = sbr.rel (%p341) target = $region40
    $region39: #{double_conv_forward.4} parent=5 // pred_region
      // Predicated region
      $region41: #{double_conv_forward.4} parent=39 // pred_check
        %p344 = pneg %p57
      $region42: #{double_conv_forward.4} parent=39 // pred_check_branch
        %346 = sbr.rel (%p344) target = $region44
      $region43: #{double_conv_forward.4} parent=39 // pred_region
        %s347 = ssub.s32 %s25, 1
        %p348 = scmp.gt.s32.totalorder %s347, 0
        %s349 = scalar_select %p348, %s347, 0
        %p350 = scmp.lt.s32.totalorder %s24, 1
        %s351 = scalar_select %p350, %s24, 1
        %p352 = scmp.lt.s32.totalorder %s349, 0
        %s353 = scalar_select %p352, %s349, 0
        %s354 = smul.addr %s353, 3
        %s355 = smul.addr %s351, 3
        %s356 = sadd.s32 %s354, %s355
        %s357 = smul.addr %s356, 8
        %s358 = scalar_lea.vmem %s0, %s357
        %s359 = ssub.s32 %s25, 1
        %p360 = scmp.gt.s32.totalorder %s359, 0
        %s361 = scalar_select %p360, %s359, 0
      $region44: #{double_conv_forward.4} parent=39 // pred_fallthru
        _
      // Predicated region
      $region45: #{double_conv_forward.4} parent=39 // pred_check
        %p362 = pneg %p85
      $region46: #{double_conv_forward.4} parent=39 // pred_check_branch
        %364 = sbr.rel (%p362) target = $region48
      $region47: #{double_conv_forward.4} parent=39 // pred_region
        %s365 = smul.u32 36, %s25
        %p366 = scmp.lt.s32.totalorder %s24, 1
        %s367 = scalar_select %p366, %s24, 1
        %p368 = scmp.lt.s32.totalorder %s365, 35
        %s369 = scalar_select %p368, %s365, 35
        %s370 = smul.addr %s367, 36
        %s371 = sadd.s32 %s369, %s370
        %s372 = smul.addr %s371, 8
        %s373 = scalar_lea.vmem %s1, %s372
        %s374 = smul.u32 36, %s25
      $region48: #{double_conv_forward.4} parent=39 // pred_fallthru
        _
      // Predicated region
      $region49: #{double_conv_forward.4} parent=39 // pred_check
        %p375 = pneg %p119
      $region50: #{double_conv_forward.4} parent=39 // pred_check_branch
        %377 = sbr.rel (%p375) target = $region52
      $region51: #{double_conv_forward.4} parent=39 // pred_region
        %s378 = sadd.s32 %s25, 1
        %p379 = scmp.lt.s32.totalorder %s378, 0
        %s380 = scalar_select %p379, %s378, 0
        %p381 = scmp.lt.s32.totalorder %s24, 1
        %s382 = scalar_select %p381, %s24, 1
        %p383 = scmp.lt.s32.totalorder %s380, 0
        %s384 = scalar_select %p383, %s380, 0
        %s385 = smul.addr %s384, 3
        %s386 = smul.addr %s382, 3
        %s387 = sadd.s32 %s385, %s386
        %s388 = smul.addr %s387, 8
        %s389 = scalar_lea.vmem %s2, %s388
        %s390 = sadd.s32 %s25, 1
        %p391 = scmp.lt.s32.totalorder %s390, 0
        %s392 = scalar_select %p391, %s390, 0
      $region52: #{double_conv_forward.4} parent=39 // pred_fallthru
        _
    $region40: #{double_conv_forward.4} parent=5 // pred_fallthru
      _
    %p393 = scmp.le.s32.totalorder 1, %s17
    %p394 = scmp.lt.s32.totalorder %s17, 3
    %p395 = pnand %p393, %p394
    %p396 = pneg %p395
    // Predicated region
    $region53: #{double_conv_forward.4} parent=5 // pred_check
      _
    $region54: #{double_conv_forward.4} parent=5 // pred_check_branch
      %398 = sbr.rel (%p395) target = $region56
    $region55: #{double_conv_forward.4} parent=5 // pred_region
      %s399 = ssub.s32 %s17, 1
      %s400 = ssub.s32 %s27, 1
      %p401 = scmp.gt.s32.totalorder %s400, 0
      %s402 = scalar_select %p401, %s400, 0
      %p403 = scmp.lt.s32.totalorder %s26, 1
      %s404 = scalar_select %p403, %s26, 1
      %p405 = scmp.lt.s32.totalorder %s402, 0
      %s406 = scalar_select %p405, %s402, 0
      %s407 = smul.addr %s406, 3
      %s408 = smul.addr %s404, 3
      %s409 = sadd.s32 %s407, %s408
      %s410 = smul.addr %s409, 8
      %s411 = scalar_lea.vmem %s0, %s410
      %p412 = pneg %p63
      %p413 = pneg %p60
      %s414 = smul.u32 36, %s27
      %p415 = scmp.lt.s32.totalorder %s26, 1
      %s416 = scalar_select %p415, %s26, 1
      %p417 = scmp.lt.s32.totalorder %s414, 35
      %s418 = scalar_select %p417, %s414, 35
      %s419 = smul.addr %s416, 36
      %s420 = sadd.s32 %s418, %s419
      %s421 = smul.addr %s420, 8
      %s422 = scalar_lea.vmem %s1, %s421
      %p423 = pneg %p91
      %p424 = pneg %p88
      %s425 = sadd.s32 %s27, 1
      %p426 = scmp.lt.s32.totalorder %s425, 0
      %s427 = scalar_select %p426, %s425, 0
      %p428 = scmp.lt.s32.totalorder %s26, 1
      %s429 = scalar_select %p428, %s26, 1
      %p430 = scmp.lt.s32.totalorder %s427, 0
      %s431 = scalar_select %p430, %s427, 0
      %s432 = smul.addr %s431, 3
      %s433 = smul.addr %s429, 3
      %s434 = sadd.s32 %s432, %s433
      %s435 = smul.addr %s434, 8
      %s436 = scalar_lea.vmem %s2, %s435
      %p437 = pneg %p125
      %p438 = pneg %p122
      %p439 = pneg %p146
      %p440 = pneg %p143
      %p441 = pneg %p167
      %p442 = pneg %p164
      %p443 = pneg %p188
      %p444 = pneg %p185
      %p445 = pneg %p209
      %p446 = pneg %p206
      %p447 = pneg %p230
      %p448 = pneg %p227
      %p449 = pneg %p251
      %p450 = pneg %p248
      %p451 = pneg %p279
      %p452 = pneg %p276
      %s453 = smul.u32 36, %s27
      %p454 = scmp.lt.s32.totalorder %s26, 1
      %s455 = scalar_select %p454, %s26, 1
      %p456 = scmp.lt.s32.totalorder %s453, 35
      %s457 = scalar_select %p456, %s453, 35
      %s458 = smul.addr %s455, 36
      %s459 = sadd.s32 %s457, %s458
      %s460 = smul.addr %s459, 8
      %s461 = scalar_lea.vmem %s9, %s460
      %p462 = pneg %p307
      %p463 = pneg %p304
      %p464 = scmp.lt.s32.totalorder %s26, 1
      %s465 = scalar_select %p464, %s26, 1
      %p466 = scmp.lt.s32.totalorder %s27, 0
      %s467 = scalar_select %p466, %s27, 0
      %s468 = sadd.s32 %s467, %s465
      %s469 = smul.addr %s468, 2
      %s470 = scalar_lea.vmem %s10, %s469
      %s471 = ssub.s32 %s27, 1
      %p472 = scmp.gt.s32.totalorder %s471, 0
      %s473 = scalar_select %p472, %s471, 0
      %p474 = scmp.lt.s32.totalorder %s26, 1
      %s475 = scalar_select %p474, %s26, 1
      %p476 = scmp.lt.s32.totalorder %s473, 0
      %s477 = scalar_select %p476, %s473, 0
      %s478 = smul.addr %s477, 3
      %s479 = smul.addr %s475, 3
      %s480 = sadd.s32 %s478, %s479
      %s481 = smul.addr %s480, 8
      %s482 = scalar_lea.vmem %s0, %s481
      %s483 = ssub.s32 %s27, 1
      %p484 = scmp.gt.s32.totalorder %s483, 0
      %s485 = scalar_select %p484, %s483, 0
      %s486 = smul.u32 36, %s27
      %p487 = scmp.lt.s32.totalorder %s26, 1
      %s488 = scalar_select %p487, %s26, 1
      %p489 = scmp.lt.s32.totalorder %s486, 35
      %s490 = scalar_select %p489, %s486, 35
      %s491 = smul.addr %s488, 36
      %s492 = sadd.s32 %s490, %s491
      %s493 = smul.addr %s492, 8
      %s494 = scalar_lea.vmem %s1, %s493
      %s495 = smul.u32 36, %s27
      %s496 = sadd.s32 %s27, 1
      %p497 = scmp.lt.s32.totalorder %s496, 0
      %s498 = scalar_select %p497, %s496, 0
      %p499 = scmp.lt.s32.totalorder %s26, 1
      %s500 = scalar_select %p499, %s26, 1
      %p501 = scmp.lt.s32.totalorder %s498, 0
      %s502 = scalar_select %p501, %s498, 0
      %s503 = smul.addr %s502, 3
      %s504 = smul.addr %s500, 3
      %s505 = sadd.s32 %s503, %s504
      %s506 = smul.addr %s505, 8
      %s507 = scalar_lea.vmem %s2, %s506
      %s508 = sadd.s32 %s27, 1
      %p509 = scmp.lt.s32.totalorder %s508, 0
      %s510 = scalar_select %p509, %s508, 0
      %s511 = smul.u32 36, %s27
      %p512 = scmp.lt.s32.totalorder %s26, 1
      %s513 = scalar_select %p512, %s26, 1
      %p514 = scmp.lt.s32.totalorder %s511, 35
      %s515 = scalar_select %p514, %s511, 35
      %s516 = smul.addr %s513, 36
      %s517 = sadd.s32 %s515, %s516
      %s518 = smul.addr %s517, 8
      %s519 = scalar_lea.vmem %s9, %s518
      %s520 = smul.u32 36, %s27
      %p521 = scmp.lt.s32.totalorder %s26, 1
      %s522 = scalar_select %p521, %s26, 1
      %p523 = scmp.lt.s32.totalorder %s27, 0
      %s524 = scalar_select %p523, %s27, 0
      %s525 = sadd.s32 %s524, %s522
      %s526 = smul.addr %s525, 2
      %s527 = scalar_lea.vmem %s10, %s526
      %v529 = vld [vmem:[%s3] sm:$0x1]
      %v530 = vld [vmem:[%s4] sm:$0x1]
      %v531 = vld [vmem:[%s482] sm:$0xff]
      %v532 = vld [vmem:[%s482 + $0x8] sm:$0xff]
      %v533 = vld [vmem:[%s482 + $0x10] sm:$0x3]
      %v535 = vlaneseq
      %v536 = vshrl.u32 %v535, 7
      %v537 = vsub.s32 0, %v536
      %v538 = vrot.slane %v529, %v537
      %v540 = vmul.f32 %v531, %v538
      %v541 = vmul.f32 %v532, %v538
      %v542 = vmul.f32 %v533, %v538
      %v544 = vlaneseq
      %v545 = vshrl.u32 %v544, 7
      %v546 = vsub.s32 0, %v545
      %v547 = vrot.slane %v530, %v546
      %v549 = vadd.f32 %v540, %v547
      %v550 = vadd.f32 %v541, %v547
      %v551 = vadd.f32 %v542, %v547
      %v552 = vmax.f32 %v549, 0.0
      %v553 = vmax.f32 %v550, 0.0
      %v554 = vmax.f32 %v551, 0.0
      %p555 = scmp.gt.s32.totalorder %s27, 0
      %s556 = scalar_select %p555, 1, 0
      %s557 = scvt.s32.f32 %s556
      %v558 = vstv %s557
      %v559 = vmul.f32 %v552, %v558
      %v560 = vmul.f32 %v553, %v558
      %v561 = vmul.f32 %v554, %v558
      %v562 = vld [vmem:[%s507] sm:$0xff]
      %v563 = vld [vmem:[%s507 + $0x8] sm:$0xff]
      %v564 = vld [vmem:[%s507 + $0x10] sm:$0x3]
      %v565 = vmul.f32 %v562, %v538
      %v566 = vmul.f32 %v563, %v538
      %v567 = vmul.f32 %v564, %v538
      %v568 = vadd.f32 %v565, %v547
      %v569 = vadd.f32 %v566, %v547
      %v570 = vadd.f32 %v567, %v547
      %v571 = vmax.f32 %v568, 0.0
      %v572 = vmax.f32 %v569, 0.0
      %v573 = vmax.f32 %v570, 0.0
      %p574 = scmp.lt.s32.totalorder %s27, 0
      %s575 = scalar_select %p574, 1, 0
      %s576 = scvt.s32.f32 %s575
      %v577 = vstv %s576
      %v578 = vmul.f32 %v571, %v577
      %v579 = vmul.f32 %v572, %v577
      %v580 = vmul.f32 %v573, %v577
      %v581 = vld [vmem:[%s494] sm:$0xff]
      %v582 = vld [vmem:[%s494 + $0x8] sm:$0xff]
      %v583 = vld [vmem:[%s494 + $0x10] sm:$0xff]
      %v584 = vld [vmem:[%s494 + $0x18] sm:$0xff]
      %v585 = vld [vmem:[%s494 + $0x20] sm:$0xff]
      %v586 = vld [vmem:[%s494 + $0x28] sm:$0xff]
      %v587 = vld [vmem:[%s494 + $0x30] sm:$0xff]
      %v588 = vld [vmem:[%s494 + $0x38] sm:$0xff]
      %v589 = vld [vmem:[%s494 + $0x40] sm:$0xff]
      %v590 = vld [vmem:[%s494 + $0x48] sm:$0xff]
      %v591 = vld [vmem:[%s494 + $0x50] sm:$0xff]
      %v592 = vld [vmem:[%s494 + $0x58] sm:$0xff]
      %v593 = vld [vmem:[%s494 + $0x60] sm:$0xff]
      %v594 = vld [vmem:[%s494 + $0x68] sm:$0xff]
      %v595 = vld [vmem:[%s494 + $0x70] sm:$0xff]
      %v596 = vld [vmem:[%s494 + $0x78] sm:$0xff]
      %v597 = vld [vmem:[%s494 + $0x80] sm:$0xff]
      %v598 = vld [vmem:[%s494 + $0x88] sm:$0xff]
      %v599 = vld [vmem:[%s494 + $0x90] sm:$0xff]
      %v600 = vld [vmem:[%s494 + $0x98] sm:$0xff]
      %v601 = vld [vmem:[%s494 + $0xa0] sm:$0xff]
      %v602 = vld [vmem:[%s494 + $0xa8] sm:$0xff]
      %v603 = vld [vmem:[%s494 + $0xb0] sm:$0xff]
      %v604 = vld [vmem:[%s494 + $0xb8] sm:$0xff]
      %v605 = vld [vmem:[%s494 + $0xc0] sm:$0xff]
      %v606 = vld [vmem:[%s494 + $0xc8] sm:$0xff]
      %v607 = vld [vmem:[%s494 + $0xd0] sm:$0xff]
      %v608 = vld [vmem:[%s494 + $0xd8] sm:$0xff]
      %v609 = vld [vmem:[%s494 + $0xe0] sm:$0xff]
      %v610 = vld [vmem:[%s494 + $0xe8] sm:$0xff]
      %v611 = vld [vmem:[%s494 + $0xf0] sm:$0xff]
      %v612 = vld [vmem:[%s494 + $0xf8] sm:$0xff]
      %v613 = vld [vmem:[%s494 + $0x100] sm:$0xff]
      %v614 = vld [vmem:[%s494 + $0x108] sm:$0xff]
      %v615 = vld [vmem:[%s494 + $0x110] sm:$0xff]
      %v616 = vld [vmem:[%s494 + $0x118] sm:$0xff]
      %v617 = vmul.f32 %v581, %v538
      %v618 = vmul.f32 %v582, %v538
      %v619 = vmul.f32 %v583, %v538
      %v620 = vmul.f32 %v584, %v538
      %v621 = vmul.f32 %v585, %v538
      %v622 = vmul.f32 %v586, %v538
      %v623 = vmul.f32 %v587, %v538
      %v624 = vmul.f32 %v588, %v538
      %v625 = vmul.f32 %v589, %v538
      %v626 = vmul.f32 %v590, %v538
      %v627 = vmul.f32 %v591, %v538
      %v628 = vmul.f32 %v592, %v538
      %v629 = vmul.f32 %v593, %v538
      %v630 = vmul.f32 %v594, %v538
      %v631 = vmul.f32 %v595, %v538
      %v632 = vmul.f32 %v596, %v538
      %v633 = vmul.f32 %v597, %v538
      %v634 = vmul.f32 %v598, %v538
      %v635 = vmul.f32 %v599, %v538
      %v636 = vmul.f32 %v600, %v538
      %v637 = vmul.f32 %v601, %v538
      %v638 = vmul.f32 %v602, %v538
      %v639 = vmul.f32 %v603, %v538
      %v640 = vmul.f32 %v604, %v538
      %v641 = vmul.f32 %v605, %v538
      %v642 = vmul.f32 %v606, %v538
      %v643 = vmul.f32 %v607, %v538
      %v644 = vmul.f32 %v608, %v538
      %v645 = vmul.f32 %v609, %v538
      %v646 = vmul.f32 %v610, %v538
      %v647 = vmul.f32 %v611, %v538
      %v648 = vmul.f32 %v612, %v538
      %v649 = vmul.f32 %v613, %v538
      %v650 = vmul.f32 %v614, %v538
      %v651 = vmul.f32 %v615, %v538
      %v652 = vmul.f32 %v616, %v538
      %v653 = vadd.f32 %v617, %v547
      %v654 = vadd.f32 %v618, %v547
      %v655 = vadd.f32 %v619, %v547
      %v656 = vadd.f32 %v620, %v547
      %v657 = vadd.f32 %v621, %v547
      %v658 = vadd.f32 %v622, %v547
      %v659 = vadd.f32 %v623, %v547
      %v660 = vadd.f32 %v624, %v547
      %v661 = vadd.f32 %v625, %v547
      %v662 = vadd.f32 %v626, %v547
      %v663 = vadd.f32 %v627, %v547
      %v664 = vadd.f32 %v628, %v547
      %v665 = vadd.f32 %v629, %v547
      %v666 = vadd.f32 %v630, %v547
      %v667 = vadd.f32 %v631, %v547
      %v668 = vadd.f32 %v632, %v547
      %v669 = vadd.f32 %v633, %v547
      %v670 = vadd.f32 %v634, %v547
      %v671 = vadd.f32 %v635, %v547
      %v672 = vadd.f32 %v636, %v547
      %v673 = vadd.f32 %v637, %v547
      %v674 = vadd.f32 %v638, %v547
      %v675 = vadd.f32 %v639, %v547
      %v676 = vadd.f32 %v640, %v547
      %v677 = vadd.f32 %v641, %v547
      %v678 = vadd.f32 %v642, %v547
      %v679 = vadd.f32 %v643, %v547
      %v680 = vadd.f32 %v644, %v547
      %v681 = vadd.f32 %v645, %v547
      %v682 = vadd.f32 %v646, %v547
      %v683 = vadd.f32 %v647, %v547
      %v684 = vadd.f32 %v648, %v547
      %v685 = vadd.f32 %v649, %v547
      %v686 = vadd.f32 %v650, %v547
      %v687 = vadd.f32 %v651, %v547
      %v688 = vadd.f32 %v652, %v547
      %v689 = vmax.f32 %v653, 0.0
      %v690 = vmax.f32 %v654, 0.0
      %v691 = vmax.f32 %v655, 0.0
      %v692 = vmax.f32 %v656, 0.0
      %v693 = vmax.f32 %v657, 0.0
      %v694 = vmax.f32 %v658, 0.0
      %v695 = vmax.f32 %v659, 0.0
      %v696 = vmax.f32 %v660, 0.0
      %v697 = vmax.f32 %v661, 0.0
      %v698 = vmax.f32 %v662, 0.0
      %v699 = vmax.f32 %v663, 0.0
      %v700 = vmax.f32 %v664, 0.0
      %v701 = vmax.f32 %v665, 0.0
      %v702 = vmax.f32 %v666, 0.0
      %v703 = vmax.f32 %v667, 0.0
      %v704 = vmax.f32 %v668, 0.0
      %v705 = vmax.f32 %v669, 0.0
      %v706 = vmax.f32 %v670, 0.0
      %v707 = vmax.f32 %v671, 0.0
      %v708 = vmax.f32 %v672, 0.0
      %v709 = vmax.f32 %v673, 0.0
      %v710 = vmax.f32 %v674, 0.0
      %v711 = vmax.f32 %v675, 0.0
      %v712 = vmax.f32 %v676, 0.0
      %v713 = vmax.f32 %v677, 0.0
      %v714 = vmax.f32 %v678, 0.0
      %v715 = vmax.f32 %v679, 0.0
      %v716 = vmax.f32 %v680, 0.0
      %v717 = vmax.f32 %v681, 0.0
      %v718 = vmax.f32 %v682, 0.0
      %v719 = vmax.f32 %v683, 0.0
      %v720 = vmax.f32 %v684, 0.0
      %v721 = vmax.f32 %v685, 0.0
      %v722 = vmax.f32 %v686, 0.0
      %v723 = vmax.f32 %v687, 0.0
      %v724 = vmax.f32 %v688, 0.0
      %vm761 = vcmask 1041408
      %v762 = vrot.slane %v689, 6
      %v763 = vrot.slane %v690, 6
      %v764 = vsel %vm761, %v762, %v763
      %v765 = vrot.slane %v691, 6
      %v766 = vsel %vm761, %v763, %v765
      %v767 = vrot.slane %v692, 6
      %v768 = vsel %vm761, %v765, %v767
      %v769 = vrot.slane %v693, 6
      %v770 = vsel %vm761, %v767, %v769
      %v771 = vrot.slane %v694, 6
      %v772 = vsel %vm761, %v769, %v771
      %v773 = vrot.slane %v695, 6
      %v774 = vsel %vm761, %v771, %v773
      %v775 = vrot.slane %v696, 6
      %v776 = vsel %vm761, %v773, %v775
      %v777 = vrot.slane %v697, 6
      %v778 = vsel %vm761, %v775, %v777
      %v779 = vrot.slane %v698, 6
      %v780 = vsel %vm761, %v777, %v779
      %v781 = vrot.slane %v699, 6
      %v782 = vsel %vm761, %v779, %v781
      %v783 = vrot.slane %v700, 6
      %v784 = vsel %vm761, %v781, %v783
      %v785 = vrot.slane %v701, 6
      %v786 = vsel %vm761, %v783, %v785
      %v787 = vrot.slane %v702, 6
      %v788 = vsel %vm761, %v785, %v787
      %v789 = vrot.slane %v703, 6
      %v790 = vsel %vm761, %v787, %v789
      %v791 = vrot.slane %v704, 6
      %v792 = vsel %vm761, %v789, %v791
      %v793 = vrot.slane %v705, 6
      %v794 = vsel %vm761, %v791, %v793
      %v795 = vrot.slane %v706, 6
      %v796 = vsel %vm761, %v793, %v795
      %v797 = vrot.slane %v707, 6
      %v798 = vsel %vm761, %v795, %v797
      %v799 = vrot.slane %v708, 6
      %v800 = vsel %vm761, %v797, %v799
      %v801 = vrot.slane %v709, 6
      %v802 = vsel %vm761, %v799, %v801
      %v803 = vrot.slane %v710, 6
      %v804 = vsel %vm761, %v801, %v803
      %v805 = vrot.slane %v711, 6
      %v806 = vsel %vm761, %v803, %v805
      %v807 = vrot.slane %v712, 6
      %v808 = vsel %vm761, %v805, %v807
      %v809 = vrot.slane %v713, 6
      %v810 = vsel %vm761, %v807, %v809
      %v811 = vrot.slane %v714, 6
      %v812 = vsel %vm761, %v809, %v811
      %v813 = vrot.slane %v715, 6
      %v814 = vsel %vm761, %v811, %v813
      %v815 = vrot.slane %v716, 6
      %v816 = vsel %vm761, %v813, %v815
      %v817 = vrot.slane %v717, 6
      %v818 = vsel %vm761, %v815, %v817
      %v819 = vrot.slane %v718, 6
      %v820 = vsel %vm761, %v817, %v819
      %v821 = vrot.slane %v719, 6
      %v822 = vsel %vm761, %v819, %v821
      %v823 = vrot.slane %v720, 6
      %v824 = vsel %vm761, %v821, %v823
      %v825 = vrot.slane %v721, 6
      %v826 = vsel %vm761, %v823, %v825
      %v827 = vrot.slane %v722, 6
      %v828 = vsel %vm761, %v825, %v827
      %v829 = vrot.slane %v723, 6
      %v830 = vsel %vm761, %v827, %v829
      %v831 = vrot.slane %v724, 6
      %v832 = vsel %vm761, %v829, %v831
      %v873 = vrot.slane %v578, 6
      %v874 = vrot.slane %v579, 6
      %v875 = vsel %vm761, %v873, %v874
      %v876 = vrot.slane %v580, 6
      %v877 = vsel %vm761, %v874, %v876
      %v881 = vsel %vm761, %v561, %v762
      %v882 = vsel %vm761, %v831, %v873
      %v883 = vld [vmem:[%s7] sm:$0xff]
      %v884 = vld [vmem:[%s7 + $0x8] sm:$0xff]
      %v885 = vld [vmem:[%s7 + $0x10] sm:$0xff]
      %v886 = vld [vmem:[%s7 + $0x18] sm:$0xff]
      %v887 = vld [vmem:[%s7 + $0x20] sm:$0xff]
      %v888 = vld [vmem:[%s7 + $0x28] sm:$0xff]
      %v889 = vld [vmem:[%s7 + $0x30] sm:$0xff]
      %v890 = vld [vmem:[%s7 + $0x38] sm:$0xff]
      %v891 = vld [vmem:[%s7 + $0x40] sm:$0xff]
      %v892 = vld [vmem:[%s7 + $0x48] sm:$0xff]
      %v893 = vld [vmem:[%s7 + $0x50] sm:$0xff]
      %v894 = vld [vmem:[%s7 + $0x58] sm:$0xff]
      %v895 = vld [vmem:[%s7 + $0x60] sm:$0xff]
      %v896 = vld [vmem:[%s7 + $0x68] sm:$0xff]
      %v897 = vld [vmem:[%s7 + $0x70] sm:$0xff]
      %v898 = vld [vmem:[%s7 + $0x78] sm:$0xff]
      %v899 = vld [vmem:[%s7 + $0x80] sm:$0xff]
      %v900 = vld [vmem:[%s7 + $0x88] sm:$0xff]
      %v901 = vld [vmem:[%s7 + $0x90] sm:$0xff]
      %v902 = vld [vmem:[%s7 + $0x98] sm:$0xff]
      %v903 = vld [vmem:[%s7 + $0xa0] sm:$0xff]
      %v904 = vld [vmem:[%s7 + $0xa8] sm:$0xff]
      %v905 = vld [vmem:[%s7 + $0xb0] sm:$0xff]
      %v906 = vld [vmem:[%s7 + $0xb8] sm:$0xff]
      %v907 = vld [vmem:[%s7 + $0xc0] sm:$0xff]
      %v908 = vld [vmem:[%s7 + $0xc8] sm:$0xff]
      %v909 = vld [vmem:[%s7 + $0xd0] sm:$0xff]
      %v910 = vld [vmem:[%s7 + $0xd8] sm:$0xff]
      %v911 = vld [vmem:[%s7 + $0xe0] sm:$0xff]
      %v912 = vld [vmem:[%s7 + $0xe8] sm:$0xff]
      %v913 = vld [vmem:[%s7 + $0xf0] sm:$0xff]
      %v914 = vld [vmem:[%s7 + $0xf8] sm:$0xff]
      %v915 = vld [vmem:[%s7 + $0x100] sm:$0xff]
      %v916 = vld [vmem:[%s7 + $0x108] sm:$0xff]
      %v917 = vld [vmem:[%s7 + $0x110] sm:$0xff]
      %v918 = vld [vmem:[%s7 + $0x118] sm:$0xff]
      %v919 = vld [vmem:[%s7 + $0x120] sm:$0xff]
      %v920 = vld [vmem:[%s7 + $0x128] sm:$0xff]
      %v921 = vld [vmem:[%s7 + $0x130] sm:$0xff]
      %v922 = vld [vmem:[%s7 + $0x138] sm:$0xff]
      %v923 = vld [vmem:[%s7 + $0x140] sm:$0xf]
      %925 = vset.pattern.permute.xlu0 0
      %926 = vperm.xlu0 %925, %v883
      %v927 = vpop.permute.xlu0 %926
      %930 = vset.pattern.permute.xlu0 0
      %931 = vperm.xlu0 %930, %v884
      %v932 = vpop.permute.xlu0 %931
      %935 = vset.pattern.permute.xlu0 0
      %936 = vperm.xlu0 %935, %v885
      %v937 = vpop.permute.xlu0 %936
      %940 = vset.pattern.permute.xlu0 0
      %941 = vperm.xlu0 %940, %v886
      %v942 = vpop.permute.xlu0 %941
      %945 = vset.pattern.permute.xlu0 0
      %946 = vperm.xlu0 %945, %v887
      %v947 = vpop.permute.xlu0 %946
      %950 = vset.pattern.permute.xlu0 0
      %951 = vperm.xlu0 %950, %v888
      %v952 = vpop.permute.xlu0 %951
      %955 = vset.pattern.permute.xlu0 0
      %956 = vperm.xlu0 %955, %v889
      %v957 = vpop.permute.xlu0 %956
      %960 = vset.pattern.permute.xlu0 0
      %961 = vperm.xlu0 %960, %v890
      %v962 = vpop.permute.xlu0 %961
      %965 = vset.pattern.permute.xlu0 0
      %966 = vperm.xlu0 %965, %v891
      %v967 = vpop.permute.xlu0 %966
      %970 = vset.pattern.permute.xlu0 0
      %971 = vperm.xlu0 %970, %v892
      %v972 = vpop.permute.xlu0 %971
      %975 = vset.pattern.permute.xlu0 0
      %976 = vperm.xlu0 %975, %v893
      %v977 = vpop.permute.xlu0 %976
      %980 = vset.pattern.permute.xlu0 0
      %981 = vperm.xlu0 %980, %v894
      %v982 = vpop.permute.xlu0 %981
      %985 = vset.pattern.permute.xlu0 0
      %986 = vperm.xlu0 %985, %v895
      %v987 = vpop.permute.xlu0 %986
      %990 = vset.pattern.permute.xlu0 0
      %991 = vperm.xlu0 %990, %v896
      %v992 = vpop.permute.xlu0 %991
      %995 = vset.pattern.permute.xlu0 0
      %996 = vperm.xlu0 %995, %v897
      %v997 = vpop.permute.xlu0 %996
      %1000 = vset.pattern.permute.xlu0 0
      %1001 = vperm.xlu0 %1000, %v898
      %v1002 = vpop.permute.xlu0 %1001
      %1005 = vset.pattern.permute.xlu0 0
      %1006 = vperm.xlu0 %1005, %v899
      %v1007 = vpop.permute.xlu0 %1006
      %1010 = vset.pattern.permute.xlu0 0
      %1011 = vperm.xlu0 %1010, %v900
      %v1012 = vpop.permute.xlu0 %1011
      %1015 = vset.pattern.permute.xlu0 0
      %1016 = vperm.xlu0 %1015, %v901
      %v1017 = vpop.permute.xlu0 %1016
      %1020 = vset.pattern.permute.xlu0 0
      %1021 = vperm.xlu0 %1020, %v902
      %v1022 = vpop.permute.xlu0 %1021
      %1025 = vset.pattern.permute.xlu0 0
      %1026 = vperm.xlu0 %1025, %v903
      %v1027 = vpop.permute.xlu0 %1026
      %1030 = vset.pattern.permute.xlu0 0
      %1031 = vperm.xlu0 %1030, %v904
      %v1032 = vpop.permute.xlu0 %1031
      %1035 = vset.pattern.permute.xlu0 0
      %1036 = vperm.xlu0 %1035, %v905
      %v1037 = vpop.permute.xlu0 %1036
      %1040 = vset.pattern.permute.xlu0 0
      %1041 = vperm.xlu0 %1040, %v906
      %v1042 = vpop.permute.xlu0 %1041
      %1045 = vset.pattern.permute.xlu0 0
      %1046 = vperm.xlu0 %1045, %v907
      %v1047 = vpop.permute.xlu0 %1046
      %1050 = vset.pattern.permute.xlu0 0
      %1051 = vperm.xlu0 %1050, %v908
      %v1052 = vpop.permute.xlu0 %1051
      %1055 = vset.pattern.permute.xlu0 0
      %1056 = vperm.xlu0 %1055, %v909
      %v1057 = vpop.permute.xlu0 %1056
      %1060 = vset.pattern.permute.xlu0 0
      %1061 = vperm.xlu0 %1060, %v910
      %v1062 = vpop.permute.xlu0 %1061
      %1065 = vset.pattern.permute.xlu0 0
      %1066 = vperm.xlu0 %1065, %v911
      %v1067 = vpop.permute.xlu0 %1066
      %1070 = vset.pattern.permute.xlu0 0
      %1071 = vperm.xlu0 %1070, %v912
      %v1072 = vpop.permute.xlu0 %1071
      %1075 = vset.pattern.permute.xlu0 0
      %1076 = vperm.xlu0 %1075, %v913
      %v1077 = vpop.permute.xlu0 %1076
      %1080 = vset.pattern.permute.xlu0 0
      %1081 = vperm.xlu0 %1080, %v914
      %v1082 = vpop.permute.xlu0 %1081
      %1085 = vset.pattern.permute.xlu0 0
      %1086 = vperm.xlu0 %1085, %v915
      %v1087 = vpop.permute.xlu0 %1086
      %1090 = vset.pattern.permute.xlu0 0
      %1091 = vperm.xlu0 %1090, %v916
      %v1092 = vpop.permute.xlu0 %1091
      %1095 = vset.pattern.permute.xlu0 0
      %1096 = vperm.xlu0 %1095, %v917
      %v1097 = vpop.permute.xlu0 %1096
      %1100 = vset.pattern.permute.xlu0 0
      %1101 = vperm.xlu0 %1100, %v918
      %v1102 = vpop.permute.xlu0 %1101
      %1105 = vset.pattern.permute.xlu0 0
      %1106 = vperm.xlu0 %1105, %v919
      %v1107 = vpop.permute.xlu0 %1106
      %1110 = vset.pattern.permute.xlu0 0
      %1111 = vperm.xlu0 %1110, %v920
      %v1112 = vpop.permute.xlu0 %1111
      %1115 = vset.pattern.permute.xlu0 0
      %1116 = vperm.xlu0 %1115, %v921
      %v1117 = vpop.permute.xlu0 %1116
      %1120 = vset.pattern.permute.xlu0 0
      %1121 = vperm.xlu0 %1120, %v922
      %v1122 = vpop.permute.xlu0 %1121
      %1125 = vset.pattern.permute.xlu0 0
      %1126 = vperm.xlu0 %1125, %v923
      %v1127 = vpop.permute.xlu0 %1126
      %v1129 = vmul.f32 %v559, %v927
      %v1130 = vmul.f32 %v560, %v932
      %v1131 = vmul.f32 %v881, %v937
      %v1132 = vmul.f32 %v764, %v942
      %v1133 = vmul.f32 %v766, %v947
      %v1134 = vmul.f32 %v768, %v952
      %v1135 = vmul.f32 %v770, %v957
      %v1136 = vmul.f32 %v772, %v962
      %v1137 = vmul.f32 %v774, %v967
      %v1138 = vmul.f32 %v776, %v972
      %v1139 = vmul.f32 %v778, %v977
      %v1140 = vmul.f32 %v780, %v982
      %v1141 = vmul.f32 %v782, %v987
      %v1142 = vmul.f32 %v784, %v992
      %v1143 = vmul.f32 %v786, %v997
      %v1144 = vmul.f32 %v788, %v1002
      %v1145 = vmul.f32 %v790, %v1007
      %v1146 = vmul.f32 %v792, %v1012
      %v1147 = vmul.f32 %v794, %v1017
      %v1148 = vmul.f32 %v796, %v1022
      %v1149 = vmul.f32 %v798, %v1027
      %v1150 = vmul.f32 %v800, %v1032
      %v1151 = vmul.f32 %v802, %v1037
      %v1152 = vmul.f32 %v804, %v1042
      %v1153 = vmul.f32 %v806, %v1047
      %v1154 = vmul.f32 %v808, %v1052
      %v1155 = vmul.f32 %v810, %v1057
      %v1156 = vmul.f32 %v812, %v1062
      %v1157 = vmul.f32 %v814, %v1067
      %v1158 = vmul.f32 %v816, %v1072
      %v1159 = vmul.f32 %v818, %v1077
      %v1160 = vmul.f32 %v820, %v1082
      %v1161 = vmul.f32 %v822, %v1087
      %v1162 = vmul.f32 %v824, %v1092
      %v1163 = vmul.f32 %v826, %v1097
      %v1164 = vmul.f32 %v828, %v1102
      %v1165 = vmul.f32 %v830, %v1107
      %v1166 = vmul.f32 %v832, %v1112
      %v1167 = vmul.f32 %v882, %v1117
      %v1168 = vmul.f32 %v875, %v1122
      %v1169 = vmul.f32 %v877, %v1127
      %v1170 = vpack.c.bf16 %v1130, %v1129
      %v1171 = vpack.c.bf16 %v1132, %v1131
      %v1172 = vpack.c.bf16 %v1134, %v1133
      %v1173 = vpack.c.bf16 %v1136, %v1135
      %v1174 = vpack.c.bf16 %v1138, %v1137
      %v1175 = vpack.c.bf16 %v1140, %v1139
      %v1176 = vpack.c.bf16 %v1142, %v1141
      %v1177 = vpack.c.bf16 %v1144, %v1143
      %v1178 = vpack.c.bf16 %v1146, %v1145
      %v1179 = vpack.c.bf16 %v1148, %v1147
      %v1180 = vpack.c.bf16 %v1150, %v1149
      %v1181 = vpack.c.bf16 %v1152, %v1151
      %v1182 = vpack.c.bf16 %v1154, %v1153
      %v1183 = vpack.c.bf16 %v1156, %v1155
      %v1184 = vpack.c.bf16 %v1158, %v1157
      %v1185 = vpack.c.bf16 %v1160, %v1159
      %v1186 = vpack.c.bf16 %v1162, %v1161
      %v1187 = vpack.c.bf16 %v1164, %v1163
      %v1188 = vpack.c.bf16 %v1166, %v1165
      %v1189 = vpack.c.bf16 %v1168, %v1167
      %v1190 = vpack.c.bf16 %v1169, %v1169
      %v1193 = vsel %vm761, %v1190, 0
      %v1194 = vld [vmem:[%s5] sm:$0xf]
      %v1195 = vld [vmem:[%s5 + $0x4] sm:$0xf]
      %v1196 = vld [vmem:[%s5 + $0x8] sm:$0xf]
      %v1197 = vld [vmem:[%s5 + $0xc] sm:$0xf]
      %v1198 = vld [vmem:[%s5 + $0x10] sm:$0xf]
      %v1199 = vld [vmem:[%s5 + $0x14] sm:$0xf]
      %v1200 = vld [vmem:[%s5 + $0x18] sm:$0xf]
      %v1201 = vld [vmem:[%s5 + $0x1c] sm:$0xf]
      %v1202 = vld [vmem:[%s5 + $0x20] sm:$0xf]
      %v1203 = vld [vmem:[%s5 + $0x24] sm:$0xf]
      %v1204 = vld [vmem:[%s5 + $0x28] sm:$0xf]
      %v1205 = vld [vmem:[%s5 + $0x2c] sm:$0xf]
      %v1206 = vld [vmem:[%s5 + $0x30] sm:$0xf]
      %v1207 = vld [vmem:[%s5 + $0x34] sm:$0xf]
      %v1208 = vld [vmem:[%s5 + $0x38] sm:$0xf]
      %v1209 = vld [vmem:[%s5 + $0x3c] sm:$0xf]
      %s1210 = scalar_lea.vmem %s5, 64
      %v1211 = vld [vmem:[%s1210] sm:$0xf]
      %v1212 = vld [vmem:[%s1210 + $0x4] sm:$0xf]
      %v1213 = vld [vmem:[%s1210 + $0x8] sm:$0xf]
      %v1214 = vld [vmem:[%s1210 + $0xc] sm:$0xf]
      %v1215 = vld [vmem:[%s1210 + $0x10] sm:$0xf]
      %v1216 = vld [vmem:[%s1210 + $0x14] sm:$0xf]
      %v1217 = vld [vmem:[%s1210 + $0x18] sm:$0xf]
      %v1218 = vld [vmem:[%s1210 + $0x1c] sm:$0xf]
      %v1219 = vld [vmem:[%s1210 + $0x20] sm:$0xf]
      %v1220 = vld [vmem:[%s1210 + $0x24] sm:$0xf]
      %v1221 = vld [vmem:[%s1210 + $0x28] sm:$0xf]
      %v1222 = vld [vmem:[%s1210 + $0x2c] sm:$0xf]
      %v1223 = vld [vmem:[%s1210 + $0x30] sm:$0xf]
      %v1224 = vld [vmem:[%s1210 + $0x34] sm:$0xf]
      %v1225 = vld [vmem:[%s1210 + $0x38] sm:$0xf]
      %v1226 = vld [vmem:[%s1210 + $0x3c] sm:$0xf]
      %vm1227 = vsmask.f32 7424
      %v1229 = vshrl.u32 %v1170, 16
      %v1231 = vshll.u32 %v1170, 16
      %v1233 = vrot.slane %v1231, 1
      %v1234 = vor.u32 %v1229, %v1233
      %v1236 = vshll.u32 %v1171, 16
      %v1238 = vrot.slane %v1236, 1
      %v1239 = vsel %vm1227, %v1234, %v1238
      %v1240 = vshrl.u32 %v1171, 16
      %v1242 = vor.u32 %v1240, %v1238
      %v1244 = vshll.u32 %v1172, 16
      %v1246 = vrot.slane %v1244, 1
      %v1247 = vsel %vm1227, %v1242, %v1246
      %v1248 = vshrl.u32 %v1172, 16
      %v1250 = vor.u32 %v1248, %v1246
      %v1252 = vshll.u32 %v1173, 16
      %v1254 = vrot.slane %v1252, 1
      %v1255 = vsel %vm1227, %v1250, %v1254
      %v1256 = vshrl.u32 %v1173, 16
      %v1258 = vor.u32 %v1256, %v1254
      %v1260 = vshll.u32 %v1174, 16
      %v1262 = vrot.slane %v1260, 1
      %v1263 = vsel %vm1227, %v1258, %v1262
      %v1264 = vshrl.u32 %v1174, 16
      %v1266 = vor.u32 %v1264, %v1262
      %v1268 = vshll.u32 %v1175, 16
      %v1270 = vrot.slane %v1268, 1
      %v1271 = vsel %vm1227, %v1266, %v1270
      %v1272 = vshrl.u32 %v1175, 16
      %v1274 = vor.u32 %v1272, %v1270
      %v1276 = vshll.u32 %v1176, 16
      %v1278 = vrot.slane %v1276, 1
      %v1279 = vsel %vm1227, %v1274, %v1278
      %v1280 = vshrl.u32 %v1176, 16
      %v1282 = vor.u32 %v1280, %v1278
      %v1284 = vshll.u32 %v1177, 16
      %v1286 = vrot.slane %v1284, 1
      %v1287 = vsel %vm1227, %v1282, %v1286
      %v1288 = vshrl.u32 %v1177, 16
      %v1290 = vor.u32 %v1288, %v1286
      %v1292 = vshll.u32 %v1178, 16
      %v1294 = vrot.slane %v1292, 1
      %v1295 = vsel %vm1227, %v1290, %v1294
      %v1296 = vshrl.u32 %v1178, 16
      %v1298 = vor.u32 %v1296, %v1294
      %v1300 = vshll.u32 %v1179, 16
      %v1302 = vrot.slane %v1300, 1
      %v1303 = vsel %vm1227, %v1298, %v1302
      %v1304 = vshrl.u32 %v1179, 16
      %v1306 = vor.u32 %v1304, %v1302
      %v1308 = vshll.u32 %v1180, 16
      %v1310 = vrot.slane %v1308, 1
      %v1311 = vsel %vm1227, %v1306, %v1310
      %v1312 = vshrl.u32 %v1180, 16
      %v1314 = vor.u32 %v1312, %v1310
      %v1316 = vshll.u32 %v1181, 16
      %v1318 = vrot.slane %v1316, 1
      %v1319 = vsel %vm1227, %v1314, %v1318
      %v1320 = vshrl.u32 %v1181, 16
      %v1322 = vor.u32 %v1320, %v1318
      %v1324 = vshll.u32 %v1182, 16
      %v1326 = vrot.slane %v1324, 1
      %v1327 = vsel %vm1227, %v1322, %v1326
      %v1328 = vshrl.u32 %v1182, 16
      %v1330 = vor.u32 %v1328, %v1326
      %v1332 = vshll.u32 %v1183, 16
      %v1334 = vrot.slane %v1332, 1
      %v1335 = vsel %vm1227, %v1330, %v1334
      %v1336 = vshrl.u32 %v1183, 16
      %v1338 = vor.u32 %v1336, %v1334
      %v1340 = vshll.u32 %v1184, 16
      %v1342 = vrot.slane %v1340, 1
      %v1343 = vsel %vm1227, %v1338, %v1342
      %v1344 = vshrl.u32 %v1184, 16
      %v1346 = vor.u32 %v1344, %v1342
      %v1348 = vshll.u32 %v1185, 16
      %v1350 = vrot.slane %v1348, 1
      %v1351 = vsel %vm1227, %v1346, %v1350
      %v1352 = vshrl.u32 %v1185, 16
      %v1354 = vor.u32 %v1352, %v1350
      %v1356 = vshll.u32 %v1186, 16
      %v1358 = vrot.slane %v1356, 1
      %v1359 = vsel %vm1227, %v1354, %v1358
      %v1360 = vshrl.u32 %v1186, 16
      %v1362 = vor.u32 %v1360, %v1358
      %v1364 = vshll.u32 %v1187, 16
      %v1366 = vrot.slane %v1364, 1
      %v1367 = vsel %vm1227, %v1362, %v1366
      %v1368 = vshrl.u32 %v1187, 16
      %v1370 = vor.u32 %v1368, %v1366
      %v1372 = vshll.u32 %v1188, 16
      %v1374 = vrot.slane %v1372, 1
      %v1375 = vsel %vm1227, %v1370, %v1374
      %v1410 = vunpack.c.l.b16 %v1211
      %v1411 = vunpack.c.l.b16 %v1212
      %v1412 = vunpack.c.l.b16 %v1213
      %v1413 = vunpack.c.l.b16 %v1214
      %v1414 = vunpack.c.l.b16 %v1215
      %v1415 = vunpack.c.l.b16 %v1216
      %v1416 = vunpack.c.l.b16 %v1217
      %v1417 = vunpack.c.l.b16 %v1218
      %v1418 = vunpack.c.l.b16 %v1219
      %v1419 = vunpack.c.l.b16 %v1220
      %v1420 = vunpack.c.l.b16 %v1221
      %v1421 = vunpack.c.l.b16 %v1222
      %v1422 = vunpack.c.l.b16 %v1223
      %v1423 = vunpack.c.l.b16 %v1224
      %v1424 = vunpack.c.l.b16 %v1225
      %v1425 = vunpack.c.l.b16 %v1226
      %v1426 = vpack.c.b16 %v1411, %v1410
      %v1427 = vpack.c.b16 %v1413, %v1412
      %v1428 = vpack.c.b16 %v1415, %v1414
      %v1429 = vpack.c.b16 %v1417, %v1416
      %v1430 = vpack.c.b16 %v1419, %v1418
      %v1431 = vpack.c.b16 %v1421, %v1420
      %v1432 = vpack.c.b16 %v1423, %v1422
      %v1433 = vpack.c.b16 %v1425, %v1424
      %1442 = vmatprep.subr.bf16.mxu0 0
      %1443 = vmatpush1.bf16.msra.mxu0 %v1426
      %1444 = vmatprep.subr.bf16.mxu0 0
      %1445 = vmatpush1.bf16.msra.mxu0 %v1427
      %1446 = vmatprep.subr.bf16.mxu0 0
      %1447 = vmatpush1.bf16.msra.mxu0 %v1428
      %1448 = vmatprep.subr.bf16.mxu0 0
      %1449 = vmatpush1.bf16.msra.mxu0 %v1429
      %1450 = vmatprep.subr.bf16.mxu0 0
      %1451 = vmatpush1.bf16.msra.mxu0 %v1430
      %1452 = vmatprep.subr.bf16.mxu0 0
      %1453 = vmatpush1.bf16.msra.mxu0 %v1431
      %1454 = vmatprep.subr.bf16.mxu0 0
      %1455 = vmatpush1.bf16.msra.mxu0 %v1432
      %1456 = vmatprep.subr.bf16.mxu0 0
      %1457 = vmatpush1.bf16.msra.mxu0 %v1433
      %1458 = vmatprep.subr.bf16.mxu0 0
      %1459 = vmatpush1.bf16.msra.mxu0 0
      %1460 = vmatprep.subr.bf16.mxu0 0
      %1461 = vmatpush1.bf16.msra.mxu0 0
      %1462 = vmatprep.subr.bf16.mxu0 0
      %1463 = vmatpush1.bf16.msra.mxu0 0
      %1464 = vmatprep.subr.bf16.mxu0 0
      %1465 = vmatpush1.bf16.msra.mxu0 0
      %1466 = vmatprep.subr.bf16.mxu0 0
      %1467 = vmatpush1.bf16.msra.mxu0 0
      %1468 = vmatprep.subr.bf16.mxu0 0
      %1469 = vmatpush1.bf16.msra.mxu0 0
      %1470 = vmatprep.subr.bf16.mxu0 0
      %1471 = vmatpush1.bf16.msra.mxu0 0
      %1472 = vmatprep.subr.bf16.mxu0 0
      %1473 = vmatpush1.bf16.msra.mxu0 0
      %1474 = vmatprep.mubr.bf16.mxu0 0
      %1475 = vmatmul.mubr.bf16.gmra.mrb[0].mxu0 %v1239
      %v1476 = vpop.f32.mrb[0].mxu0
      %v1477 = vadd.f32 0.0, %v1476
      %v1478 = vpop.f32.mrb[0].mxu0
      %v1479 = vpop.f32.mrb[0].mxu0
      %v1480 = vadd.f32 0.0, %v1479
      %v1481 = vpop.f32.mrb[0].mxu0
      %1482 = vmatprep.mubr.bf16.mxu0 0
      %1483 = vmatmul.mubr.bf16.gmra.mrb[0].mxu0 %v1247
      %v1484 = vpop.f32.mrb[0].mxu0
      %v1485 = vadd.f32 0.0, %v1484
      %v1486 = vpop.f32.mrb[0].mxu0
      %v1487 = vpop.f32.mrb[0].mxu0
      %v1488 = vadd.f32 0.0, %v1487
      %v1489 = vpop.f32.mrb[0].mxu0
      %1490 = vmatprep.mubr.bf16.mxu0 0
      %1491 = vmatmul.mubr.bf16.gmra.mrb[0].mxu0 %v1255
      %v1492 = vpop.f32.mrb[0].mxu0
      %v1493 = vadd.f32 0.0, %v1492
      %v1494 = vpop.f32.mrb[0].mxu0
      %v1495 = vpop.f32.mrb[0].mxu0
      %v1496 = vadd.f32 0.0, %v1495
      %v1497 = vpop.f32.mrb[0].mxu0
      %1498 = vmatprep.mubr.bf16.mxu0 0
      %1499 = vmatmul.mubr.bf16.gmra.mrb[0].mxu0 %v1263
      %v1500 = vpop.f32.mrb[0].mxu0
      %v1501 = vadd.f32 0.0, %v1500
      %v1502 = vpop.f32.mrb[0].mxu0
      %v1503 = vpop.f32.mrb[0].mxu0
      %v1504 = vadd.f32 0.0, %v1503
      %v1505 = vpop.f32.mrb[0].mxu0
      %1506 = vmatprep.mubr.bf16.mxu0 0
      %1507 = vmatmul.mubr.bf16.gmra.mrb[0].mxu0 %v1271
      %v1508 = vpop.f32.mrb[0].mxu0
      %v1509 = vadd.f32 0.0, %v1508
      %v1510 = vpop.f32.mrb[0].mxu0
      %v1511 = vpop.f32.mrb[0].mxu0
      %v1512 = vadd.f32 0.0, %v1511
      %v1513 = vpop.f32.mrb[0].mxu0
      %1514 = vmatprep.mubr.bf16.mxu0 0
      %1515 = vmatmul.mubr.bf16.gmra.mrb[0].mxu0 %v1279
      %v1516 = vpop.f32.mrb[0].mxu0
      %v1517 = vadd.f32 0.0, %v1516
      %v1518 = vpop.f32.mrb[0].mxu0
      %v1519 = vpop.f32.mrb[0].mxu0
      %v1520 = vadd.f32 0.0, %v1519
      %v1521 = vpop.f32.mrb[0].mxu0
      %1522 = vmatprep.mubr.bf16.mxu0 0
      %1523 = vmatmul.mubr.bf16.gmra.mrb[0].mxu0 %v1287
      %v1524 = vpop.f32.mrb[0].mxu0
      %v1525 = vadd.f32 0.0, %v1524
      %v1526 = vpop.f32.mrb[0].mxu0
      %v1527 = vpop.f32.mrb[0].mxu0
      %v1528 = vadd.f32 0.0, %v1527
      %v1529 = vpop.f32.mrb[0].mxu0
      %1530 = vmatprep.mubr.bf16.mxu0 0
      %1531 = vmatmul.mubr.bf16.gmra.mrb[0].mxu0 %v1295
      %v1532 = vpop.f32.mrb[0].mxu0
      %v1533 = vadd.f32 0.0, %v1532
      %v1534 = vpop.f32.mrb[0].mxu0
      %v1535 = vpop.f32.mrb[0].mxu0
      %v1536 = vadd.f32 0.0, %v1535
      %v1537 = vpop.f32.mrb[0].mxu0
      %1538 = vmatprep.mubr.bf16.mxu0 0
      %1539 = vmatmul.mubr.bf16.gmra.mrb[0].mxu0 %v1303
      %v1540 = vpop.f32.mrb[0].mxu0
      %v1541 = vadd.f32 0.0, %v1540
      %v1542 = vpop.f32.mrb[0].mxu0
      %v1543 = vpop.f32.mrb[0].mxu0
      %v1544 = vadd.f32 0.0, %v1543
      %v1545 = vpop.f32.mrb[0].mxu0
      %1546 = vmatprep.mubr.bf16.mxu0 0
      %1547 = vmatmul.mubr.bf16.gmra.mrb[0].mxu0 %v1311
      %v1548 = vpop.f32.mrb[0].mxu0
      %v1549 = vadd.f32 0.0, %v1548
      %v1550 = vpop.f32.mrb[0].mxu0
      %v1551 = vpop.f32.mrb[0].mxu0
      %v1552 = vadd.f32 0.0, %v1551
      %v1553 = vpop.f32.mrb[0].mxu0
      %1554 = vmatprep.mubr.bf16.mxu0 0
      %1555 = vmatmul.mubr.bf16.gmra.mrb[0].mxu0 %v1319
      %v1556 = vpop.f32.mrb[0].mxu0
      %v1557 = vadd.f32 0.0, %v1556
      %v1558 = vpop.f32.mrb[0].mxu0
      %v1559 = vpop.f32.mrb[0].mxu0
      %v1560 = vadd.f32 0.0, %v1559
      %v1561 = vpop.f32.mrb[0].mxu0
      %1562 = vmatprep.mubr.bf16.mxu0 0
      %1563 = vmatmul.mubr.bf16.gmra.mrb[0].mxu0 %v1327
      %v1564 = vpop.f32.mrb[0].mxu0
      %v1565 = vadd.f32 0.0, %v1564
      %v1566 = vpop.f32.mrb[0].mxu0
      %v1567 = vpop.f32.mrb[0].mxu0
      %v1568 = vadd.f32 0.0, %v1567
      %v1569 = vpop.f32.mrb[0].mxu0
      %1570 = vmatprep.mubr.bf16.mxu0 0
      %1571 = vmatmul.mubr.bf16.gmra.mrb[0].mxu0 %v1335
      %v1572 = vpop.f32.mrb[0].mxu0
      %v1573 = vadd.f32 0.0, %v1572
      %v1574 = vpop.f32.mrb[0].mxu0
      %v1575 = vpop.f32.mrb[0].mxu0
      %v1576 = vadd.f32 0.0, %v1575
      %v1577 = vpop.f32.mrb[0].mxu0
      %1578 = vmatprep.mubr.bf16.mxu0 0
      %1579 = vmatmul.mubr.bf16.gmra.mrb[0].mxu0 %v1343
      %v1580 = vpop.f32.mrb[0].mxu0
      %v1581 = vadd.f32 0.0, %v1580
      %v1582 = vpop.f32.mrb[0].mxu0
      %v1583 = vpop.f32.mrb[0].mxu0
      %v1584 = vadd.f32 0.0, %v1583
      %v1585 = vpop.f32.mrb[0].mxu0
      %1586 = vmatprep.mubr.bf16.mxu0 0
      %1587 = vmatmul.mubr.bf16.gmra.mrb[0].mxu0 %v1351
      %v1588 = vpop.f32.mrb[0].mxu0
      %v1589 = vadd.f32 0.0, %v1588
      %v1590 = vpop.f32.mrb[0].mxu0
      %v1591 = vpop.f32.mrb[0].mxu0
      %v1592 = vadd.f32 0.0, %v1591
      %v1593 = vpop.f32.mrb[0].mxu0
      %1594 = vmatprep.mubr.bf16.mxu0 0
      %1595 = vmatmul.mubr.bf16.gmra.mrb[0].mxu0 %v1359
      %v1596 = vpop.f32.mrb[0].mxu0
      %v1597 = vadd.f32 0.0, %v1596
      %v1598 = vpop.f32.mrb[0].mxu0
      %v1599 = vpop.f32.mrb[0].mxu0
      %v1600 = vadd.f32 0.0, %v1599
      %v1601 = vpop.f32.mrb[0].mxu0
      %1602 = vmatprep.mubr.bf16.mxu0 0
      %1603 = vmatmul.mubr.bf16.gmra.mrb[0].mxu0 %v1367
      %v1604 = vpop.f32.mrb[0].mxu0
      %v1605 = vadd.f32 0.0, %v1604
      %v1606 = vpop.f32.mrb[0].mxu0
      %v1607 = vpop.f32.mrb[0].mxu0
      %v1608 = vadd.f32 0.0, %v1607
      %v1609 = vpop.f32.mrb[0].mxu0
      %1610 = vmatprep.mubr.bf16.mxu0 0
      %1611 = vmatmul.mubr.bf16.gmra.mrb[0].mxu0 %v1375
      %v1612 = vpop.f32.mrb[0].mxu0
      %v1613 = vadd.f32 0.0, %v1612
      %v1614 = vpop.f32.mrb[0].mxu0
      %v1615 = vpop.f32.mrb[0].mxu0
      %v1616 = vadd.f32 0.0, %v1615
      %v1617 = vpop.f32.mrb[0].mxu0
      %1618 = vdwg.mxu0
      %v1635 = vunpack.c.l.b16 %v1194
      %v1636 = vunpack.c.l.b16 %v1195
      %v1637 = vunpack.c.l.b16 %v1196
      %v1638 = vunpack.c.l.b16 %v1197
      %v1639 = vunpack.c.l.b16 %v1198
      %v1640 = vunpack.c.l.b16 %v1199
      %v1641 = vunpack.c.l.b16 %v1200
      %v1642 = vunpack.c.l.b16 %v1201
      %v1643 = vunpack.c.l.b16 %v1202
      %v1644 = vunpack.c.l.b16 %v1203
      %v1645 = vunpack.c.l.b16 %v1204
      %v1646 = vunpack.c.l.b16 %v1205
      %v1647 = vunpack.c.l.b16 %v1206
      %v1648 = vunpack.c.l.b16 %v1207
      %v1649 = vunpack.c.l.b16 %v1208
      %v1650 = vunpack.c.l.b16 %v1209
      %v1651 = vpack.c.b16 %v1636, %v1635
      %v1652 = vpack.c.b16 %v1638, %v1637
      %v1653 = vpack.c.b16 %v1640, %v1639
      %v1654 = vpack.c.b16 %v1642, %v1641
      %v1655 = vpack.c.b16 %v1644, %v1643
      %v1656 = vpack.c.b16 %v1646, %v1645
      %v1657 = vpack.c.b16 %v1648, %v1647
      %v1658 = vpack.c.b16 %v1650, %v1649
      %1667 = vmatprep.subr.bf16.mxu0 0
      %1668 = vmatpush1.bf16.msra.mxu0 %v1651
      %1669 = vmatprep.subr.bf16.mxu0 0
      %1670 = vmatpush1.bf16.msra.mxu0 %v1652
      %1671 = vmatprep.subr.bf16.mxu0 0
      %1672 = vmatpush1.bf16.msra.mxu0 %v1653
      %1673 = vmatprep.subr.bf16.mxu0 0
      %1674 = vmatpush1.bf16.msra.mxu0 %v1654
      %1675 = vmatprep.subr.bf16.mxu0 0
      %1676 = vmatpush1.bf16.msra.mxu0 %v1655
      %1677 = vmatprep.subr.bf16.mxu0 0
      %1678 = vmatpush1.bf16.msra.mxu0 %v1656
      %1679 = vmatprep.subr.bf16.mxu0 0
      %1680 = vmatpush1.bf16.msra.mxu0 %v1657
      %1681 = vmatprep.subr.bf16.mxu0 0
      %1682 = vmatpush1.bf16.msra.mxu0 %v1658
      %1683 = vmatprep.subr.bf16.mxu0 0
      %1684 = vmatpush1.bf16.msra.mxu0 0
      %1685 = vmatprep.subr.bf16.mxu0 0
      %1686 = vmatpush1.bf16.msra.mxu0 0
      %1687 = vmatprep.subr.bf16.mxu0 0
      %1688 = vmatpush1.bf16.msra.mxu0 0
      %1689 = vmatprep.subr.bf16.mxu0 0
      %1690 = vmatpush1.bf16.msra.mxu0 0
      %1691 = vmatprep.subr.bf16.mxu0 0
      %1692 = vmatpush1.bf16.msra.mxu0 0
      %1693 = vmatprep.subr.bf16.mxu0 0
      %1694 = vmatpush1.bf16.msra.mxu0 0
      %1695 = vmatprep.subr.bf16.mxu0 0
      %1696 = vmatpush1.bf16.msra.mxu0 0
      %1697 = vmatprep.subr.bf16.mxu0 0
      %1698 = vmatpush1.bf16.msra.mxu0 0
      %1699 = vmatprep.mubr.bf16.mxu0 0
      %1700 = vmatmul.mubr.bf16.gmra.mrb[0].mxu0 %v1170
      %v1701 = vpop.f32.mrb[0].mxu0
      %v1702 = vadd.f32 %v1477, %v1701
      %v1703 = vpop.f32.mrb[0].mxu0
      %v1704 = vpop.f32.mrb[0].mxu0
      %v1705 = vadd.f32 %v1480, %v1704
      %v1706 = vpop.f32.mrb[0].mxu0
      %1707 = vmatprep.mubr.bf16.mxu0 0
      %1708 = vmatmul.mubr.bf16.gmra.mrb[0].mxu0 %v1171
      %v1709 = vpop.f32.mrb[0].mxu0
      %v1710 = vadd.f32 %v1485, %v1709
      %v1711 = vpop.f32.mrb[0].mxu0
      %v1712 = vpop.f32.mrb[0].mxu0
      %v1713 = vadd.f32 %v1488, %v1712
      %v1714 = vpop.f32.mrb[0].mxu0
      %1715 = vmatprep.mubr.bf16.mxu0 0
      %1716 = vmatmul.mubr.bf16.gmra.mrb[0].mxu0 %v1172
      %v1717 = vpop.f32.mrb[0].mxu0
      %v1718 = vadd.f32 %v1493, %v1717
      %v1719 = vpop.f32.mrb[0].mxu0
      %v1720 = vpop.f32.mrb[0].mxu0
      %v1721 = vadd.f32 %v1496, %v1720
      %v1722 = vpop.f32.mrb[0].mxu0
      %1723 = vmatprep.mubr.bf16.mxu0 0
      %1724 = vmatmul.mubr.bf16.gmra.mrb[0].mxu0 %v1173
      %v1725 = vpop.f32.mrb[0].mxu0
      %v1726 = vadd.f32 %v1501, %v1725
      %v1727 = vpop.f32.mrb[0].mxu0
      %v1728 = vpop.f32.mrb[0].mxu0
      %v1729 = vadd.f32 %v1504, %v1728
      %v1730 = vpop.f32.mrb[0].mxu0
      %1731 = vmatprep.mubr.bf16.mxu0 0
      %1732 = vmatmul.mubr.bf16.gmra.mrb[0].mxu0 %v1174
      %v1733 = vpop.f32.mrb[0].mxu0
      %v1734 = vadd.f32 %v1509, %v1733
      %v1735 = vpop.f32.mrb[0].mxu0
      %v1736 = vpop.f32.mrb[0].mxu0
      %v1737 = vadd.f32 %v1512, %v1736
      %v1738 = vpop.f32.mrb[0].mxu0
      %1739 = vmatprep.mubr.bf16.mxu0 0
      %1740 = vmatmul.mubr.bf16.gmra.mrb[0].mxu0 %v1175
      %v1741 = vpop.f32.mrb[0].mxu0
      %v1742 = vadd.f32 %v1517, %v1741
      %v1743 = vpop.f32.mrb[0].mxu0
      %v1744 = vpop.f32.mrb[0].mxu0
      %v1745 = vadd.f32 %v1520, %v1744
      %v1746 = vpop.f32.mrb[0].mxu0
      %1747 = vmatprep.mubr.bf16.mxu0 0
      %1748 = vmatmul.mubr.bf16.gmra.mrb[0].mxu0 %v1176
      %v1749 = vpop.f32.mrb[0].mxu0
      %v1750 = vadd.f32 %v1525, %v1749
      %v1751 = vpop.f32.mrb[0].mxu0
      %v1752 = vpop.f32.mrb[0].mxu0
      %v1753 = vadd.f32 %v1528, %v1752
      %v1754 = vpop.f32.mrb[0].mxu0
      %1755 = vmatprep.mubr.bf16.mxu0 0
      %1756 = vmatmul.mubr.bf16.gmra.mrb[0].mxu0 %v1177
      %v1757 = vpop.f32.mrb[0].mxu0
      %v1758 = vadd.f32 %v1533, %v1757
      %v1759 = vpop.f32.mrb[0].mxu0
      %v1760 = vpop.f32.mrb[0].mxu0
      %v1761 = vadd.f32 %v1536, %v1760
      %v1762 = vpop.f32.mrb[0].mxu0
      %1763 = vmatprep.mubr.bf16.mxu0 0
      %1764 = vmatmul.mubr.bf16.gmra.mrb[0].mxu0 %v1178
      %v1765 = vpop.f32.mrb[0].mxu0
      %v1766 = vadd.f32 %v1541, %v1765
      %v1767 = vpop.f32.mrb[0].mxu0
      %v1768 = vpop.f32.mrb[0].mxu0
      %v1769 = vadd.f32 %v1544, %v1768
      %v1770 = vpop.f32.mrb[0].mxu0
      %1771 = vmatprep.mubr.bf16.mxu0 0
      %1772 = vmatmul.mubr.bf16.gmra.mrb[0].mxu0 %v1179
      %v1773 = vpop.f32.mrb[0].mxu0
      %v1774 = vadd.f32 %v1549, %v1773
      %v1775 = vpop.f32.mrb[0].mxu0
      %v1776 = vpop.f32.mrb[0].mxu0
      %v1777 = vadd.f32 %v1552, %v1776
      %v1778 = vpop.f32.mrb[0].mxu0
      %1779 = vmatprep.mubr.bf16.mxu0 0
      %1780 = vmatmul.mubr.bf16.gmra.mrb[0].mxu0 %v1180
      %v1781 = vpop.f32.mrb[0].mxu0
      %v1782 = vadd.f32 %v1557, %v1781
      %v1783 = vpop.f32.mrb[0].mxu0
      %v1784 = vpop.f32.mrb[0].mxu0
      %v1785 = vadd.f32 %v1560, %v1784
      %v1786 = vpop.f32.mrb[0].mxu0
      %1787 = vmatprep.mubr.bf16.mxu0 0
      %1788 = vmatmul.mubr.bf16.gmra.mrb[0].mxu0 %v1181
      %v1789 = vpop.f32.mrb[0].mxu0
      %v1790 = vadd.f32 %v1565, %v1789
      %v1791 = vpop.f32.mrb[0].mxu0
      %v1792 = vpop.f32.mrb[0].mxu0
      %v1793 = vadd.f32 %v1568, %v1792
      %v1794 = vpop.f32.mrb[0].mxu0
      %1795 = vmatprep.mubr.bf16.mxu0 0
      %1796 = vmatmul.mubr.bf16.gmra.mrb[0].mxu0 %v1182
      %v1797 = vpop.f32.mrb[0].mxu0
      %v1798 = vadd.f32 %v1573, %v1797
      %v1799 = vpop.f32.mrb[0].mxu0
      %v1800 = vpop.f32.mrb[0].mxu0
      %v1801 = vadd.f32 %v1576, %v1800
      %v1802 = vpop.f32.mrb[0].mxu0
      %1803 = vmatprep.mubr.bf16.mxu0 0
      %1804 = vmatmul.mubr.bf16.gmra.mrb[0].mxu0 %v1183
      %v1805 = vpop.f32.mrb[0].mxu0
      %v1806 = vadd.f32 %v1581, %v1805
      %v1807 = vpop.f32.mrb[0].mxu0
      %v1808 = vpop.f32.mrb[0].mxu0
      %v1809 = vadd.f32 %v1584, %v1808
      %v1810 = vpop.f32.mrb[0].mxu0
      %1811 = vmatprep.mubr.bf16.mxu0 0
      %1812 = vmatmul.mubr.bf16.gmra.mrb[0].mxu0 %v1184
      %v1813 = vpop.f32.mrb[0].mxu0
      %v1814 = vadd.f32 %v1589, %v1813
      %v1815 = vpop.f32.mrb[0].mxu0
      %v1816 = vpop.f32.mrb[0].mxu0
      %v1817 = vadd.f32 %v1592, %v1816
      %v1818 = vpop.f32.mrb[0].mxu0
      %1819 = vmatprep.mubr.bf16.mxu0 0
      %1820 = vmatmul.mubr.bf16.gmra.mrb[0].mxu0 %v1185
      %v1821 = vpop.f32.mrb[0].mxu0
      %v1822 = vadd.f32 %v1597, %v1821
      %v1823 = vpop.f32.mrb[0].mxu0
      %v1824 = vpop.f32.mrb[0].mxu0
      %v1825 = vadd.f32 %v1600, %v1824
      %v1826 = vpop.f32.mrb[0].mxu0
      %1827 = vmatprep.mubr.bf16.mxu0 0
      %1828 = vmatmul.mubr.bf16.gmra.mrb[0].mxu0 %v1186
      %v1829 = vpop.f32.mrb[0].mxu0
      %v1830 = vadd.f32 %v1605, %v1829
      %v1831 = vpop.f32.mrb[0].mxu0
      %v1832 = vpop.f32.mrb[0].mxu0
      %v1833 = vadd.f32 %v1608, %v1832
      %v1834 = vpop.f32.mrb[0].mxu0
      %1835 = vmatprep.mubr.bf16.mxu0 0
      %1836 = vmatmul.mubr.bf16.gmra.mrb[0].mxu0 %v1187
      %v1837 = vpop.f32.mrb[0].mxu0
      %v1838 = vadd.f32 %v1613, %v1837
      %v1839 = vpop.f32.mrb[0].mxu0
      %v1840 = vpop.f32.mrb[0].mxu0
      %v1841 = vadd.f32 %v1616, %v1840
      %v1842 = vpop.f32.mrb[0].mxu0
      %1843 = vdwg.mxu0
      %s1844 = scalar_lea.vmem %s5, 128
      %v1845 = vld [vmem:[%s1844] sm:$0xf]
      %v1846 = vld [vmem:[%s1844 + $0x4] sm:$0xf]
      %v1847 = vld [vmem:[%s1844 + $0x8] sm:$0xf]
      %v1848 = vld [vmem:[%s1844 + $0xc] sm:$0xf]
      %v1849 = vld [vmem:[%s1844 + $0x10] sm:$0xf]
      %v1850 = vld [vmem:[%s1844 + $0x14] sm:$0xf]
      %v1851 = vld [vmem:[%s1844 + $0x18] sm:$0xf]
      %v1852 = vld [vmem:[%s1844 + $0x1c] sm:$0xf]
      %v1853 = vld [vmem:[%s1844 + $0x20] sm:$0xf]
      %v1854 = vld [vmem:[%s1844 + $0x24] sm:$0xf]
      %v1855 = vld [vmem:[%s1844 + $0x28] sm:$0xf]
      %v1856 = vld [vmem:[%s1844 + $0x2c] sm:$0xf]
      %v1857 = vld [vmem:[%s1844 + $0x30] sm:$0xf]
      %v1858 = vld [vmem:[%s1844 + $0x34] sm:$0xf]
      %v1859 = vld [vmem:[%s1844 + $0x38] sm:$0xf]
      %v1860 = vld [vmem:[%s1844 + $0x3c] sm:$0xf]
      %vm1880 = vcmask 1046528
      %v1881 = vrot.slane %v1170, 1
      %v1882 = vrot.slane %v1171, 1
      %v1883 = vsel %vm1880, %v1881, %v1882
      %v1884 = vrot.slane %v1172, 1
      %v1885 = vsel %vm1880, %v1882, %v1884
      %v1886 = vrot.slane %v1173, 1
      %v1887 = vsel %vm1880, %v1884, %v1886
      %v1888 = vrot.slane %v1174, 1
      %v1889 = vsel %vm1880, %v1886, %v1888
      %v1890 = vrot.slane %v1175, 1
      %v1891 = vsel %vm1880, %v1888, %v1890
      %v1892 = vrot.slane %v1176, 1
      %v1893 = vsel %vm1880, %v1890, %v1892
      %v1894 = vrot.slane %v1177, 1
      %v1895 = vsel %vm1880, %v1892, %v1894
      %v1896 = vrot.slane %v1178, 1
      %v1897 = vsel %vm1880, %v1894, %v1896
      %v1898 = vrot.slane %v1179, 1
      %v1899 = vsel %vm1880, %v1896, %v1898
      %v1900 = vrot.slane %v1180, 1
      %v1901 = vsel %vm1880, %v1898, %v1900
      %v1902 = vrot.slane %v1181, 1
      %v1903 = vsel %vm1880, %v1900, %v1902
      %v1904 = vrot.slane %v1182, 1
      %v1905 = vsel %vm1880, %v1902, %v1904
      %v1906 = vrot.slane %v1183, 1
      %v1907 = vsel %vm1880, %v1904, %v1906
      %v1908 = vrot.slane %v1184, 1
      %v1909 = vsel %vm1880, %v1906, %v1908
      %v1910 = vrot.slane %v1185, 1
      %v1911 = vsel %vm1880, %v1908, %v1910
      %v1912 = vrot.slane %v1186, 1
      %v1913 = vsel %vm1880, %v1910, %v1912
      %v1914 = vrot.slane %v1187, 1
      %v1915 = vsel %vm1880, %v1912, %v1914
      %v1916 = vrot.slane %v1188, 1
      %v1917 = vsel %vm1880, %v1914, %v1916
      %v1952 = vunpack.c.l.b16 %v1845
      %v1953 = vunpack.c.l.b16 %v1846
      %v1954 = vunpack.c.l.b16 %v1847
      %v1955 = vunpack.c.l.b16 %v1848
      %v1956 = vunpack.c.l.b16 %v1849
      %v1957 = vunpack.c.l.b16 %v1850
      %v1958 = vunpack.c.l.b16 %v1851
      %v1959 = vunpack.c.l.b16 %v1852
      %v1960 = vunpack.c.l.b16 %v1853
      %v1961 = vunpack.c.l.b16 %v1854
      %v1962 = vunpack.c.l.b16 %v1855
      %v1963 = vunpack.c.l.b16 %v1856
      %v1964 = vunpack.c.l.b16 %v1857
      %v1965 = vunpack.c.l.b16 %v1858
      %v1966 = vunpack.c.l.b16 %v1859
      %v1967 = vunpack.c.l.b16 %v1860
      %v1968 = vpack.c.b16 %v1953, %v1952
      %v1969 = vpack.c.b16 %v1955, %v1954
      %v1970 = vpack.c.b16 %v1957, %v1956
      %v1971 = vpack.c.b16 %v1959, %v1958
      %v1972 = vpack.c.b16 %v1961, %v1960
      %v1973 = vpack.c.b16 %v1963, %v1962
      %v1974 = vpack.c.b16 %v1965, %v1964
      %v1975 = vpack.c.b16 %v1967, %v1966
      %1984 = vmatprep.subr.bf16.mxu0 0
      %1985 = vmatpush1.bf16.msra.mxu0 %v1968
      %1986 = vmatprep.subr.bf16.mxu0 0
      %1987 = vmatpush1.bf16.msra.mxu0 %v1969
      %1988 = vmatprep.subr.bf16.mxu0 0
      %1989 = vmatpush1.bf16.msra.mxu0 %v1970
      %1990 = vmatprep.subr.bf16.mxu0 0
      %1991 = vmatpush1.bf16.msra.mxu0 %v1971
      %1992 = vmatprep.subr.bf16.mxu0 0
      %1993 = vmatpush1.bf16.msra.mxu0 %v1972
      %1994 = vmatprep.subr.bf16.mxu0 0
      %1995 = vmatpush1.bf16.msra.mxu0 %v1973
      %1996 = vmatprep.subr.bf16.mxu0 0
      %1997 = vmatpush1.bf16.msra.mxu0 %v1974
      %1998 = vmatprep.subr.bf16.mxu0 0
      %1999 = vmatpush1.bf16.msra.mxu0 %v1975
      %2000 = vmatprep.subr.bf16.mxu0 0
      %2001 = vmatpush1.bf16.msra.mxu0 0
      %2002 = vmatprep.subr.bf16.mxu0 0
      %2003 = vmatpush1.bf16.msra.mxu0 0
      %2004 = vmatprep.subr.bf16.mxu0 0
      %2005 = vmatpush1.bf16.msra.mxu0 0
      %2006 = vmatprep.subr.bf16.mxu0 0
      %2007 = vmatpush1.bf16.msra.mxu0 0
      %2008 = vmatprep.subr.bf16.mxu0 0
      %2009 = vmatpush1.bf16.msra.mxu0 0
      %2010 = vmatprep.subr.bf16.mxu0 0
      %2011 = vmatpush1.bf16.msra.mxu0 0
      %2012 = vmatprep.subr.bf16.mxu0 0
      %2013 = vmatpush1.bf16.msra.mxu0 0
      %2014 = vmatprep.subr.bf16.mxu0 0
      %2015 = vmatpush1.bf16.msra.mxu0 0
      %2016 = vmatprep.mubr.bf16.mxu0 0
      %2017 = vmatmul.mubr.bf16.gmra.mrb[0].mxu0 %v1883
      %v2018 = vpop.f32.mrb[0].mxu0
      %v2019 = vadd.f32 0.0, %v2018
      %v2020 = vpop.f32.mrb[0].mxu0
      %v2021 = vpop.f32.mrb[0].mxu0
      %v2022 = vadd.f32 0.0, %v2021
      %v2023 = vpop.f32.mrb[0].mxu0
      %2024 = vmatprep.mubr.bf16.mxu0 0
      %2025 = vmatmul.mubr.bf16.gmra.mrb[0].mxu0 %v1885
      %v2026 = vpop.f32.mrb[0].mxu0
      %v2027 = vadd.f32 0.0, %v2026
      %v2028 = vpop.f32.mrb[0].mxu0
      %v2029 = vpop.f32.mrb[0].mxu0
      %v2030 = vadd.f32 0.0, %v2029
      %v2031 = vpop.f32.mrb[0].mxu0
      %2032 = vmatprep.mubr.bf16.mxu0 0
      %2033 = vmatmul.mubr.bf16.gmra.mrb[0].mxu0 %v1887
      %v2034 = vpop.f32.mrb[0].mxu0
      %v2035 = vadd.f32 0.0, %v2034
      %v2036 = vpop.f32.mrb[0].mxu0
      %v2037 = vpop.f32.mrb[0].mxu0
      %v2038 = vadd.f32 0.0, %v2037
      %v2039 = vpop.f32.mrb[0].mxu0
      %2040 = vmatprep.mubr.bf16.mxu0 0
      %2041 = vmatmul.mubr.bf16.gmra.mrb[0].mxu0 %v1889
      %v2042 = vpop.f32.mrb[0].mxu0
      %v2043 = vadd.f32 0.0, %v2042
      %v2044 = vpop.f32.mrb[0].mxu0
      %v2045 = vpop.f32.mrb[0].mxu0
      %v2046 = vadd.f32 0.0, %v2045
      %v2047 = vpop.f32.mrb[0].mxu0
      %2048 = vmatprep.mubr.bf16.mxu0 0
      %2049 = vmatmul.mubr.bf16.gmra.mrb[0].mxu0 %v1891
      %v2050 = vpop.f32.mrb[0].mxu0
      %v2051 = vadd.f32 0.0, %v2050
      %v2052 = vpop.f32.mrb[0].mxu0
      %v2053 = vpop.f32.mrb[0].mxu0
      %v2054 = vadd.f32 0.0, %v2053
      %v2055 = vpop.f32.mrb[0].mxu0
      %2056 = vmatprep.mubr.bf16.mxu0 0
      %2057 = vmatmul.mubr.bf16.gmra.mrb[0].mxu0 %v1893
      %v2058 = vpop.f32.mrb[0].mxu0
      %v2059 = vadd.f32 0.0, %v2058
      %v2060 = vpop.f32.mrb[0].mxu0
      %v2061 = vpop.f32.mrb[0].mxu0
      %v2062 = vadd.f32 0.0, %v2061
      %v2063 = vpop.f32.mrb[0].mxu0
      %2064 = vmatprep.mubr.bf16.mxu0 0
      %2065 = vmatmul.mubr.bf16.gmra.mrb[0].mxu0 %v1895
      %v2066 = vpop.f32.mrb[0].mxu0
      %v2067 = vadd.f32 0.0, %v2066
      %v2068 = vpop.f32.mrb[0].mxu0
      %v2069 = vpop.f32.mrb[0].mxu0
      %v2070 = vadd.f32 0.0, %v2069
      %v2071 = vpop.f32.mrb[0].mxu0
      %2072 = vmatprep.mubr.bf16.mxu0 0
      %2073 = vmatmul.mubr.bf16.gmra.mrb[0].mxu0 %v1897
      %v2074 = vpop.f32.mrb[0].mxu0
      %v2075 = vadd.f32 0.0, %v2074
      %v2076 = vpop.f32.mrb[0].mxu0
      %v2077 = vpop.f32.mrb[0].mxu0
      %v2078 = vadd.f32 0.0, %v2077
      %v2079 = vpop.f32.mrb[0].mxu0
      %2080 = vmatprep.mubr.bf16.mxu0 0
      %2081 = vmatmul.mubr.bf16.gmra.mrb[0].mxu0 %v1899
      %v2082 = vpop.f32.mrb[0].mxu0
      %v2083 = vadd.f32 0.0, %v2082
      %v2084 = vpop.f32.mrb[0].mxu0
      %v2085 = vpop.f32.mrb[0].mxu0
      %v2086 = vadd.f32 0.0, %v2085
      %v2087 = vpop.f32.mrb[0].mxu0
      %2088 = vmatprep.mubr.bf16.mxu0 0
      %2089 = vmatmul.mubr.bf16.gmra.mrb[0].mxu0 %v1901
      %v2090 = vpop.f32.mrb[0].mxu0
      %v2091 = vadd.f32 0.0, %v2090
      %v2092 = vpop.f32.mrb[0].mxu0
      %v2093 = vpop.f32.mrb[0].mxu0
      %v2094 = vadd.f32 0.0, %v2093
      %v2095 = vpop.f32.mrb[0].mxu0
      %2096 = vmatprep.mubr.bf16.mxu0 0
      %2097 = vmatmul.mubr.bf16.gmra.mrb[0].mxu0 %v1903
      %v2098 = vpop.f32.mrb[0].mxu0
      %v2099 = vadd.f32 0.0, %v2098
      %v2100 = vpop.f32.mrb[0].mxu0
      %v2101 = vpop.f32.mrb[0].mxu0
      %v2102 = vadd.f32 0.0, %v2101
      %v2103 = vpop.f32.mrb[0].mxu0
      %2104 = vmatprep.mubr.bf16.mxu0 0
      %2105 = vmatmul.mubr.bf16.gmra.mrb[0].mxu0 %v1905
      %v2106 = vpop.f32.mrb[0].mxu0
      %v2107 = vadd.f32 0.0, %v2106
      %v2108 = vpop.f32.mrb[0].mxu0
      %v2109 = vpop.f32.mrb[0].mxu0
      %v2110 = vadd.f32 0.0, %v2109
      %v2111 = vpop.f32.mrb[0].mxu0
      %2112 = vmatprep.mubr.bf16.mxu0 0
      %2113 = vmatmul.mubr.bf16.gmra.mrb[0].mxu0 %v1907
      %v2114 = vpop.f32.mrb[0].mxu0
      %v2115 = vadd.f32 0.0, %v2114
      %v2116 = vpop.f32.mrb[0].mxu0
      %v2117 = vpop.f32.mrb[0].mxu0
      %v2118 = vadd.f32 0.0, %v2117
      %v2119 = vpop.f32.mrb[0].mxu0
      %2120 = vmatprep.mubr.bf16.mxu0 0
      %2121 = vmatmul.mubr.bf16.gmra.mrb[0].mxu0 %v1909
      %v2122 = vpop.f32.mrb[0].mxu0
      %v2123 = vadd.f32 0.0, %v2122
      %v2124 = vpop.f32.mrb[0].mxu0
      %v2125 = vpop.f32.mrb[0].mxu0
      %v2126 = vadd.f32 0.0, %v2125
      %v2127 = vpop.f32.mrb[0].mxu0
      %2128 = vmatprep.mubr.bf16.mxu0 0
      %2129 = vmatmul.mubr.bf16.gmra.mrb[0].mxu0 %v1911
      %v2130 = vpop.f32.mrb[0].mxu0
      %v2131 = vadd.f32 0.0, %v2130
      %v2132 = vpop.f32.mrb[0].mxu0
      %v2133 = vpop.f32.mrb[0].mxu0
      %v2134 = vadd.f32 0.0, %v2133
      %v2135 = vpop.f32.mrb[0].mxu0
      %2136 = vmatprep.mubr.bf16.mxu0 0
      %2137 = vmatmul.mubr.bf16.gmra.mrb[0].mxu0 %v1913
      %v2138 = vpop.f32.mrb[0].mxu0
      %v2139 = vadd.f32 0.0, %v2138
      %v2140 = vpop.f32.mrb[0].mxu0
      %v2141 = vpop.f32.mrb[0].mxu0
      %v2142 = vadd.f32 0.0, %v2141
      %v2143 = vpop.f32.mrb[0].mxu0
      %2144 = vmatprep.mubr.bf16.mxu0 0
      %2145 = vmatmul.mubr.bf16.gmra.mrb[0].mxu0 %v1915
      %v2146 = vpop.f32.mrb[0].mxu0
      %v2147 = vadd.f32 0.0, %v2146
      %v2148 = vpop.f32.mrb[0].mxu0
      %v2149 = vpop.f32.mrb[0].mxu0
      %v2150 = vadd.f32 0.0, %v2149
      %v2151 = vpop.f32.mrb[0].mxu0
      %2152 = vmatprep.mubr.bf16.mxu0 0
      %2153 = vmatmul.mubr.bf16.gmra.mrb[0].mxu0 %v1917
      %v2154 = vpop.f32.mrb[0].mxu0
      %v2155 = vadd.f32 0.0, %v2154
      %v2156 = vpop.f32.mrb[0].mxu0
      %v2157 = vpop.f32.mrb[0].mxu0
      %v2158 = vadd.f32 0.0, %v2157
      %v2159 = vpop.f32.mrb[0].mxu0
      %2160 = vdwg.mxu0
      %v2161 = vadd.f32 %v1702, %v2019
      %v2162 = vadd.f32 %v1705, %v2022
      %v2163 = vadd.f32 %v1710, %v2027
      %v2164 = vadd.f32 %v1713, %v2030
      %v2165 = vadd.f32 %v1718, %v2035
      %v2166 = vadd.f32 %v1721, %v2038
      %v2167 = vadd.f32 %v1726, %v2043
      %v2168 = vadd.f32 %v1729, %v2046
      %v2169 = vadd.f32 %v1734, %v2051
      %v2170 = vadd.f32 %v1737, %v2054
      %v2171 = vadd.f32 %v1742, %v2059
      %v2172 = vadd.f32 %v1745, %v2062
      %v2173 = vadd.f32 %v1750, %v2067
      %v2174 = vadd.f32 %v1753, %v2070
      %v2175 = vadd.f32 %v1758, %v2075
      %v2176 = vadd.f32 %v1761, %v2078
      %v2177 = vadd.f32 %v1766, %v2083
      %v2178 = vadd.f32 %v1769, %v2086
      %v2179 = vadd.f32 %v1774, %v2091
      %v2180 = vadd.f32 %v1777, %v2094
      %v2181 = vadd.f32 %v1782, %v2099
      %v2182 = vadd.f32 %v1785, %v2102
      %v2183 = vadd.f32 %v1790, %v2107
      %v2184 = vadd.f32 %v1793, %v2110
      %v2185 = vadd.f32 %v1798, %v2115
      %v2186 = vadd.f32 %v1801, %v2118
      %v2187 = vadd.f32 %v1806, %v2123
      %v2188 = vadd.f32 %v1809, %v2126
      %v2189 = vadd.f32 %v1814, %v2131
      %v2190 = vadd.f32 %v1817, %v2134
      %v2191 = vadd.f32 %v1822, %v2139
      %v2192 = vadd.f32 %v1825, %v2142
      %v2193 = vadd.f32 %v1830, %v2147
      %v2194 = vadd.f32 %v1833, %v2150
      %v2195 = vadd.f32 %v1838, %v2155
      %v2196 = vadd.f32 %v1841, %v2158
      %s2197 = scalar_lea.vmem %s5, 192
      %v2198 = vld [vmem:[%s2197] sm:$0xf]
      %v2199 = vld [vmem:[%s2197 + $0x4] sm:$0xf]
      %v2200 = vld [vmem:[%s2197 + $0x8] sm:$0xf]
      %v2201 = vld [vmem:[%s2197 + $0xc] sm:$0xf]
      %v2202 = vld [vmem:[%s2197 + $0x10] sm:$0xf]
      %v2203 = vld [vmem:[%s2197 + $0x14] sm:$0xf]
      %v2204 = vld [vmem:[%s2197 + $0x18] sm:$0xf]
      %v2205 = vld [vmem:[%s2197 + $0x1c] sm:$0xf]
      %v2206 = vld [vmem:[%s2197 + $0x20] sm:$0xf]
      %v2207 = vld [vmem:[%s2197 + $0x24] sm:$0xf]
      %v2208 = vld [vmem:[%s2197 + $0x28] sm:$0xf]
      %v2209 = vld [vmem:[%s2197 + $0x2c] sm:$0xf]
      %v2210 = vld [vmem:[%s2197 + $0x30] sm:$0xf]
      %v2211 = vld [vmem:[%s2197 + $0x34] sm:$0xf]
      %v2212 = vld [vmem:[%s2197 + $0x38] sm:$0xf]
      %v2213 = vld [vmem:[%s2197 + $0x3c] sm:$0xf]
      %v2215 = vrot.slane %v1189, 1
      %v2216 = vsel %vm1880, %v1916, %v2215
      %v2234 = vunpack.c.l.b16 %v2198
      %v2235 = vunpack.c.l.b16 %v2199
      %v2236 = vunpack.c.l.b16 %v2200
      %v2237 = vunpack.c.l.b16 %v2201
      %v2238 = vunpack.c.l.b16 %v2202
      %v2239 = vunpack.c.l.b16 %v2203
      %v2240 = vunpack.c.l.b16 %v2204
      %v2241 = vunpack.c.l.b16 %v2205
      %v2242 = vunpack.c.l.b16 %v2206
      %v2243 = vunpack.c.l.b16 %v2207
      %v2244 = vunpack.c.l.b16 %v2208
      %v2245 = vunpack.c.l.b16 %v2209
      %v2246 = vunpack.c.l.b16 %v2210
      %v2247 = vunpack.c.l.b16 %v2211
      %v2248 = vunpack.c.l.b16 %v2212
      %v2249 = vunpack.c.l.b16 %v2213
      %v2250 = vpack.c.b16 %v2235, %v2234
      %v2251 = vpack.c.b16 %v2237, %v2236
      %v2252 = vpack.c.b16 %v2239, %v2238
      %v2253 = vpack.c.b16 %v2241, %v2240
      %v2254 = vpack.c.b16 %v2243, %v2242
      %v2255 = vpack.c.b16 %v2245, %v2244
      %v2256 = vpack.c.b16 %v2247, %v2246
      %v2257 = vpack.c.b16 %v2249, %v2248
      %2266 = vmatprep.subr.bf16.mxu0 0
      %2267 = vmatpush1.bf16.msra.mxu0 %v2250
      %2268 = vmatprep.subr.bf16.mxu0 0
      %2269 = vmatpush1.bf16.msra.mxu0 %v2251
      %2270 = vmatprep.subr.bf16.mxu0 0
      %2271 = vmatpush1.bf16.msra.mxu0 %v2252
      %2272 = vmatprep.subr.bf16.mxu0 0
      %2273 = vmatpush1.bf16.msra.mxu0 %v2253
      %2274 = vmatprep.subr.bf16.mxu0 0
      %2275 = vmatpush1.bf16.msra.mxu0 %v2254
      %2276 = vmatprep.subr.bf16.mxu0 0
      %2277 = vmatpush1.bf16.msra.mxu0 %v2255
      %2278 = vmatprep.subr.bf16.mxu0 0
      %2279 = vmatpush1.bf16.msra.mxu0 %v2256
      %2280 = vmatprep.subr.bf16.mxu0 0
      %2281 = vmatpush1.bf16.msra.mxu0 %v2257
      %2282 = vmatprep.subr.bf16.mxu0 0
      %2283 = vmatpush1.bf16.msra.mxu0 0
      %2284 = vmatprep.subr.bf16.mxu0 0
      %2285 = vmatpush1.bf16.msra.mxu0 0
      %2286 = vmatprep.subr.bf16.mxu0 0
      %2287 = vmatpush1.bf16.msra.mxu0 0
      %2288 = vmatprep.subr.bf16.mxu0 0
      %2289 = vmatpush1.bf16.msra.mxu0 0
      %2290 = vmatprep.subr.bf16.mxu0 0
      %2291 = vmatpush1.bf16.msra.mxu0 0
      %2292 = vmatprep.subr.bf16.mxu0 0
      %2293 = vmatpush1.bf16.msra.mxu0 0
      %2294 = vmatprep.subr.bf16.mxu0 0
      %2295 = vmatpush1.bf16.msra.mxu0 0
      %2296 = vmatprep.subr.bf16.mxu0 0
      %2297 = vmatpush1.bf16.msra.mxu0 0
      %2298 = vmatprep.mubr.bf16.mxu0 0
      %2299 = vmatmul.mubr.bf16.gmra.mrb[0].mxu0 %v1885
      %v2300 = vpop.f32.mrb[0].mxu0
      %v2301 = vadd.f32 0.0, %v2300
      %v2302 = vpop.f32.mrb[0].mxu0
      %v2303 = vpop.f32.mrb[0].mxu0
      %v2304 = vadd.f32 0.0, %v2303
      %v2305 = vpop.f32.mrb[0].mxu0
      %2306 = vmatprep.mubr.bf16.mxu0 0
      %2307 = vmatmul.mubr.bf16.gmra.mrb[0].mxu0 %v1887
      %v2308 = vpop.f32.mrb[0].mxu0
      %v2309 = vadd.f32 0.0, %v2308
      %v2310 = vpop.f32.mrb[0].mxu0
      %v2311 = vpop.f32.mrb[0].mxu0
      %v2312 = vadd.f32 0.0, %v2311
      %v2313 = vpop.f32.mrb[0].mxu0
      %2314 = vmatprep.mubr.bf16.mxu0 0
      %2315 = vmatmul.mubr.bf16.gmra.mrb[0].mxu0 %v1889
      %v2316 = vpop.f32.mrb[0].mxu0
      %v2317 = vadd.f32 0.0, %v2316
      %v2318 = vpop.f32.mrb[0].mxu0
      %v2319 = vpop.f32.mrb[0].mxu0
      %v2320 = vadd.f32 0.0, %v2319
      %v2321 = vpop.f32.mrb[0].mxu0
      %2322 = vmatprep.mubr.bf16.mxu0 0
      %2323 = vmatmul.mubr.bf16.gmra.mrb[0].mxu0 %v1891
      %v2324 = vpop.f32.mrb[0].mxu0
      %v2325 = vadd.f32 0.0, %v2324
      %v2326 = vpop.f32.mrb[0].mxu0
      %v2327 = vpop.f32.mrb[0].mxu0
      %v2328 = vadd.f32 0.0, %v2327
      %v2329 = vpop.f32.mrb[0].mxu0
      %2330 = vmatprep.mubr.bf16.mxu0 0
      %2331 = vmatmul.mubr.bf16.gmra.mrb[0].mxu0 %v1893
      %v2332 = vpop.f32.mrb[0].mxu0
      %v2333 = vadd.f32 0.0, %v2332
      %v2334 = vpop.f32.mrb[0].mxu0
      %v2335 = vpop.f32.mrb[0].mxu0
      %v2336 = vadd.f32 0.0, %v2335
      %v2337 = vpop.f32.mrb[0].mxu0
      %2338 = vmatprep.mubr.bf16.mxu0 0
      %2339 = vmatmul.mubr.bf16.gmra.mrb[0].mxu0 %v1895
      %v2340 = vpop.f32.mrb[0].mxu0
      %v2341 = vadd.f32 0.0, %v2340
      %v2342 = vpop.f32.mrb[0].mxu0
      %v2343 = vpop.f32.mrb[0].mxu0
      %v2344 = vadd.f32 0.0, %v2343
      %v2345 = vpop.f32.mrb[0].mxu0
      %2346 = vmatprep.mubr.bf16.mxu0 0
      %2347 = vmatmul.mubr.bf16.gmra.mrb[0].mxu0 %v1897
      %v2348 = vpop.f32.mrb[0].mxu0
      %v2349 = vadd.f32 0.0, %v2348
      %v2350 = vpop.f32.mrb[0].mxu0
      %v2351 = vpop.f32.mrb[0].mxu0
      %v2352 = vadd.f32 0.0, %v2351
      %v2353 = vpop.f32.mrb[0].mxu0
      %2354 = vmatprep.mubr.bf16.mxu0 0
      %2355 = vmatmul.mubr.bf16.gmra.mrb[0].mxu0 %v1899
      %v2356 = vpop.f32.mrb[0].mxu0
      %v2357 = vadd.f32 0.0, %v2356
      %v2358 = vpop.f32.mrb[0].mxu0
      %v2359 = vpop.f32.mrb[0].mxu0
      %v2360 = vadd.f32 0.0, %v2359
      %v2361 = vpop.f32.mrb[0].mxu0
      %2362 = vmatprep.mubr.bf16.mxu0 0
      %2363 = vmatmul.mubr.bf16.gmra.mrb[0].mxu0 %v1901
      %v2364 = vpop.f32.mrb[0].mxu0
      %v2365 = vadd.f32 0.0, %v2364
      %v2366 = vpop.f32.mrb[0].mxu0
      %v2367 = vpop.f32.mrb[0].mxu0
      %v2368 = vadd.f32 0.0, %v2367
      %v2369 = vpop.f32.mrb[0].mxu0
      %2370 = vmatprep.mubr.bf16.mxu0 0
      %2371 = vmatmul.mubr.bf16.gmra.mrb[0].mxu0 %v1903
      %v2372 = vpop.f32.mrb[0].mxu0
      %v2373 = vadd.f32 0.0, %v2372
      %v2374 = vpop.f32.mrb[0].mxu0
      %v2375 = vpop.f32.mrb[0].mxu0
      %v2376 = vadd.f32 0.0, %v2375
      %v2377 = vpop.f32.mrb[0].mxu0
      %2378 = vmatprep.mubr.bf16.mxu0 0
      %2379 = vmatmul.mubr.bf16.gmra.mrb[0].mxu0 %v1905
      %v2380 = vpop.f32.mrb[0].mxu0
      %v2381 = vadd.f32 0.0, %v2380
      %v2382 = vpop.f32.mrb[0].mxu0
      %v2383 = vpop.f32.mrb[0].mxu0
      %v2384 = vadd.f32 0.0, %v2383
      %v2385 = vpop.f32.mrb[0].mxu0
      %2386 = vmatprep.mubr.bf16.mxu0 0
      %2387 = vmatmul.mubr.bf16.gmra.mrb[0].mxu0 %v1907
      %v2388 = vpop.f32.mrb[0].mxu0
      %v2389 = vadd.f32 0.0, %v2388
      %v2390 = vpop.f32.mrb[0].mxu0
      %v2391 = vpop.f32.mrb[0].mxu0
      %v2392 = vadd.f32 0.0, %v2391
      %v2393 = vpop.f32.mrb[0].mxu0
      %2394 = vmatprep.mubr.bf16.mxu0 0
      %2395 = vmatmul.mubr.bf16.gmra.mrb[0].mxu0 %v1909
      %v2396 = vpop.f32.mrb[0].mxu0
      %v2397 = vadd.f32 0.0, %v2396
      %v2398 = vpop.f32.mrb[0].mxu0
      %v2399 = vpop.f32.mrb[0].mxu0
      %v2400 = vadd.f32 0.0, %v2399
      %v2401 = vpop.f32.mrb[0].mxu0
      %2402 = vmatprep.mubr.bf16.mxu0 0
      %2403 = vmatmul.mubr.bf16.gmra.mrb[0].mxu0 %v1911
      %v2404 = vpop.f32.mrb[0].mxu0
      %v2405 = vadd.f32 0.0, %v2404
      %v2406 = vpop.f32.mrb[0].mxu0
      %v2407 = vpop.f32.mrb[0].mxu0
      %v2408 = vadd.f32 0.0, %v2407
      %v2409 = vpop.f32.mrb[0].mxu0
      %2410 = vmatprep.mubr.bf16.mxu0 0
      %2411 = vmatmul.mubr.bf16.gmra.mrb[0].mxu0 %v1913
      %v2412 = vpop.f32.mrb[0].mxu0
      %v2413 = vadd.f32 0.0, %v2412
      %v2414 = vpop.f32.mrb[0].mxu0
      %v2415 = vpop.f32.mrb[0].mxu0
      %v2416 = vadd.f32 0.0, %v2415
      %v2417 = vpop.f32.mrb[0].mxu0
      %2418 = vmatprep.mubr.bf16.mxu0 0
      %2419 = vmatmul.mubr.bf16.gmra.mrb[0].mxu0 %v1915
      %v2420 = vpop.f32.mrb[0].mxu0
      %v2421 = vadd.f32 0.0, %v2420
      %v2422 = vpop.f32.mrb[0].mxu0
      %v2423 = vpop.f32.mrb[0].mxu0
      %v2424 = vadd.f32 0.0, %v2423
      %v2425 = vpop.f32.mrb[0].mxu0
      %2426 = vmatprep.mubr.bf16.mxu0 0
      %2427 = vmatmul.mubr.bf16.gmra.mrb[0].mxu0 %v1917
      %v2428 = vpop.f32.mrb[0].mxu0
      %v2429 = vadd.f32 0.0, %v2428
      %v2430 = vpop.f32.mrb[0].mxu0
      %v2431 = vpop.f32.mrb[0].mxu0
      %v2432 = vadd.f32 0.0, %v2431
      %v2433 = vpop.f32.mrb[0].mxu0
      %2434 = vmatprep.mubr.bf16.mxu0 0
      %2435 = vmatmul.mubr.bf16.gmra.mrb[0].mxu0 %v2216
      %v2436 = vpop.f32.mrb[0].mxu0
      %v2437 = vadd.f32 0.0, %v2436
      %v2438 = vpop.f32.mrb[0].mxu0
      %v2439 = vpop.f32.mrb[0].mxu0
      %v2440 = vadd.f32 0.0, %v2439
      %v2441 = vpop.f32.mrb[0].mxu0
      %2442 = vdwg.mxu0
      %v2443 = vadd.f32 %v2161, %v2301
      %v2444 = vadd.f32 %v2162, %v2304
      %v2445 = vadd.f32 %v2163, %v2309
      %v2446 = vadd.f32 %v2164, %v2312
      %v2447 = vadd.f32 %v2165, %v2317
      %v2448 = vadd.f32 %v2166, %v2320
      %v2449 = vadd.f32 %v2167, %v2325
      %v2450 = vadd.f32 %v2168, %v2328
      %v2451 = vadd.f32 %v2169, %v2333
      %v2452 = vadd.f32 %v2170, %v2336
      %v2453 = vadd.f32 %v2171, %v2341
      %v2454 = vadd.f32 %v2172, %v2344
      %v2455 = vadd.f32 %v2173, %v2349
      %v2456 = vadd.f32 %v2174, %v2352
      %v2457 = vadd.f32 %v2175, %v2357
      %v2458 = vadd.f32 %v2176, %v2360
      %v2459 = vadd.f32 %v2177, %v2365
      %v2460 = vadd.f32 %v2178, %v2368
      %v2461 = vadd.f32 %v2179, %v2373
      %v2462 = vadd.f32 %v2180, %v2376
      %v2463 = vadd.f32 %v2181, %v2381
      %v2464 = vadd.f32 %v2182, %v2384
      %v2465 = vadd.f32 %v2183, %v2389
      %v2466 = vadd.f32 %v2184, %v2392
      %v2467 = vadd.f32 %v2185, %v2397
      %v2468 = vadd.f32 %v2186, %v2400
      %v2469 = vadd.f32 %v2187, %v2405
      %v2470 = vadd.f32 %v2188, %v2408
      %v2471 = vadd.f32 %v2189, %v2413
      %v2472 = vadd.f32 %v2190, %v2416
      %v2473 = vadd.f32 %v2191, %v2421
      %v2474 = vadd.f32 %v2192, %v2424
      %v2475 = vadd.f32 %v2193, %v2429
      %v2476 = vadd.f32 %v2194, %v2432
      %v2477 = vadd.f32 %v2195, %v2437
      %v2478 = vadd.f32 %v2196, %v2440
      %s2479 = scalar_lea.vmem %s5, 256
      %v2480 = vld [vmem:[%s2479] sm:$0xf]
      %v2481 = vld [vmem:[%s2479 + $0x4] sm:$0xf]
      %v2482 = vld [vmem:[%s2479 + $0x8] sm:$0xf]
      %v2483 = vld [vmem:[%s2479 + $0xc] sm:$0xf]
      %v2484 = vld [vmem:[%s2479 + $0x10] sm:$0xf]
      %v2485 = vld [vmem:[%s2479 + $0x14] sm:$0xf]
      %v2486 = vld [vmem:[%s2479 + $0x18] sm:$0xf]
      %v2487 = vld [vmem:[%s2479 + $0x1c] sm:$0xf]
      %v2488 = vld [vmem:[%s2479 + $0x20] sm:$0xf]
      %v2489 = vld [vmem:[%s2479 + $0x24] sm:$0xf]
      %v2490 = vld [vmem:[%s2479 + $0x28] sm:$0xf]
      %v2491 = vld [vmem:[%s2479 + $0x2c] sm:$0xf]
      %v2492 = vld [vmem:[%s2479 + $0x30] sm:$0xf]
      %v2493 = vld [vmem:[%s2479 + $0x34] sm:$0xf]
      %v2494 = vld [vmem:[%s2479 + $0x38] sm:$0xf]
      %v2495 = vld [vmem:[%s2479 + $0x3c] sm:$0xf]
      %vm2496 = vsmask.f32 6400
      %v2497 = vrot.slane %v1240, 1
      %v2498 = vrot.slane %v1236, 2
      %v2499 = vor.u32 %v2497, %v2498
      %v2500 = vrot.slane %v1248, 1
      %v2501 = vrot.slane %v1244, 2
      %v2502 = vor.u32 %v2500, %v2501
      %v2503 = vsel %vm2496, %v2499, %v2502
      %v2504 = vrot.slane %v1256, 1
      %v2505 = vrot.slane %v1252, 2
      %v2506 = vor.u32 %v2504, %v2505
      %v2507 = vsel %vm2496, %v2502, %v2506
      %v2508 = vrot.slane %v1264, 1
      %v2509 = vrot.slane %v1260, 2
      %v2510 = vor.u32 %v2508, %v2509
      %v2511 = vsel %vm2496, %v2506, %v2510
      %v2512 = vrot.slane %v1272, 1
      %v2513 = vrot.slane %v1268, 2
      %v2514 = vor.u32 %v2512, %v2513
      %v2515 = vsel %vm2496, %v2510, %v2514
      %v2516 = vrot.slane %v1280, 1
      %v2517 = vrot.slane %v1276, 2
      %v2518 = vor.u32 %v2516, %v2517
      %v2519 = vsel %vm2496, %v2514, %v2518
      %v2520 = vrot.slane %v1288, 1
      %v2521 = vrot.slane %v1284, 2
      %v2522 = vor.u32 %v2520, %v2521
      %v2523 = vsel %vm2496, %v2518, %v2522
      %v2524 = vrot.slane %v1296, 1
      %v2525 = vrot.slane %v1292, 2
      %v2526 = vor.u32 %v2524, %v2525
      %v2527 = vsel %vm2496, %v2522, %v2526
      %v2528 = vrot.slane %v1304, 1
      %v2529 = vrot.slane %v1300, 2
      %v2530 = vor.u32 %v2528, %v2529
      %v2531 = vsel %vm2496, %v2526, %v2530
      %v2532 = vrot.slane %v1312, 1
      %v2533 = vrot.slane %v1308, 2
      %v2534 = vor.u32 %v2532, %v2533
      %v2535 = vsel %vm2496, %v2530, %v2534
      %v2536 = vrot.slane %v1320, 1
      %v2537 = vrot.slane %v1316, 2
      %v2538 = vor.u32 %v2536, %v2537
      %v2539 = vsel %vm2496, %v2534, %v2538
      %v2540 = vrot.slane %v1328, 1
      %v2541 = vrot.slane %v1324, 2
      %v2542 = vor.u32 %v2540, %v2541
      %v2543 = vsel %vm2496, %v2538, %v2542
      %v2544 = vrot.slane %v1336, 1
      %v2545 = vrot.slane %v1332, 2
      %v2546 = vor.u32 %v2544, %v2545
      %v2547 = vsel %vm2496, %v2542, %v2546
      %v2548 = vrot.slane %v1344, 1
      %v2549 = vrot.slane %v1340, 2
      %v2550 = vor.u32 %v2548, %v2549
      %v2551 = vsel %vm2496, %v2546, %v2550
      %v2552 = vrot.slane %v1352, 1
      %v2553 = vrot.slane %v1348, 2
      %v2554 = vor.u32 %v2552, %v2553
      %v2555 = vsel %vm2496, %v2550, %v2554
      %v2556 = vrot.slane %v1360, 1
      %v2557 = vrot.slane %v1356, 2
      %v2558 = vor.u32 %v2556, %v2557
      %v2559 = vsel %vm2496, %v2554, %v2558
      %v2560 = vrot.slane %v1368, 1
      %v2561 = vrot.slane %v1364, 2
      %v2562 = vor.u32 %v2560, %v2561
      %v2563 = vsel %vm2496, %v2558, %v2562
      %v2564 = vshrl.u32 %v1188, 16
      %v2566 = vrot.slane %v2564, 1
      %v2567 = vrot.slane %v1372, 2
      %v2568 = vor.u32 %v2566, %v2567
      %v2569 = vsel %vm2496, %v2562, %v2568
      %v2571 = vshrl.u32 %v1189, 16
      %v2573 = vrot.slane %v2571, 1
      %v2574 = vshll.u32 %v1189, 16
      %v2576 = vrot.slane %v2574, 2
      %v2577 = vor.u32 %v2573, %v2576
      %v2578 = vsel %vm2496, %v2568, %v2577
      %v2613 = vunpack.c.l.b16 %v2480
      %v2614 = vunpack.c.l.b16 %v2481
      %v2615 = vunpack.c.l.b16 %v2482
      %v2616 = vunpack.c.l.b16 %v2483
      %v2617 = vunpack.c.l.b16 %v2484
      %v2618 = vunpack.c.l.b16 %v2485
      %v2619 = vunpack.c.l.b16 %v2486
      %v2620 = vunpack.c.l.b16 %v2487
      %v2621 = vunpack.c.l.b16 %v2488
      %v2622 = vunpack.c.l.b16 %v2489
      %v2623 = vunpack.c.l.b16 %v2490
      %v2624 = vunpack.c.l.b16 %v2491
      %v2625 = vunpack.c.l.b16 %v2492
      %v2626 = vunpack.c.l.b16 %v2493
      %v2627 = vunpack.c.l.b16 %v2494
      %v2628 = vunpack.c.l.b16 %v2495
      %v2629 = vpack.c.b16 %v2614, %v2613
      %v2630 = vpack.c.b16 %v2616, %v2615
      %v2631 = vpack.c.b16 %v2618, %v2617
      %v2632 = vpack.c.b16 %v2620, %v2619
      %v2633 = vpack.c.b16 %v2622, %v2621
      %v2634 = vpack.c.b16 %v2624, %v2623
      %v2635 = vpack.c.b16 %v2626, %v2625
      %v2636 = vpack.c.b16 %v2628, %v2627
      %2645 = vmatprep.subr.bf16.mxu0 0
      %2646 = vmatpush1.bf16.msra.mxu0 %v2629
      %2647 = vmatprep.subr.bf16.mxu0 0
      %2648 = vmatpush1.bf16.msra.mxu0 %v2630
      %2649 = vmatprep.subr.bf16.mxu0 0
      %2650 = vmatpush1.bf16.msra.mxu0 %v2631
      %2651 = vmatprep.subr.bf16.mxu0 0
      %2652 = vmatpush1.bf16.msra.mxu0 %v2632
      %2653 = vmatprep.subr.bf16.mxu0 0
      %2654 = vmatpush1.bf16.msra.mxu0 %v2633
      %2655 = vmatprep.subr.bf16.mxu0 0
      %2656 = vmatpush1.bf16.msra.mxu0 %v2634
      %2657 = vmatprep.subr.bf16.mxu0 0
      %2658 = vmatpush1.bf16.msra.mxu0 %v2635
      %2659 = vmatprep.subr.bf16.mxu0 0
      %2660 = vmatpush1.bf16.msra.mxu0 %v2636
      %2661 = vmatprep.subr.bf16.mxu0 0
      %2662 = vmatpush1.bf16.msra.mxu0 0
      %2663 = vmatprep.subr.bf16.mxu0 0
      %2664 = vmatpush1.bf16.msra.mxu0 0
      %2665 = vmatprep.subr.bf16.mxu0 0
      %2666 = vmatpush1.bf16.msra.mxu0 0
      %2667 = vmatprep.subr.bf16.mxu0 0
      %2668 = vmatpush1.bf16.msra.mxu0 0
      %2669 = vmatprep.subr.bf16.mxu0 0
      %2670 = vmatpush1.bf16.msra.mxu0 0
      %2671 = vmatprep.subr.bf16.mxu0 0
      %2672 = vmatpush1.bf16.msra.mxu0 0
      %2673 = vmatprep.subr.bf16.mxu0 0
      %2674 = vmatpush1.bf16.msra.mxu0 0
      %2675 = vmatprep.subr.bf16.mxu0 0
      %2676 = vmatpush1.bf16.msra.mxu0 0
      %2677 = vmatprep.mubr.bf16.mxu0 0
      %2678 = vmatmul.mubr.bf16.gmra.mrb[0].mxu0 %v2503
      %v2679 = vpop.f32.mrb[0].mxu0
      %v2680 = vadd.f32 0.0, %v2679
      %v2681 = vpop.f32.mrb[0].mxu0
      %v2682 = vpop.f32.mrb[0].mxu0
      %v2683 = vadd.f32 0.0, %v2682
      %v2684 = vpop.f32.mrb[0].mxu0
      %2685 = vmatprep.mubr.bf16.mxu0 0
      %2686 = vmatmul.mubr.bf16.gmra.mrb[0].mxu0 %v2507
      %v2687 = vpop.f32.mrb[0].mxu0
      %v2688 = vadd.f32 0.0, %v2687
      %v2689 = vpop.f32.mrb[0].mxu0
      %v2690 = vpop.f32.mrb[0].mxu0
      %v2691 = vadd.f32 0.0, %v2690
      %v2692 = vpop.f32.mrb[0].mxu0
      %2693 = vmatprep.mubr.bf16.mxu0 0
      %2694 = vmatmul.mubr.bf16.gmra.mrb[0].mxu0 %v2511
      %v2695 = vpop.f32.mrb[0].mxu0
      %v2696 = vadd.f32 0.0, %v2695
      %v2697 = vpop.f32.mrb[0].mxu0
      %v2698 = vpop.f32.mrb[0].mxu0
      %v2699 = vadd.f32 0.0, %v2698
      %v2700 = vpop.f32.mrb[0].mxu0
      %2701 = vmatprep.mubr.bf16.mxu0 0
      %2702 = vmatmul.mubr.bf16.gmra.mrb[0].mxu0 %v2515
      %v2703 = vpop.f32.mrb[0].mxu0
      %v2704 = vadd.f32 0.0, %v2703
      %v2705 = vpop.f32.mrb[0].mxu0
      %v2706 = vpop.f32.mrb[0].mxu0
      %v2707 = vadd.f32 0.0, %v2706
      %v2708 = vpop.f32.mrb[0].mxu0
      %2709 = vmatprep.mubr.bf16.mxu0 0
      %2710 = vmatmul.mubr.bf16.gmra.mrb[0].mxu0 %v2519
      %v2711 = vpop.f32.mrb[0].mxu0
      %v2712 = vadd.f32 0.0, %v2711
      %v2713 = vpop.f32.mrb[0].mxu0
      %v2714 = vpop.f32.mrb[0].mxu0
      %v2715 = vadd.f32 0.0, %v2714
      %v2716 = vpop.f32.mrb[0].mxu0
      %2717 = vmatprep.mubr.bf16.mxu0 0
      %2718 = vmatmul.mubr.bf16.gmra.mrb[0].mxu0 %v2523
      %v2719 = vpop.f32.mrb[0].mxu0
      %v2720 = vadd.f32 0.0, %v2719
      %v2721 = vpop.f32.mrb[0].mxu0
      %v2722 = vpop.f32.mrb[0].mxu0
      %v2723 = vadd.f32 0.0, %v2722
      %v2724 = vpop.f32.mrb[0].mxu0
      %2725 = vmatprep.mubr.bf16.mxu0 0
      %2726 = vmatmul.mubr.bf16.gmra.mrb[0].mxu0 %v2527
      %v2727 = vpop.f32.mrb[0].mxu0
      %v2728 = vadd.f32 0.0, %v2727
      %v2729 = vpop.f32.mrb[0].mxu0
      %v2730 = vpop.f32.mrb[0].mxu0
      %v2731 = vadd.f32 0.0, %v2730
      %v2732 = vpop.f32.mrb[0].mxu0
      %2733 = vmatprep.mubr.bf16.mxu0 0
      %2734 = vmatmul.mubr.bf16.gmra.mrb[0].mxu0 %v2531
      %v2735 = vpop.f32.mrb[0].mxu0
      %v2736 = vadd.f32 0.0, %v2735
      %v2737 = vpop.f32.mrb[0].mxu0
      %v2738 = vpop.f32.mrb[0].mxu0
      %v2739 = vadd.f32 0.0, %v2738
      %v2740 = vpop.f32.mrb[0].mxu0
      %2741 = vmatprep.mubr.bf16.mxu0 0
      %2742 = vmatmul.mubr.bf16.gmra.mrb[0].mxu0 %v2535
      %v2743 = vpop.f32.mrb[0].mxu0
      %v2744 = vadd.f32 0.0, %v2743
      %v2745 = vpop.f32.mrb[0].mxu0
      %v2746 = vpop.f32.mrb[0].mxu0
      %v2747 = vadd.f32 0.0, %v2746
      %v2748 = vpop.f32.mrb[0].mxu0
      %2749 = vmatprep.mubr.bf16.mxu0 0
      %2750 = vmatmul.mubr.bf16.gmra.mrb[0].mxu0 %v2539
      %v2751 = vpop.f32.mrb[0].mxu0
      %v2752 = vadd.f32 0.0, %v2751
      %v2753 = vpop.f32.mrb[0].mxu0
      %v2754 = vpop.f32.mrb[0].mxu0
      %v2755 = vadd.f32 0.0, %v2754
      %v2756 = vpop.f32.mrb[0].mxu0
      %2757 = vmatprep.mubr.bf16.mxu0 0
      %2758 = vmatmul.mubr.bf16.gmra.mrb[0].mxu0 %v2543
      %v2759 = vpop.f32.mrb[0].mxu0
      %v2760 = vadd.f32 0.0, %v2759
      %v2761 = vpop.f32.mrb[0].mxu0
      %v2762 = vpop.f32.mrb[0].mxu0
      %v2763 = vadd.f32 0.0, %v2762
      %v2764 = vpop.f32.mrb[0].mxu0
      %2765 = vmatprep.mubr.bf16.mxu0 0
      %2766 = vmatmul.mubr.bf16.gmra.mrb[0].mxu0 %v2547
      %v2767 = vpop.f32.mrb[0].mxu0
      %v2768 = vadd.f32 0.0, %v2767
      %v2769 = vpop.f32.mrb[0].mxu0
      %v2770 = vpop.f32.mrb[0].mxu0
      %v2771 = vadd.f32 0.0, %v2770
      %v2772 = vpop.f32.mrb[0].mxu0
      %2773 = vmatprep.mubr.bf16.mxu0 0
      %2774 = vmatmul.mubr.bf16.gmra.mrb[0].mxu0 %v2551
      %v2775 = vpop.f32.mrb[0].mxu0
      %v2776 = vadd.f32 0.0, %v2775
      %v2777 = vpop.f32.mrb[0].mxu0
      %v2778 = vpop.f32.mrb[0].mxu0
      %v2779 = vadd.f32 0.0, %v2778
      %v2780 = vpop.f32.mrb[0].mxu0
      %2781 = vmatprep.mubr.bf16.mxu0 0
      %2782 = vmatmul.mubr.bf16.gmra.mrb[0].mxu0 %v2555
      %v2783 = vpop.f32.mrb[0].mxu0
      %v2784 = vadd.f32 0.0, %v2783
      %v2785 = vpop.f32.mrb[0].mxu0
      %v2786 = vpop.f32.mrb[0].mxu0
      %v2787 = vadd.f32 0.0, %v2786
      %v2788 = vpop.f32.mrb[0].mxu0
      %2789 = vmatprep.mubr.bf16.mxu0 0
      %2790 = vmatmul.mubr.bf16.gmra.mrb[0].mxu0 %v2559
      %v2791 = vpop.f32.mrb[0].mxu0
      %v2792 = vadd.f32 0.0, %v2791
      %v2793 = vpop.f32.mrb[0].mxu0
      %v2794 = vpop.f32.mrb[0].mxu0
      %v2795 = vadd.f32 0.0, %v2794
      %v2796 = vpop.f32.mrb[0].mxu0
      %2797 = vmatprep.mubr.bf16.mxu0 0
      %2798 = vmatmul.mubr.bf16.gmra.mrb[0].mxu0 %v2563
      %v2799 = vpop.f32.mrb[0].mxu0
      %v2800 = vadd.f32 0.0, %v2799
      %v2801 = vpop.f32.mrb[0].mxu0
      %v2802 = vpop.f32.mrb[0].mxu0
      %v2803 = vadd.f32 0.0, %v2802
      %v2804 = vpop.f32.mrb[0].mxu0
      %2805 = vmatprep.mubr.bf16.mxu0 0
      %2806 = vmatmul.mubr.bf16.gmra.mrb[0].mxu0 %v2569
      %v2807 = vpop.f32.mrb[0].mxu0
      %v2808 = vadd.f32 0.0, %v2807
      %v2809 = vpop.f32.mrb[0].mxu0
      %v2810 = vpop.f32.mrb[0].mxu0
      %v2811 = vadd.f32 0.0, %v2810
      %v2812 = vpop.f32.mrb[0].mxu0
      %2813 = vmatprep.mubr.bf16.mxu0 0
      %2814 = vmatmul.mubr.bf16.gmra.mrb[0].mxu0 %v2578
      %v2815 = vpop.f32.mrb[0].mxu0
      %v2816 = vadd.f32 0.0, %v2815
      %v2817 = vpop.f32.mrb[0].mxu0
      %v2818 = vpop.f32.mrb[0].mxu0
      %v2819 = vadd.f32 0.0, %v2818
      %v2820 = vpop.f32.mrb[0].mxu0
      %2821 = vdwg.mxu0
      %v2822 = vadd.f32 %v2443, %v2680
      %v2823 = vadd.f32 %v2444, %v2683
      %v2824 = vadd.f32 %v2445, %v2688
      %v2825 = vadd.f32 %v2446, %v2691
      %v2826 = vadd.f32 %v2447, %v2696
      %v2827 = vadd.f32 %v2448, %v2699
      %v2828 = vadd.f32 %v2449, %v2704
      %v2829 = vadd.f32 %v2450, %v2707
      %v2830 = vadd.f32 %v2451, %v2712
      %v2831 = vadd.f32 %v2452, %v2715
      %v2832 = vadd.f32 %v2453, %v2720
      %v2833 = vadd.f32 %v2454, %v2723
      %v2834 = vadd.f32 %v2455, %v2728
      %v2835 = vadd.f32 %v2456, %v2731
      %v2836 = vadd.f32 %v2457, %v2736
      %v2837 = vadd.f32 %v2458, %v2739
      %v2838 = vadd.f32 %v2459, %v2744
      %v2839 = vadd.f32 %v2460, %v2747
      %v2840 = vadd.f32 %v2461, %v2752
      %v2841 = vadd.f32 %v2462, %v2755
      %v2842 = vadd.f32 %v2463, %v2760
      %v2843 = vadd.f32 %v2464, %v2763
      %v2844 = vadd.f32 %v2465, %v2768
      %v2845 = vadd.f32 %v2466, %v2771
      %v2846 = vadd.f32 %v2467, %v2776
      %v2847 = vadd.f32 %v2468, %v2779
      %v2848 = vadd.f32 %v2469, %v2784
      %v2849 = vadd.f32 %v2470, %v2787
      %v2850 = vadd.f32 %v2471, %v2792
      %v2851 = vadd.f32 %v2472, %v2795
      %v2852 = vadd.f32 %v2473, %v2800
      %v2853 = vadd.f32 %v2474, %v2803
      %v2854 = vadd.f32 %v2475, %v2808
      %v2855 = vadd.f32 %v2476, %v2811
      %v2856 = vadd.f32 %v2477, %v2816
      %v2857 = vadd.f32 %v2478, %v2819
      %s2858 = scalar_lea.vmem %s5, 320
      %v2859 = vld [vmem:[%s2858] sm:$0xf]
      %v2860 = vld [vmem:[%s2858 + $0x4] sm:$0xf]
      %v2861 = vld [vmem:[%s2858 + $0x8] sm:$0xf]
      %v2862 = vld [vmem:[%s2858 + $0xc] sm:$0xf]
      %v2863 = vld [vmem:[%s2858 + $0x10] sm:$0xf]
      %v2864 = vld [vmem:[%s2858 + $0x14] sm:$0xf]
      %v2865 = vld [vmem:[%s2858 + $0x18] sm:$0xf]
      %v2866 = vld [vmem:[%s2858 + $0x1c] sm:$0xf]
      %v2867 = vld [vmem:[%s2858 + $0x20] sm:$0xf]
      %v2868 = vld [vmem:[%s2858 + $0x24] sm:$0xf]
      %v2869 = vld [vmem:[%s2858 + $0x28] sm:$0xf]
      %v2870 = vld [vmem:[%s2858 + $0x2c] sm:$0xf]
      %v2871 = vld [vmem:[%s2858 + $0x30] sm:$0xf]
      %v2872 = vld [vmem:[%s2858 + $0x34] sm:$0xf]
      %v2873 = vld [vmem:[%s2858 + $0x38] sm:$0xf]
      %v2874 = vld [vmem:[%s2858 + $0x3c] sm:$0xf]
      %vm2875 = vcmask 1045504
      %v2876 = vrot.slane %v1171, 2
      %v2877 = vrot.slane %v1172, 2
      %v2878 = vsel %vm2875, %v2876, %v2877
      %v2879 = vrot.slane %v1173, 2
      %v2880 = vsel %vm2875, %v2877, %v2879
      %v2881 = vrot.slane %v1174, 2
      %v2882 = vsel %vm2875, %v2879, %v2881
      %v2883 = vrot.slane %v1175, 2
      %v2884 = vsel %vm2875, %v2881, %v2883
      %v2885 = vrot.slane %v1176, 2
      %v2886 = vsel %vm2875, %v2883, %v2885
      %v2887 = vrot.slane %v1177, 2
      %v2888 = vsel %vm2875, %v2885, %v2887
      %v2889 = vrot.slane %v1178, 2
      %v2890 = vsel %vm2875, %v2887, %v2889
      %v2891 = vrot.slane %v1179, 2
      %v2892 = vsel %vm2875, %v2889, %v2891
      %v2893 = vrot.slane %v1180, 2
      %v2894 = vsel %vm2875, %v2891, %v2893
      %v2895 = vrot.slane %v1181, 2
      %v2896 = vsel %vm2875, %v2893, %v2895
      %v2897 = vrot.slane %v1182, 2
      %v2898 = vsel %vm2875, %v2895, %v2897
      %v2899 = vrot.slane %v1183, 2
      %v2900 = vsel %vm2875, %v2897, %v2899
      %v2901 = vrot.slane %v1184, 2
      %v2902 = vsel %vm2875, %v2899, %v2901
      %v2903 = vrot.slane %v1185, 2
      %v2904 = vsel %vm2875, %v2901, %v2903
      %v2905 = vrot.slane %v1186, 2
      %v2906 = vsel %vm2875, %v2903, %v2905
      %v2907 = vrot.slane %v1187, 2
      %v2908 = vsel %vm2875, %v2905, %v2907
      %v2909 = vrot.slane %v1188, 2
      %v2910 = vsel %vm2875, %v2907, %v2909
      %v2911 = vrot.slane %v1189, 2
      %v2912 = vsel %vm2875, %v2909, %v2911
      %v2947 = vunpack.c.l.b16 %v2859
      %v2948 = vunpack.c.l.b16 %v2860
      %v2949 = vunpack.c.l.b16 %v2861
      %v2950 = vunpack.c.l.b16 %v2862
      %v2951 = vunpack.c.l.b16 %v2863
      %v2952 = vunpack.c.l.b16 %v2864
      %v2953 = vunpack.c.l.b16 %v2865
      %v2954 = vunpack.c.l.b16 %v2866
      %v2955 = vunpack.c.l.b16 %v2867
      %v2956 = vunpack.c.l.b16 %v2868
      %v2957 = vunpack.c.l.b16 %v2869
      %v2958 = vunpack.c.l.b16 %v2870
      %v2959 = vunpack.c.l.b16 %v2871
      %v2960 = vunpack.c.l.b16 %v2872
      %v2961 = vunpack.c.l.b16 %v2873
      %v2962 = vunpack.c.l.b16 %v2874
      %v2963 = vpack.c.b16 %v2948, %v2947
      %v2964 = vpack.c.b16 %v2950, %v2949
      %v2965 = vpack.c.b16 %v2952, %v2951
      %v2966 = vpack.c.b16 %v2954, %v2953
      %v2967 = vpack.c.b16 %v2956, %v2955
      %v2968 = vpack.c.b16 %v2958, %v2957
      %v2969 = vpack.c.b16 %v2960, %v2959
      %v2970 = vpack.c.b16 %v2962, %v2961
      %2979 = vmatprep.subr.bf16.mxu0 0
      %2980 = vmatpush1.bf16.msra.mxu0 %v2963
      %2981 = vmatprep.subr.bf16.mxu0 0
      %2982 = vmatpush1.bf16.msra.mxu0 %v2964
      %2983 = vmatprep.subr.bf16.mxu0 0
      %2984 = vmatpush1.bf16.msra.mxu0 %v2965
      %2985 = vmatprep.subr.bf16.mxu0 0
      %2986 = vmatpush1.bf16.msra.mxu0 %v2966
      %2987 = vmatprep.subr.bf16.mxu0 0
      %2988 = vmatpush1.bf16.msra.mxu0 %v2967
      %2989 = vmatprep.subr.bf16.mxu0 0
      %2990 = vmatpush1.bf16.msra.mxu0 %v2968
      %2991 = vmatprep.subr.bf16.mxu0 0
      %2992 = vmatpush1.bf16.msra.mxu0 %v2969
      %2993 = vmatprep.subr.bf16.mxu0 0
      %2994 = vmatpush1.bf16.msra.mxu0 %v2970
      %2995 = vmatprep.subr.bf16.mxu0 0
      %2996 = vmatpush1.bf16.msra.mxu0 0
      %2997 = vmatprep.subr.bf16.mxu0 0
      %2998 = vmatpush1.bf16.msra.mxu0 0
      %2999 = vmatprep.subr.bf16.mxu0 0
      %3000 = vmatpush1.bf16.msra.mxu0 0
      %3001 = vmatprep.subr.bf16.mxu0 0
      %3002 = vmatpush1.bf16.msra.mxu0 0
      %3003 = vmatprep.subr.bf16.mxu0 0
      %3004 = vmatpush1.bf16.msra.mxu0 0
      %3005 = vmatprep.subr.bf16.mxu0 0
      %3006 = vmatpush1.bf16.msra.mxu0 0
      %3007 = vmatprep.subr.bf16.mxu0 0
      %3008 = vmatpush1.bf16.msra.mxu0 0
      %3009 = vmatprep.subr.bf16.mxu0 0
      %3010 = vmatpush1.bf16.msra.mxu0 0
      %3011 = vmatprep.mubr.bf16.mxu0 0
      %3012 = vmatmul.mubr.bf16.gmra.mrb[0].mxu0 %v2878
      %v3013 = vpop.f32.mrb[0].mxu0
      %v3014 = vadd.f32 0.0, %v3013
      %v3015 = vpop.f32.mrb[0].mxu0
      %v3016 = vpop.f32.mrb[0].mxu0
      %v3017 = vadd.f32 0.0, %v3016
      %v3018 = vpop.f32.mrb[0].mxu0
      %3019 = vmatprep.mubr.bf16.mxu0 0
      %3020 = vmatmul.mubr.bf16.gmra.mrb[0].mxu0 %v2880
      %v3021 = vpop.f32.mrb[0].mxu0
      %v3022 = vadd.f32 0.0, %v3021
      %v3023 = vpop.f32.mrb[0].mxu0
      %v3024 = vpop.f32.mrb[0].mxu0
      %v3025 = vadd.f32 0.0, %v3024
      %v3026 = vpop.f32.mrb[0].mxu0
      %3027 = vmatprep.mubr.bf16.mxu0 0
      %3028 = vmatmul.mubr.bf16.gmra.mrb[0].mxu0 %v2882
      %v3029 = vpop.f32.mrb[0].mxu0
      %v3030 = vadd.f32 0.0, %v3029
      %v3031 = vpop.f32.mrb[0].mxu0
      %v3032 = vpop.f32.mrb[0].mxu0
      %v3033 = vadd.f32 0.0, %v3032
      %v3034 = vpop.f32.mrb[0].mxu0
      %3035 = vmatprep.mubr.bf16.mxu0 0
      %3036 = vmatmul.mubr.bf16.gmra.mrb[0].mxu0 %v2884
      %v3037 = vpop.f32.mrb[0].mxu0
      %v3038 = vadd.f32 0.0, %v3037
      %v3039 = vpop.f32.mrb[0].mxu0
      %v3040 = vpop.f32.mrb[0].mxu0
      %v3041 = vadd.f32 0.0, %v3040
      %v3042 = vpop.f32.mrb[0].mxu0
      %3043 = vmatprep.mubr.bf16.mxu0 0
      %3044 = vmatmul.mubr.bf16.gmra.mrb[0].mxu0 %v2886
      %v3045 = vpop.f32.mrb[0].mxu0
      %v3046 = vadd.f32 0.0, %v3045
      %v3047 = vpop.f32.mrb[0].mxu0
      %v3048 = vpop.f32.mrb[0].mxu0
      %v3049 = vadd.f32 0.0, %v3048
      %v3050 = vpop.f32.mrb[0].mxu0
      %3051 = vmatprep.mubr.bf16.mxu0 0
      %3052 = vmatmul.mubr.bf16.gmra.mrb[0].mxu0 %v2888
      %v3053 = vpop.f32.mrb[0].mxu0
      %v3054 = vadd.f32 0.0, %v3053
      %v3055 = vpop.f32.mrb[0].mxu0
      %v3056 = vpop.f32.mrb[0].mxu0
      %v3057 = vadd.f32 0.0, %v3056
      %v3058 = vpop.f32.mrb[0].mxu0
      %3059 = vmatprep.mubr.bf16.mxu0 0
      %3060 = vmatmul.mubr.bf16.gmra.mrb[0].mxu0 %v2890
      %v3061 = vpop.f32.mrb[0].mxu0
      %v3062 = vadd.f32 0.0, %v3061
      %v3063 = vpop.f32.mrb[0].mxu0
      %v3064 = vpop.f32.mrb[0].mxu0
      %v3065 = vadd.f32 0.0, %v3064
      %v3066 = vpop.f32.mrb[0].mxu0
      %3067 = vmatprep.mubr.bf16.mxu0 0
      %3068 = vmatmul.mubr.bf16.gmra.mrb[0].mxu0 %v2892
      %v3069 = vpop.f32.mrb[0].mxu0
      %v3070 = vadd.f32 0.0, %v3069
      %v3071 = vpop.f32.mrb[0].mxu0
      %v3072 = vpop.f32.mrb[0].mxu0
      %v3073 = vadd.f32 0.0, %v3072
      %v3074 = vpop.f32.mrb[0].mxu0
      %3075 = vmatprep.mubr.bf16.mxu0 0
      %3076 = vmatmul.mubr.bf16.gmra.mrb[0].mxu0 %v2894
      %v3077 = vpop.f32.mrb[0].mxu0
      %v3078 = vadd.f32 0.0, %v3077
      %v3079 = vpop.f32.mrb[0].mxu0
      %v3080 = vpop.f32.mrb[0].mxu0
      %v3081 = vadd.f32 0.0, %v3080
      %v3082 = vpop.f32.mrb[0].mxu0
      %3083 = vmatprep.mubr.bf16.mxu0 0
      %3084 = vmatmul.mubr.bf16.gmra.mrb[0].mxu0 %v2896
      %v3085 = vpop.f32.mrb[0].mxu0
      %v3086 = vadd.f32 0.0, %v3085
      %v3087 = vpop.f32.mrb[0].mxu0
      %v3088 = vpop.f32.mrb[0].mxu0
      %v3089 = vadd.f32 0.0, %v3088
      %v3090 = vpop.f32.mrb[0].mxu0
      %3091 = vmatprep.mubr.bf16.mxu0 0
      %3092 = vmatmul.mubr.bf16.gmra.mrb[0].mxu0 %v2898
      %v3093 = vpop.f32.mrb[0].mxu0
      %v3094 = vadd.f32 0.0, %v3093
      %v3095 = vpop.f32.mrb[0].mxu0
      %v3096 = vpop.f32.mrb[0].mxu0
      %v3097 = vadd.f32 0.0, %v3096
      %v3098 = vpop.f32.mrb[0].mxu0
      %3099 = vmatprep.mubr.bf16.mxu0 0
      %3100 = vmatmul.mubr.bf16.gmra.mrb[0].mxu0 %v2900
      %v3101 = vpop.f32.mrb[0].mxu0
      %v3102 = vadd.f32 0.0, %v3101
      %v3103 = vpop.f32.mrb[0].mxu0
      %v3104 = vpop.f32.mrb[0].mxu0
      %v3105 = vadd.f32 0.0, %v3104
      %v3106 = vpop.f32.mrb[0].mxu0
      %3107 = vmatprep.mubr.bf16.mxu0 0
      %3108 = vmatmul.mubr.bf16.gmra.mrb[0].mxu0 %v2902
      %v3109 = vpop.f32.mrb[0].mxu0
      %v3110 = vadd.f32 0.0, %v3109
      %v3111 = vpop.f32.mrb[0].mxu0
      %v3112 = vpop.f32.mrb[0].mxu0
      %v3113 = vadd.f32 0.0, %v3112
      %v3114 = vpop.f32.mrb[0].mxu0
      %3115 = vmatprep.mubr.bf16.mxu0 0
      %3116 = vmatmul.mubr.bf16.gmra.mrb[0].mxu0 %v2904
      %v3117 = vpop.f32.mrb[0].mxu0
      %v3118 = vadd.f32 0.0, %v3117
      %v3119 = vpop.f32.mrb[0].mxu0
      %v3120 = vpop.f32.mrb[0].mxu0
      %v3121 = vadd.f32 0.0, %v3120
      %v3122 = vpop.f32.mrb[0].mxu0
      %3123 = vmatprep.mubr.bf16.mxu0 0
      %3124 = vmatmul.mubr.bf16.gmra.mrb[0].mxu0 %v2906
      %v3125 = vpop.f32.mrb[0].mxu0
      %v3126 = vadd.f32 0.0, %v3125
      %v3127 = vpop.f32.mrb[0].mxu0
      %v3128 = vpop.f32.mrb[0].mxu0
      %v3129 = vadd.f32 0.0, %v3128
      %v3130 = vpop.f32.mrb[0].mxu0
      %3131 = vmatprep.mubr.bf16.mxu0 0
      %3132 = vmatmul.mubr.bf16.gmra.mrb[0].mxu0 %v2908
      %v3133 = vpop.f32.mrb[0].mxu0
      %v3134 = vadd.f32 0.0, %v3133
      %v3135 = vpop.f32.mrb[0].mxu0
      %v3136 = vpop.f32.mrb[0].mxu0
      %v3137 = vadd.f32 0.0, %v3136
      %v3138 = vpop.f32.mrb[0].mxu0
      %3139 = vmatprep.mubr.bf16.mxu0 0
      %3140 = vmatmul.mubr.bf16.gmra.mrb[0].mxu0 %v2910
      %v3141 = vpop.f32.mrb[0].mxu0
      %v3142 = vadd.f32 0.0, %v3141
      %v3143 = vpop.f32.mrb[0].mxu0
      %v3144 = vpop.f32.mrb[0].mxu0
      %v3145 = vadd.f32 0.0, %v3144
      %v3146 = vpop.f32.mrb[0].mxu0
      %3147 = vmatprep.mubr.bf16.mxu0 0
      %3148 = vmatmul.mubr.bf16.gmra.mrb[0].mxu0 %v2912
      %v3149 = vpop.f32.mrb[0].mxu0
      %v3150 = vadd.f32 0.0, %v3149
      %v3151 = vpop.f32.mrb[0].mxu0
      %v3152 = vpop.f32.mrb[0].mxu0
      %v3153 = vadd.f32 0.0, %v3152
      %v3154 = vpop.f32.mrb[0].mxu0
      %3155 = vdwg.mxu0
      %v3156 = vadd.f32 %v2822, %v3014
      %v3157 = vadd.f32 %v2823, %v3017
      %v3158 = vadd.f32 %v2824, %v3022
      %v3159 = vadd.f32 %v2825, %v3025
      %v3160 = vadd.f32 %v2826, %v3030
      %v3161 = vadd.f32 %v2827, %v3033
      %v3162 = vadd.f32 %v2828, %v3038
      %v3163 = vadd.f32 %v2829, %v3041
      %v3164 = vadd.f32 %v2830, %v3046
      %v3165 = vadd.f32 %v2831, %v3049
      %v3166 = vadd.f32 %v2832, %v3054
      %v3167 = vadd.f32 %v2833, %v3057
      %v3168 = vadd.f32 %v2834, %v3062
      %v3169 = vadd.f32 %v2835, %v3065
      %v3170 = vadd.f32 %v2836, %v3070
      %v3171 = vadd.f32 %v2837, %v3073
      %v3172 = vadd.f32 %v2838, %v3078
      %v3173 = vadd.f32 %v2839, %v3081
      %v3174 = vadd.f32 %v2840, %v3086
      %v3175 = vadd.f32 %v2841, %v3089
      %v3176 = vadd.f32 %v2842, %v3094
      %v3177 = vadd.f32 %v2843, %v3097
      %v3178 = vadd.f32 %v2844, %v3102
      %v3179 = vadd.f32 %v2845, %v3105
      %v3180 = vadd.f32 %v2846, %v3110
      %v3181 = vadd.f32 %v2847, %v3113
      %v3182 = vadd.f32 %v2848, %v3118
      %v3183 = vadd.f32 %v2849, %v3121
      %v3184 = vadd.f32 %v2850, %v3126
      %v3185 = vadd.f32 %v2851, %v3129
      %v3186 = vadd.f32 %v2852, %v3134
      %v3187 = vadd.f32 %v2853, %v3137
      %v3188 = vadd.f32 %v2854, %v3142
      %v3189 = vadd.f32 %v2855, %v3145
      %v3190 = vadd.f32 %v2856, %v3150
      %v3191 = vadd.f32 %v2857, %v3153
      %s3192 = scalar_lea.vmem %s5, 384
      %v3193 = vld [vmem:[%s3192] sm:$0xf]
      %v3194 = vld [vmem:[%s3192 + $0x4] sm:$0xf]
      %v3195 = vld [vmem:[%s3192 + $0x8] sm:$0xf]
      %v3196 = vld [vmem:[%s3192 + $0xc] sm:$0xf]
      %v3197 = vld [vmem:[%s3192 + $0x10] sm:$0xf]
      %v3198 = vld [vmem:[%s3192 + $0x14] sm:$0xf]
      %v3199 = vld [vmem:[%s3192 + $0x18] sm:$0xf]
      %v3200 = vld [vmem:[%s3192 + $0x1c] sm:$0xf]
      %v3201 = vld [vmem:[%s3192 + $0x20] sm:$0xf]
      %v3202 = vld [vmem:[%s3192 + $0x24] sm:$0xf]
      %v3203 = vld [vmem:[%s3192 + $0x28] sm:$0xf]
      %v3204 = vld [vmem:[%s3192 + $0x2c] sm:$0xf]
      %v3205 = vld [vmem:[%s3192 + $0x30] sm:$0xf]
      %v3206 = vld [vmem:[%s3192 + $0x34] sm:$0xf]
      %v3207 = vld [vmem:[%s3192 + $0x38] sm:$0xf]
      %v3208 = vld [vmem:[%s3192 + $0x3c] sm:$0xf]
      %v3210 = vrot.slane %v1193, 2
      %v3211 = vsel %vm2875, %v2911, %v3210
      %v3229 = vunpack.c.l.b16 %v3193
      %v3230 = vunpack.c.l.b16 %v3194
      %v3231 = vunpack.c.l.b16 %v3195
      %v3232 = vunpack.c.l.b16 %v3196
      %v3233 = vunpack.c.l.b16 %v3197
      %v3234 = vunpack.c.l.b16 %v3198
      %v3235 = vunpack.c.l.b16 %v3199
      %v3236 = vunpack.c.l.b16 %v3200
      %v3237 = vunpack.c.l.b16 %v3201
      %v3238 = vunpack.c.l.b16 %v3202
      %v3239 = vunpack.c.l.b16 %v3203
      %v3240 = vunpack.c.l.b16 %v3204
      %v3241 = vunpack.c.l.b16 %v3205
      %v3242 = vunpack.c.l.b16 %v3206
      %v3243 = vunpack.c.l.b16 %v3207
      %v3244 = vunpack.c.l.b16 %v3208
      %v3245 = vpack.c.b16 %v3230, %v3229
      %v3246 = vpack.c.b16 %v3232, %v3231
      %v3247 = vpack.c.b16 %v3234, %v3233
      %v3248 = vpack.c.b16 %v3236, %v3235
      %v3249 = vpack.c.b16 %v3238, %v3237
      %v3250 = vpack.c.b16 %v3240, %v3239
      %v3251 = vpack.c.b16 %v3242, %v3241
      %v3252 = vpack.c.b16 %v3244, %v3243
      %3261 = vmatprep.subr.bf16.mxu0 0
      %3262 = vmatpush1.bf16.msra.mxu0 %v3245
      %3263 = vmatprep.subr.bf16.mxu0 0
      %3264 = vmatpush1.bf16.msra.mxu0 %v3246
      %3265 = vmatprep.subr.bf16.mxu0 0
      %3266 = vmatpush1.bf16.msra.mxu0 %v3247
      %3267 = vmatprep.subr.bf16.mxu0 0
      %3268 = vmatpush1.bf16.msra.mxu0 %v3248
      %3269 = vmatprep.subr.bf16.mxu0 0
      %3270 = vmatpush1.bf16.msra.mxu0 %v3249
      %3271 = vmatprep.subr.bf16.mxu0 0
      %3272 = vmatpush1.bf16.msra.mxu0 %v3250
      %3273 = vmatprep.subr.bf16.mxu0 0
      %3274 = vmatpush1.bf16.msra.mxu0 %v3251
      %3275 = vmatprep.subr.bf16.mxu0 0
      %3276 = vmatpush1.bf16.msra.mxu0 %v3252
      %3277 = vmatprep.subr.bf16.mxu0 0
      %3278 = vmatpush1.bf16.msra.mxu0 0
      %3279 = vmatprep.subr.bf16.mxu0 0
      %3280 = vmatpush1.bf16.msra.mxu0 0
      %3281 = vmatprep.subr.bf16.mxu0 0
      %3282 = vmatpush1.bf16.msra.mxu0 0
      %3283 = vmatprep.subr.bf16.mxu0 0
      %3284 = vmatpush1.bf16.msra.mxu0 0
      %3285 = vmatprep.subr.bf16.mxu0 0
      %3286 = vmatpush1.bf16.msra.mxu0 0
      %3287 = vmatprep.subr.bf16.mxu0 0
      %3288 = vmatpush1.bf16.msra.mxu0 0
      %3289 = vmatprep.subr.bf16.mxu0 0
      %3290 = vmatpush1.bf16.msra.mxu0 0
      %3291 = vmatprep.subr.bf16.mxu0 0
      %3292 = vmatpush1.bf16.msra.mxu0 0
      %3293 = vmatprep.mubr.bf16.mxu0 0
      %3294 = vmatmul.mubr.bf16.gmra.mrb[0].mxu0 %v2880
      %v3295 = vpop.f32.mrb[0].mxu0
      %v3296 = vadd.f32 0.0, %v3295
      %v3297 = vpop.f32.mrb[0].mxu0
      %v3298 = vpop.f32.mrb[0].mxu0
      %v3299 = vadd.f32 0.0, %v3298
      %v3300 = vpop.f32.mrb[0].mxu0
      %3301 = vmatprep.mubr.bf16.mxu0 0
      %3302 = vmatmul.mubr.bf16.gmra.mrb[0].mxu0 %v2882
      %v3303 = vpop.f32.mrb[0].mxu0
      %v3304 = vadd.f32 0.0, %v3303
      %v3305 = vpop.f32.mrb[0].mxu0
      %v3306 = vpop.f32.mrb[0].mxu0
      %v3307 = vadd.f32 0.0, %v3306
      %v3308 = vpop.f32.mrb[0].mxu0
      %3309 = vmatprep.mubr.bf16.mxu0 0
      %3310 = vmatmul.mubr.bf16.gmra.mrb[0].mxu0 %v2884
      %v3311 = vpop.f32.mrb[0].mxu0
      %v3312 = vadd.f32 0.0, %v3311
      %v3313 = vpop.f32.mrb[0].mxu0
      %v3314 = vpop.f32.mrb[0].mxu0
      %v3315 = vadd.f32 0.0, %v3314
      %v3316 = vpop.f32.mrb[0].mxu0
      %3317 = vmatprep.mubr.bf16.mxu0 0
      %3318 = vmatmul.mubr.bf16.gmra.mrb[0].mxu0 %v2886
      %v3319 = vpop.f32.mrb[0].mxu0
      %v3320 = vadd.f32 0.0, %v3319
      %v3321 = vpop.f32.mrb[0].mxu0
      %v3322 = vpop.f32.mrb[0].mxu0
      %v3323 = vadd.f32 0.0, %v3322
      %v3324 = vpop.f32.mrb[0].mxu0
      %3325 = vmatprep.mubr.bf16.mxu0 0
      %3326 = vmatmul.mubr.bf16.gmra.mrb[0].mxu0 %v2888
      %v3327 = vpop.f32.mrb[0].mxu0
      %v3328 = vadd.f32 0.0, %v3327
      %v3329 = vpop.f32.mrb[0].mxu0
      %v3330 = vpop.f32.mrb[0].mxu0
      %v3331 = vadd.f32 0.0, %v3330
      %v3332 = vpop.f32.mrb[0].mxu0
      %3333 = vmatprep.mubr.bf16.mxu0 0
      %3334 = vmatmul.mubr.bf16.gmra.mrb[0].mxu0 %v2890
      %v3335 = vpop.f32.mrb[0].mxu0
      %v3336 = vadd.f32 0.0, %v3335
      %v3337 = vpop.f32.mrb[0].mxu0
      %v3338 = vpop.f32.mrb[0].mxu0
      %v3339 = vadd.f32 0.0, %v3338
      %v3340 = vpop.f32.mrb[0].mxu0
      %3341 = vmatprep.mubr.bf16.mxu0 0
      %3342 = vmatmul.mubr.bf16.gmra.mrb[0].mxu0 %v2892
      %v3343 = vpop.f32.mrb[0].mxu0
      %v3344 = vadd.f32 0.0, %v3343
      %v3345 = vpop.f32.mrb[0].mxu0
      %v3346 = vpop.f32.mrb[0].mxu0
      %v3347 = vadd.f32 0.0, %v3346
      %v3348 = vpop.f32.mrb[0].mxu0
      %3349 = vmatprep.mubr.bf16.mxu0 0
      %3350 = vmatmul.mubr.bf16.gmra.mrb[0].mxu0 %v2894
      %v3351 = vpop.f32.mrb[0].mxu0
      %v3352 = vadd.f32 0.0, %v3351
      %v3353 = vpop.f32.mrb[0].mxu0
      %v3354 = vpop.f32.mrb[0].mxu0
      %v3355 = vadd.f32 0.0, %v3354
      %v3356 = vpop.f32.mrb[0].mxu0
      %3357 = vmatprep.mubr.bf16.mxu0 0
      %3358 = vmatmul.mubr.bf16.gmra.mrb[0].mxu0 %v2896
      %v3359 = vpop.f32.mrb[0].mxu0
      %v3360 = vadd.f32 0.0, %v3359
      %v3361 = vpop.f32.mrb[0].mxu0
      %v3362 = vpop.f32.mrb[0].mxu0
      %v3363 = vadd.f32 0.0, %v3362
      %v3364 = vpop.f32.mrb[0].mxu0
      %3365 = vmatprep.mubr.bf16.mxu0 0
      %3366 = vmatmul.mubr.bf16.gmra.mrb[0].mxu0 %v2898
      %v3367 = vpop.f32.mrb[0].mxu0
      %v3368 = vadd.f32 0.0, %v3367
      %v3369 = vpop.f32.mrb[0].mxu0
      %v3370 = vpop.f32.mrb[0].mxu0
      %v3371 = vadd.f32 0.0, %v3370
      %v3372 = vpop.f32.mrb[0].mxu0
      %3373 = vmatprep.mubr.bf16.mxu0 0
      %3374 = vmatmul.mubr.bf16.gmra.mrb[0].mxu0 %v2900
      %v3375 = vpop.f32.mrb[0].mxu0
      %v3376 = vadd.f32 0.0, %v3375
      %v3377 = vpop.f32.mrb[0].mxu0
      %v3378 = vpop.f32.mrb[0].mxu0
      %v3379 = vadd.f32 0.0, %v3378
      %v3380 = vpop.f32.mrb[0].mxu0
      %3381 = vmatprep.mubr.bf16.mxu0 0
      %3382 = vmatmul.mubr.bf16.gmra.mrb[0].mxu0 %v2902
      %v3383 = vpop.f32.mrb[0].mxu0
      %v3384 = vadd.f32 0.0, %v3383
      %v3385 = vpop.f32.mrb[0].mxu0
      %v3386 = vpop.f32.mrb[0].mxu0
      %v3387 = vadd.f32 0.0, %v3386
      %v3388 = vpop.f32.mrb[0].mxu0
      %3389 = vmatprep.mubr.bf16.mxu0 0
      %3390 = vmatmul.mubr.bf16.gmra.mrb[0].mxu0 %v2904
      %v3391 = vpop.f32.mrb[0].mxu0
      %v3392 = vadd.f32 0.0, %v3391
      %v3393 = vpop.f32.mrb[0].mxu0
      %v3394 = vpop.f32.mrb[0].mxu0
      %v3395 = vadd.f32 0.0, %v3394
      %v3396 = vpop.f32.mrb[0].mxu0
      %3397 = vmatprep.mubr.bf16.mxu0 0
      %3398 = vmatmul.mubr.bf16.gmra.mrb[0].mxu0 %v2906
      %v3399 = vpop.f32.mrb[0].mxu0
      %v3400 = vadd.f32 0.0, %v3399
      %v3401 = vpop.f32.mrb[0].mxu0
      %v3402 = vpop.f32.mrb[0].mxu0
      %v3403 = vadd.f32 0.0, %v3402
      %v3404 = vpop.f32.mrb[0].mxu0
      %3405 = vmatprep.mubr.bf16.mxu0 0
      %3406 = vmatmul.mubr.bf16.gmra.mrb[0].mxu0 %v2908
      %v3407 = vpop.f32.mrb[0].mxu0
      %v3408 = vadd.f32 0.0, %v3407
      %v3409 = vpop.f32.mrb[0].mxu0
      %v3410 = vpop.f32.mrb[0].mxu0
      %v3411 = vadd.f32 0.0, %v3410
      %v3412 = vpop.f32.mrb[0].mxu0
      %3413 = vmatprep.mubr.bf16.mxu0 0
      %3414 = vmatmul.mubr.bf16.gmra.mrb[0].mxu0 %v2910
      %v3415 = vpop.f32.mrb[0].mxu0
      %v3416 = vadd.f32 0.0, %v3415
      %v3417 = vpop.f32.mrb[0].mxu0
      %v3418 = vpop.f32.mrb[0].mxu0
      %v3419 = vadd.f32 0.0, %v3418
      %v3420 = vpop.f32.mrb[0].mxu0
      %3421 = vmatprep.mubr.bf16.mxu0 0
      %3422 = vmatmul.mubr.bf16.gmra.mrb[0].mxu0 %v2912
      %v3423 = vpop.f32.mrb[0].mxu0
      %v3424 = vadd.f32 0.0, %v3423
      %v3425 = vpop.f32.mrb[0].mxu0
      %v3426 = vpop.f32.mrb[0].mxu0
      %v3427 = vadd.f32 0.0, %v3426
      %v3428 = vpop.f32.mrb[0].mxu0
      %3429 = vmatprep.mubr.bf16.mxu0 0
      %3430 = vmatmul.mubr.bf16.gmra.mrb[0].mxu0 %v3211
      %v3431 = vpop.f32.mrb[0].mxu0
      %v3432 = vadd.f32 0.0, %v3431
      %v3433 = vpop.f32.mrb[0].mxu0
      %v3434 = vpop.f32.mrb[0].mxu0
      %v3435 = vadd.f32 0.0, %v3434
      %v3436 = vpop.f32.mrb[0].mxu0
      %3437 = vdwg.mxu0
      %v3438 = vadd.f32 %v3156, %v3296
      %v3439 = vadd.f32 %v3157, %v3299
      %v3440 = vadd.f32 %v3158, %v3304
      %v3441 = vadd.f32 %v3159, %v3307
      %v3442 = vadd.f32 %v3160, %v3312
      %v3443 = vadd.f32 %v3161, %v3315
      %v3444 = vadd.f32 %v3162, %v3320
      %v3445 = vadd.f32 %v3163, %v3323
      %v3446 = vadd.f32 %v3164, %v3328
      %v3447 = vadd.f32 %v3165, %v3331
      %v3448 = vadd.f32 %v3166, %v3336
      %v3449 = vadd.f32 %v3167, %v3339
      %v3450 = vadd.f32 %v3168, %v3344
      %v3451 = vadd.f32 %v3169, %v3347
      %v3452 = vadd.f32 %v3170, %v3352
      %v3453 = vadd.f32 %v3171, %v3355
      %v3454 = vadd.f32 %v3172, %v3360
      %v3455 = vadd.f32 %v3173, %v3363
      %v3456 = vadd.f32 %v3174, %v3368
      %v3457 = vadd.f32 %v3175, %v3371
      %v3458 = vadd.f32 %v3176, %v3376
      %v3459 = vadd.f32 %v3177, %v3379
      %v3460 = vadd.f32 %v3178, %v3384
      %v3461 = vadd.f32 %v3179, %v3387
      %v3462 = vadd.f32 %v3180, %v3392
      %v3463 = vadd.f32 %v3181, %v3395
      %v3464 = vadd.f32 %v3182, %v3400
      %v3465 = vadd.f32 %v3183, %v3403
      %v3466 = vadd.f32 %v3184, %v3408
      %v3467 = vadd.f32 %v3185, %v3411
      %v3468 = vadd.f32 %v3186, %v3416
      %v3469 = vadd.f32 %v3187, %v3419
      %v3470 = vadd.f32 %v3188, %v3424
      %v3471 = vadd.f32 %v3189, %v3427
      %v3472 = vadd.f32 %v3190, %v3432
      %v3473 = vadd.f32 %v3191, %v3435
      %s3474 = scalar_lea.vmem %s5, 448
      %v3475 = vld [vmem:[%s3474] sm:$0xf]
      %v3476 = vld [vmem:[%s3474 + $0x4] sm:$0xf]
      %v3477 = vld [vmem:[%s3474 + $0x8] sm:$0xf]
      %v3478 = vld [vmem:[%s3474 + $0xc] sm:$0xf]
      %v3479 = vld [vmem:[%s3474 + $0x10] sm:$0xf]
      %v3480 = vld [vmem:[%s3474 + $0x14] sm:$0xf]
      %v3481 = vld [vmem:[%s3474 + $0x18] sm:$0xf]
      %v3482 = vld [vmem:[%s3474 + $0x1c] sm:$0xf]
      %v3483 = vld [vmem:[%s3474 + $0x20] sm:$0xf]
      %v3484 = vld [vmem:[%s3474 + $0x24] sm:$0xf]
      %v3485 = vld [vmem:[%s3474 + $0x28] sm:$0xf]
      %v3486 = vld [vmem:[%s3474 + $0x2c] sm:$0xf]
      %v3487 = vld [vmem:[%s3474 + $0x30] sm:$0xf]
      %v3488 = vld [vmem:[%s3474 + $0x34] sm:$0xf]
      %v3489 = vld [vmem:[%s3474 + $0x38] sm:$0xf]
      %v3490 = vld [vmem:[%s3474 + $0x3c] sm:$0xf]
      %vm3491 = vsmask.f32 5376
      %v3492 = vrot.slane %v1248, 2
      %v3493 = vrot.slane %v1244, 3
      %v3494 = vor.u32 %v3492, %v3493
      %v3495 = vrot.slane %v1256, 2
      %v3496 = vrot.slane %v1252, 3
      %v3497 = vor.u32 %v3495, %v3496
      %v3498 = vsel %vm3491, %v3494, %v3497
      %v3499 = vrot.slane %v1264, 2
      %v3500 = vrot.slane %v1260, 3
      %v3501 = vor.u32 %v3499, %v3500
      %v3502 = vsel %vm3491, %v3497, %v3501
      %v3503 = vrot.slane %v1272, 2
      %v3504 = vrot.slane %v1268, 3
      %v3505 = vor.u32 %v3503, %v3504
      %v3506 = vsel %vm3491, %v3501, %v3505
      %v3507 = vrot.slane %v1280, 2
      %v3508 = vrot.slane %v1276, 3
      %v3509 = vor.u32 %v3507, %v3508
      %v3510 = vsel %vm3491, %v3505, %v3509
      %v3511 = vrot.slane %v1288, 2
      %v3512 = vrot.slane %v1284, 3
      %v3513 = vor.u32 %v3511, %v3512
      %v3514 = vsel %vm3491, %v3509, %v3513
      %v3515 = vrot.slane %v1296, 2
      %v3516 = vrot.slane %v1292, 3
      %v3517 = vor.u32 %v3515, %v3516
      %v3518 = vsel %vm3491, %v3513, %v3517
      %v3519 = vrot.slane %v1304, 2
      %v3520 = vrot.slane %v1300, 3
      %v3521 = vor.u32 %v3519, %v3520
      %v3522 = vsel %vm3491, %v3517, %v3521
      %v3523 = vrot.slane %v1312, 2
      %v3524 = vrot.slane %v1308, 3
      %v3525 = vor.u32 %v3523, %v3524
      %v3526 = vsel %vm3491, %v3521, %v3525
      %v3527 = vrot.slane %v1320, 2
      %v3528 = vrot.slane %v1316, 3
      %v3529 = vor.u32 %v3527, %v3528
      %v3530 = vsel %vm3491, %v3525, %v3529
      %v3531 = vrot.slane %v1328, 2
      %v3532 = vrot.slane %v1324, 3
      %v3533 = vor.u32 %v3531, %v3532
      %v3534 = vsel %vm3491, %v3529, %v3533
      %v3535 = vrot.slane %v1336, 2
      %v3536 = vrot.slane %v1332, 3
      %v3537 = vor.u32 %v3535, %v3536
      %v3538 = vsel %vm3491, %v3533, %v3537
      %v3539 = vrot.slane %v1344, 2
      %v3540 = vrot.slane %v1340, 3
      %v3541 = vor.u32 %v3539, %v3540
      %v3542 = vsel %vm3491, %v3537, %v3541
      %v3543 = vrot.slane %v1352, 2
      %v3544 = vrot.slane %v1348, 3
      %v3545 = vor.u32 %v3543, %v3544
      %v3546 = vsel %vm3491, %v3541, %v3545
      %v3547 = vrot.slane %v1360, 2
      %v3548 = vrot.slane %v1356, 3
      %v3549 = vor.u32 %v3547, %v3548
      %v3550 = vsel %vm3491, %v3545, %v3549
      %v3551 = vrot.slane %v1368, 2
      %v3552 = vrot.slane %v1364, 3
      %v3553 = vor.u32 %v3551, %v3552
      %v3554 = vsel %vm3491, %v3549, %v3553
      %v3555 = vrot.slane %v2564, 2
      %v3556 = vrot.slane %v1372, 3
      %v3557 = vor.u32 %v3555, %v3556
      %v3558 = vsel %vm3491, %v3553, %v3557
      %v3559 = vrot.slane %v2571, 2
      %v3560 = vrot.slane %v2574, 3
      %v3561 = vor.u32 %v3559, %v3560
      %v3562 = vsel %vm3491, %v3557, %v3561
      %v3563 = vshrl.u32 %v1193, 16
      %v3565 = vrot.slane %v3563, 2
      %v3566 = vshll.u32 %v1193, 16
      %v3568 = vrot.slane %v3566, 3
      %v3569 = vor.u32 %v3565, %v3568
      %v3570 = vsel %vm3491, %v3561, %v3569
      %v3605 = vunpack.c.l.b16 %v3475
      %v3606 = vunpack.c.l.b16 %v3476
      %v3607 = vunpack.c.l.b16 %v3477
      %v3608 = vunpack.c.l.b16 %v3478
      %v3609 = vunpack.c.l.b16 %v3479
      %v3610 = vunpack.c.l.b16 %v3480
      %v3611 = vunpack.c.l.b16 %v3481
      %v3612 = vunpack.c.l.b16 %v3482
      %v3613 = vunpack.c.l.b16 %v3483
      %v3614 = vunpack.c.l.b16 %v3484
      %v3615 = vunpack.c.l.b16 %v3485
      %v3616 = vunpack.c.l.b16 %v3486
      %v3617 = vunpack.c.l.b16 %v3487
      %v3618 = vunpack.c.l.b16 %v3488
      %v3619 = vunpack.c.l.b16 %v3489
      %v3620 = vunpack.c.l.b16 %v3490
      %v3621 = vpack.c.b16 %v3606, %v3605
      %v3622 = vpack.c.b16 %v3608, %v3607
      %v3623 = vpack.c.b16 %v3610, %v3609
      %v3624 = vpack.c.b16 %v3612, %v3611
      %v3625 = vpack.c.b16 %v3614, %v3613
      %v3626 = vpack.c.b16 %v3616, %v3615
      %v3627 = vpack.c.b16 %v3618, %v3617
      %v3628 = vpack.c.b16 %v3620, %v3619
      %3637 = vmatprep.subr.bf16.mxu0 0
      %3638 = vmatpush1.bf16.msra.mxu0 %v3621
      %3639 = vmatprep.subr.bf16.mxu0 0
      %3640 = vmatpush1.bf16.msra.mxu0 %v3622
      %3641 = vmatprep.subr.bf16.mxu0 0
      %3642 = vmatpush1.bf16.msra.mxu0 %v3623
      %3643 = vmatprep.subr.bf16.mxu0 0
      %3644 = vmatpush1.bf16.msra.mxu0 %v3624
      %3645 = vmatprep.subr.bf16.mxu0 0
      %3646 = vmatpush1.bf16.msra.mxu0 %v3625
      %3647 = vmatprep.subr.bf16.mxu0 0
      %3648 = vmatpush1.bf16.msra.mxu0 %v3626
      %3649 = vmatprep.subr.bf16.mxu0 0
      %3650 = vmatpush1.bf16.msra.mxu0 %v3627
      %3651 = vmatprep.subr.bf16.mxu0 0
      %3652 = vmatpush1.bf16.msra.mxu0 %v3628
      %3653 = vmatprep.subr.bf16.mxu0 0
      %3654 = vmatpush1.bf16.msra.mxu0 0
      %3655 = vmatprep.subr.bf16.mxu0 0
      %3656 = vmatpush1.bf16.msra.mxu0 0
      %3657 = vmatprep.subr.bf16.mxu0 0
      %3658 = vmatpush1.bf16.msra.mxu0 0
      %3659 = vmatprep.subr.bf16.mxu0 0
      %3660 = vmatpush1.bf16.msra.mxu0 0
      %3661 = vmatprep.subr.bf16.mxu0 0
      %3662 = vmatpush1.bf16.msra.mxu0 0
      %3663 = vmatprep.subr.bf16.mxu0 0
      %3664 = vmatpush1.bf16.msra.mxu0 0
      %3665 = vmatprep.subr.bf16.mxu0 0
      %3666 = vmatpush1.bf16.msra.mxu0 0
      %3667 = vmatprep.subr.bf16.mxu0 0
      %3668 = vmatpush1.bf16.msra.mxu0 0
      %3669 = vmatprep.mubr.bf16.mxu0 0
      %3670 = vmatmul.mubr.bf16.gmra.mrb[0].mxu0 %v3498
      %v3671 = vpop.f32.mrb[0].mxu0
      %v3672 = vadd.f32 0.0, %v3671
      %v3673 = vpop.f32.mrb[0].mxu0
      %v3674 = vpop.f32.mrb[0].mxu0
      %v3675 = vadd.f32 0.0, %v3674
      %v3676 = vpop.f32.mrb[0].mxu0
      %3677 = vmatprep.mubr.bf16.mxu0 0
      %3678 = vmatmul.mubr.bf16.gmra.mrb[0].mxu0 %v3502
      %v3679 = vpop.f32.mrb[0].mxu0
      %v3680 = vadd.f32 0.0, %v3679
      %v3681 = vpop.f32.mrb[0].mxu0
      %v3682 = vpop.f32.mrb[0].mxu0
      %v3683 = vadd.f32 0.0, %v3682
      %v3684 = vpop.f32.mrb[0].mxu0
      %3685 = vmatprep.mubr.bf16.mxu0 0
      %3686 = vmatmul.mubr.bf16.gmra.mrb[0].mxu0 %v3506
      %v3687 = vpop.f32.mrb[0].mxu0
      %v3688 = vadd.f32 0.0, %v3687
      %v3689 = vpop.f32.mrb[0].mxu0
      %v3690 = vpop.f32.mrb[0].mxu0
      %v3691 = vadd.f32 0.0, %v3690
      %v3692 = vpop.f32.mrb[0].mxu0
      %3693 = vmatprep.mubr.bf16.mxu0 0
      %3694 = vmatmul.mubr.bf16.gmra.mrb[0].mxu0 %v3510
      %v3695 = vpop.f32.mrb[0].mxu0
      %v3696 = vadd.f32 0.0, %v3695
      %v3697 = vpop.f32.mrb[0].mxu0
      %v3698 = vpop.f32.mrb[0].mxu0
      %v3699 = vadd.f32 0.0, %v3698
      %v3700 = vpop.f32.mrb[0].mxu0
      %3701 = vmatprep.mubr.bf16.mxu0 0
      %3702 = vmatmul.mubr.bf16.gmra.mrb[0].mxu0 %v3514
      %v3703 = vpop.f32.mrb[0].mxu0
      %v3704 = vadd.f32 0.0, %v3703
      %v3705 = vpop.f32.mrb[0].mxu0
      %v3706 = vpop.f32.mrb[0].mxu0
      %v3707 = vadd.f32 0.0, %v3706
      %v3708 = vpop.f32.mrb[0].mxu0
      %3709 = vmatprep.mubr.bf16.mxu0 0
      %3710 = vmatmul.mubr.bf16.gmra.mrb[0].mxu0 %v3518
      %v3711 = vpop.f32.mrb[0].mxu0
      %v3712 = vadd.f32 0.0, %v3711
      %v3713 = vpop.f32.mrb[0].mxu0
      %v3714 = vpop.f32.mrb[0].mxu0
      %v3715 = vadd.f32 0.0, %v3714
      %v3716 = vpop.f32.mrb[0].mxu0
      %3717 = vmatprep.mubr.bf16.mxu0 0
      %3718 = vmatmul.mubr.bf16.gmra.mrb[0].mxu0 %v3522
      %v3719 = vpop.f32.mrb[0].mxu0
      %v3720 = vadd.f32 0.0, %v3719
      %v3721 = vpop.f32.mrb[0].mxu0
      %v3722 = vpop.f32.mrb[0].mxu0
      %v3723 = vadd.f32 0.0, %v3722
      %v3724 = vpop.f32.mrb[0].mxu0
      %3725 = vmatprep.mubr.bf16.mxu0 0
      %3726 = vmatmul.mubr.bf16.gmra.mrb[0].mxu0 %v3526
      %v3727 = vpop.f32.mrb[0].mxu0
      %v3728 = vadd.f32 0.0, %v3727
      %v3729 = vpop.f32.mrb[0].mxu0
      %v3730 = vpop.f32.mrb[0].mxu0
      %v3731 = vadd.f32 0.0, %v3730
      %v3732 = vpop.f32.mrb[0].mxu0
      %3733 = vmatprep.mubr.bf16.mxu0 0
      %3734 = vmatmul.mubr.bf16.gmra.mrb[0].mxu0 %v3530
      %v3735 = vpop.f32.mrb[0].mxu0
      %v3736 = vadd.f32 0.0, %v3735
      %v3737 = vpop.f32.mrb[0].mxu0
      %v3738 = vpop.f32.mrb[0].mxu0
      %v3739 = vadd.f32 0.0, %v3738
      %v3740 = vpop.f32.mrb[0].mxu0
      %3741 = vmatprep.mubr.bf16.mxu0 0
      %3742 = vmatmul.mubr.bf16.gmra.mrb[0].mxu0 %v3534
      %v3743 = vpop.f32.mrb[0].mxu0
      %v3744 = vadd.f32 0.0, %v3743
      %v3745 = vpop.f32.mrb[0].mxu0
      %v3746 = vpop.f32.mrb[0].mxu0
      %v3747 = vadd.f32 0.0, %v3746
      %v3748 = vpop.f32.mrb[0].mxu0
      %3749 = vmatprep.mubr.bf16.mxu0 0
      %3750 = vmatmul.mubr.bf16.gmra.mrb[0].mxu0 %v3538
      %v3751 = vpop.f32.mrb[0].mxu0
      %v3752 = vadd.f32 0.0, %v3751
      %v3753 = vpop.f32.mrb[0].mxu0
      %v3754 = vpop.f32.mrb[0].mxu0
      %v3755 = vadd.f32 0.0, %v3754
      %v3756 = vpop.f32.mrb[0].mxu0
      %3757 = vmatprep.mubr.bf16.mxu0 0
      %3758 = vmatmul.mubr.bf16.gmra.mrb[0].mxu0 %v3542
      %v3759 = vpop.f32.mrb[0].mxu0
      %v3760 = vadd.f32 0.0, %v3759
      %v3761 = vpop.f32.mrb[0].mxu0
      %v3762 = vpop.f32.mrb[0].mxu0
      %v3763 = vadd.f32 0.0, %v3762
      %v3764 = vpop.f32.mrb[0].mxu0
      %3765 = vmatprep.mubr.bf16.mxu0 0
      %3766 = vmatmul.mubr.bf16.gmra.mrb[0].mxu0 %v3546
      %v3767 = vpop.f32.mrb[0].mxu0
      %v3768 = vadd.f32 0.0, %v3767
      %v3769 = vpop.f32.mrb[0].mxu0
      %v3770 = vpop.f32.mrb[0].mxu0
      %v3771 = vadd.f32 0.0, %v3770
      %v3772 = vpop.f32.mrb[0].mxu0
      %3773 = vmatprep.mubr.bf16.mxu0 0
      %3774 = vmatmul.mubr.bf16.gmra.mrb[0].mxu0 %v3550
      %v3775 = vpop.f32.mrb[0].mxu0
      %v3776 = vadd.f32 0.0, %v3775
      %v3777 = vpop.f32.mrb[0].mxu0
      %v3778 = vpop.f32.mrb[0].mxu0
      %v3779 = vadd.f32 0.0, %v3778
      %v3780 = vpop.f32.mrb[0].mxu0
      %3781 = vmatprep.mubr.bf16.mxu0 0
      %3782 = vmatmul.mubr.bf16.gmra.mrb[0].mxu0 %v3554
      %v3783 = vpop.f32.mrb[0].mxu0
      %v3784 = vadd.f32 0.0, %v3783
      %v3785 = vpop.f32.mrb[0].mxu0
      %v3786 = vpop.f32.mrb[0].mxu0
      %v3787 = vadd.f32 0.0, %v3786
      %v3788 = vpop.f32.mrb[0].mxu0
      %3789 = vmatprep.mubr.bf16.mxu0 0
      %3790 = vmatmul.mubr.bf16.gmra.mrb[0].mxu0 %v3558
      %v3791 = vpop.f32.mrb[0].mxu0
      %v3792 = vadd.f32 0.0, %v3791
      %v3793 = vpop.f32.mrb[0].mxu0
      %v3794 = vpop.f32.mrb[0].mxu0
      %v3795 = vadd.f32 0.0, %v3794
      %v3796 = vpop.f32.mrb[0].mxu0
      %3797 = vmatprep.mubr.bf16.mxu0 0
      %3798 = vmatmul.mubr.bf16.gmra.mrb[0].mxu0 %v3562
      %v3799 = vpop.f32.mrb[0].mxu0
      %v3800 = vadd.f32 0.0, %v3799
      %v3801 = vpop.f32.mrb[0].mxu0
      %v3802 = vpop.f32.mrb[0].mxu0
      %v3803 = vadd.f32 0.0, %v3802
      %v3804 = vpop.f32.mrb[0].mxu0
      %3805 = vmatprep.mubr.bf16.mxu0 0
      %3806 = vmatmul.mubr.bf16.gmra.mrb[0].mxu0 %v3570
      %v3807 = vpop.f32.mrb[0].mxu0
      %v3808 = vadd.f32 0.0, %v3807
      %v3809 = vpop.f32.mrb[0].mxu0
      %v3810 = vpop.f32.mrb[0].mxu0
      %v3811 = vadd.f32 0.0, %v3810
      %v3812 = vpop.f32.mrb[0].mxu0
      %3813 = vdwg.mxu0
      %v3814 = vadd.f32 %v3438, %v3672
      %v3815 = vadd.f32 %v3439, %v3675
      %v3816 = vadd.f32 %v3440, %v3680
      %v3817 = vadd.f32 %v3441, %v3683
      %v3818 = vadd.f32 %v3442, %v3688
      %v3819 = vadd.f32 %v3443, %v3691
      %v3820 = vadd.f32 %v3444, %v3696
      %v3821 = vadd.f32 %v3445, %v3699
      %v3822 = vadd.f32 %v3446, %v3704
      %v3823 = vadd.f32 %v3447, %v3707
      %v3824 = vadd.f32 %v3448, %v3712
      %v3825 = vadd.f32 %v3449, %v3715
      %v3826 = vadd.f32 %v3450, %v3720
      %v3827 = vadd.f32 %v3451, %v3723
      %v3828 = vadd.f32 %v3452, %v3728
      %v3829 = vadd.f32 %v3453, %v3731
      %v3830 = vadd.f32 %v3454, %v3736
      %v3831 = vadd.f32 %v3455, %v3739
      %v3832 = vadd.f32 %v3456, %v3744
      %v3833 = vadd.f32 %v3457, %v3747
      %v3834 = vadd.f32 %v3458, %v3752
      %v3835 = vadd.f32 %v3459, %v3755
      %v3836 = vadd.f32 %v3460, %v3760
      %v3837 = vadd.f32 %v3461, %v3763
      %v3838 = vadd.f32 %v3462, %v3768
      %v3839 = vadd.f32 %v3463, %v3771
      %v3840 = vadd.f32 %v3464, %v3776
      %v3841 = vadd.f32 %v3465, %v3779
      %v3842 = vadd.f32 %v3466, %v3784
      %v3843 = vadd.f32 %v3467, %v3787
      %v3844 = vadd.f32 %v3468, %v3792
      %v3845 = vadd.f32 %v3469, %v3795
      %v3846 = vadd.f32 %v3470, %v3800
      %v3847 = vadd.f32 %v3471, %v3803
      %v3848 = vadd.f32 %v3472, %v3808
      %v3849 = vadd.f32 %v3473, %v3811
      %s3850 = scalar_lea.vmem %s5, 512
      %v3851 = vld [vmem:[%s3850] sm:$0xf]
      %v3852 = vld [vmem:[%s3850 + $0x4] sm:$0xf]
      %v3853 = vld [vmem:[%s3850 + $0x8] sm:$0xf]
      %v3854 = vld [vmem:[%s3850 + $0xc] sm:$0xf]
      %v3855 = vld [vmem:[%s3850 + $0x10] sm:$0xf]
      %v3856 = vld [vmem:[%s3850 + $0x14] sm:$0xf]
      %v3857 = vld [vmem:[%s3850 + $0x18] sm:$0xf]
      %v3858 = vld [vmem:[%s3850 + $0x1c] sm:$0xf]
      %v3859 = vld [vmem:[%s3850 + $0x20] sm:$0xf]
      %v3860 = vld [vmem:[%s3850 + $0x24] sm:$0xf]
      %v3861 = vld [vmem:[%s3850 + $0x28] sm:$0xf]
      %v3862 = vld [vmem:[%s3850 + $0x2c] sm:$0xf]
      %v3863 = vld [vmem:[%s3850 + $0x30] sm:$0xf]
      %v3864 = vld [vmem:[%s3850 + $0x34] sm:$0xf]
      %v3865 = vld [vmem:[%s3850 + $0x38] sm:$0xf]
      %v3866 = vld [vmem:[%s3850 + $0x3c] sm:$0xf]
      %vm3867 = vcmask 1044480
      %v3868 = vrot.slane %v1172, 3
      %v3869 = vrot.slane %v1173, 3
      %v3870 = vsel %vm3867, %v3868, %v3869
      %v3871 = vrot.slane %v1174, 3
      %v3872 = vsel %vm3867, %v3869, %v3871
      %v3873 = vrot.slane %v1175, 3
      %v3874 = vsel %vm3867, %v3871, %v3873
      %v3875 = vrot.slane %v1176, 3
      %v3876 = vsel %vm3867, %v3873, %v3875
      %v3877 = vrot.slane %v1177, 3
      %v3878 = vsel %vm3867, %v3875, %v3877
      %v3879 = vrot.slane %v1178, 3
      %v3880 = vsel %vm3867, %v3877, %v3879
      %v3881 = vrot.slane %v1179, 3
      %v3882 = vsel %vm3867, %v3879, %v3881
      %v3883 = vrot.slane %v1180, 3
      %v3884 = vsel %vm3867, %v3881, %v3883
      %v3885 = vrot.slane %v1181, 3
      %v3886 = vsel %vm3867, %v3883, %v3885
      %v3887 = vrot.slane %v1182, 3
      %v3888 = vsel %vm3867, %v3885, %v3887
      %v3889 = vrot.slane %v1183, 3
      %v3890 = vsel %vm3867, %v3887, %v3889
      %v3891 = vrot.slane %v1184, 3
      %v3892 = vsel %vm3867, %v3889, %v3891
      %v3893 = vrot.slane %v1185, 3
      %v3894 = vsel %vm3867, %v3891, %v3893
      %v3895 = vrot.slane %v1186, 3
      %v3896 = vsel %vm3867, %v3893, %v3895
      %v3897 = vrot.slane %v1187, 3
      %v3898 = vsel %vm3867, %v3895, %v3897
      %v3899 = vrot.slane %v1188, 3
      %v3900 = vsel %vm3867, %v3897, %v3899
      %v3901 = vrot.slane %v1189, 3
      %v3902 = vsel %vm3867, %v3899, %v3901
      %v3903 = vrot.slane %v1193, 3
      %v3904 = vsel %vm3867, %v3901, %v3903
      %v3939 = vunpack.c.l.b16 %v3851
      %v3940 = vunpack.c.l.b16 %v3852
      %v3941 = vunpack.c.l.b16 %v3853
      %v3942 = vunpack.c.l.b16 %v3854
      %v3943 = vunpack.c.l.b16 %v3855
      %v3944 = vunpack.c.l.b16 %v3856
      %v3945 = vunpack.c.l.b16 %v3857
      %v3946 = vunpack.c.l.b16 %v3858
      %v3947 = vunpack.c.l.b16 %v3859
      %v3948 = vunpack.c.l.b16 %v3860
      %v3949 = vunpack.c.l.b16 %v3861
      %v3950 = vunpack.c.l.b16 %v3862
      %v3951 = vunpack.c.l.b16 %v3863
      %v3952 = vunpack.c.l.b16 %v3864
      %v3953 = vunpack.c.l.b16 %v3865
      %v3954 = vunpack.c.l.b16 %v3866
      %v3955 = vpack.c.b16 %v3940, %v3939
      %v3956 = vpack.c.b16 %v3942, %v3941
      %v3957 = vpack.c.b16 %v3944, %v3943
      %v3958 = vpack.c.b16 %v3946, %v3945
      %v3959 = vpack.c.b16 %v3948, %v3947
      %v3960 = vpack.c.b16 %v3950, %v3949
      %v3961 = vpack.c.b16 %v3952, %v3951
      %v3962 = vpack.c.b16 %v3954, %v3953
      %3971 = vmatprep.subr.bf16.mxu0 0
      %3972 = vmatpush1.bf16.msra.mxu0 %v3955
      %3973 = vmatprep.subr.bf16.mxu0 0
      %3974 = vmatpush1.bf16.msra.mxu0 %v3956
      %3975 = vmatprep.subr.bf16.mxu0 0
      %3976 = vmatpush1.bf16.msra.mxu0 %v3957
      %3977 = vmatprep.subr.bf16.mxu0 0
      %3978 = vmatpush1.bf16.msra.mxu0 %v3958
      %3979 = vmatprep.subr.bf16.mxu0 0
      %3980 = vmatpush1.bf16.msra.mxu0 %v3959
      %3981 = vmatprep.subr.bf16.mxu0 0
      %3982 = vmatpush1.bf16.msra.mxu0 %v3960
      %3983 = vmatprep.subr.bf16.mxu0 0
      %3984 = vmatpush1.bf16.msra.mxu0 %v3961
      %3985 = vmatprep.subr.bf16.mxu0 0
      %3986 = vmatpush1.bf16.msra.mxu0 %v3962
      %3987 = vmatprep.subr.bf16.mxu0 0
      %3988 = vmatpush1.bf16.msra.mxu0 0
      %3989 = vmatprep.subr.bf16.mxu0 0
      %3990 = vmatpush1.bf16.msra.mxu0 0
      %3991 = vmatprep.subr.bf16.mxu0 0
      %3992 = vmatpush1.bf16.msra.mxu0 0
      %3993 = vmatprep.subr.bf16.mxu0 0
      %3994 = vmatpush1.bf16.msra.mxu0 0
      %3995 = vmatprep.subr.bf16.mxu0 0
      %3996 = vmatpush1.bf16.msra.mxu0 0
      %3997 = vmatprep.subr.bf16.mxu0 0
      %3998 = vmatpush1.bf16.msra.mxu0 0
      %3999 = vmatprep.subr.bf16.mxu0 0
      %4000 = vmatpush1.bf16.msra.mxu0 0
      %4001 = vmatprep.subr.bf16.mxu0 0
      %4002 = vmatpush1.bf16.msra.mxu0 0
      %4003 = vmatprep.mubr.bf16.mxu0 0
      %4004 = vmatmul.mubr.bf16.gmra.mrb[0].mxu0 %v3870
      %v4005 = vpop.f32.mrb[0].mxu0
      %v4006 = vadd.f32 0.0, %v4005
      %v4007 = vpop.f32.mrb[0].mxu0
      %v4008 = vpop.f32.mrb[0].mxu0
      %v4009 = vadd.f32 0.0, %v4008
      %v4010 = vpop.f32.mrb[0].mxu0
      %4011 = vmatprep.mubr.bf16.mxu0 0
      %4012 = vmatmul.mubr.bf16.gmra.mrb[0].mxu0 %v3872
      %v4013 = vpop.f32.mrb[0].mxu0
      %v4014 = vadd.f32 0.0, %v4013
      %v4015 = vpop.f32.mrb[0].mxu0
      %v4016 = vpop.f32.mrb[0].mxu0
      %v4017 = vadd.f32 0.0, %v4016
      %v4018 = vpop.f32.mrb[0].mxu0
      %4019 = vmatprep.mubr.bf16.mxu0 0
      %4020 = vmatmul.mubr.bf16.gmra.mrb[0].mxu0 %v3874
      %v4021 = vpop.f32.mrb[0].mxu0
      %v4022 = vadd.f32 0.0, %v4021
      %v4023 = vpop.f32.mrb[0].mxu0
      %v4024 = vpop.f32.mrb[0].mxu0
      %v4025 = vadd.f32 0.0, %v4024
      %v4026 = vpop.f32.mrb[0].mxu0
      %4027 = vmatprep.mubr.bf16.mxu0 0
      %4028 = vmatmul.mubr.bf16.gmra.mrb[0].mxu0 %v3876
      %v4029 = vpop.f32.mrb[0].mxu0
      %v4030 = vadd.f32 0.0, %v4029
      %v4031 = vpop.f32.mrb[0].mxu0
      %v4032 = vpop.f32.mrb[0].mxu0
      %v4033 = vadd.f32 0.0, %v4032
      %v4034 = vpop.f32.mrb[0].mxu0
      %4035 = vmatprep.mubr.bf16.mxu0 0
      %4036 = vmatmul.mubr.bf16.gmra.mrb[0].mxu0 %v3878
      %v4037 = vpop.f32.mrb[0].mxu0
      %v4038 = vadd.f32 0.0, %v4037
      %v4039 = vpop.f32.mrb[0].mxu0
      %v4040 = vpop.f32.mrb[0].mxu0
      %v4041 = vadd.f32 0.0, %v4040
      %v4042 = vpop.f32.mrb[0].mxu0
      %4043 = vmatprep.mubr.bf16.mxu0 0
      %4044 = vmatmul.mubr.bf16.gmra.mrb[0].mxu0 %v3880
      %v4045 = vpop.f32.mrb[0].mxu0
      %v4046 = vadd.f32 0.0, %v4045
      %v4047 = vpop.f32.mrb[0].mxu0
      %v4048 = vpop.f32.mrb[0].mxu0
      %v4049 = vadd.f32 0.0, %v4048
      %v4050 = vpop.f32.mrb[0].mxu0
      %4051 = vmatprep.mubr.bf16.mxu0 0
      %4052 = vmatmul.mubr.bf16.gmra.mrb[0].mxu0 %v3882
      %v4053 = vpop.f32.mrb[0].mxu0
      %v4054 = vadd.f32 0.0, %v4053
      %v4055 = vpop.f32.mrb[0].mxu0
      %v4056 = vpop.f32.mrb[0].mxu0
      %v4057 = vadd.f32 0.0, %v4056
      %v4058 = vpop.f32.mrb[0].mxu0
      %4059 = vmatprep.mubr.bf16.mxu0 0
      %4060 = vmatmul.mubr.bf16.gmra.mrb[0].mxu0 %v3884
      %v4061 = vpop.f32.mrb[0].mxu0
      %v4062 = vadd.f32 0.0, %v4061
      %v4063 = vpop.f32.mrb[0].mxu0
      %v4064 = vpop.f32.mrb[0].mxu0
      %v4065 = vadd.f32 0.0, %v4064
      %v4066 = vpop.f32.mrb[0].mxu0
      %4067 = vmatprep.mubr.bf16.mxu0 0
      %4068 = vmatmul.mubr.bf16.gmra.mrb[0].mxu0 %v3886
      %v4069 = vpop.f32.mrb[0].mxu0
      %v4070 = vadd.f32 0.0, %v4069
      %v4071 = vpop.f32.mrb[0].mxu0
      %v4072 = vpop.f32.mrb[0].mxu0
      %v4073 = vadd.f32 0.0, %v4072
      %v4074 = vpop.f32.mrb[0].mxu0
      %4075 = vmatprep.mubr.bf16.mxu0 0
      %4076 = vmatmul.mubr.bf16.gmra.mrb[0].mxu0 %v3888
      %v4077 = vpop.f32.mrb[0].mxu0
      %v4078 = vadd.f32 0.0, %v4077
      %v4079 = vpop.f32.mrb[0].mxu0
      %v4080 = vpop.f32.mrb[0].mxu0
      %v4081 = vadd.f32 0.0, %v4080
      %v4082 = vpop.f32.mrb[0].mxu0
      %4083 = vmatprep.mubr.bf16.mxu0 0
      %4084 = vmatmul.mubr.bf16.gmra.mrb[0].mxu0 %v3890
      %v4085 = vpop.f32.mrb[0].mxu0
      %v4086 = vadd.f32 0.0, %v4085
      %v4087 = vpop.f32.mrb[0].mxu0
      %v4088 = vpop.f32.mrb[0].mxu0
      %v4089 = vadd.f32 0.0, %v4088
      %v4090 = vpop.f32.mrb[0].mxu0
      %4091 = vmatprep.mubr.bf16.mxu0 0
      %4092 = vmatmul.mubr.bf16.gmra.mrb[0].mxu0 %v3892
      %v4093 = vpop.f32.mrb[0].mxu0
      %v4094 = vadd.f32 0.0, %v4093
      %v4095 = vpop.f32.mrb[0].mxu0
      %v4096 = vpop.f32.mrb[0].mxu0
      %v4097 = vadd.f32 0.0, %v4096
      %v4098 = vpop.f32.mrb[0].mxu0
      %4099 = vmatprep.mubr.bf16.mxu0 0
      %4100 = vmatmul.mubr.bf16.gmra.mrb[0].mxu0 %v3894
      %v4101 = vpop.f32.mrb[0].mxu0
      %v4102 = vadd.f32 0.0, %v4101
      %v4103 = vpop.f32.mrb[0].mxu0
      %v4104 = vpop.f32.mrb[0].mxu0
      %v4105 = vadd.f32 0.0, %v4104
      %v4106 = vpop.f32.mrb[0].mxu0
      %4107 = vmatprep.mubr.bf16.mxu0 0
      %4108 = vmatmul.mubr.bf16.gmra.mrb[0].mxu0 %v3896
      %v4109 = vpop.f32.mrb[0].mxu0
      %v4110 = vadd.f32 0.0, %v4109
      %v4111 = vpop.f32.mrb[0].mxu0
      %v4112 = vpop.f32.mrb[0].mxu0
      %v4113 = vadd.f32 0.0, %v4112
      %v4114 = vpop.f32.mrb[0].mxu0
      %4115 = vmatprep.mubr.bf16.mxu0 0
      %4116 = vmatmul.mubr.bf16.gmra.mrb[0].mxu0 %v3898
      %v4117 = vpop.f32.mrb[0].mxu0
      %v4118 = vadd.f32 0.0, %v4117
      %v4119 = vpop.f32.mrb[0].mxu0
      %v4120 = vpop.f32.mrb[0].mxu0
      %v4121 = vadd.f32 0.0, %v4120
      %v4122 = vpop.f32.mrb[0].mxu0
      %4123 = vmatprep.mubr.bf16.mxu0 0
      %4124 = vmatmul.mubr.bf16.gmra.mrb[0].mxu0 %v3900
      %v4125 = vpop.f32.mrb[0].mxu0
      %v4126 = vadd.f32 0.0, %v4125
      %v4127 = vpop.f32.mrb[0].mxu0
      %v4128 = vpop.f32.mrb[0].mxu0
      %v4129 = vadd.f32 0.0, %v4128
      %v4130 = vpop.f32.mrb[0].mxu0
      %4131 = vmatprep.mubr.bf16.mxu0 0
      %4132 = vmatmul.mubr.bf16.gmra.mrb[0].mxu0 %v3902
      %v4133 = vpop.f32.mrb[0].mxu0
      %v4134 = vadd.f32 0.0, %v4133
      %v4135 = vpop.f32.mrb[0].mxu0
      %v4136 = vpop.f32.mrb[0].mxu0
      %v4137 = vadd.f32 0.0, %v4136
      %v4138 = vpop.f32.mrb[0].mxu0
      %4139 = vmatprep.mubr.bf16.mxu0 0
      %4140 = vmatmul.mubr.bf16.gmra.mrb[0].mxu0 %v3904
      %v4141 = vpop.f32.mrb[0].mxu0
      %v4142 = vadd.f32 0.0, %v4141
      %v4143 = vpop.f32.mrb[0].mxu0
      %v4144 = vpop.f32.mrb[0].mxu0
      %v4145 = vadd.f32 0.0, %v4144
      %v4146 = vpop.f32.mrb[0].mxu0
      %4147 = vdwg.mxu0
      %v4148 = vadd.f32 %v3814, %v4006
      %v4149 = vadd.f32 %v3815, %v4009
      %v4150 = vadd.f32 %v3816, %v4014
      %v4151 = vadd.f32 %v3817, %v4017
      %v4152 = vadd.f32 %v3818, %v4022
      %v4153 = vadd.f32 %v3819, %v4025
      %v4154 = vadd.f32 %v3820, %v4030
      %v4155 = vadd.f32 %v3821, %v4033
      %v4156 = vadd.f32 %v3822, %v4038
      %v4157 = vadd.f32 %v3823, %v4041
      %v4158 = vadd.f32 %v3824, %v4046
      %v4159 = vadd.f32 %v3825, %v4049
      %v4160 = vadd.f32 %v3826, %v4054
      %v4161 = vadd.f32 %v3827, %v4057
      %v4162 = vadd.f32 %v3828, %v4062
      %v4163 = vadd.f32 %v3829, %v4065
      %v4164 = vadd.f32 %v3830, %v4070
      %v4165 = vadd.f32 %v3831, %v4073
      %v4166 = vadd.f32 %v3832, %v4078
      %v4167 = vadd.f32 %v3833, %v4081
      %v4168 = vadd.f32 %v3834, %v4086
      %v4169 = vadd.f32 %v3835, %v4089
      %v4170 = vadd.f32 %v3836, %v4094
      %v4171 = vadd.f32 %v3837, %v4097
      %v4172 = vadd.f32 %v3838, %v4102
      %v4173 = vadd.f32 %v3839, %v4105
      %v4174 = vadd.f32 %v3840, %v4110
      %v4175 = vadd.f32 %v3841, %v4113
      %v4176 = vadd.f32 %v3842, %v4118
      %v4177 = vadd.f32 %v3843, %v4121
      %v4178 = vadd.f32 %v3844, %v4126
      %v4179 = vadd.f32 %v3845, %v4129
      %v4180 = vadd.f32 %v3846, %v4134
      %v4181 = vadd.f32 %v3847, %v4137
      %v4182 = vadd.f32 %v3848, %v4142
      %v4183 = vadd.f32 %v3849, %v4145
      %v4184 = vld [vmem:[%s6] sm:$0x1]
      %v4186 = vlaneseq
      %v4187 = vshrl.u32 %v4186, 7
      %v4188 = vsub.s32 0, %v4187
      %v4189 = vrot.slane %v4184, %v4188
      %v4191 = vadd.f32 %v4148, %v4189
      %v4192 = vadd.f32 %v4149, %v4189
      %v4193 = vadd.f32 %v4150, %v4189
      %v4194 = vadd.f32 %v4151, %v4189
      %v4195 = vadd.f32 %v4152, %v4189
      %v4196 = vadd.f32 %v4153, %v4189
      %v4197 = vadd.f32 %v4154, %v4189
      %v4198 = vadd.f32 %v4155, %v4189
      %v4199 = vadd.f32 %v4156, %v4189
      %v4200 = vadd.f32 %v4157, %v4189
      %v4201 = vadd.f32 %v4158, %v4189
      %v4202 = vadd.f32 %v4159, %v4189
      %v4203 = vadd.f32 %v4160, %v4189
      %v4204 = vadd.f32 %v4161, %v4189
      %v4205 = vadd.f32 %v4162, %v4189
      %v4206 = vadd.f32 %v4163, %v4189
      %v4207 = vadd.f32 %v4164, %v4189
      %v4208 = vadd.f32 %v4165, %v4189
      %v4209 = vadd.f32 %v4166, %v4189
      %v4210 = vadd.f32 %v4167, %v4189
      %v4211 = vadd.f32 %v4168, %v4189
      %v4212 = vadd.f32 %v4169, %v4189
      %v4213 = vadd.f32 %v4170, %v4189
      %v4214 = vadd.f32 %v4171, %v4189
      %v4215 = vadd.f32 %v4172, %v4189
      %v4216 = vadd.f32 %v4173, %v4189
      %v4217 = vadd.f32 %v4174, %v4189
      %v4218 = vadd.f32 %v4175, %v4189
      %v4219 = vadd.f32 %v4176, %v4189
      %v4220 = vadd.f32 %v4177, %v4189
      %v4221 = vadd.f32 %v4178, %v4189
      %v4222 = vadd.f32 %v4179, %v4189
      %v4223 = vadd.f32 %v4180, %v4189
      %v4224 = vadd.f32 %v4181, %v4189
      %v4225 = vadd.f32 %v4182, %v4189
      %v4226 = vadd.f32 %v4183, %v4189
      %v4227 = vmul.f32 %v4191, 3.3333333
      %v4228 = vmul.f32 %v4192, 3.3333333
      %v4229 = vmul.f32 %v4193, 3.3333333
      %v4230 = vmul.f32 %v4194, 3.3333333
      %v4231 = vmul.f32 %v4195, 3.3333333
      %v4232 = vmul.f32 %v4196, 3.3333333
      %v4233 = vmul.f32 %v4197, 3.3333333
      %v4234 = vmul.f32 %v4198, 3.3333333
      %v4235 = vmul.f32 %v4199, 3.3333333
      %v4236 = vmul.f32 %v4200, 3.3333333
      %v4237 = vmul.f32 %v4201, 3.3333333
      %v4238 = vmul.f32 %v4202, 3.3333333
      %v4239 = vmul.f32 %v4203, 3.3333333
      %v4240 = vmul.f32 %v4204, 3.3333333
      %v4241 = vmul.f32 %v4205, 3.3333333
      %v4242 = vmul.f32 %v4206, 3.3333333
      %v4243 = vmul.f32 %v4207, 3.3333333
      %v4244 = vmul.f32 %v4208, 3.3333333
      %v4245 = vmul.f32 %v4209, 3.3333333
      %v4246 = vmul.f32 %v4210, 3.3333333
      %v4247 = vmul.f32 %v4211, 3.3333333
      %v4248 = vmul.f32 %v4212, 3.3333333
      %v4249 = vmul.f32 %v4213, 3.3333333
      %v4250 = vmul.f32 %v4214, 3.3333333
      %v4251 = vmul.f32 %v4215, 3.3333333
      %v4252 = vmul.f32 %v4216, 3.3333333
      %v4253 = vmul.f32 %v4217, 3.3333333
      %v4254 = vmul.f32 %v4218, 3.3333333
      %v4255 = vmul.f32 %v4219, 3.3333333
      %v4256 = vmul.f32 %v4220, 3.3333333
      %v4257 = vmul.f32 %v4221, 3.3333333
      %v4258 = vmul.f32 %v4222, 3.3333333
      %v4259 = vmul.f32 %v4223, 3.3333333
      %v4260 = vmul.f32 %v4224, 3.3333333
      %v4261 = vmul.f32 %v4225, 3.3333333
      %v4262 = vmul.f32 %v4226, 3.3333333
      %v4263 = vsub.f32 1.0, %v4191
      %v4264 = vsub.f32 1.0, %v4192
      %v4265 = vsub.f32 1.0, %v4193
      %v4266 = vsub.f32 1.0, %v4194
      %v4267 = vsub.f32 1.0, %v4195
      %v4268 = vsub.f32 1.0, %v4196
      %v4269 = vsub.f32 1.0, %v4197
      %v4270 = vsub.f32 1.0, %v4198
      %v4271 = vsub.f32 1.0, %v4199
      %v4272 = vsub.f32 1.0, %v4200
      %v4273 = vsub.f32 1.0, %v4201
      %v4274 = vsub.f32 1.0, %v4202
      %v4275 = vsub.f32 1.0, %v4203
      %v4276 = vsub.f32 1.0, %v4204
      %v4277 = vsub.f32 1.0, %v4205
      %v4278 = vsub.f32 1.0, %v4206
      %v4279 = vsub.f32 1.0, %v4207
      %v4280 = vsub.f32 1.0, %v4208
      %v4281 = vsub.f32 1.0, %v4209
      %v4282 = vsub.f32 1.0, %v4210
      %v4283 = vsub.f32 1.0, %v4211
      %v4284 = vsub.f32 1.0, %v4212
      %v4285 = vsub.f32 1.0, %v4213
      %v4286 = vsub.f32 1.0, %v4214
      %v4287 = vsub.f32 1.0, %v4215
      %v4288 = vsub.f32 1.0, %v4216
      %v4289 = vsub.f32 1.0, %v4217
      %v4290 = vsub.f32 1.0, %v4218
      %v4291 = vsub.f32 1.0, %v4219
      %v4292 = vsub.f32 1.0, %v4220
      %v4293 = vsub.f32 1.0, %v4221
      %v4294 = vsub.f32 1.0, %v4222
      %v4295 = vsub.f32 1.0, %v4223
      %v4296 = vsub.f32 1.0, %v4224
      %v4297 = vsub.f32 1.0, %v4225
      %v4298 = vsub.f32 1.0, %v4226
      %v4299 = vmul.f32 %v4263, 3.3333333
      %v4300 = vmul.f32 %v4264, 3.3333333
      %v4301 = vmul.f32 %v4265, 3.3333333
      %v4302 = vmul.f32 %v4266, 3.3333333
      %v4303 = vmul.f32 %v4267, 3.3333333
      %v4304 = vmul.f32 %v4268, 3.3333333
      %v4305 = vmul.f32 %v4269, 3.3333333
      %v4306 = vmul.f32 %v4270, 3.3333333
      %v4307 = vmul.f32 %v4271, 3.3333333
      %v4308 = vmul.f32 %v4272, 3.3333333
      %v4309 = vmul.f32 %v4273, 3.3333333
      %v4310 = vmul.f32 %v4274, 3.3333333
      %v4311 = vmul.f32 %v4275, 3.3333333
      %v4312 = vmul.f32 %v4276, 3.3333333
      %v4313 = vmul.f32 %v4277, 3.3333333
      %v4314 = vmul.f32 %v4278, 3.3333333
      %v4315 = vmul.f32 %v4279, 3.3333333
      %v4316 = vmul.f32 %v4280, 3.3333333
      %v4317 = vmul.f32 %v4281, 3.3333333
      %v4318 = vmul.f32 %v4282, 3.3333333
      %v4319 = vmul.f32 %v4283, 3.3333333
      %v4320 = vmul.f32 %v4284, 3.3333333
      %v4321 = vmul.f32 %v4285, 3.3333333
      %v4322 = vmul.f32 %v4286, 3.3333333
      %v4323 = vmul.f32 %v4287, 3.3333333
      %v4324 = vmul.f32 %v4288, 3.3333333
      %v4325 = vmul.f32 %v4289, 3.3333333
      %v4326 = vmul.f32 %v4290, 3.3333333
      %v4327 = vmul.f32 %v4291, 3.3333333
      %v4328 = vmul.f32 %v4292, 3.3333333
      %v4329 = vmul.f32 %v4293, 3.3333333
      %v4330 = vmul.f32 %v4294, 3.3333333
      %v4331 = vmul.f32 %v4295, 3.3333333
      %v4332 = vmul.f32 %v4296, 3.3333333
      %v4333 = vmul.f32 %v4297, 3.3333333
      %v4334 = vmul.f32 %v4298, 3.3333333
      %v4335 = vmin.f32 %v4227, %v4299
      %v4336 = vmin.f32 %v4228, %v4300
      %v4337 = vmin.f32 %v4229, %v4301
      %v4338 = vmin.f32 %v4230, %v4302
      %v4339 = vmin.f32 %v4231, %v4303
      %v4340 = vmin.f32 %v4232, %v4304
      %v4341 = vmin.f32 %v4233, %v4305
      %v4342 = vmin.f32 %v4234, %v4306
      %v4343 = vmin.f32 %v4235, %v4307
      %v4344 = vmin.f32 %v4236, %v4308
      %v4345 = vmin.f32 %v4237, %v4309
      %v4346 = vmin.f32 %v4238, %v4310
      %v4347 = vmin.f32 %v4239, %v4311
      %v4348 = vmin.f32 %v4240, %v4312
      %v4349 = vmin.f32 %v4241, %v4313
      %v4350 = vmin.f32 %v4242, %v4314
      %v4351 = vmin.f32 %v4243, %v4315
      %v4352 = vmin.f32 %v4244, %v4316
      %v4353 = vmin.f32 %v4245, %v4317
      %v4354 = vmin.f32 %v4246, %v4318
      %v4355 = vmin.f32 %v4247, %v4319
      %v4356 = vmin.f32 %v4248, %v4320
      %v4357 = vmin.f32 %v4249, %v4321
      %v4358 = vmin.f32 %v4250, %v4322
      %v4359 = vmin.f32 %v4251, %v4323
      %v4360 = vmin.f32 %v4252, %v4324
      %v4361 = vmin.f32 %v4253, %v4325
      %v4362 = vmin.f32 %v4254, %v4326
      %v4363 = vmin.f32 %v4255, %v4327
      %v4364 = vmin.f32 %v4256, %v4328
      %v4365 = vmin.f32 %v4257, %v4329
      %v4366 = vmin.f32 %v4258, %v4330
      %v4367 = vmin.f32 %v4259, %v4331
      %v4368 = vmin.f32 %v4260, %v4332
      %v4369 = vmin.f32 %v4261, %v4333
      %v4370 = vmin.f32 %v4262, %v4334
      %v4371 = vmax.f32 %v4335, 0.0
      %v4372 = vmax.f32 %v4336, 0.0
      %v4373 = vmax.f32 %v4337, 0.0
      %v4374 = vmax.f32 %v4338, 0.0
      %v4375 = vmax.f32 %v4339, 0.0
      %v4376 = vmax.f32 %v4340, 0.0
      %v4377 = vmax.f32 %v4341, 0.0
      %v4378 = vmax.f32 %v4342, 0.0
      %v4379 = vmax.f32 %v4343, 0.0
      %v4380 = vmax.f32 %v4344, 0.0
      %v4381 = vmax.f32 %v4345, 0.0
      %v4382 = vmax.f32 %v4346, 0.0
      %v4383 = vmax.f32 %v4347, 0.0
      %v4384 = vmax.f32 %v4348, 0.0
      %v4385 = vmax.f32 %v4349, 0.0
      %v4386 = vmax.f32 %v4350, 0.0
      %v4387 = vmax.f32 %v4351, 0.0
      %v4388 = vmax.f32 %v4352, 0.0
      %v4389 = vmax.f32 %v4353, 0.0
      %v4390 = vmax.f32 %v4354, 0.0
      %v4391 = vmax.f32 %v4355, 0.0
      %v4392 = vmax.f32 %v4356, 0.0
      %v4393 = vmax.f32 %v4357, 0.0
      %v4394 = vmax.f32 %v4358, 0.0
      %v4395 = vmax.f32 %v4359, 0.0
      %v4396 = vmax.f32 %v4360, 0.0
      %v4397 = vmax.f32 %v4361, 0.0
      %v4398 = vmax.f32 %v4362, 0.0
      %v4399 = vmax.f32 %v4363, 0.0
      %v4400 = vmax.f32 %v4364, 0.0
      %v4401 = vmax.f32 %v4365, 0.0
      %v4402 = vmax.f32 %v4366, 0.0
      %v4403 = vmax.f32 %v4367, 0.0
      %v4404 = vmax.f32 %v4368, 0.0
      %v4405 = vmax.f32 %v4369, 0.0
      %v4406 = vmax.f32 %v4370, 0.0
      %4407 = vst [vmem:[%s519] sm:$0xff] %v4371
      %4408 = vst [vmem:[%s519 + $0x8] sm:$0xff] %v4372
      %4409 = vst [vmem:[%s519 + $0x10] sm:$0xff] %v4373
      %4410 = vst [vmem:[%s519 + $0x18] sm:$0xff] %v4374
      %4411 = vst [vmem:[%s519 + $0x20] sm:$0xff] %v4375
      %4412 = vst [vmem:[%s519 + $0x28] sm:$0xff] %v4376
      %4413 = vst [vmem:[%s519 + $0x30] sm:$0xff] %v4377
      %4414 = vst [vmem:[%s519 + $0x38] sm:$0xff] %v4378
      %4415 = vst [vmem:[%s519 + $0x40] sm:$0xff] %v4379
      %4416 = vst [vmem:[%s519 + $0x48] sm:$0xff] %v4380
      %4417 = vst [vmem:[%s519 + $0x50] sm:$0xff] %v4381
      %4418 = vst [vmem:[%s519 + $0x58] sm:$0xff] %v4382
      %4419 = vst [vmem:[%s519 + $0x60] sm:$0xff] %v4383
      %4420 = vst [vmem:[%s519 + $0x68] sm:$0xff] %v4384
      %4421 = vst [vmem:[%s519 + $0x70] sm:$0xff] %v4385
      %4422 = vst [vmem:[%s519 + $0x78] sm:$0xff] %v4386
      %4423 = vst [vmem:[%s519 + $0x80] sm:$0xff] %v4387
      %4424 = vst [vmem:[%s519 + $0x88] sm:$0xff] %v4388
      %4425 = vst [vmem:[%s519 + $0x90] sm:$0xff] %v4389
      %4426 = vst [vmem:[%s519 + $0x98] sm:$0xff] %v4390
      %4427 = vst [vmem:[%s519 + $0xa0] sm:$0xff] %v4391
      %4428 = vst [vmem:[%s519 + $0xa8] sm:$0xff] %v4392
      %4429 = vst [vmem:[%s519 + $0xb0] sm:$0xff] %v4393
      %4430 = vst [vmem:[%s519 + $0xb8] sm:$0xff] %v4394
      %4431 = vst [vmem:[%s519 + $0xc0] sm:$0xff] %v4395
      %4432 = vst [vmem:[%s519 + $0xc8] sm:$0xff] %v4396
      %4433 = vst [vmem:[%s519 + $0xd0] sm:$0xff] %v4397
      %4434 = vst [vmem:[%s519 + $0xd8] sm:$0xff] %v4398
      %4435 = vst [vmem:[%s519 + $0xe0] sm:$0xff] %v4399
      %4436 = vst [vmem:[%s519 + $0xe8] sm:$0xff] %v4400
      %4437 = vst [vmem:[%s519 + $0xf0] sm:$0xff] %v4401
      %4438 = vst [vmem:[%s519 + $0xf8] sm:$0xff] %v4402
      %4439 = vst [vmem:[%s519 + $0x100] sm:$0xff] %v4403
      %4440 = vst [vmem:[%s519 + $0x108] sm:$0xff] %v4404
      %4441 = vst [vmem:[%s519 + $0x110] sm:$0xff] %v4405
      %4442 = vst [vmem:[%s519 + $0x118] sm:$0xff] %v4406
      %v4443 = vld [vmem:[%s8] sm:$0xff]
      %v4444 = vld [vmem:[%s8 + $0x8] sm:$0xff]
      %v4445 = vld [vmem:[%s8 + $0x10] sm:$0xff]
      %v4446 = vld [vmem:[%s8 + $0x18] sm:$0xff]
      %v4447 = vld [vmem:[%s8 + $0x20] sm:$0xff]
      %v4448 = vld [vmem:[%s8 + $0x28] sm:$0xff]
      %v4449 = vld [vmem:[%s8 + $0x30] sm:$0xff]
      %v4450 = vld [vmem:[%s8 + $0x38] sm:$0xff]
      %v4451 = vld [vmem:[%s8 + $0x40] sm:$0xff]
      %v4452 = vld [vmem:[%s8 + $0x48] sm:$0xff]
      %v4453 = vld [vmem:[%s8 + $0x50] sm:$0xff]
      %v4454 = vld [vmem:[%s8 + $0x58] sm:$0xff]
      %v4455 = vld [vmem:[%s8 + $0x60] sm:$0xff]
      %v4456 = vld [vmem:[%s8 + $0x68] sm:$0xff]
      %v4457 = vld [vmem:[%s8 + $0x70] sm:$0xff]
      %v4458 = vld [vmem:[%s8 + $0x78] sm:$0xff]
      %v4459 = vld [vmem:[%s8 + $0x80] sm:$0xff]
      %v4460 = vld [vmem:[%s8 + $0x88] sm:$0xff]
      %v4461 = vld [vmem:[%s8 + $0x90] sm:$0xff]
      %v4462 = vld [vmem:[%s8 + $0x98] sm:$0xff]
      %v4463 = vld [vmem:[%s8 + $0xa0] sm:$0xff]
      %v4464 = vld [vmem:[%s8 + $0xa8] sm:$0xff]
      %v4465 = vld [vmem:[%s8 + $0xb0] sm:$0xff]
      %v4466 = vld [vmem:[%s8 + $0xb8] sm:$0xff]
      %v4467 = vld [vmem:[%s8 + $0xc0] sm:$0xff]
      %v4468 = vld [vmem:[%s8 + $0xc8] sm:$0xff]
      %v4469 = vld [vmem:[%s8 + $0xd0] sm:$0xff]
      %v4470 = vld [vmem:[%s8 + $0xd8] sm:$0xff]
      %v4471 = vld [vmem:[%s8 + $0xe0] sm:$0xff]
      %v4472 = vld [vmem:[%s8 + $0xe8] sm:$0xff]
      %v4473 = vld [vmem:[%s8 + $0xf0] sm:$0xff]
      %v4474 = vld [vmem:[%s8 + $0xf8] sm:$0xff]
      %v4475 = vld [vmem:[%s8 + $0x100] sm:$0xff]
      %v4476 = vld [vmem:[%s8 + $0x108] sm:$0xff]
      %v4477 = vld [vmem:[%s8 + $0x110] sm:$0xff]
      %v4478 = vld [vmem:[%s8 + $0x118] sm:$0xff]
      %4480 = vset.pattern.permute.xlu0 0
      %4481 = vperm.xlu0 %4480, %v4443
      %v4482 = vpop.permute.xlu0 %4481
      %4485 = vset.pattern.permute.xlu0 0
      %4486 = vperm.xlu0 %4485, %v4444
      %v4487 = vpop.permute.xlu0 %4486
      %4490 = vset.pattern.permute.xlu0 0
      %4491 = vperm.xlu0 %4490, %v4445
      %v4492 = vpop.permute.xlu0 %4491
      %4495 = vset.pattern.permute.xlu0 0
      %4496 = vperm.xlu0 %4495, %v4446
      %v4497 = vpop.permute.xlu0 %4496
      %4500 = vset.pattern.permute.xlu0 0
      %4501 = vperm.xlu0 %4500, %v4447
      %v4502 = vpop.permute.xlu0 %4501
      %4505 = vset.pattern.permute.xlu0 0
      %4506 = vperm.xlu0 %4505, %v4448
      %v4507 = vpop.permute.xlu0 %4506
      %4510 = vset.pattern.permute.xlu0 0
      %4511 = vperm.xlu0 %4510, %v4449
      %v4512 = vpop.permute.xlu0 %4511
      %4515 = vset.pattern.permute.xlu0 0
      %4516 = vperm.xlu0 %4515, %v4450
      %v4517 = vpop.permute.xlu0 %4516
      %4520 = vset.pattern.permute.xlu0 0
      %4521 = vperm.xlu0 %4520, %v4451
      %v4522 = vpop.permute.xlu0 %4521
      %4525 = vset.pattern.permute.xlu0 0
      %4526 = vperm.xlu0 %4525, %v4452
      %v4527 = vpop.permute.xlu0 %4526
      %4530 = vset.pattern.permute.xlu0 0
      %4531 = vperm.xlu0 %4530, %v4453
      %v4532 = vpop.permute.xlu0 %4531
      %4535 = vset.pattern.permute.xlu0 0
      %4536 = vperm.xlu0 %4535, %v4454
      %v4537 = vpop.permute.xlu0 %4536
      %4540 = vset.pattern.permute.xlu0 0
      %4541 = vperm.xlu0 %4540, %v4455
      %v4542 = vpop.permute.xlu0 %4541
      %4545 = vset.pattern.permute.xlu0 0
      %4546 = vperm.xlu0 %4545, %v4456
      %v4547 = vpop.permute.xlu0 %4546
      %4550 = vset.pattern.permute.xlu0 0
      %4551 = vperm.xlu0 %4550, %v4457
      %v4552 = vpop.permute.xlu0 %4551
      %4555 = vset.pattern.permute.xlu0 0
      %4556 = vperm.xlu0 %4555, %v4458
      %v4557 = vpop.permute.xlu0 %4556
      %4560 = vset.pattern.permute.xlu0 0
      %4561 = vperm.xlu0 %4560, %v4459
      %v4562 = vpop.permute.xlu0 %4561
      %4565 = vset.pattern.permute.xlu0 0
      %4566 = vperm.xlu0 %4565, %v4460
      %v4567 = vpop.permute.xlu0 %4566
      %4570 = vset.pattern.permute.xlu0 0
      %4571 = vperm.xlu0 %4570, %v4461
      %v4572 = vpop.permute.xlu0 %4571
      %4575 = vset.pattern.permute.xlu0 0
      %4576 = vperm.xlu0 %4575, %v4462
      %v4577 = vpop.permute.xlu0 %4576
      %4580 = vset.pattern.permute.xlu0 0
      %4581 = vperm.xlu0 %4580, %v4463
      %v4582 = vpop.permute.xlu0 %4581
      %4585 = vset.pattern.permute.xlu0 0
      %4586 = vperm.xlu0 %4585, %v4464
      %v4587 = vpop.permute.xlu0 %4586
      %4590 = vset.pattern.permute.xlu0 0
      %4591 = vperm.xlu0 %4590, %v4465
      %v4592 = vpop.permute.xlu0 %4591
      %4595 = vset.pattern.permute.xlu0 0
      %4596 = vperm.xlu0 %4595, %v4466
      %v4597 = vpop.permute.xlu0 %4596
      %4600 = vset.pattern.permute.xlu0 0
      %4601 = vperm.xlu0 %4600, %v4467
      %v4602 = vpop.permute.xlu0 %4601
      %4605 = vset.pattern.permute.xlu0 0
      %4606 = vperm.xlu0 %4605, %v4468
      %v4607 = vpop.permute.xlu0 %4606
      %4610 = vset.pattern.permute.xlu0 0
      %4611 = vperm.xlu0 %4610, %v4469
      %v4612 = vpop.permute.xlu0 %4611
      %4615 = vset.pattern.permute.xlu0 0
      %4616 = vperm.xlu0 %4615, %v4470
      %v4617 = vpop.permute.xlu0 %4616
      %4620 = vset.pattern.permute.xlu0 0
      %4621 = vperm.xlu0 %4620, %v4471
      %v4622 = vpop.permute.xlu0 %4621
      %4625 = vset.pattern.permute.xlu0 0
      %4626 = vperm.xlu0 %4625, %v4472
      %v4627 = vpop.permute.xlu0 %4626
      %4630 = vset.pattern.permute.xlu0 0
      %4631 = vperm.xlu0 %4630, %v4473
      %v4632 = vpop.permute.xlu0 %4631
      %4635 = vset.pattern.permute.xlu0 0
      %4636 = vperm.xlu0 %4635, %v4474
      %v4637 = vpop.permute.xlu0 %4636
      %4640 = vset.pattern.permute.xlu0 0
      %4641 = vperm.xlu0 %4640, %v4475
      %v4642 = vpop.permute.xlu0 %4641
      %4645 = vset.pattern.permute.xlu0 0
      %4646 = vperm.xlu0 %4645, %v4476
      %v4647 = vpop.permute.xlu0 %4646
      %4650 = vset.pattern.permute.xlu0 0
      %4651 = vperm.xlu0 %4650, %v4477
      %v4652 = vpop.permute.xlu0 %4651
      %4655 = vset.pattern.permute.xlu0 0
      %4656 = vperm.xlu0 %4655, %v4478
      %v4657 = vpop.permute.xlu0 %4656
      %v4659 = vmul.f32 %v4371, %v4482
      %v4660 = vmul.f32 %v4372, %v4487
      %v4661 = vmul.f32 %v4373, %v4492
      %v4662 = vmul.f32 %v4374, %v4497
      %v4663 = vmul.f32 %v4375, %v4502
      %v4664 = vmul.f32 %v4376, %v4507
      %v4665 = vmul.f32 %v4377, %v4512
      %v4666 = vmul.f32 %v4378, %v4517
      %v4667 = vmul.f32 %v4379, %v4522
      %v4668 = vmul.f32 %v4380, %v4527
      %v4669 = vmul.f32 %v4381, %v4532
      %v4670 = vmul.f32 %v4382, %v4537
      %v4671 = vmul.f32 %v4383, %v4542
      %v4672 = vmul.f32 %v4384, %v4547
      %v4673 = vmul.f32 %v4385, %v4552
      %v4674 = vmul.f32 %v4386, %v4557
      %v4675 = vmul.f32 %v4387, %v4562
      %v4676 = vmul.f32 %v4388, %v4567
      %v4677 = vmul.f32 %v4389, %v4572
      %v4678 = vmul.f32 %v4390, %v4577
      %v4679 = vmul.f32 %v4391, %v4582
      %v4680 = vmul.f32 %v4392, %v4587
      %v4681 = vmul.f32 %v4393, %v4592
      %v4682 = vmul.f32 %v4394, %v4597
      %v4683 = vmul.f32 %v4395, %v4602
      %v4684 = vmul.f32 %v4396, %v4607
      %v4685 = vmul.f32 %v4397, %v4612
      %v4686 = vmul.f32 %v4398, %v4617
      %v4687 = vmul.f32 %v4399, %v4622
      %v4688 = vmul.f32 %v4400, %v4627
      %v4689 = vmul.f32 %v4401, %v4632
      %v4690 = vmul.f32 %v4402, %v4637
      %v4691 = vmul.f32 %v4403, %v4642
      %v4692 = vmul.f32 %v4404, %v4647
      %v4693 = vmul.f32 %v4405, %v4652
      %v4694 = vmul.f32 %v4406, %v4657
      %v4695 = vadd.f32 %v4659, %v4660
      %v4696 = vadd.f32 %v4695, %v4661
      %v4697 = vadd.f32 %v4696, %v4662
      %v4698 = vadd.f32 %v4697, %v4663
      %v4699 = vadd.f32 %v4698, %v4664
      %v4700 = vadd.f32 %v4699, %v4665
      %v4701 = vadd.f32 %v4700, %v4666
      %v4702 = vadd.f32 %v4701, %v4667
      %v4703 = vadd.f32 %v4702, %v4668
      %v4704 = vadd.f32 %v4703, %v4669
      %v4705 = vadd.f32 %v4704, %v4670
      %v4706 = vadd.f32 %v4705, %v4671
      %v4707 = vadd.f32 %v4706, %v4672
      %v4708 = vadd.f32 %v4707, %v4673
      %v4709 = vadd.f32 %v4708, %v4674
      %v4710 = vadd.f32 %v4709, %v4675
      %v4711 = vadd.f32 %v4710, %v4676
      %v4712 = vadd.f32 %v4711, %v4677
      %v4713 = vadd.f32 %v4712, %v4678
      %v4714 = vadd.f32 %v4713, %v4679
      %v4715 = vadd.f32 %v4714, %v4680
      %v4716 = vadd.f32 %v4715, %v4681
      %v4717 = vadd.f32 %v4716, %v4682
      %v4718 = vadd.f32 %v4717, %v4683
      %v4719 = vadd.f32 %v4718, %v4684
      %v4720 = vadd.f32 %v4719, %v4685
      %v4721 = vadd.f32 %v4720, %v4686
      %v4722 = vadd.f32 %v4721, %v4687
      %v4723 = vadd.f32 %v4722, %v4688
      %v4724 = vadd.f32 %v4723, %v4689
      %v4725 = vadd.f32 %v4724, %v4690
      %v4726 = vadd.f32 %v4725, %v4691
      %v4727 = vadd.f32 %v4726, %v4692
      %v4728 = vadd.f32 %v4727, %v4693
      %v4729 = vadd.f32 %v4728, %v4694
      %v4730 = vrot.slane %v4729, 4
      %v4731 = vadd.f32 %v4729, %v4730
      %v4732 = vrot.slane %v4731, 2
      %v4733 = vadd.f32 %v4731, %v4732
      %v4734 = vrot.slane %v4733, 1
      %v4735 = vadd.f32 %v4733, %v4734
      %v4736 = vmul.f32 %v4659, %v4371
      %v4737 = vmul.f32 %v4660, %v4372
      %v4738 = vmul.f32 %v4661, %v4373
      %v4739 = vmul.f32 %v4662, %v4374
      %v4740 = vmul.f32 %v4663, %v4375
      %v4741 = vmul.f32 %v4664, %v4376
      %v4742 = vmul.f32 %v4665, %v4377
      %v4743 = vmul.f32 %v4666, %v4378
      %v4744 = vmul.f32 %v4667, %v4379
      %v4745 = vmul.f32 %v4668, %v4380
      %v4746 = vmul.f32 %v4669, %v4381
      %v4747 = vmul.f32 %v4670, %v4382
      %v4748 = vmul.f32 %v4671, %v4383
      %v4749 = vmul.f32 %v4672, %v4384
      %v4750 = vmul.f32 %v4673, %v4385
      %v4751 = vmul.f32 %v4674, %v4386
      %v4752 = vmul.f32 %v4675, %v4387
      %v4753 = vmul.f32 %v4676, %v4388
      %v4754 = vmul.f32 %v4677, %v4389
      %v4755 = vmul.f32 %v4678, %v4390
      %v4756 = vmul.f32 %v4679, %v4391
      %v4757 = vmul.f32 %v4680, %v4392
      %v4758 = vmul.f32 %v4681, %v4393
      %v4759 = vmul.f32 %v4682, %v4394
      %v4760 = vmul.f32 %v4683, %v4395
      %v4761 = vmul.f32 %v4684, %v4396
      %v4762 = vmul.f32 %v4685, %v4397
      %v4763 = vmul.f32 %v4686, %v4398
      %v4764 = vmul.f32 %v4687, %v4399
      %v4765 = vmul.f32 %v4688, %v4400
      %v4766 = vmul.f32 %v4689, %v4401
      %v4767 = vmul.f32 %v4690, %v4402
      %v4768 = vmul.f32 %v4691, %v4403
      %v4769 = vmul.f32 %v4692, %v4404
      %v4770 = vmul.f32 %v4693, %v4405
      %v4771 = vmul.f32 %v4694, %v4406
      %v4772 = vadd.f32 %v4736, %v4737
      %v4773 = vadd.f32 %v4772, %v4738
      %v4774 = vadd.f32 %v4773, %v4739
      %v4775 = vadd.f32 %v4774, %v4740
      %v4776 = vadd.f32 %v4775, %v4741
      %v4777 = vadd.f32 %v4776, %v4742
      %v4778 = vadd.f32 %v4777, %v4743
      %v4779 = vadd.f32 %v4778, %v4744
      %v4780 = vadd.f32 %v4779, %v4745
      %v4781 = vadd.f32 %v4780, %v4746
      %v4782 = vadd.f32 %v4781, %v4747
      %v4783 = vadd.f32 %v4782, %v4748
      %v4784 = vadd.f32 %v4783, %v4749
      %v4785 = vadd.f32 %v4784, %v4750
      %v4786 = vadd.f32 %v4785, %v4751
      %v4787 = vadd.f32 %v4786, %v4752
      %v4788 = vadd.f32 %v4787, %v4753
      %v4789 = vadd.f32 %v4788, %v4754
      %v4790 = vadd.f32 %v4789, %v4755
      %v4791 = vadd.f32 %v4790, %v4756
      %v4792 = vadd.f32 %v4791, %v4757
      %v4793 = vadd.f32 %v4792, %v4758
      %v4794 = vadd.f32 %v4793, %v4759
      %v4795 = vadd.f32 %v4794, %v4760
      %v4796 = vadd.f32 %v4795, %v4761
      %v4797 = vadd.f32 %v4796, %v4762
      %v4798 = vadd.f32 %v4797, %v4763
      %v4799 = vadd.f32 %v4798, %v4764
      %v4800 = vadd.f32 %v4799, %v4765
      %v4801 = vadd.f32 %v4800, %v4766
      %v4802 = vadd.f32 %v4801, %v4767
      %v4803 = vadd.f32 %v4802, %v4768
      %v4804 = vadd.f32 %v4803, %v4769
      %v4805 = vadd.f32 %v4804, %v4770
      %v4806 = vadd.f32 %v4805, %v4771
      %v4807 = vrot.slane %v4806, 4
      %v4808 = vadd.f32 %v4806, %v4807
      %v4809 = vrot.slane %v4808, 2
      %v4810 = vadd.f32 %v4808, %v4809
      %v4811 = vrot.slane %v4810, 1
      %v4812 = vadd.f32 %v4810, %v4811
      %vm4813 = vcmask 1040384
      %v4814 = vsel %vm4813, %v4735, %v4812
      %4815 = vst [vmem:[%s527] sm:$0x3] %v4814
      %s4816 = smul.u32 36, %s27
      %p4817 = scmp.lt.s32.totalorder %s26, 1
      %s4818 = scalar_select %p4817, %s26, 1
      %p4819 = scmp.lt.s32.totalorder %s4816, 35
      %s4820 = scalar_select %p4819, %s4816, 35
      %s4821 = smul.addr %s4818, 36
      %s4822 = sadd.s32 %s4820, %s4821
      %s4823 = smul.addr %s4822, 8
      %s4824 = scalar_lea.vmem %s9, %s4823
      %p4825 = scmp.lt.s32.totalorder %s26, 1
      %s4826 = scalar_select %p4825, %s26, 1
      %p4827 = scmp.lt.s32.totalorder %s27, 0
      %s4828 = scalar_select %p4827, %s27, 0
      %s4829 = sadd.s32 %s4828, %s4826
      %s4830 = smul.addr %s4829, 2
      %s4831 = scalar_lea.vmem %s10, %s4830
      // Predicated region
      $region57: #{double_conv_forward.4} parent=55 // pred_check
        %p4832 = pneg %p276
      $region58: #{double_conv_forward.4} parent=55 // pred_check_branch
        %4834 = sbr.rel (%p4832) target = $region60
      $region59: #{double_conv_forward.4} parent=55 // pred_region
        %s4835 = smul.u32 36, %s27
      $region60: #{double_conv_forward.4} parent=55 // pred_fallthru
        _
      // Predicated region
      $region61: #{double_conv_forward.4} parent=55 // pred_check
        %p4836 = pneg %p304
      $region62: #{double_conv_forward.4} parent=55 // pred_check_branch
        %4838 = sbr.rel (%p4836) target = $region64
      $region63: #{double_conv_forward.4} parent=55 // pred_region
        _
      $region64: #{double_conv_forward.4} parent=55 // pred_fallthru
        _
    $region56: #{double_conv_forward.4} parent=5 // pred_fallthru
      _
    %p4839 = scmp.le.s32.totalorder 2, %s17
    // Predicated region
    $region65: #{double_conv_forward.4} parent=5 // pred_check
      %p4840 = pneg %p4839
    $region66: #{double_conv_forward.4} parent=5 // pred_check_branch
      %4842 = sbr.rel (%p4840) target = $region68
    $region67: #{double_conv_forward.4} parent=5 // pred_region
      %s4843 = ssub.s32 %s17, 2
      // Predicated region
      $region69: #{double_conv_forward.4} parent=67 // pred_check
        %p4844 = pneg %p282
      $region70: #{double_conv_forward.4} parent=67 // pred_check_branch
        %4846 = sbr.rel (%p4844) target = $region72
      $region71: #{double_conv_forward.4} parent=67 // pred_region
        %s4847 = smul.u32 36, %s29
        %p4848 = scmp.lt.s32.totalorder %s28, 1
        %s4849 = scalar_select %p4848, %s28, 1
        %p4850 = scmp.lt.s32.totalorder %s4847, 35
        %s4851 = scalar_select %p4850, %s4847, 35
        %s4852 = smul.addr %s4849, 36
        %s4853 = sadd.s32 %s4851, %s4852
        %s4854 = smul.addr %s4853, 8
        %s4855 = scalar_lea.vmem %s9, %s4854
      $region72: #{double_conv_forward.4} parent=67 // pred_fallthru
        _
      // Predicated region
      $region73: #{double_conv_forward.4} parent=67 // pred_check
        %p4856 = pneg %p310
      $region74: #{double_conv_forward.4} parent=67 // pred_check_branch
        %4858 = sbr.rel (%p4856) target = $region76
      $region75: #{double_conv_forward.4} parent=67 // pred_region
        %p4859 = scmp.lt.s32.totalorder %s28, 1
        %s4860 = scalar_select %p4859, %s28, 1
        %p4861 = scmp.lt.s32.totalorder %s29, 0
        %s4862 = scalar_select %p4861, %s29, 0
        %s4863 = sadd.s32 %s4862, %s4860
        %s4864 = smul.addr %s4863, 2
        %s4865 = scalar_lea.vmem %s10, %s4864
      $region76: #{double_conv_forward.4} parent=67 // pred_fallthru
        _
    $region68: #{double_conv_forward.4} parent=5 // pred_fallthru
      _
  $region6: #{double_conv_forward.4} parent=0 // loop_footer
    %s21 = sadd.s32 1, %s17
  $region7: #{double_conv_forward.4} parent=0 // loop_footer_branch
    %16 = sbr.rel target = $region3
  $region8: #{double_conv_forward.4} parent=0 // loop_exit
    _

</llo_original>
